<compile_context>
chip_gen: v6e
topology: v6e:2x2x1
jax: 0.10.0
libtpu: 0.0.40
codegen_flags: <defaults>
</compile_context>

<pallas_src>
import functools

import jax
import jax.numpy as jnp
from jax import lax
from jax.experimental import pallas as pl
from jax.experimental.pallas import tpu as pltpu

BN_EPS = 1e-5
LANE = 128
VMEM_LIMIT = 32 * 1024 * 1024  # safe scoped-VMEM budget across v5e / v6e / v7x


def _round_up(x, m):
    return (x + m - 1) // m * m


def _pick_divisor(n, candidates):
    for c in candidates:
        if n % c == 0:
            return c
    return None


# --------------------- 1x1 conv: tiled matmul + fused BN stats ---------------

def _mm_epilogue(acc, o_ref, psum_ref, psq_ref):
    o_ref[...] = acc
    psum_ref[...] = jnp.sum(acc, axis=0, keepdims=True)[None]
    psq_ref[...] = jnp.sum(acc * acc, axis=0, keepdims=True)[None]


def _mm_stats_kernel(x_ref, w_ref, o_ref, psum_ref, psq_ref, acc_ref):
    k = pl.program_id(2)

    @pl.when(k == 0)
    def _():
        acc_ref[...] = jnp.zeros_like(acc_ref)

    # x_ref is already bf16 -> no per-step cast.
    acc_ref[...] += jnp.dot(x_ref[...], w_ref[...],
                            preferred_element_type=jnp.float32)

    @pl.when(k == pl.num_programs(2) - 1)
    def _():
        _mm_epilogue(acc_ref[...], o_ref, psum_ref, psq_ref)


def _mm_affine_stats_kernel(y_ref, s_ref, b_ref, w_ref, o_ref, psum_ref,
                            psq_ref, acc_ref, *, m_valid, tm):
    """1x1 conv with the previous BN affine + ReLU fused into the prologue."""
    k = pl.program_id(2)

    @pl.when(k == 0)
    def _():
        acc_ref[...] = jnp.zeros_like(acc_ref)

    a = jnp.maximum(y_ref[...] * s_ref[...] + b_ref[...], 0.0)
    if m_valid is not None:
        # zero padded rows so BN stats (and padded outputs) stay exact
        rows = (pl.program_id(0) * tm
                + lax.broadcasted_iota(jnp.int32, a.shape, 0))
        a = jnp.where(rows < m_valid, a, 0.0)
    acc_ref[...] += jnp.dot(a.astype(jnp.bfloat16), w_ref[...],
                            preferred_element_type=jnp.float32)

    @pl.when(k == pl.num_programs(2) - 1)
    def _():
        _mm_epilogue(acc_ref[...], o_ref, psum_ref, psq_ref)


def matmul_stats_pallas(x2, w, scale=None, shift=None):
    """(M, K) @ (K, Co) bf16 -> y (M, Co) f32, colsum (1, Co), colsumsq (1, Co).

    If scale/shift are given, the A operand is mapped through relu(x*scale+shift)
    (fused BN affine + ReLU prologue) and cast to bf16 in-kernel; otherwise x2
    must already be bf16.  K, Co are channel-padded multiples of 128.
    """
    M, K = x2.shape
    Co = w.shape[1]
    assert K % LANE == 0 and Co % LANE == 0
    if scale is None:
        assert x2.dtype == jnp.bfloat16
    else:
        assert x2.dtype == jnp.float32

    Mp = _round_up(M, LANE)
    if Mp != M:
        x2 = jnp.pad(x2, ((0, Mp - M), (0, 0)))
    tm = _pick_divisor(Mp, (1024, 512, 256, 128))
    tn = _pick_divisor(Co, (256, 128))
    tk = _pick_divisor(K, (512, 256, 128))
    nm, nn, nk = Mp // tm, Co // tn, K // tk

    x_spec = pl.BlockSpec((tm, tk), lambda i, j, k: (i, k))
    w_spec = pl.BlockSpec((tk, tn), lambda i, j, k: (k, j))
    vec_spec = pl.BlockSpec((1, tk), lambda i, j, k: (0, k))

    if scale is None:
        kern = _mm_stats_kernel
        in_specs = [x_spec, w_spec]
        args = (x2, w)
    else:
        m_valid = M if Mp != M else None
        kern = functools.partial(_mm_affine_stats_kernel, m_valid=m_valid, tm=tm)
        in_specs = [x_spec, vec_spec, vec_spec, w_spec]
        args = (x2, scale, shift, w)

    y, psum, psq = pl.pallas_call(
        kern,
        grid=(nm, nn, nk),
        in_specs=in_specs,
        out_specs=[pl.BlockSpec((tm, tn), lambda i, j, k: (i, j)),
                   pl.BlockSpec((1, 1, tn), lambda i, j, k: (i, 0, j)),
                   pl.BlockSpec((1, 1, tn), lambda i, j, k: (i, 0, j))],
        out_shape=[jax.ShapeDtypeStruct((Mp, Co), jnp.float32),
                   jax.ShapeDtypeStruct((nm, 1, Co), jnp.float32),
                   jax.ShapeDtypeStruct((nm, 1, Co), jnp.float32)],
        scratch_shapes=[pltpu.VMEM((tm, tn), jnp.float32)],
        compiler_params=pltpu.CompilerParams(
            dimension_semantics=("parallel", "parallel", "arbitrary"),
            vmem_limit_bytes=VMEM_LIMIT),
    )(*args)
    if Mp != M:
        y = y[:M]
    return y, jnp.sum(psum, axis=0), jnp.sum(psq, axis=0)


def _same_pad_1d(size, k, s):
    # SamePadConvNd convention (videogpt): extra padding on the low-index side.
    if size % s == 0:
        p = max(k - s, 0)
    else:
        p = max(k - size % s, 0)
    return (p // 2 + p % 2, p // 2)


def conv1x1_stats(x_nhwc, w, stride):
    """SamePadConvNd 1x1 (bias=False) on a bf16 NHWC input + fused stats."""
    if stride > 1:  # k=1 SAME padding == plain subsampling
        x_nhwc = x_nhwc[:, ::stride, ::stride, :]
    N, H, W, Cp = x_nhwc.shape
    M = N * H * W
    y2, ps, pq = matmul_stats_pallas(x_nhwc.reshape(M, Cp), w)
    return y2.reshape(N, H, W, -1), ps, pq, M


def conv1x1_affine_stats(y_nhwc, scale, shift, w):
    """1x1 conv applied to relu(y*scale+shift) (fused prologue) + fused stats."""
    N, H, W, Cp = y_nhwc.shape
    M = N * H * W
    y2, ps, pq = matmul_stats_pallas(y_nhwc.reshape(M, Cp), w, scale, shift)
    return y2.reshape(N, H, W, -1), ps, pq, M


# --------------------- 3x3 conv: in-kernel im2col + fused BN stats -----------

def _conv3x3_stats_kernel(xm_ref, xh_ref, w_ref, o_ref, psum_ref, psq_ref,
                          xe_ref, *, kh, kw, stride, th, wo, ho_valid):
    cin = xm_ref.shape[-1]
    tn = o_ref.shape[-1]
    # assemble row tile + 2-row halo once per grid step (cheap VMEM copy)
    xe_ref[:, :th] = xm_ref[...]
    xe_ref[:, th:] = xh_ref[...]
    acc = jnp.zeros((th * wo, tn), jnp.float32)
    # TODO(synk): the dj//stride column shift still causes a sublane relayout per
    #             tap; a width-padded / dot_general formulation would avoid it.
    for di in range(kh):
        for dj in range(kw):
            phase = (di % stride) * stride + (dj % stride)
            r0, c0 = di // stride, dj // stride
            win = xe_ref[phase, r0:r0 + th, c0:c0 + wo, :]   # (th, wo, cin) bf16
            acc = acc + jnp.dot(win.reshape(th * wo, cin),
                                w_ref[di * kw + dj],
                                preferred_element_type=jnp.float32)
    o_ref[...] = acc.reshape(1, th, wo, tn)
    if ho_valid is not None:   # mask ragged output rows out of the BN stats
        rows = (pl.program_id(1) * th
                + lax.broadcasted_iota(jnp.int32, (th * wo, 1), 0) // wo)
        acc = jnp.where(rows < ho_valid, acc, 0.0)
    psum_ref[...] = jnp.sum(acc, axis=0, keepdims=True)[None]
    psq_ref[...] = jnp.sum(acc * acc, axis=0, keepdims=True)[None]


def conv3x3_stats(a_nhwc, w_taps, stride):
    """SamePadConvNd 3x3 (bias=False) over a bf16 NHWC input + fused BN stats.

    w_taps: (9, Cin_p, Co_p) bf16, tap-major (di*3 + dj).  The (already
    activated, already bf16) input is phase-split for the stride at the JAX
    level; the kernel is tiled over (batch, output-row tile, Cout tile) with a
    2-row halo operand so VMEM stays bounded at large H*W (v7x / v5e budgets).
    """
    kh = kw = 3
    N, H, W, Cp = a_nhwc.shape
    T, Cin_p, Co_p = w_taps.shape
    s = stride
    ph = _same_pad_1d(H, kh, s)
    pw = _same_pad_1d(W, kw, s)
    xp = jnp.pad(a_nhwc, ((0, 0), ph, pw, (0, 0)))
    Hp, Wp = H + ph[0] + ph[1], W + pw[0] + pw[1]
    Ho = (Hp - kh) // s + 1
    Wo = (Wp - kw) // s + 1
    Wph = -(-Wp // s)

    # output-row tiling (even tile so the 2-row halo block is block-indexable)
    th = _pick_divisor(Ho, (8, 4, 2)) or (8 if Ho >= 8 else 2)
    nb = -(-Ho // th)
    rows_tot = nb * th + 2
    ho_valid = None if nb * th == Ho else Ho

    s2 = s * s
    phases = []
    for p in range(s):
        for q in range(s):
            xq = xp[:, p::s, q::s, :]
            xq = jnp.pad(xq, ((0, 0), (0, rows_tot - xq.shape[1]),
                              (0, Wph - xq.shape[2]), (0, 0)))
            phases.append(xq)
    xph = jnp.stack(phases, axis=1).reshape(N * s2, rows_tot, Wph, Cp)

    tn = _pick_divisor(Co_p, (256, 128))
    kern = functools.partial(_conv3x3_stats_kernel, kh=kh, kw=kw, stride=s,
                             th=th, wo=Wo, ho_valid=ho_valid)
    y, psum, psq = pl.pallas_call(
        kern,
        grid=(N, nb, Co_p // tn),
        in_specs=[
            pl.BlockSpec((s2, th, Wph, Cp), lambda n, i, j: (n, i, 0, 0)),
            pl.BlockSpec((s2, 2, Wph, Cp),
                         lambda n, i, j: (n, (i + 1) * (th // 2), 0, 0)),
            pl.BlockSpec((T, Cin_p, tn), lambda n, i, j: (0, 0, j)),
        ],
        out_specs=[
            pl.BlockSpec((1, th, Wo, tn), lambda n, i, j: (n, i, 0, j)),
            pl.BlockSpec((1, 1, tn), lambda n, i, j: (n * nb + i, 0, j)),
            pl.BlockSpec((1, 1, tn), lambda n, i, j: (n * nb + i, 0, j)),
        ],
        out_shape=[jax.ShapeDtypeStruct((N, nb * th, Wo, Co_p), jnp.float32),
                   jax.ShapeDtypeStruct((N * nb, 1, Co_p), jnp.float32),
                   jax.ShapeDtypeStruct((N * nb, 1, Co_p), jnp.float32)],
        scratch_shapes=[pltpu.VMEM((s2, th + 2, Wph, Cp), jnp.bfloat16)],
        compiler_params=pltpu.CompilerParams(
            dimension_semantics=("parallel", "parallel", "parallel"),
            vmem_limit_bytes=VMEM_LIMIT),
    )(xph, xph, w_taps)
    if nb * th != Ho:
        y = y[:, :Ho]
    return y, jnp.sum(psum, axis=0), jnp.sum(psq, axis=0), N * Ho * Wo


# ---------------------- fused elementwise residual epilogue -------------------

def _bn_relu_add_relu_kernel(y_ref, s_ref, b_ref, r_ref, o_ref):
    # out = relu( relu(bn3(y)) + residual )
    h = jnp.maximum(y_ref[...] * s_ref[...] + b_ref[...], 0.0)
    o_ref[...] = jnp.maximum(h + r_ref[...].astype(jnp.float32),
                             0.0).astype(o_ref.dtype)


def _bn_relu_proj_add_relu_kernel(y_ref, s_ref, b_ref, yp_ref, sp_ref, bp_ref,
                                  o_ref):
    # out = relu( relu(bn3(y)) + bn_proj(y_proj) )   (projection BN has no ReLU)
    h = jnp.maximum(y_ref[...] * s_ref[...] + b_ref[...], 0.0)
    sc = yp_ref[...] * sp_ref[...] + bp_ref[...]
    o_ref[...] = jnp.maximum(h + sc, 0.0).astype(o_ref.dtype)


def _row_tile(m, c):
    for t in (2048, 1024, 512, 256, 128, 64, 32, 16, 8):
        if m % t == 0 and t * c <= (1 << 19):
            return t
    return m   # TODO(synk): ragged M falls back to a single whole-array block.


def _elementwise_pallas(kernel, args, is_full, out_dtype):
    M, C = args[0].shape
    tme = _row_tile(M, C)
    in_specs = [pl.BlockSpec((tme, C), lambda i: (i, 0)) if full
                else pl.BlockSpec((1, C), lambda i: (0, 0)) for full in is_full]
    return pl.pallas_call(
        kernel,
        grid=(M // tme,),
        in_specs=in_specs,
        out_specs=pl.BlockSpec((tme, C), lambda i: (i, 0)),
        out_shape=jax.ShapeDtypeStruct((M, C), out_dtype),
        compiler_params=pltpu.CompilerParams(
            dimension_semantics=("parallel",),
            vmem_limit_bytes=VMEM_LIMIT),
    )(*args)


# ------------------------------ BN scale/shift --------------------------------

def _bn_scale_shift(psum, psq, gamma, beta, count):
    mean = psum / count
    var = jnp.maximum(psq / count - mean * mean, 0.0)
    scale = gamma * lax.rsqrt(var + BN_EPS)
    shift = beta - mean * scale
    return scale, shift


# --------------------------- param preparation --------------------------------

def _pad_axis(a, axis, target):
    pad = [(0, 0)] * a.ndim
    pad[axis] = (0, target - a.shape[axis])
    return jnp.pad(a, pad)


def _prep_w_1x1(w):
    _, _, cin, cout = w.shape
    w2 = w.reshape(cin, cout)
    w2 = _pad_axis(_pad_axis(w2, 0, _round_up(cin, LANE)), 1,
                   _round_up(cout, LANE))
    return w2.astype(jnp.bfloat16)


def _prep_w_3x3(w):
    kh, kw, cin, cout = w.shape
    w2 = _pad_axis(_pad_axis(w, 2, _round_up(cin, LANE)), 3,
                   _round_up(cout, LANE))
    return w2.reshape(kh * kw, w2.shape[2], w2.shape[3]).astype(jnp.bfloat16)


def _prep_vec(v):
    return _pad_axis(v, 0, _round_up(v.shape[0], LANE)).reshape(1, -1).astype(
        jnp.float32)


def prepare_block_params(p):
    q = {
        "w1": _prep_w_1x1(p["w1"]), "g1": _prep_vec(p["g1"]), "b1": _prep_vec(p["b1"]),
        "w2": _prep_w_3x3(p["w2"]), "g2": _prep_vec(p["g2"]), "b2": _prep_vec(p["b2"]),
        "w3": _prep_w_1x1(p["w3"]), "g3": _prep_vec(p["g3"]), "b3": _prep_vec(p["b3"]),
    }
    if "proj_w" in p:
        q["proj_w"] = _prep_w_1x1(p["proj_w"])
        q["proj_gamma"] = _prep_vec(p["proj_gamma"])
        q["proj_beta"] = _prep_vec(p["proj_beta"])
    return q


def prepare_block_group_params(params):
    # Done ONCE, outside the jitted forward, so weights are not re-padded /
    # re-cast on every call.
    return [prepare_block_params(p) for p in params]


# -------------------------- BottleneckBlock / group ---------------------------

def bottleneck_forward(x_nhwc, p, stride, use_projection):
    """x_nhwc: (N,H,W,Cp) bf16 -> (N,H/stride,W/stride,4f_p) bf16."""
    # conv1 (1x1, stride 1) + fused per-channel stats
    y1, ps1, pq1, m1 = conv1x1_stats(x_nhwc, p["w1"], 1)
    sc1, sh1 = _bn_scale_shift(ps1, pq1, p["g1"], p["b1"], m1)
    # bnr1 affine+ReLU + bf16 cast folded into the phase-split feeding conv2
    # (zero padding is applied AFTER the activation -> halo stays exactly zero).
    a1 = jnp.maximum(y1 * sc1 + sh1, 0.0).astype(jnp.bfloat16)

    # conv2 (3x3, stride) + fused stats
    y2, ps2, pq2, m2 = conv3x3_stats(a1, p["w2"], stride)
    sc2, sh2 = _bn_scale_shift(ps2, pq2, p["g2"], p["b2"], m2)

    # conv3 (1x1, stride 1): bnr2 affine+ReLU fused into the matmul prologue
    y3, ps3, pq3, m3 = conv1x1_affine_stats(y2, sc2, sh2, p["w3"])
    sc3, sh3 = _bn_scale_shift(ps3, pq3, p["g3"], p["b3"], m3)
    out_shape_nhwc = y3.shape
    y3f = y3.reshape(m3, -1)

    # fused epilogue: relu(bn3 affine) + shortcut (+ projection BN) + relu, bf16 out
    if use_projection:
        yp, psp, pqp, mp_ = conv1x1_stats(x_nhwc, p["proj_w"], stride)
        scp, shp = _bn_scale_shift(psp, pqp, p["proj_gamma"], p["proj_beta"], mp_)
        out = _elementwise_pallas(
            _bn_relu_proj_add_relu_kernel,
            (y3f, sc3, sh3, yp.reshape(mp_, -1), scp, shp),
            (True, False, False, True, False, False), jnp.bfloat16)
    else:
        out = _elementwise_pallas(
            _bn_relu_add_relu_kernel,
            (y3f, sc3, sh3, x_nhwc.reshape(m3, -1)),
            (True, False, False, True), jnp.bfloat16)
    return out.reshape(out_shape_nhwc)


def init_bottleneck_params(key, in_channels, filters, use_projection):
    f_out = 4 * filters
    keys = jax.random.split(key, 4)

    def conv_w(k, kh, kw, cin, cout):
        fan_in = kh * kw * cin
        return (jax.random.normal(k, (kh, kw, cin, cout), jnp.float32)
                / jnp.sqrt(fan_in))

    p = {
        "w1": conv_w(keys[0], 1, 1, in_channels, filters),
        "g1": jnp.ones((filters,), jnp.float32),
        "b1": jnp.zeros((filters,), jnp.float32),
        "w2": conv_w(keys[1], 3, 3, filters, filters),
        "g2": jnp.ones((filters,), jnp.float32),
        "b2": jnp.zeros((filters,), jnp.float32),
        "w3": conv_w(keys[2], 1, 1, filters, f_out),
        "g3": jnp.ones((f_out,), jnp.float32),
        "b3": jnp.zeros((f_out,), jnp.float32),
    }
    if use_projection:
        p["proj_w"] = conv_w(keys[3], 1, 1, in_channels, f_out)
        p["proj_gamma"] = jnp.ones((f_out,), jnp.float32)
        p["proj_beta"] = jnp.zeros((f_out,), jnp.float32)
    return p


def init_block_group_params(key, in_channels, filters, blocks):
    keys = jax.random.split(key, blocks)
    params = [init_bottleneck_params(keys[0], in_channels, filters, True)]
    in_c = 4 * filters
    for i in range(1, blocks):
        params.append(init_bottleneck_params(keys[i], in_c, filters, False))
    return params


def block_group_forward(x_nchw, prepped, stride, c_out):
    # NCHW (PyTorch) -> NHWC bf16, channels zero-padded to a multiple of 128.
    x = jnp.transpose(x_nchw, (0, 2, 3, 1))
    x = _pad_axis(x, 3, _round_up(x.shape[-1], LANE)).astype(jnp.bfloat16)
    x = bottleneck_forward(x, prepped[0], stride, True)
    for q in prepped[1:]:
        x = bottleneck_forward(x, q, 1, False)
    x = x[..., :c_out].astype(jnp.float32)
    return jnp.transpose(x, (0, 3, 1, 2))


# ------------------------------ pure-JAX reference ----------------------------
# Convs cast inputs/weights to bf16 (f32 accumulation) to match MXU precision;
# inter-block activations are rounded to bf16 to mirror the kernel's bf16
# activation storage; all BN / residual math is f32.

def _ref_conv(x, w, stride):
    _, H, W, _ = x.shape
    kh, kw = w.shape[0], w.shape[1]
    ph = _same_pad_1d(H, kh, stride)
    pw = _same_pad_1d(W, kw, stride)
    return lax.conv_general_dilated(
        x.astype(jnp.bfloat16), w.astype(jnp.bfloat16), (stride, stride),
        [ph, pw], dimension_numbers=("NHWC", "HWIO", "NHWC"),
        preferred_element_type=jnp.float32)


def _ref_norm_relu(x, gamma, beta, relu=True):
    mean = jnp.mean(x, axis=(0, 1, 2))
    var = jnp.mean((x - mean) ** 2, axis=(0, 1, 2))
    y = (x - mean) * lax.rsqrt(var + BN_EPS) * gamma + beta
    return jnp.maximum(y, 0.0) if relu else y


def _ref_bottleneck(x, p, stride, use_projection):
    shortcut = x
    if use_projection:
        shortcut = _ref_norm_relu(_ref_conv(x, p["proj_w"], stride),
                                  p["proj_gamma"], p["proj_beta"], False)
    h = _ref_norm_relu(_ref_conv(x, p["w1"], 1), p["g1"], p["b1"], True)
    h = _ref_norm_relu(_ref_conv(h, p["w2"], stride), p["g2"], p["b2"], True)
    h = _ref_norm_relu(_ref_conv(h, p["w3"], 1), p["g3"], p["b3"], True)
    return jnp.maximum(h + shortcut, 0.0)


def _ref_block_group(x_nchw, params, stride):
    x = jnp.transpose(x_nchw, (0, 2, 3, 1)).astype(jnp.float32)
    x = _ref_bottleneck(x, params[0], stride, True)
    x = x.astype(jnp.bfloat16).astype(jnp.float32)   # model bf16 block storage
    for p in params[1:]:
        x = _ref_bottleneck(x, p, 1, False)
        x = x.astype(jnp.bfloat16).astype(jnp.float32)
    return jnp.transpose(x, (0, 3, 1, 2))


# ----------------------------------- main --------------------------------------

if __name__ == "__main__":
    key = jax.random.PRNGKey(0)
    kx, kp = jax.random.split(key)

    # BlockGroup(n_dim=2, in_channels=4, filters=4, block_fn=BottleneckBlock,
    #            blocks=2, stride=2, norm_type='bn')
    N, Cin, H, W = 2, 4, 16, 16
    filters, blocks, stride = 4, 2, 2
    c_out = 4 * filters

    x = jax.random.normal(kx, (N, Cin, H, W), jnp.float32)
    params = init_block_group_params(kp, Cin, filters, blocks)
    prepped = prepare_block_group_params(params)   # once, outside jit

    fwd = jax.jit(block_group_forward, static_argnums=(2, 3))
    out = jax.block_until_ready(fwd(x, prepped, stride, c_out))
    ref = jax.block_until_ready(_ref_block_group(x, params, stride))

    assert out.shape == (N, c_out, H // stride, W // stride), out.shape
    max_err = float(jnp.max(jnp.abs(out - ref)))
    assert jnp.allclose(out, ref, atol=1e-2, rtol=1e-2), max_err

    print("KERNEL_OK")
</pallas_src>

<mosaic_0001>
module attributes {stable_mosaic.version = 11 : i64} {
  func.func @_mm_stats_kernel(%arg0: i32, %arg1: i32, %arg2: i32, %arg3: memref<128x128xbf16, #tpu.memory_space<vmem>>, %arg4: memref<128x128xbf16, #tpu.memory_space<vmem>>, %arg5: memref<128x128xf32, #tpu.memory_space<vmem>>, %arg6: memref<1x1x128xf32, #tpu.memory_space<vmem>>, %arg7: memref<1x1x128xf32, #tpu.memory_space<vmem>>, %arg8: memref<128x128xf32, #tpu.memory_space<vmem>>) attributes {dimension_semantics = [#tpu.dimension_semantics<parallel>, #tpu.dimension_semantics<parallel>, #tpu.dimension_semantics<arbitrary>], iteration_bounds = array<i64: 1, 1, 1>, scalar_prefetch = 0 : i64, scratch_operands = 1 : i64, tpu.core_type = #tpu.core_type<tc>, window_params = [{transform_indices = @transform_0, window_bounds = array<i64: 128, 128>}, {transform_indices = @transform_1, window_bounds = array<i64: 128, 128>}, {transform_indices = @transform_2, window_bounds = array<i64: 128, 128>}, {transform_indices = @transform_3, window_bounds = array<i64: 1, 1, 128>}, {transform_indices = @transform_4, window_bounds = array<i64: 1, 1, 128>}]} {
    %c0_i32 = arith.constant 0 : i32
    %0 = arith.cmpi eq, %arg2, %c0_i32 : i32
    %1 = arith.extui %0 : i1 to i32
    %c0_i32_0 = arith.constant 0 : i32
    %2 = arith.cmpi ne, %1, %c0_i32_0 : i32
    scf.if %2 {
      %cst_10 = arith.constant 0.000000e+00 : f32
      %12 = vector.broadcast %cst_10 : f32 to vector<128x128xf32>
      %c0_11 = arith.constant 0 : index
      %c0_12 = arith.constant 0 : index
      %13 = vector.load %arg8[%c0_11, %c0_12] : memref<128x128xf32, #tpu.memory_space<vmem>>, vector<128x128xf32>
      tpu.vector_store %arg8[%c0_11, %c0_12], %12 {strides = array<i32>} : memref<128x128xf32, #tpu.memory_space<vmem>>, vector<128x128xf32>,
    } else {
    }
    %c0 = arith.constant 0 : index
    %c0_1 = arith.constant 0 : index
    %3 = vector.load %arg8[%c0, %c0_1] : memref<128x128xf32, #tpu.memory_space<vmem>>, vector<128x128xf32>
    %c0_2 = arith.constant 0 : index
    %c0_3 = arith.constant 0 : index
    %4 = vector.load %arg3[%c0_2, %c0_3] : memref<128x128xbf16, #tpu.memory_space<vmem>>, vector<128x128xbf16>
    %c0_4 = arith.constant 0 : index
    %c0_5 = arith.constant 0 : index
    %5 = vector.load %arg4[%c0_4, %c0_5] : memref<128x128xbf16, #tpu.memory_space<vmem>>, vector<128x128xbf16>
    %cst = arith.constant dense<0.000000e+00> : vector<128x128xf32>
    %6 = tpu.matmul %4, %5, %cst {dimension_numbers = #tpu.dot_dimension_numbers<[1], [0], [0], [1], [0, 0, 1, 1], [], []>} : vector<128x128xbf16>, vector<128x128xbf16>, vector<128x128xf32> -> vector<128x128xf32>
    %7 = arith.addf %3, %6 : vector<128x128xf32>
    %c0_6 = arith.constant 0 : index
    %c0_7 = arith.constant 0 : index
    %8 = vector.load %arg8[%c0_6, %c0_7] : memref<128x128xf32, #tpu.memory_space<vmem>>, vector<128x128xf32>
    tpu.vector_store %arg8[%c0_6, %c0_7], %7 {strides = array<i32>} : memref<128x128xf32, #tpu.memory_space<vmem>>, vector<128x128xf32>,
    %c0_i32_8 = arith.constant 0 : i32
    %9 = arith.cmpi eq, %arg2, %c0_i32_8 : i32
    %10 = arith.extui %9 : i1 to i32
    %c0_i32_9 = arith.constant 0 : i32
    %11 = arith.cmpi ne, %10, %c0_i32_9 : i32
    scf.if %11 {
      %c0_10 = arith.constant 0 : index
      %c0_11 = arith.constant 0 : index
      %12 = vector.load %arg8[%c0_10, %c0_11] : memref<128x128xf32, #tpu.memory_space<vmem>>, vector<128x128xf32>
      %c0_12 = arith.constant 0 : index
      %c0_13 = arith.constant 0 : index
      %13 = vector.load %arg5[%c0_12, %c0_13] : memref<128x128xf32, #tpu.memory_space<vmem>>, vector<128x128xf32>
      tpu.vector_store %arg5[%c0_12, %c0_13], %12 {strides = array<i32>} : memref<128x128xf32, #tpu.memory_space<vmem>>, vector<128x128xf32>,
      %cst_14 = arith.constant dense<0.000000e+00> : vector<128xf32>
      %14 = vector.multi_reduction <add>, %12, %cst_14 [0] : vector<128x128xf32> to vector<128xf32>
      %15 = vector.shape_cast %14 : vector<128xf32> to vector<1x128xf32>
      %16 = vector.shape_cast %15 : vector<1x128xf32> to vector<1x1x128xf32>
      %c0_15 = arith.constant 0 : index
      %c0_16 = arith.constant 0 : index
      %c0_17 = arith.constant 0 : index
      %17 = vector.load %arg6[%c0_15, %c0_16, %c0_17] : memref<1x1x128xf32, #tpu.memory_space<vmem>>, vector<1x1x128xf32>
      tpu.vector_store %arg6[%c0_15, %c0_16, %c0_17], %16 {strides = array<i32>} : memref<1x1x128xf32, #tpu.memory_space<vmem>>, vector<1x1x128xf32>,
      %18 = arith.mulf %12, %12 : vector<128x128xf32>
      %cst_18 = arith.constant dense<0.000000e+00> : vector<128xf32>
      %19 = vector.multi_reduction <add>, %18, %cst_18 [0] : vector<128x128xf32> to vector<128xf32>
      %20 = vector.shape_cast %19 : vector<128xf32> to vector<1x128xf32>
      %21 = vector.shape_cast %20 : vector<1x128xf32> to vector<1x1x128xf32>
      %c0_19 = arith.constant 0 : index
      %c0_20 = arith.constant 0 : index
      %c0_21 = arith.constant 0 : index
      %22 = vector.load %arg7[%c0_19, %c0_20, %c0_21] : memref<1x1x128xf32, #tpu.memory_space<vmem>>, vector<1x1x128xf32>
      tpu.vector_store %arg7[%c0_19, %c0_20, %c0_21], %21 {strides = array<i32>} : memref<1x1x128xf32, #tpu.memory_space<vmem>>, vector<1x1x128xf32>,
    } else {
    }
    return
  }
  func.func @transform_0(%arg0: i32, %arg1: i32, %arg2: i32) -> (i32, i32) {
    %c0_i32 = arith.constant 0 : i32
    return %arg0, %arg2 : i32, i32
  }
  func.func @transform_1(%arg0: i32, %arg1: i32, %arg2: i32) -> (i32, i32) {
    %c0_i32 = arith.constant 0 : i32
    return %arg2, %arg1 : i32, i32
  }
  func.func @transform_2(%arg0: i32, %arg1: i32, %arg2: i32) -> (i32, i32) {
    %c0_i32 = arith.constant 0 : i32
    return %arg0, %arg1 : i32, i32
  }
  func.func @transform_3(%arg0: i32, %arg1: i32, %arg2: i32) -> (i32, i32, i32) {
    %c0_i32 = arith.constant 0 : i32
    %c0_i32_0 = arith.constant 0 : i32
    return %arg0, %c0_i32, %arg1 : i32, i32, i32
  }
  func.func @transform_4(%arg0: i32, %arg1: i32, %arg2: i32) -> (i32, i32, i32) {
    %c0_i32 = arith.constant 0 : i32
    %c0_i32_0 = arith.constant 0 : i32
    return %arg0, %c0_i32, %arg1 : i32, i32, i32
  }
}

module attributes {stable_mosaic.version = 11 : i64} {
  func.func @_mm_stats_kernel(%arg0: i32, %arg1: i32, %arg2: i32, %arg3: memref<512x128xbf16, #tpu.memory_space<vmem>>, %arg4: memref<128x128xbf16, #tpu.memory_space<vmem>>, %arg5: memref<512x128xf32, #tpu.memory_space<vmem>>, %arg6: memref<1x1x128xf32, #tpu.memory_space<vmem>>, %arg7: memref<1x1x128xf32, #tpu.memory_space<vmem>>, %arg8: memref<512x128xf32, #tpu.memory_space<vmem>>) attributes {dimension_semantics = [#tpu.dimension_semantics<parallel>, #tpu.dimension_semantics<parallel>, #tpu.dimension_semantics<arbitrary>], iteration_bounds = array<i64: 1, 1, 1>, scalar_prefetch = 0 : i64, scratch_operands = 1 : i64, tpu.core_type = #tpu.core_type<tc>, window_params = [{transform_indices = @transform_0, window_bounds = array<i64: 512, 128>}, {transform_indices = @transform_1, window_bounds = array<i64: 128, 128>}, {transform_indices = @transform_2, window_bounds = array<i64: 512, 128>}, {transform_indices = @transform_3, window_bounds = array<i64: 1, 1, 128>}, {transform_indices = @transform_4, window_bounds = array<i64: 1, 1, 128>}]} {
    %c0_i32 = arith.constant 0 : i32
    %0 = arith.cmpi eq, %arg2, %c0_i32 : i32
    %1 = arith.extui %0 : i1 to i32
    %c0_i32_0 = arith.constant 0 : i32
    %2 = arith.cmpi ne, %1, %c0_i32_0 : i32
    scf.if %2 {
      %cst_10 = arith.constant 0.000000e+00 : f32
      %12 = vector.broadcast %cst_10 : f32 to vector<512x128xf32>
      %c0_11 = arith.constant 0 : index
      %c0_12 = arith.constant 0 : index
      %13 = vector.load %arg8[%c0_11, %c0_12] : memref<512x128xf32, #tpu.memory_space<vmem>>, vector<512x128xf32>
      tpu.vector_store %arg8[%c0_11, %c0_12], %12 {strides = array<i32>} : memref<512x128xf32, #tpu.memory_space<vmem>>, vector<512x128xf32>,
    } else {
    }
    %c0 = arith.constant 0 : index
    %c0_1 = arith.constant 0 : index
    %3 = vector.load %arg8[%c0, %c0_1] : memref<512x128xf32, #tpu.memory_space<vmem>>, vector<512x128xf32>
    %c0_2 = arith.constant 0 : index
    %c0_3 = arith.constant 0 : index
    %4 = vector.load %arg3[%c0_2, %c0_3] : memref<512x128xbf16, #tpu.memory_space<vmem>>, vector<512x128xbf16>
    %c0_4 = arith.constant 0 : index
    %c0_5 = arith.constant 0 : index
    %5 = vector.load %arg4[%c0_4, %c0_5] : memref<128x128xbf16, #tpu.memory_space<vmem>>, vector<128x128xbf16>
    %cst = arith.constant dense<0.000000e+00> : vector<512x128xf32>
    %6 = tpu.matmul %4, %5, %cst {dimension_numbers = #tpu.dot_dimension_numbers<[1], [0], [0], [1], [0, 0, 1, 1], [], []>} : vector<512x128xbf16>, vector<128x128xbf16>, vector<512x128xf32> -> vector<512x128xf32>
    %7 = arith.addf %3, %6 : vector<512x128xf32>
    %c0_6 = arith.constant 0 : index
    %c0_7 = arith.constant 0 : index
    %8 = vector.load %arg8[%c0_6, %c0_7] : memref<512x128xf32, #tpu.memory_space<vmem>>, vector<512x128xf32>
    tpu.vector_store %arg8[%c0_6, %c0_7], %7 {strides = array<i32>} : memref<512x128xf32, #tpu.memory_space<vmem>>, vector<512x128xf32>,
    %c0_i32_8 = arith.constant 0 : i32
    %9 = arith.cmpi eq, %arg2, %c0_i32_8 : i32
    %10 = arith.extui %9 : i1 to i32
    %c0_i32_9 = arith.constant 0 : i32
    %11 = arith.cmpi ne, %10, %c0_i32_9 : i32
    scf.if %11 {
      %c0_10 = arith.constant 0 : index
      %c0_11 = arith.constant 0 : index
      %12 = vector.load %arg8[%c0_10, %c0_11] : memref<512x128xf32, #tpu.memory_space<vmem>>, vector<512x128xf32>
      %c0_12 = arith.constant 0 : index
      %c0_13 = arith.constant 0 : index
      %13 = vector.load %arg5[%c0_12, %c0_13] : memref<512x128xf32, #tpu.memory_space<vmem>>, vector<512x128xf32>
      tpu.vector_store %arg5[%c0_12, %c0_13], %12 {strides = array<i32>} : memref<512x128xf32, #tpu.memory_space<vmem>>, vector<512x128xf32>,
      %cst_14 = arith.constant dense<0.000000e+00> : vector<128xf32>
      %14 = vector.multi_reduction <add>, %12, %cst_14 [0] : vector<512x128xf32> to vector<128xf32>
      %15 = vector.shape_cast %14 : vector<128xf32> to vector<1x128xf32>
      %16 = vector.shape_cast %15 : vector<1x128xf32> to vector<1x1x128xf32>
      %c0_15 = arith.constant 0 : index
      %c0_16 = arith.constant 0 : index
      %c0_17 = arith.constant 0 : index
      %17 = vector.load %arg6[%c0_15, %c0_16, %c0_17] : memref<1x1x128xf32, #tpu.memory_space<vmem>>, vector<1x1x128xf32>
      tpu.vector_store %arg6[%c0_15, %c0_16, %c0_17], %16 {strides = array<i32>} : memref<1x1x128xf32, #tpu.memory_space<vmem>>, vector<1x1x128xf32>,
      %18 = arith.mulf %12, %12 : vector<512x128xf32>
      %cst_18 = arith.constant dense<0.000000e+00> : vector<128xf32>
      %19 = vector.multi_reduction <add>, %18, %cst_18 [0] : vector<512x128xf32> to vector<128xf32>
      %20 = vector.shape_cast %19 : vector<128xf32> to vector<1x128xf32>
      %21 = vector.shape_cast %20 : vector<1x128xf32> to vector<1x1x128xf32>
      %c0_19 = arith.constant 0 : index
      %c0_20 = arith.constant 0 : index
      %c0_21 = arith.constant 0 : index
      %22 = vector.load %arg7[%c0_19, %c0_20, %c0_21] : memref<1x1x128xf32, #tpu.memory_space<vmem>>, vector<1x1x128xf32>
      tpu.vector_store %arg7[%c0_19, %c0_20, %c0_21], %21 {strides = array<i32>} : memref<1x1x128xf32, #tpu.memory_space<vmem>>, vector<1x1x128xf32>,
    } else {
    }
    return
  }
  func.func @transform_0(%arg0: i32, %arg1: i32, %arg2: i32) -> (i32, i32) {
    %c0_i32 = arith.constant 0 : i32
    return %arg0, %arg2 : i32, i32
  }
  func.func @transform_1(%arg0: i32, %arg1: i32, %arg2: i32) -> (i32, i32) {
    %c0_i32 = arith.constant 0 : i32
    return %arg2, %arg1 : i32, i32
  }
  func.func @transform_2(%arg0: i32, %arg1: i32, %arg2: i32) -> (i32, i32) {
    %c0_i32 = arith.constant 0 : i32
    return %arg0, %arg1 : i32, i32
  }
  func.func @transform_3(%arg0: i32, %arg1: i32, %arg2: i32) -> (i32, i32, i32) {
    %c0_i32 = arith.constant 0 : i32
    %c0_i32_0 = arith.constant 0 : i32
    return %arg0, %c0_i32, %arg1 : i32, i32, i32
  }
  func.func @transform_4(%arg0: i32, %arg1: i32, %arg2: i32) -> (i32, i32, i32) {
    %c0_i32 = arith.constant 0 : i32
    %c0_i32_0 = arith.constant 0 : i32
    return %arg0, %c0_i32, %arg1 : i32, i32, i32
  }
}

module attributes {stable_mosaic.version = 11 : i64} {
  func.func @_mm_affine_stats_kernel(%arg0: i32, %arg1: i32, %arg2: i32, %arg3: memref<128x128xf32, #tpu.memory_space<vmem>>, %arg4: memref<1x128xf32, #tpu.memory_space<vmem>>, %arg5: memref<1x128xf32, #tpu.memory_space<vmem>>, %arg6: memref<128x128xbf16, #tpu.memory_space<vmem>>, %arg7: memref<128x128xf32, #tpu.memory_space<vmem>>, %arg8: memref<1x1x128xf32, #tpu.memory_space<vmem>>, %arg9: memref<1x1x128xf32, #tpu.memory_space<vmem>>, %arg10: memref<128x128xf32, #tpu.memory_space<vmem>>) attributes {dimension_semantics = [#tpu.dimension_semantics<parallel>, #tpu.dimension_semantics<parallel>, #tpu.dimension_semantics<arbitrary>], iteration_bounds = array<i64: 1, 1, 1>, scalar_prefetch = 0 : i64, scratch_operands = 1 : i64, tpu.core_type = #tpu.core_type<tc>, window_params = [{transform_indices = @transform_0, window_bounds = array<i64: 128, 128>}, {transform_indices = @transform_1, window_bounds = array<i64: 1, 128>}, {transform_indices = @transform_2, window_bounds = array<i64: 1, 128>}, {transform_indices = @transform_3, window_bounds = array<i64: 128, 128>}, {transform_indices = @transform_4, window_bounds = array<i64: 128, 128>}, {transform_indices = @transform_5, window_bounds = array<i64: 1, 1, 128>}, {transform_indices = @transform_6, window_bounds = array<i64: 1, 1, 128>}]} {
    %c0_i32 = arith.constant 0 : i32
    %0 = arith.cmpi eq, %arg2, %c0_i32 : i32
    %1 = arith.extui %0 : i1 to i32
    %c0_i32_0 = arith.constant 0 : i32
    %2 = arith.cmpi ne, %1, %c0_i32_0 : i32
    scf.if %2 {
      %cst_15 = arith.constant 0.000000e+00 : f32
      %21 = vector.broadcast %cst_15 : f32 to vector<128x128xf32>
      %c0_16 = arith.constant 0 : index
      %c0_17 = arith.constant 0 : index
      %22 = vector.load %arg10[%c0_16, %c0_17] : memref<128x128xf32, #tpu.memory_space<vmem>>, vector<128x128xf32>
      tpu.vector_store %arg10[%c0_16, %c0_17], %21 {strides = array<i32>} : memref<128x128xf32, #tpu.memory_space<vmem>>, vector<128x128xf32>,
    } else {
    }
    %c0 = arith.constant 0 : index
    %c0_1 = arith.constant 0 : index
    %3 = vector.load %arg3[%c0, %c0_1] : memref<128x128xf32, #tpu.memory_space<vmem>>, vector<128x128xf32>
    %c0_2 = arith.constant 0 : index
    %c0_3 = arith.constant 0 : index
    %4 = vector.load %arg4[%c0_2, %c0_3] : memref<1x128xf32, #tpu.memory_space<vmem>>, vector<1x128xf32>
    %5 = vector.broadcast %4 : vector<1x128xf32> to vector<128x128xf32>
    %6 = arith.mulf %3, %5 : vector<128x128xf32>
    %c0_4 = arith.constant 0 : index
    %c0_5 = arith.constant 0 : index
    %7 = vector.load %arg5[%c0_4, %c0_5] : memref<1x128xf32, #tpu.memory_space<vmem>>, vector<1x128xf32>
    %8 = vector.broadcast %7 : vector<1x128xf32> to vector<128x128xf32>
    %9 = arith.addf %6, %8 : vector<128x128xf32>
    %cst = arith.constant 0.000000e+00 : f32
    %10 = vector.broadcast %cst : f32 to vector<128x128xf32>
    %11 = arith.maximumf %9, %10 : vector<128x128xf32>
    %c0_6 = arith.constant 0 : index
    %c0_7 = arith.constant 0 : index
    %12 = vector.load %arg10[%c0_6, %c0_7] : memref<128x128xf32, #tpu.memory_space<vmem>>, vector<128x128xf32>
    %13 = arith.truncf %11 : vector<128x128xf32> to vector<128x128xbf16>
    %c0_8 = arith.constant 0 : index
    %c0_9 = arith.constant 0 : index
    %14 = vector.load %arg6[%c0_8, %c0_9] : memref<128x128xbf16, #tpu.memory_space<vmem>>, vector<128x128xbf16>
    %cst_10 = arith.constant dense<0.000000e+00> : vector<128x128xf32>
    %15 = tpu.matmul %13, %14, %cst_10 {dimension_numbers = #tpu.dot_dimension_numbers<[1], [0], [0], [1], [0, 0, 1, 1], [], []>} : vector<128x128xbf16>, vector<128x128xbf16>, vector<128x128xf32> -> vector<128x128xf32>
    %16 = arith.addf %12, %15 : vector<128x128xf32>
    %c0_11 = arith.constant 0 : index
    %c0_12 = arith.constant 0 : index
    %17 = vector.load %arg10[%c0_11, %c0_12] : memref<128x128xf32, #tpu.memory_space<vmem>>, vector<128x128xf32>
    tpu.vector_store %arg10[%c0_11, %c0_12], %16 {strides = array<i32>} : memref<128x128xf32, #tpu.memory_space<vmem>>, vector<128x128xf32>,
    %c0_i32_13 = arith.constant 0 : i32
    %18 = arith.cmpi eq, %arg2, %c0_i32_13 : i32
    %19 = arith.extui %18 : i1 to i32
    %c0_i32_14 = arith.constant 0 : i32
    %20 = arith.cmpi ne, %19, %c0_i32_14 : i32
    scf.if %20 {
      %c0_15 = arith.constant 0 : index
      %c0_16 = arith.constant 0 : index
      %21 = vector.load %arg10[%c0_15, %c0_16] : memref<128x128xf32, #tpu.memory_space<vmem>>, vector<128x128xf32>
      %c0_17 = arith.constant 0 : index
      %c0_18 = arith.constant 0 : index
      %22 = vector.load %arg7[%c0_17, %c0_18] : memref<128x128xf32, #tpu.memory_space<vmem>>, vector<128x128xf32>
      tpu.vector_store %arg7[%c0_17, %c0_18], %21 {strides = array<i32>} : memref<128x128xf32, #tpu.memory_space<vmem>>, vector<128x128xf32>,
      %cst_19 = arith.constant dense<0.000000e+00> : vector<128xf32>
      %23 = vector.multi_reduction <add>, %21, %cst_19 [0] : vector<128x128xf32> to vector<128xf32>
      %24 = vector.shape_cast %23 : vector<128xf32> to vector<1x128xf32>
      %25 = vector.shape_cast %24 : vector<1x128xf32> to vector<1x1x128xf32>
      %c0_20 = arith.constant 0 : index
      %c0_21 = arith.constant 0 : index
      %c0_22 = arith.constant 0 : index
      %26 = vector.load %arg8[%c0_20, %c0_21, %c0_22] : memref<1x1x128xf32, #tpu.memory_space<vmem>>, vector<1x1x128xf32>
      tpu.vector_store %arg8[%c0_20, %c0_21, %c0_22], %25 {strides = array<i32>} : memref<1x1x128xf32, #tpu.memory_space<vmem>>, vector<1x1x128xf32>,
      %27 = arith.mulf %21, %21 : vector<128x128xf32>
      %cst_23 = arith.constant dense<0.000000e+00> : vector<128xf32>
      %28 = vector.multi_reduction <add>, %27, %cst_23 [0] : vector<128x128xf32> to vector<128xf32>
      %29 = vector.shape_cast %28 : vector<128xf32> to vector<1x128xf32>
      %30 = vector.shape_cast %29 : vector<1x128xf32> to vector<1x1x128xf32>
      %c0_24 = arith.constant 0 : index
      %c0_25 = arith.constant 0 : index
      %c0_26 = arith.constant 0 : index
      %31 = vector.load %arg9[%c0_24, %c0_25, %c0_26] : memref<1x1x128xf32, #tpu.memory_space<vmem>>, vector<1x1x128xf32>
      tpu.vector_store %arg9[%c0_24, %c0_25, %c0_26], %30 {strides = array<i32>} : memref<1x1x128xf32, #tpu.memory_space<vmem>>, vector<1x1x128xf32>,
    } else {
    }
    return
  }
  func.func @transform_0(%arg0: i32, %arg1: i32, %arg2: i32) -> (i32, i32) {
    %c0_i32 = arith.constant 0 : i32
    return %arg0, %arg2 : i32, i32
  }
  func.func @transform_1(%arg0: i32, %arg1: i32, %arg2: i32) -> (i32, i32) {
    %c0_i32 = arith.constant 0 : i32
    %c0_i32_0 = arith.constant 0 : i32
    return %c0_i32, %arg2 : i32, i32
  }
  func.func @transform_2(%arg0: i32, %arg1: i32, %arg2: i32) -> (i32, i32) {
    %c0_i32 = arith.constant 0 : i32
    %c0_i32_0 = arith.constant 0 : i32
    return %c0_i32, %arg2 : i32, i32
  }
  func.func @transform_3(%arg0: i32, %arg1: i32, %arg2: i32) -> (i32, i32) {
    %c0_i32 = arith.constant 0 : i32
    return %arg2, %arg1 : i32, i32
  }
  func.func @transform_4(%arg0: i32, %arg1: i32, %arg2: i32) -> (i32, i32) {
    %c0_i32 = arith.constant 0 : i32
    return %arg0, %arg1 : i32, i32
  }
  func.func @transform_5(%arg0: i32, %arg1: i32, %arg2: i32) -> (i32, i32, i32) {
    %c0_i32 = arith.constant 0 : i32
    %c0_i32_0 = arith.constant 0 : i32
    return %arg0, %c0_i32, %arg1 : i32, i32, i32
  }
  func.func @transform_6(%arg0: i32, %arg1: i32, %arg2: i32) -> (i32, i32, i32) {
    %c0_i32 = arith.constant 0 : i32
    %c0_i32_0 = arith.constant 0 : i32
    return %arg0, %c0_i32, %arg1 : i32, i32, i32
  }
}

module attributes {stable_mosaic.version = 11 : i64} {
  func.func @_conv3x3_stats_kernel(%arg0: i32, %arg1: i32, %arg2: i32, %arg3: memref<4x8x9x128xbf16, #tpu.memory_space<vmem>>, %arg4: memref<4x2x9x128xbf16, #tpu.memory_space<vmem>>, %arg5: memref<9x128x128xbf16, #tpu.memory_space<vmem>>, %arg6: memref<1x8x8x128xf32, #tpu.memory_space<vmem>>, %arg7: memref<1x1x128xf32, #tpu.memory_space<vmem>>, %arg8: memref<1x1x128xf32, #tpu.memory_space<vmem>>, %arg9: memref<4x10x9x128xbf16, #tpu.memory_space<vmem>>) attributes {dimension_semantics = [#tpu.dimension_semantics<parallel>, #tpu.dimension_semantics<parallel>, #tpu.dimension_semantics<parallel>], iteration_bounds = array<i64: 2, 1, 1>, scalar_prefetch = 0 : i64, scratch_operands = 1 : i64, tpu.core_type = #tpu.core_type<tc>, window_params = [{transform_indices = @transform_0, window_bounds = array<i64: 4, 8, 9, 128>}, {transform_indices = @transform_1, window_bounds = array<i64: 4, 2, 9, 128>}, {transform_indices = @transform_2, window_bounds = array<i64: 9, 128, 128>}, {transform_indices = @transform_3, window_bounds = array<i64: 1, 8, 8, 128>}, {transform_indices = @transform_4, window_bounds = array<i64: 1, 1, 128>}, {transform_indices = @transform_5, window_bounds = array<i64: 1, 1, 128>}]} {
    %c0 = arith.constant 0 : index
    %c0_0 = arith.constant 0 : index
    %c0_1 = arith.constant 0 : index
    %c0_2 = arith.constant 0 : index
    %0 = vector.load %arg3[%c0, %c0_0, %c0_1, %c0_2] : memref<4x8x9x128xbf16, #tpu.memory_space<vmem>>, vector<4x8x9x128xbf16>
    %c0_3 = arith.constant 0 : index
    %c0_4 = arith.constant 0 : index
    %c0_5 = arith.constant 0 : index
    %c0_6 = arith.constant 0 : index
    %1 = vector.load %arg9[%c0_3, %c0_4, %c0_5, %c0_6] : memref<4x10x9x128xbf16, #tpu.memory_space<vmem>>, vector<4x8x9x128xbf16>
    tpu.vector_store %arg9[%c0_3, %c0_4, %c0_5, %c0_6], %0 {strides = array<i32>} : memref<4x10x9x128xbf16, #tpu.memory_space<vmem>>, vector<4x8x9x128xbf16>,
    %c0_7 = arith.constant 0 : index
    %c0_8 = arith.constant 0 : index
    %c0_9 = arith.constant 0 : index
    %c0_10 = arith.constant 0 : index
    %2 = vector.load %arg4[%c0_7, %c0_8, %c0_9, %c0_10] : memref<4x2x9x128xbf16, #tpu.memory_space<vmem>>, vector<4x2x9x128xbf16>
    %c0_11 = arith.constant 0 : index
    %c8 = arith.constant 8 : index
    %c0_12 = arith.constant 0 : index
    %c0_13 = arith.constant 0 : index
    %3 = vector.load %arg9[%c0_11, %c8, %c0_12, %c0_13] : memref<4x10x9x128xbf16, #tpu.memory_space<vmem>>, vector<4x2x9x128xbf16>
    tpu.vector_store %arg9[%c0_11, %c8, %c0_12, %c0_13], %2 {strides = array<i32>} : memref<4x10x9x128xbf16, #tpu.memory_space<vmem>>, vector<4x2x9x128xbf16>,
    %cst = arith.constant 0.000000e+00 : f32
    %4 = vector.broadcast %cst : f32 to vector<64x128xf32>
    %c0_14 = arith.constant 0 : index
    %c0_15 = arith.constant 0 : index
    %c0_16 = arith.constant 0 : index
    %c0_17 = arith.constant 0 : index
    %5 = vector.load %arg9[%c0_14, %c0_15, %c0_16, %c0_17] : memref<4x10x9x128xbf16, #tpu.memory_space<vmem>>, vector<1x8x8x128xbf16>
    %6 = vector.shape_cast %5 : vector<1x8x8x128xbf16> to vector<8x8x128xbf16>
    %7 = vector.shape_cast %6 : vector<8x8x128xbf16> to vector<64x128xbf16>
    %c0_18 = arith.constant 0 : index
    %c0_19 = arith.constant 0 : index
    %c0_20 = arith.constant 0 : index
    %8 = vector.load %arg5[%c0_18, %c0_19, %c0_20] : memref<9x128x128xbf16, #tpu.memory_space<vmem>>, vector<1x128x128xbf16>
    %9 = vector.shape_cast %8 : vector<1x128x128xbf16> to vector<128x128xbf16>
    %cst_21 = arith.constant dense<0.000000e+00> : vector<64x128xf32>
    %10 = tpu.matmul %7, %9, %cst_21 {dimension_numbers = #tpu.dot_dimension_numbers<[1], [0], [0], [1], [0, 0, 1, 1], [], []>} : vector<64x128xbf16>, vector<128x128xbf16>, vector<64x128xf32> -> vector<64x128xf32>
    %11 = arith.addf %4, %10 : vector<64x128xf32>
    %c1 = arith.constant 1 : index
    %c0_22 = arith.constant 0 : index
    %c0_23 = arith.constant 0 : index
    %c0_24 = arith.constant 0 : index
    %12 = vector.load %arg9[%c1, %c0_22, %c0_23, %c0_24] : memref<4x10x9x128xbf16, #tpu.memory_space<vmem>>, vector<1x8x8x128xbf16>
    %13 = vector.shape_cast %12 : vector<1x8x8x128xbf16> to vector<8x8x128xbf16>
    %14 = vector.shape_cast %13 : vector<8x8x128xbf16> to vector<64x128xbf16>
    %c1_25 = arith.constant 1 : index
    %c0_26 = arith.constant 0 : index
    %c0_27 = arith.constant 0 : index
    %15 = vector.load %arg5[%c1_25, %c0_26, %c0_27] : memref<9x128x128xbf16, #tpu.memory_space<vmem>>, vector<1x128x128xbf16>
    %16 = vector.shape_cast %15 : vector<1x128x128xbf16> to vector<128x128xbf16>
    %cst_28 = arith.constant dense<0.000000e+00> : vector<64x128xf32>
    %17 = tpu.matmul %14, %16, %cst_28 {dimension_numbers = #tpu.dot_dimension_numbers<[1], [0], [0], [1], [0, 0, 1, 1], [], []>} : vector<64x128xbf16>, vector<128x128xbf16>, vector<64x128xf32> -> vector<64x128xf32>
    %18 = arith.addf %11, %17 : vector<64x128xf32>
    %c0_29 = arith.constant 0 : index
    %c0_30 = arith.constant 0 : index
    %c1_31 = arith.constant 1 : index
    %c0_32 = arith.constant 0 : index
    %19 = vector.load %arg9[%c0_29, %c0_30, %c1_31, %c0_32] : memref<4x10x9x128xbf16, #tpu.memory_space<vmem>>, vector<1x8x8x128xbf16>
    %20 = vector.shape_cast %19 : vector<1x8x8x128xbf16> to vector<8x8x128xbf16>
    %21 = vector.shape_cast %20 : vector<8x8x128xbf16> to vector<64x128xbf16>
    %c2 = arith.constant 2 : index
    %c0_33 = arith.constant 0 : index
    %c0_34 = arith.constant 0 : index
    %22 = vector.load %arg5[%c2, %c0_33, %c0_34] : memref<9x128x128xbf16, #tpu.memory_space<vmem>>, vector<1x128x128xbf16>
    %23 = vector.shape_cast %22 : vector<1x128x128xbf16> to vector<128x128xbf16>
    %cst_35 = arith.constant dense<0.000000e+00> : vector<64x128xf32>
    %24 = tpu.matmul %21, %23, %cst_35 {dimension_numbers = #tpu.dot_dimension_numbers<[1], [0], [0], [1], [0, 0, 1, 1], [], []>} : vector<64x128xbf16>, vector<128x128xbf16>, vector<64x128xf32> -> vector<64x128xf32>
    %25 = arith.addf %18, %24 : vector<64x128xf32>
    %c2_36 = arith.constant 2 : index
    %c0_37 = arith.constant 0 : index
    %c0_38 = arith.constant 0 : index
    %c0_39 = arith.constant 0 : index
    %26 = vector.load %arg9[%c2_36, %c0_37, %c0_38, %c0_39] : memref<4x10x9x128xbf16, #tpu.memory_space<vmem>>, vector<1x8x8x128xbf16>
    %27 = vector.shape_cast %26 : vector<1x8x8x128xbf16> to vector<8x8x128xbf16>
    %28 = vector.shape_cast %27 : vector<8x8x128xbf16> to vector<64x128xbf16>
    %c3 = arith.constant 3 : index
    %c0_40 = arith.constant 0 : index
    %c0_41 = arith.constant 0 : index
    %29 = vector.load %arg5[%c3, %c0_40, %c0_41] : memref<9x128x128xbf16, #tpu.memory_space<vmem>>, vector<1x128x128xbf16>
    %30 = vector.shape_cast %29 : vector<1x128x128xbf16> to vector<128x128xbf16>
    %cst_42 = arith.constant dense<0.000000e+00> : vector<64x128xf32>
    %31 = tpu.matmul %28, %30, %cst_42 {dimension_numbers = #tpu.dot_dimension_numbers<[1], [0], [0], [1], [0, 0, 1, 1], [], []>} : vector<64x128xbf16>, vector<128x128xbf16>, vector<64x128xf32> -> vector<64x128xf32>
    %32 = arith.addf %25, %31 : vector<64x128xf32>
    %c3_43 = arith.constant 3 : index
    %c0_44 = arith.constant 0 : index
    %c0_45 = arith.constant 0 : index
    %c0_46 = arith.constant 0 : index
    %33 = vector.load %arg9[%c3_43, %c0_44, %c0_45, %c0_46] : memref<4x10x9x128xbf16, #tpu.memory_space<vmem>>, vector<1x8x8x128xbf16>
    %34 = vector.shape_cast %33 : vector<1x8x8x128xbf16> to vector<8x8x128xbf16>
    %35 = vector.shape_cast %34 : vector<8x8x128xbf16> to vector<64x128xbf16>
    %c4 = arith.constant 4 : index
    %c0_47 = arith.constant 0 : index
    %c0_48 = arith.constant 0 : index
    %36 = vector.load %arg5[%c4, %c0_47, %c0_48] : memref<9x128x128xbf16, #tpu.memory_space<vmem>>, vector<1x128x128xbf16>
    %37 = vector.shape_cast %36 : vector<1x128x128xbf16> to vector<128x128xbf16>
    %cst_49 = arith.constant dense<0.000000e+00> : vector<64x128xf32>
    %38 = tpu.matmul %35, %37, %cst_49 {dimension_numbers = #tpu.dot_dimension_numbers<[1], [0], [0], [1], [0, 0, 1, 1], [], []>} : vector<64x128xbf16>, vector<128x128xbf16>, vector<64x128xf32> -> vector<64x128xf32>
    %39 = arith.addf %32, %38 : vector<64x128xf32>
    %c2_50 = arith.constant 2 : index
    %c0_51 = arith.constant 0 : index
    %c1_52 = arith.constant 1 : index
    %c0_53 = arith.constant 0 : index
    %40 = vector.load %arg9[%c2_50, %c0_51, %c1_52, %c0_53] : memref<4x10x9x128xbf16, #tpu.memory_space<vmem>>, vector<1x8x8x128xbf16>
    %41 = vector.shape_cast %40 : vector<1x8x8x128xbf16> to vector<8x8x128xbf16>
    %42 = vector.shape_cast %41 : vector<8x8x128xbf16> to vector<64x128xbf16>
    %c5 = arith.constant 5 : index
    %c0_54 = arith.constant 0 : index
    %c0_55 = arith.constant 0 : index
    %43 = vector.load %arg5[%c5, %c0_54, %c0_55] : memref<9x128x128xbf16, #tpu.memory_space<vmem>>, vector<1x128x128xbf16>
    %44 = vector.shape_cast %43 : vector<1x128x128xbf16> to vector<128x128xbf16>
    %cst_56 = arith.constant dense<0.000000e+00> : vector<64x128xf32>
    %45 = tpu.matmul %42, %44, %cst_56 {dimension_numbers = #tpu.dot_dimension_numbers<[1], [0], [0], [1], [0, 0, 1, 1], [], []>} : vector<64x128xbf16>, vector<128x128xbf16>, vector<64x128xf32> -> vector<64x128xf32>
    %46 = arith.addf %39, %45 : vector<64x128xf32>
    %c0_57 = arith.constant 0 : index
    %c1_58 = arith.constant 1 : index
    %c0_59 = arith.constant 0 : index
    %c0_60 = arith.constant 0 : index
    %47 = vector.load %arg9[%c0_57, %c1_58, %c0_59, %c0_60] : memref<4x10x9x128xbf16, #tpu.memory_space<vmem>>, vector<1x8x8x128xbf16>
    %48 = vector.shape_cast %47 : vector<1x8x8x128xbf16> to vector<8x8x128xbf16>
    %49 = vector.shape_cast %48 : vector<8x8x128xbf16> to vector<64x128xbf16>
    %c6 = arith.constant 6 : index
    %c0_61 = arith.constant 0 : index
    %c0_62 = arith.constant 0 : index
    %50 = vector.load %arg5[%c6, %c0_61, %c0_62] : memref<9x128x128xbf16, #tpu.memory_space<vmem>>, vector<1x128x128xbf16>
    %51 = vector.shape_cast %50 : vector<1x128x128xbf16> to vector<128x128xbf16>
    %cst_63 = arith.constant dense<0.000000e+00> : vector<64x128xf32>
    %52 = tpu.matmul %49, %51, %cst_63 {dimension_numbers = #tpu.dot_dimension_numbers<[1], [0], [0], [1], [0, 0, 1, 1], [], []>} : vector<64x128xbf16>, vector<128x128xbf16>, vector<64x128xf32> -> vector<64x128xf32>
    %53 = arith.addf %46, %52 : vector<64x128xf32>
    %c1_64 = arith.constant 1 : index
    %c1_65 = arith.constant 1 : index
    %c0_66 = arith.constant 0 : index
    %c0_67 = arith.constant 0 : index
    %54 = vector.load %arg9[%c1_64, %c1_65, %c0_66, %c0_67] : memref<4x10x9x128xbf16, #tpu.memory_space<vmem>>, vector<1x8x8x128xbf16>
    %55 = vector.shape_cast %54 : vector<1x8x8x128xbf16> to vector<8x8x128xbf16>
    %56 = vector.shape_cast %55 : vector<8x8x128xbf16> to vector<64x128xbf16>
    %c7 = arith.constant 7 : index
    %c0_68 = arith.constant 0 : index
    %c0_69 = arith.constant 0 : index
    %57 = vector.load %arg5[%c7, %c0_68, %c0_69] : memref<9x128x128xbf16, #tpu.memory_space<vmem>>, vector<1x128x128xbf16>
    %58 = vector.shape_cast %57 : vector<1x128x128xbf16> to vector<128x128xbf16>
    %cst_70 = arith.constant dense<0.000000e+00> : vector<64x128xf32>
    %59 = tpu.matmul %56, %58, %cst_70 {dimension_numbers = #tpu.dot_dimension_numbers<[1], [0], [0], [1], [0, 0, 1, 1], [], []>} : vector<64x128xbf16>, vector<128x128xbf16>, vector<64x128xf32> -> vector<64x128xf32>
    %60 = arith.addf %53, %59 : vector<64x128xf32>
    %c0_71 = arith.constant 0 : index
    %c1_72 = arith.constant 1 : index
    %c1_73 = arith.constant 1 : index
    %c0_74 = arith.constant 0 : index
    %61 = vector.load %arg9[%c0_71, %c1_72, %c1_73, %c0_74] : memref<4x10x9x128xbf16, #tpu.memory_space<vmem>>, vector<1x8x8x128xbf16>
    %62 = vector.shape_cast %61 : vector<1x8x8x128xbf16> to vector<8x8x128xbf16>
    %63 = vector.shape_cast %62 : vector<8x8x128xbf16> to vector<64x128xbf16>
    %c8_75 = arith.constant 8 : index
    %c0_76 = arith.constant 0 : index
    %c0_77 = arith.constant 0 : index
    %64 = vector.load %arg5[%c8_75, %c0_76, %c0_77] : memref<9x128x128xbf16, #tpu.memory_space<vmem>>, vector<1x128x128xbf16>
    %65 = vector.shape_cast %64 : vector<1x128x128xbf16> to vector<128x128xbf16>
    %cst_78 = arith.constant dense<0.000000e+00> : vector<64x128xf32>
    %66 = tpu.matmul %63, %65, %cst_78 {dimension_numbers = #tpu.dot_dimension_numbers<[1], [0], [0], [1], [0, 0, 1, 1], [], []>} : vector<64x128xbf16>, vector<128x128xbf16>, vector<64x128xf32> -> vector<64x128xf32>
    %67 = arith.addf %60, %66 : vector<64x128xf32>
    %68 = vector.shape_cast %67 : vector<64x128xf32> to vector<1x8x8x128xf32>
    %c0_79 = arith.constant 0 : index
    %c0_80 = arith.constant 0 : index
    %c0_81 = arith.constant 0 : index
    %c0_82 = arith.constant 0 : index
    %69 = vector.load %arg6[%c0_79, %c0_80, %c0_81, %c0_82] : memref<1x8x8x128xf32, #tpu.memory_space<vmem>>, vector<1x8x8x128xf32>
    tpu.vector_store %arg6[%c0_79, %c0_80, %c0_81, %c0_82], %68 {strides = array<i32>} : memref<1x8x8x128xf32, #tpu.memory_space<vmem>>, vector<1x8x8x128xf32>,
    %cst_83 = arith.constant dense<0.000000e+00> : vector<128xf32>
    %70 = vector.multi_reduction <add>, %67, %cst_83 [0] : vector<64x128xf32> to vector<128xf32>
    %71 = vector.shape_cast %70 : vector<128xf32> to vector<1x128xf32>
    %72 = vector.shape_cast %71 : vector<1x128xf32> to vector<1x1x128xf32>
    %c0_84 = arith.constant 0 : index
    %c0_85 = arith.constant 0 : index
    %c0_86 = arith.constant 0 : index
    %73 = vector.load %arg7[%c0_84, %c0_85, %c0_86] : memref<1x1x128xf32, #tpu.memory_space<vmem>>, vector<1x1x128xf32>
    tpu.vector_store %arg7[%c0_84, %c0_85, %c0_86], %72 {strides = array<i32>} : memref<1x1x128xf32, #tpu.memory_space<vmem>>, vector<1x1x128xf32>,
    %74 = arith.mulf %67, %67 : vector<64x128xf32>
    %cst_87 = arith.constant dense<0.000000e+00> : vector<128xf32>
    %75 = vector.multi_reduction <add>, %74, %cst_87 [0] : vector<64x128xf32> to vector<128xf32>
    %76 = vector.shape_cast %75 : vector<128xf32> to vector<1x128xf32>
    %77 = vector.shape_cast %76 : vector<1x128xf32> to vector<1x1x128xf32>
    %c0_88 = arith.constant 0 : index
    %c0_89 = arith.constant 0 : index
    %c0_90 = arith.constant 0 : index
    %78 = vector.load %arg8[%c0_88, %c0_89, %c0_90] : memref<1x1x128xf32, #tpu.memory_space<vmem>>, vector<1x1x128xf32>
    tpu.vector_store %arg8[%c0_88, %c0_89, %c0_90], %77 {strides = array<i32>} : memref<1x1x128xf32, #tpu.memory_space<vmem>>, vector<1x1x128xf32>,
    return
  }
  func.func @transform_0(%arg0: i32, %arg1: i32, %arg2: i32) -> (i32, i32, i32, i32) {
    %c0_i32 = arith.constant 0 : i32
    %c0_i32_0 = arith.constant 0 : i32
    %c0_i32_1 = arith.constant 0 : i32
    return %arg0, %arg1, %c0_i32, %c0_i32_0 : i32, i32, i32, i32
  }
  func.func @transform_1(%arg0: i32, %arg1: i32, %arg2: i32) -> (i32, i32, i32, i32) {
    %c1_i32 = arith.constant 1 : i32
    %0 = arith.addi %arg1, %c1_i32 : i32
    %c4_i32 = arith.constant 4 : i32
    %1 = arith.muli %0, %c4_i32 : i32
    %c0_i32 = arith.constant 0 : i32
    %c0_i32_0 = arith.constant 0 : i32
    %c0_i32_1 = arith.constant 0 : i32
    return %arg0, %1, %c0_i32, %c0_i32_0 : i32, i32, i32, i32
  }
  func.func @transform_2(%arg0: i32, %arg1: i32, %arg2: i32) -> (i32, i32, i32) {
    %c0_i32 = arith.constant 0 : i32
    %c0_i32_0 = arith.constant 0 : i32
    %c0_i32_1 = arith.constant 0 : i32
    return %c0_i32, %c0_i32_0, %arg2 : i32, i32, i32
  }
  func.func @transform_3(%arg0: i32, %arg1: i32, %arg2: i32) -> (i32, i32, i32, i32) {
    %c0_i32 = arith.constant 0 : i32
    %c0_i32_0 = arith.constant 0 : i32
    return %arg0, %arg1, %c0_i32, %arg2 : i32, i32, i32, i32
  }
  func.func @transform_4(%arg0: i32, %arg1: i32, %arg2: i32) -> (i32, i32, i32) {
    %c1_i32 = arith.constant 1 : i32
    %0 = arith.muli %arg0, %c1_i32 : i32
    %1 = arith.addi %0, %arg1 : i32
    %c0_i32 = arith.constant 0 : i32
    %c0_i32_0 = arith.constant 0 : i32
    return %1, %c0_i32, %arg2 : i32, i32, i32
  }
  func.func @transform_5(%arg0: i32, %arg1: i32, %arg2: i32) -> (i32, i32, i32) {
    %c1_i32 = arith.constant 1 : i32
    %0 = arith.muli %arg0, %c1_i32 : i32
    %1 = arith.addi %0, %arg1 : i32
    %c0_i32 = arith.constant 0 : i32
    %c0_i32_0 = arith.constant 0 : i32
    return %1, %c0_i32, %arg2 : i32, i32, i32
  }
}

module attributes {stable_mosaic.version = 11 : i64} {
  func.func @_bn_relu_proj_add_relu_kernel(%arg0: i32, %arg1: memref<128x128xf32, #tpu.memory_space<vmem>>, %arg2: memref<1x128xf32, #tpu.memory_space<vmem>>, %arg3: memref<1x128xf32, #tpu.memory_space<vmem>>, %arg4: memref<128x128xf32, #tpu.memory_space<vmem>>, %arg5: memref<1x128xf32, #tpu.memory_space<vmem>>, %arg6: memref<1x128xf32, #tpu.memory_space<vmem>>, %arg7: memref<128x128xbf16, #tpu.memory_space<vmem>>) attributes {dimension_semantics = [#tpu.dimension_semantics<parallel>], iteration_bounds = array<i64: 1>, scalar_prefetch = 0 : i64, scratch_operands = 0 : i64, tpu.core_type = #tpu.core_type<tc>, window_params = [{transform_indices = @transform_0, window_bounds = array<i64: 128, 128>}, {pipeline_mode = #tpu.pipeline_mode<synchronous>, transform_indices = @transform_1, window_bounds = array<i64: 1, 128>}, {pipeline_mode = #tpu.pipeline_mode<synchronous>, transform_indices = @transform_2, window_bounds = array<i64: 1, 128>}, {transform_indices = @transform_3, window_bounds = array<i64: 128, 128>}, {pipeline_mode = #tpu.pipeline_mode<synchronous>, transform_indices = @transform_4, window_bounds = array<i64: 1, 128>}, {pipeline_mode = #tpu.pipeline_mode<synchronous>, transform_indices = @transform_5, window_bounds = array<i64: 1, 128>}, {transform_indices = @transform_6, window_bounds = array<i64: 128, 128>}]} {
    %c0 = arith.constant 0 : index
    %c0_0 = arith.constant 0 : index
    %0 = vector.load %arg1[%c0, %c0_0] : memref<128x128xf32, #tpu.memory_space<vmem>>, vector<128x128xf32>
    %c0_1 = arith.constant 0 : index
    %c0_2 = arith.constant 0 : index
    %1 = vector.load %arg2[%c0_1, %c0_2] : memref<1x128xf32, #tpu.memory_space<vmem>>, vector<1x128xf32>
    %2 = vector.broadcast %1 : vector<1x128xf32> to vector<128x128xf32>
    %3 = arith.mulf %0, %2 : vector<128x128xf32>
    %c0_3 = arith.constant 0 : index
    %c0_4 = arith.constant 0 : index
    %4 = vector.load %arg3[%c0_3, %c0_4] : memref<1x128xf32, #tpu.memory_space<vmem>>, vector<1x128xf32>
    %5 = vector.broadcast %4 : vector<1x128xf32> to vector<128x128xf32>
    %6 = arith.addf %3, %5 : vector<128x128xf32>
    %cst = arith.constant 0.000000e+00 : f32
    %7 = vector.broadcast %cst : f32 to vector<128x128xf32>
    %8 = arith.maximumf %6, %7 : vector<128x128xf32>
    %c0_5 = arith.constant 0 : index
    %c0_6 = arith.constant 0 : index
    %9 = vector.load %arg4[%c0_5, %c0_6] : memref<128x128xf32, #tpu.memory_space<vmem>>, vector<128x128xf32>
    %c0_7 = arith.constant 0 : index
    %c0_8 = arith.constant 0 : index
    %10 = vector.load %arg5[%c0_7, %c0_8] : memref<1x128xf32, #tpu.memory_space<vmem>>, vector<1x128xf32>
    %11 = vector.broadcast %10 : vector<1x128xf32> to vector<128x128xf32>
    %12 = arith.mulf %9, %11 : vector<128x128xf32>
    %c0_9 = arith.constant 0 : index
    %c0_10 = arith.constant 0 : index
    %13 = vector.load %arg6[%c0_9, %c0_10] : memref<1x128xf32, #tpu.memory_space<vmem>>, vector<1x128xf32>
    %14 = vector.broadcast %13 : vector<1x128xf32> to vector<128x128xf32>
    %15 = arith.addf %12, %14 : vector<128x128xf32>
    %16 = arith.addf %8, %15 : vector<128x128xf32>
    %cst_11 = arith.constant 0.000000e+00 : f32
    %17 = vector.broadcast %cst_11 : f32 to vector<128x128xf32>
    %18 = arith.maximumf %16, %17 : vector<128x128xf32>
    %19 = arith.truncf %18 : vector<128x128xf32> to vector<128x128xbf16>
    %c0_12 = arith.constant 0 : index
    %c0_13 = arith.constant 0 : index
    %20 = vector.load %arg7[%c0_12, %c0_13] : memref<128x128xbf16, #tpu.memory_space<vmem>>, vector<128x128xbf16>
    tpu.vector_store %arg7[%c0_12, %c0_13], %19 {strides = array<i32>} : memref<128x128xbf16, #tpu.memory_space<vmem>>, vector<128x128xbf16>,
    return
  }
  func.func @transform_0(%arg0: i32) -> (i32, i32) {
    %c0_i32 = arith.constant 0 : i32
    %c0_i32_0 = arith.constant 0 : i32
    return %arg0, %c0_i32 : i32, i32
  }
  func.func @transform_1(%arg0: i32) -> (i32, i32) {
    %c0_i32 = arith.constant 0 : i32
    %c0_i32_0 = arith.constant 0 : i32
    %c0_i32_1 = arith.constant 0 : i32
    return %c0_i32, %c0_i32_0 : i32, i32
  }
  func.func @transform_2(%arg0: i32) -> (i32, i32) {
    %c0_i32 = arith.constant 0 : i32
    %c0_i32_0 = arith.constant 0 : i32
    %c0_i32_1 = arith.constant 0 : i32
    return %c0_i32, %c0_i32_0 : i32, i32
  }
  func.func @transform_3(%arg0: i32) -> (i32, i32) {
    %c0_i32 = arith.constant 0 : i32
    %c0_i32_0 = arith.constant 0 : i32
    return %arg0, %c0_i32 : i32, i32
  }
  func.func @transform_4(%arg0: i32) -> (i32, i32) {
    %c0_i32 = arith.constant 0 : i32
    %c0_i32_0 = arith.constant 0 : i32
    %c0_i32_1 = arith.constant 0 : i32
    return %c0_i32, %c0_i32_0 : i32, i32
  }
  func.func @transform_5(%arg0: i32) -> (i32, i32) {
    %c0_i32 = arith.constant 0 : i32
    %c0_i32_0 = arith.constant 0 : i32
    %c0_i32_1 = arith.constant 0 : i32
    return %c0_i32, %c0_i32_0 : i32, i32
  }
  func.func @transform_6(%arg0: i32) -> (i32, i32) {
    %c0_i32 = arith.constant 0 : i32
    %c0_i32_0 = arith.constant 0 : i32
    return %arg0, %c0_i32 : i32, i32
  }
}

module attributes {stable_mosaic.version = 11 : i64} {
  func.func @_conv3x3_stats_kernel(%arg0: i32, %arg1: i32, %arg2: i32, %arg3: memref<1x8x10x128xbf16, #tpu.memory_space<vmem>>, %arg4: memref<1x2x10x128xbf16, #tpu.memory_space<vmem>>, %arg5: memref<9x128x128xbf16, #tpu.memory_space<vmem>>, %arg6: memref<1x8x8x128xf32, #tpu.memory_space<vmem>>, %arg7: memref<1x1x128xf32, #tpu.memory_space<vmem>>, %arg8: memref<1x1x128xf32, #tpu.memory_space<vmem>>, %arg9: memref<1x10x10x128xbf16, #tpu.memory_space<vmem>>) attributes {dimension_semantics = [#tpu.dimension_semantics<parallel>, #tpu.dimension_semantics<parallel>, #tpu.dimension_semantics<parallel>], iteration_bounds = array<i64: 2, 1, 1>, scalar_prefetch = 0 : i64, scratch_operands = 1 : i64, tpu.core_type = #tpu.core_type<tc>, window_params = [{transform_indices = @transform_0, window_bounds = array<i64: 1, 8, 10, 128>}, {transform_indices = @transform_1, window_bounds = array<i64: 1, 2, 10, 128>}, {transform_indices = @transform_2, window_bounds = array<i64: 9, 128, 128>}, {transform_indices = @transform_3, window_bounds = array<i64: 1, 8, 8, 128>}, {transform_indices = @transform_4, window_bounds = array<i64: 1, 1, 128>}, {transform_indices = @transform_5, window_bounds = array<i64: 1, 1, 128>}]} {
    %c0 = arith.constant 0 : index
    %c0_0 = arith.constant 0 : index
    %c0_1 = arith.constant 0 : index
    %c0_2 = arith.constant 0 : index
    %0 = vector.load %arg3[%c0, %c0_0, %c0_1, %c0_2] : memref<1x8x10x128xbf16, #tpu.memory_space<vmem>>, vector<1x8x10x128xbf16>
    %c0_3 = arith.constant 0 : index
    %c0_4 = arith.constant 0 : index
    %c0_5 = arith.constant 0 : index
    %c0_6 = arith.constant 0 : index
    %1 = vector.load %arg9[%c0_3, %c0_4, %c0_5, %c0_6] : memref<1x10x10x128xbf16, #tpu.memory_space<vmem>>, vector<1x8x10x128xbf16>
    tpu.vector_store %arg9[%c0_3, %c0_4, %c0_5, %c0_6], %0 {strides = array<i32>} : memref<1x10x10x128xbf16, #tpu.memory_space<vmem>>, vector<1x8x10x128xbf16>,
    %c0_7 = arith.constant 0 : index
    %c0_8 = arith.constant 0 : index
    %c0_9 = arith.constant 0 : index
    %c0_10 = arith.constant 0 : index
    %2 = vector.load %arg4[%c0_7, %c0_8, %c0_9, %c0_10] : memref<1x2x10x128xbf16, #tpu.memory_space<vmem>>, vector<1x2x10x128xbf16>
    %c0_11 = arith.constant 0 : index
    %c8 = arith.constant 8 : index
    %c0_12 = arith.constant 0 : index
    %c0_13 = arith.constant 0 : index
    %3 = vector.load %arg9[%c0_11, %c8, %c0_12, %c0_13] : memref<1x10x10x128xbf16, #tpu.memory_space<vmem>>, vector<1x2x10x128xbf16>
    tpu.vector_store %arg9[%c0_11, %c8, %c0_12, %c0_13], %2 {strides = array<i32>} : memref<1x10x10x128xbf16, #tpu.memory_space<vmem>>, vector<1x2x10x128xbf16>,
    %cst = arith.constant 0.000000e+00 : f32
    %4 = vector.broadcast %cst : f32 to vector<64x128xf32>
    %c0_14 = arith.constant 0 : index
    %c0_15 = arith.constant 0 : index
    %c0_16 = arith.constant 0 : index
    %c0_17 = arith.constant 0 : index
    %5 = vector.load %arg9[%c0_14, %c0_15, %c0_16, %c0_17] : memref<1x10x10x128xbf16, #tpu.memory_space<vmem>>, vector<1x8x8x128xbf16>
    %6 = vector.shape_cast %5 : vector<1x8x8x128xbf16> to vector<8x8x128xbf16>
    %7 = vector.shape_cast %6 : vector<8x8x128xbf16> to vector<64x128xbf16>
    %c0_18 = arith.constant 0 : index
    %c0_19 = arith.constant 0 : index
    %c0_20 = arith.constant 0 : index
    %8 = vector.load %arg5[%c0_18, %c0_19, %c0_20] : memref<9x128x128xbf16, #tpu.memory_space<vmem>>, vector<1x128x128xbf16>
    %9 = vector.shape_cast %8 : vector<1x128x128xbf16> to vector<128x128xbf16>
    %cst_21 = arith.constant dense<0.000000e+00> : vector<64x128xf32>
    %10 = tpu.matmul %7, %9, %cst_21 {dimension_numbers = #tpu.dot_dimension_numbers<[1], [0], [0], [1], [0, 0, 1, 1], [], []>} : vector<64x128xbf16>, vector<128x128xbf16>, vector<64x128xf32> -> vector<64x128xf32>
    %11 = arith.addf %4, %10 : vector<64x128xf32>
    %c0_22 = arith.constant 0 : index
    %c0_23 = arith.constant 0 : index
    %c1 = arith.constant 1 : index
    %c0_24 = arith.constant 0 : index
    %12 = vector.load %arg9[%c0_22, %c0_23, %c1, %c0_24] : memref<1x10x10x128xbf16, #tpu.memory_space<vmem>>, vector<1x8x8x128xbf16>
    %13 = vector.shape_cast %12 : vector<1x8x8x128xbf16> to vector<8x8x128xbf16>
    %14 = vector.shape_cast %13 : vector<8x8x128xbf16> to vector<64x128xbf16>
    %c1_25 = arith.constant 1 : index
    %c0_26 = arith.constant 0 : index
    %c0_27 = arith.constant 0 : index
    %15 = vector.load %arg5[%c1_25, %c0_26, %c0_27] : memref<9x128x128xbf16, #tpu.memory_space<vmem>>, vector<1x128x128xbf16>
    %16 = vector.shape_cast %15 : vector<1x128x128xbf16> to vector<128x128xbf16>
    %cst_28 = arith.constant dense<0.000000e+00> : vector<64x128xf32>
    %17 = tpu.matmul %14, %16, %cst_28 {dimension_numbers = #tpu.dot_dimension_numbers<[1], [0], [0], [1], [0, 0, 1, 1], [], []>} : vector<64x128xbf16>, vector<128x128xbf16>, vector<64x128xf32> -> vector<64x128xf32>
    %18 = arith.addf %11, %17 : vector<64x128xf32>
    %c0_29 = arith.constant 0 : index
    %c0_30 = arith.constant 0 : index
    %c2 = arith.constant 2 : index
    %c0_31 = arith.constant 0 : index
    %19 = vector.load %arg9[%c0_29, %c0_30, %c2, %c0_31] : memref<1x10x10x128xbf16, #tpu.memory_space<vmem>>, vector<1x8x8x128xbf16>
    %20 = vector.shape_cast %19 : vector<1x8x8x128xbf16> to vector<8x8x128xbf16>
    %21 = vector.shape_cast %20 : vector<8x8x128xbf16> to vector<64x128xbf16>
    %c2_32 = arith.constant 2 : index
    %c0_33 = arith.constant 0 : index
    %c0_34 = arith.constant 0 : index
    %22 = vector.load %arg5[%c2_32, %c0_33, %c0_34] : memref<9x128x128xbf16, #tpu.memory_space<vmem>>, vector<1x128x128xbf16>
    %23 = vector.shape_cast %22 : vector<1x128x128xbf16> to vector<128x128xbf16>
    %cst_35 = arith.constant dense<0.000000e+00> : vector<64x128xf32>
    %24 = tpu.matmul %21, %23, %cst_35 {dimension_numbers = #tpu.dot_dimension_numbers<[1], [0], [0], [1], [0, 0, 1, 1], [], []>} : vector<64x128xbf16>, vector<128x128xbf16>, vector<64x128xf32> -> vector<64x128xf32>
    %25 = arith.addf %18, %24 : vector<64x128xf32>
    %c0_36 = arith.constant 0 : index
    %c1_37 = arith.constant 1 : index
    %c0_38 = arith.constant 0 : index
    %c0_39 = arith.constant 0 : index
    %26 = vector.load %arg9[%c0_36, %c1_37, %c0_38, %c0_39] : memref<1x10x10x128xbf16, #tpu.memory_space<vmem>>, vector<1x8x8x128xbf16>
    %27 = vector.shape_cast %26 : vector<1x8x8x128xbf16> to vector<8x8x128xbf16>
    %28 = vector.shape_cast %27 : vector<8x8x128xbf16> to vector<64x128xbf16>
    %c3 = arith.constant 3 : index
    %c0_40 = arith.constant 0 : index
    %c0_41 = arith.constant 0 : index
    %29 = vector.load %arg5[%c3, %c0_40, %c0_41] : memref<9x128x128xbf16, #tpu.memory_space<vmem>>, vector<1x128x128xbf16>
    %30 = vector.shape_cast %29 : vector<1x128x128xbf16> to vector<128x128xbf16>
    %cst_42 = arith.constant dense<0.000000e+00> : vector<64x128xf32>
    %31 = tpu.matmul %28, %30, %cst_42 {dimension_numbers = #tpu.dot_dimension_numbers<[1], [0], [0], [1], [0, 0, 1, 1], [], []>} : vector<64x128xbf16>, vector<128x128xbf16>, vector<64x128xf32> -> vector<64x128xf32>
    %32 = arith.addf %25, %31 : vector<64x128xf32>
    %c0_43 = arith.constant 0 : index
    %c1_44 = arith.constant 1 : index
    %c1_45 = arith.constant 1 : index
    %c0_46 = arith.constant 0 : index
    %33 = vector.load %arg9[%c0_43, %c1_44, %c1_45, %c0_46] : memref<1x10x10x128xbf16, #tpu.memory_space<vmem>>, vector<1x8x8x128xbf16>
    %34 = vector.shape_cast %33 : vector<1x8x8x128xbf16> to vector<8x8x128xbf16>
    %35 = vector.shape_cast %34 : vector<8x8x128xbf16> to vector<64x128xbf16>
    %c4 = arith.constant 4 : index
    %c0_47 = arith.constant 0 : index
    %c0_48 = arith.constant 0 : index
    %36 = vector.load %arg5[%c4, %c0_47, %c0_48] : memref<9x128x128xbf16, #tpu.memory_space<vmem>>, vector<1x128x128xbf16>
    %37 = vector.shape_cast %36 : vector<1x128x128xbf16> to vector<128x128xbf16>
    %cst_49 = arith.constant dense<0.000000e+00> : vector<64x128xf32>
    %38 = tpu.matmul %35, %37, %cst_49 {dimension_numbers = #tpu.dot_dimension_numbers<[1], [0], [0], [1], [0, 0, 1, 1], [], []>} : vector<64x128xbf16>, vector<128x128xbf16>, vector<64x128xf32> -> vector<64x128xf32>
    %39 = arith.addf %32, %38 : vector<64x128xf32>
    %c0_50 = arith.constant 0 : index
    %c1_51 = arith.constant 1 : index
    %c2_52 = arith.constant 2 : index
    %c0_53 = arith.constant 0 : index
    %40 = vector.load %arg9[%c0_50, %c1_51, %c2_52, %c0_53] : memref<1x10x10x128xbf16, #tpu.memory_space<vmem>>, vector<1x8x8x128xbf16>
    %41 = vector.shape_cast %40 : vector<1x8x8x128xbf16> to vector<8x8x128xbf16>
    %42 = vector.shape_cast %41 : vector<8x8x128xbf16> to vector<64x128xbf16>
    %c5 = arith.constant 5 : index
    %c0_54 = arith.constant 0 : index
    %c0_55 = arith.constant 0 : index
    %43 = vector.load %arg5[%c5, %c0_54, %c0_55] : memref<9x128x128xbf16, #tpu.memory_space<vmem>>, vector<1x128x128xbf16>
    %44 = vector.shape_cast %43 : vector<1x128x128xbf16> to vector<128x128xbf16>
    %cst_56 = arith.constant dense<0.000000e+00> : vector<64x128xf32>
    %45 = tpu.matmul %42, %44, %cst_56 {dimension_numbers = #tpu.dot_dimension_numbers<[1], [0], [0], [1], [0, 0, 1, 1], [], []>} : vector<64x128xbf16>, vector<128x128xbf16>, vector<64x128xf32> -> vector<64x128xf32>
    %46 = arith.addf %39, %45 : vector<64x128xf32>
    %c0_57 = arith.constant 0 : index
    %c2_58 = arith.constant 2 : index
    %c0_59 = arith.constant 0 : index
    %c0_60 = arith.constant 0 : index
    %47 = vector.load %arg9[%c0_57, %c2_58, %c0_59, %c0_60] : memref<1x10x10x128xbf16, #tpu.memory_space<vmem>>, vector<1x8x8x128xbf16>
    %48 = vector.shape_cast %47 : vector<1x8x8x128xbf16> to vector<8x8x128xbf16>
    %49 = vector.shape_cast %48 : vector<8x8x128xbf16> to vector<64x128xbf16>
    %c6 = arith.constant 6 : index
    %c0_61 = arith.constant 0 : index
    %c0_62 = arith.constant 0 : index
    %50 = vector.load %arg5[%c6, %c0_61, %c0_62] : memref<9x128x128xbf16, #tpu.memory_space<vmem>>, vector<1x128x128xbf16>
    %51 = vector.shape_cast %50 : vector<1x128x128xbf16> to vector<128x128xbf16>
    %cst_63 = arith.constant dense<0.000000e+00> : vector<64x128xf32>
    %52 = tpu.matmul %49, %51, %cst_63 {dimension_numbers = #tpu.dot_dimension_numbers<[1], [0], [0], [1], [0, 0, 1, 1], [], []>} : vector<64x128xbf16>, vector<128x128xbf16>, vector<64x128xf32> -> vector<64x128xf32>
    %53 = arith.addf %46, %52 : vector<64x128xf32>
    %c0_64 = arith.constant 0 : index
    %c2_65 = arith.constant 2 : index
    %c1_66 = arith.constant 1 : index
    %c0_67 = arith.constant 0 : index
    %54 = vector.load %arg9[%c0_64, %c2_65, %c1_66, %c0_67] : memref<1x10x10x128xbf16, #tpu.memory_space<vmem>>, vector<1x8x8x128xbf16>
    %55 = vector.shape_cast %54 : vector<1x8x8x128xbf16> to vector<8x8x128xbf16>
    %56 = vector.shape_cast %55 : vector<8x8x128xbf16> to vector<64x128xbf16>
    %c7 = arith.constant 7 : index
    %c0_68 = arith.constant 0 : index
    %c0_69 = arith.constant 0 : index
    %57 = vector.load %arg5[%c7, %c0_68, %c0_69] : memref<9x128x128xbf16, #tpu.memory_space<vmem>>, vector<1x128x128xbf16>
    %58 = vector.shape_cast %57 : vector<1x128x128xbf16> to vector<128x128xbf16>
    %cst_70 = arith.constant dense<0.000000e+00> : vector<64x128xf32>
    %59 = tpu.matmul %56, %58, %cst_70 {dimension_numbers = #tpu.dot_dimension_numbers<[1], [0], [0], [1], [0, 0, 1, 1], [], []>} : vector<64x128xbf16>, vector<128x128xbf16>, vector<64x128xf32> -> vector<64x128xf32>
    %60 = arith.addf %53, %59 : vector<64x128xf32>
    %c0_71 = arith.constant 0 : index
    %c2_72 = arith.constant 2 : index
    %c2_73 = arith.constant 2 : index
    %c0_74 = arith.constant 0 : index
    %61 = vector.load %arg9[%c0_71, %c2_72, %c2_73, %c0_74] : memref<1x10x10x128xbf16, #tpu.memory_space<vmem>>, vector<1x8x8x128xbf16>
    %62 = vector.shape_cast %61 : vector<1x8x8x128xbf16> to vector<8x8x128xbf16>
    %63 = vector.shape_cast %62 : vector<8x8x128xbf16> to vector<64x128xbf16>
    %c8_75 = arith.constant 8 : index
    %c0_76 = arith.constant 0 : index
    %c0_77 = arith.constant 0 : index
    %64 = vector.load %arg5[%c8_75, %c0_76, %c0_77] : memref<9x128x128xbf16, #tpu.memory_space<vmem>>, vector<1x128x128xbf16>
    %65 = vector.shape_cast %64 : vector<1x128x128xbf16> to vector<128x128xbf16>
    %cst_78 = arith.constant dense<0.000000e+00> : vector<64x128xf32>
    %66 = tpu.matmul %63, %65, %cst_78 {dimension_numbers = #tpu.dot_dimension_numbers<[1], [0], [0], [1], [0, 0, 1, 1], [], []>} : vector<64x128xbf16>, vector<128x128xbf16>, vector<64x128xf32> -> vector<64x128xf32>
    %67 = arith.addf %60, %66 : vector<64x128xf32>
    %68 = vector.shape_cast %67 : vector<64x128xf32> to vector<1x8x8x128xf32>
    %c0_79 = arith.constant 0 : index
    %c0_80 = arith.constant 0 : index
    %c0_81 = arith.constant 0 : index
    %c0_82 = arith.constant 0 : index
    %69 = vector.load %arg6[%c0_79, %c0_80, %c0_81, %c0_82] : memref<1x8x8x128xf32, #tpu.memory_space<vmem>>, vector<1x8x8x128xf32>
    tpu.vector_store %arg6[%c0_79, %c0_80, %c0_81, %c0_82], %68 {strides = array<i32>} : memref<1x8x8x128xf32, #tpu.memory_space<vmem>>, vector<1x8x8x128xf32>,
    %cst_83 = arith.constant dense<0.000000e+00> : vector<128xf32>
    %70 = vector.multi_reduction <add>, %67, %cst_83 [0] : vector<64x128xf32> to vector<128xf32>
    %71 = vector.shape_cast %70 : vector<128xf32> to vector<1x128xf32>
    %72 = vector.shape_cast %71 : vector<1x128xf32> to vector<1x1x128xf32>
    %c0_84 = arith.constant 0 : index
    %c0_85 = arith.constant 0 : index
    %c0_86 = arith.constant 0 : index
    %73 = vector.load %arg7[%c0_84, %c0_85, %c0_86] : memref<1x1x128xf32, #tpu.memory_space<vmem>>, vector<1x1x128xf32>
    tpu.vector_store %arg7[%c0_84, %c0_85, %c0_86], %72 {strides = array<i32>} : memref<1x1x128xf32, #tpu.memory_space<vmem>>, vector<1x1x128xf32>,
    %74 = arith.mulf %67, %67 : vector<64x128xf32>
    %cst_87 = arith.constant dense<0.000000e+00> : vector<128xf32>
    %75 = vector.multi_reduction <add>, %74, %cst_87 [0] : vector<64x128xf32> to vector<128xf32>
    %76 = vector.shape_cast %75 : vector<128xf32> to vector<1x128xf32>
    %77 = vector.shape_cast %76 : vector<1x128xf32> to vector<1x1x128xf32>
    %c0_88 = arith.constant 0 : index
    %c0_89 = arith.constant 0 : index
    %c0_90 = arith.constant 0 : index
    %78 = vector.load %arg8[%c0_88, %c0_89, %c0_90] : memref<1x1x128xf32, #tpu.memory_space<vmem>>, vector<1x1x128xf32>
    tpu.vector_store %arg8[%c0_88, %c0_89, %c0_90], %77 {strides = array<i32>} : memref<1x1x128xf32, #tpu.memory_space<vmem>>, vector<1x1x128xf32>,
    return
  }
  func.func @transform_0(%arg0: i32, %arg1: i32, %arg2: i32) -> (i32, i32, i32, i32) {
    %c0_i32 = arith.constant 0 : i32
    %c0_i32_0 = arith.constant 0 : i32
    %c0_i32_1 = arith.constant 0 : i32
    return %arg0, %arg1, %c0_i32, %c0_i32_0 : i32, i32, i32, i32
  }
  func.func @transform_1(%arg0: i32, %arg1: i32, %arg2: i32) -> (i32, i32, i32, i32) {
    %c1_i32 = arith.constant 1 : i32
    %0 = arith.addi %arg1, %c1_i32 : i32
    %c4_i32 = arith.constant 4 : i32
    %1 = arith.muli %0, %c4_i32 : i32
    %c0_i32 = arith.constant 0 : i32
    %c0_i32_0 = arith.constant 0 : i32
    %c0_i32_1 = arith.constant 0 : i32
    return %arg0, %1, %c0_i32, %c0_i32_0 : i32, i32, i32, i32
  }
  func.func @transform_2(%arg0: i32, %arg1: i32, %arg2: i32) -> (i32, i32, i32) {
    %c0_i32 = arith.constant 0 : i32
    %c0_i32_0 = arith.constant 0 : i32
    %c0_i32_1 = arith.constant 0 : i32
    return %c0_i32, %c0_i32_0, %arg2 : i32, i32, i32
  }
  func.func @transform_3(%arg0: i32, %arg1: i32, %arg2: i32) -> (i32, i32, i32, i32) {
    %c0_i32 = arith.constant 0 : i32
    %c0_i32_0 = arith.constant 0 : i32
    return %arg0, %arg1, %c0_i32, %arg2 : i32, i32, i32, i32
  }
  func.func @transform_4(%arg0: i32, %arg1: i32, %arg2: i32) -> (i32, i32, i32) {
    %c1_i32 = arith.constant 1 : i32
    %0 = arith.muli %arg0, %c1_i32 : i32
    %1 = arith.addi %0, %arg1 : i32
    %c0_i32 = arith.constant 0 : i32
    %c0_i32_0 = arith.constant 0 : i32
    return %1, %c0_i32, %arg2 : i32, i32, i32
  }
  func.func @transform_5(%arg0: i32, %arg1: i32, %arg2: i32) -> (i32, i32, i32) {
    %c1_i32 = arith.constant 1 : i32
    %0 = arith.muli %arg0, %c1_i32 : i32
    %1 = arith.addi %0, %arg1 : i32
    %c0_i32 = arith.constant 0 : i32
    %c0_i32_0 = arith.constant 0 : i32
    return %1, %c0_i32, %arg2 : i32, i32, i32
  }
}

module attributes {stable_mosaic.version = 11 : i64} {
  func.func @_bn_relu_add_relu_kernel(%arg0: i32, %arg1: memref<128x128xf32, #tpu.memory_space<vmem>>, %arg2: memref<1x128xf32, #tpu.memory_space<vmem>>, %arg3: memref<1x128xf32, #tpu.memory_space<vmem>>, %arg4: memref<128x128xbf16, #tpu.memory_space<vmem>>, %arg5: memref<128x128xbf16, #tpu.memory_space<vmem>>) attributes {dimension_semantics = [#tpu.dimension_semantics<parallel>], iteration_bounds = array<i64: 1>, scalar_prefetch = 0 : i64, scratch_operands = 0 : i64, tpu.core_type = #tpu.core_type<tc>, window_params = [{transform_indices = @transform_0, window_bounds = array<i64: 128, 128>}, {pipeline_mode = #tpu.pipeline_mode<synchronous>, transform_indices = @transform_1, window_bounds = array<i64: 1, 128>}, {pipeline_mode = #tpu.pipeline_mode<synchronous>, transform_indices = @transform_2, window_bounds = array<i64: 1, 128>}, {transform_indices = @transform_3, window_bounds = array<i64: 128, 128>}, {transform_indices = @transform_4, window_bounds = array<i64: 128, 128>}]} {
    %c0 = arith.constant 0 : index
    %c0_0 = arith.constant 0 : index
    %0 = vector.load %arg1[%c0, %c0_0] : memref<128x128xf32, #tpu.memory_space<vmem>>, vector<128x128xf32>
    %c0_1 = arith.constant 0 : index
    %c0_2 = arith.constant 0 : index
    %1 = vector.load %arg2[%c0_1, %c0_2] : memref<1x128xf32, #tpu.memory_space<vmem>>, vector<1x128xf32>
    %2 = vector.broadcast %1 : vector<1x128xf32> to vector<128x128xf32>
    %3 = arith.mulf %0, %2 : vector<128x128xf32>
    %c0_3 = arith.constant 0 : index
    %c0_4 = arith.constant 0 : index
    %4 = vector.load %arg3[%c0_3, %c0_4] : memref<1x128xf32, #tpu.memory_space<vmem>>, vector<1x128xf32>
    %5 = vector.broadcast %4 : vector<1x128xf32> to vector<128x128xf32>
    %6 = arith.addf %3, %5 : vector<128x128xf32>
    %cst = arith.constant 0.000000e+00 : f32
    %7 = vector.broadcast %cst : f32 to vector<128x128xf32>
    %8 = arith.maximumf %6, %7 : vector<128x128xf32>
    %c0_5 = arith.constant 0 : index
    %c0_6 = arith.constant 0 : index
    %9 = vector.load %arg4[%c0_5, %c0_6] : memref<128x128xbf16, #tpu.memory_space<vmem>>, vector<128x128xbf16>
    %10 = arith.extf %9 : vector<128x128xbf16> to vector<128x128xf32>
    %11 = arith.addf %8, %10 : vector<128x128xf32>
    %cst_7 = arith.constant 0.000000e+00 : f32
    %12 = vector.broadcast %cst_7 : f32 to vector<128x128xf32>
    %13 = arith.maximumf %11, %12 : vector<128x128xf32>
    %14 = arith.truncf %13 : vector<128x128xf32> to vector<128x128xbf16>
    %c0_8 = arith.constant 0 : index
    %c0_9 = arith.constant 0 : index
    %15 = vector.load %arg5[%c0_8, %c0_9] : memref<128x128xbf16, #tpu.memory_space<vmem>>, vector<128x128xbf16>
    tpu.vector_store %arg5[%c0_8, %c0_9], %14 {strides = array<i32>} : memref<128x128xbf16, #tpu.memory_space<vmem>>, vector<128x128xbf16>,
    return
  }
  func.func @transform_0(%arg0: i32) -> (i32, i32) {
    %c0_i32 = arith.constant 0 : i32
    %c0_i32_0 = arith.constant 0 : i32
    return %arg0, %c0_i32 : i32, i32
  }
  func.func @transform_1(%arg0: i32) -> (i32, i32) {
    %c0_i32 = arith.constant 0 : i32
    %c0_i32_0 = arith.constant 0 : i32
    %c0_i32_1 = arith.constant 0 : i32
    return %c0_i32, %c0_i32_0 : i32, i32
  }
  func.func @transform_2(%arg0: i32) -> (i32, i32) {
    %c0_i32 = arith.constant 0 : i32
    %c0_i32_0 = arith.constant 0 : i32
    %c0_i32_1 = arith.constant 0 : i32
    return %c0_i32, %c0_i32_0 : i32, i32
  }
  func.func @transform_3(%arg0: i32) -> (i32, i32) {
    %c0_i32 = arith.constant 0 : i32
    %c0_i32_0 = arith.constant 0 : i32
    return %arg0, %c0_i32 : i32, i32
  }
  func.func @transform_4(%arg0: i32) -> (i32, i32) {
    %c0_i32 = arith.constant 0 : i32
    %c0_i32_0 = arith.constant 0 : i32
    return %arg0, %c0_i32 : i32, i32
  }
}

</mosaic_0001>

<llo_original>
// kernel: block_group_forward.12
$region0: #{block_group_forward.12}
  #allocation0 [shape = 'u32[]', space=smem, size = 0x4, offset = 0x4, fixed_abs, tag = 'smem constant byte address 0x4 - core index']
  #allocation1 [shape = 'u32[144,128]{1,0:T(1,128)}', space=vmem, size = 0x12000, scoped, tag = 'internal scratch']
  #allocation2 [shape = 'f32[128,128]{1,0:T(8,128)}', space=vmem, size = 0x10000, scoped, tag = 'scratch operand']
  %s0 = inlined_call_operand.vmem [shape: bf16[128,128], index: 0, kind: input, shape index: {}]
  %s1 = inlined_call_operand.vmem [shape: bf16[128,128], index: 1, kind: input, shape index: {}]
  %s2 = inlined_call_operand.vmem [shape: f32[128,128], index: 2, kind: output, shape index: {0}]
  %s3 = inlined_call_operand.vmem [shape: f32[1,1,128], index: 3, kind: output, shape index: {1}]
  %s4 = inlined_call_operand.vmem [shape: f32[1,1,128], index: 4, kind: output, shape index: {2}]
  %5 = xla_tuple %s2, %s3, %s4
  %s6 = sld [smem:[#allocation0]]
  $region42: #{block_group_forward.12} parent=0
    _
  %s8 = ssub.s32 1, %s6
  %s9 = scalar_select 0, %s8, %s6
  // Predicated region
  $region2: #{block_group_forward.12} parent=0 // pred_check
    _
  $region3: #{block_group_forward.12} parent=0 // pred_check_branch
    %11 = sbr.rel (0) target = $region5
  $region4: #{block_group_forward.12} parent=0 // pred_region
    _
  $region5: #{block_group_forward.12} parent=0 // pred_fallthru
    _
  // Predicated region
  $region6: #{block_group_forward.12} parent=0 // pred_check
    _
  $region7: #{block_group_forward.12} parent=0 // pred_check_branch
    %13 = sbr.rel (0) target = $region9
  $region8: #{block_group_forward.12} parent=0 // pred_region
    _
  $region9: #{block_group_forward.12} parent=0 // pred_fallthru
    _
  %p15 = scmp.eq.s32.totalorder 0, 0
  // Predicated region
  $region10: #{block_group_forward.12} parent=0 // pred_check
    %p16 = pneg %p15
  $region11: #{block_group_forward.12} parent=0 // pred_check_branch
    %18 = sbr.rel (%p16) target = $region13
  $region12: #{block_group_forward.12} parent=0 // pred_region
    %19 = vst [vmem:[#allocation2] sm:$0xff] 0.0
    %20 = vst [vmem:[#allocation2 + $0x8] sm:$0xff] 0.0
    %21 = vst [vmem:[#allocation2 + $0x10] sm:$0xff] 0.0
    %22 = vst [vmem:[#allocation2 + $0x18] sm:$0xff] 0.0
    %23 = vst [vmem:[#allocation2 + $0x20] sm:$0xff] 0.0
    %24 = vst [vmem:[#allocation2 + $0x28] sm:$0xff] 0.0
    %25 = vst [vmem:[#allocation2 + $0x30] sm:$0xff] 0.0
    %26 = vst [vmem:[#allocation2 + $0x38] sm:$0xff] 0.0
    %27 = vst [vmem:[#allocation2 + $0x40] sm:$0xff] 0.0
    %28 = vst [vmem:[#allocation2 + $0x48] sm:$0xff] 0.0
    %29 = vst [vmem:[#allocation2 + $0x50] sm:$0xff] 0.0
    %30 = vst [vmem:[#allocation2 + $0x58] sm:$0xff] 0.0
    %31 = vst [vmem:[#allocation2 + $0x60] sm:$0xff] 0.0
    %32 = vst [vmem:[#allocation2 + $0x68] sm:$0xff] 0.0
    %33 = vst [vmem:[#allocation2 + $0x70] sm:$0xff] 0.0
    %34 = vst [vmem:[#allocation2 + $0x78] sm:$0xff] 0.0
  $region13: #{block_group_forward.12} parent=0 // pred_fallthru
    _
  %v35 = vld [vmem:[#allocation2] sm:$0xff]
  %v36 = vld [vmem:[#allocation2 + $0x8] sm:$0xff]
  %v37 = vld [vmem:[#allocation2 + $0x10] sm:$0xff]
  %v38 = vld [vmem:[#allocation2 + $0x18] sm:$0xff]
  %v39 = vld [vmem:[#allocation2 + $0x20] sm:$0xff]
  %v40 = vld [vmem:[#allocation2 + $0x28] sm:$0xff]
  %v41 = vld [vmem:[#allocation2 + $0x30] sm:$0xff]
  %v42 = vld [vmem:[#allocation2 + $0x38] sm:$0xff]
  %v43 = vld [vmem:[#allocation2 + $0x40] sm:$0xff]
  %v44 = vld [vmem:[#allocation2 + $0x48] sm:$0xff]
  %v45 = vld [vmem:[#allocation2 + $0x50] sm:$0xff]
  %v46 = vld [vmem:[#allocation2 + $0x58] sm:$0xff]
  %v47 = vld [vmem:[#allocation2 + $0x60] sm:$0xff]
  %v48 = vld [vmem:[#allocation2 + $0x68] sm:$0xff]
  %v49 = vld [vmem:[#allocation2 + $0x70] sm:$0xff]
  %v50 = vld [vmem:[#allocation2 + $0x78] sm:$0xff]
  %v51 = vld [vmem:[%s0] sm:$0xf]
  %v52 = vld [vmem:[%s0 + $0x4] sm:$0xf]
  %v53 = vld [vmem:[%s0 + $0x8] sm:$0xf]
  %v54 = vld [vmem:[%s0 + $0xc] sm:$0xf]
  %v55 = vld [vmem:[%s0 + $0x10] sm:$0xf]
  %v56 = vld [vmem:[%s0 + $0x14] sm:$0xf]
  %v57 = vld [vmem:[%s0 + $0x18] sm:$0xf]
  %v58 = vld [vmem:[%s0 + $0x1c] sm:$0xf]
  %v59 = vld [vmem:[%s0 + $0x20] sm:$0xf]
  %v60 = vld [vmem:[%s0 + $0x24] sm:$0xf]
  %v61 = vld [vmem:[%s0 + $0x28] sm:$0xf]
  %v62 = vld [vmem:[%s0 + $0x2c] sm:$0xf]
  %v63 = vld [vmem:[%s0 + $0x30] sm:$0xf]
  %v64 = vld [vmem:[%s0 + $0x34] sm:$0xf]
  %v65 = vld [vmem:[%s0 + $0x38] sm:$0xf]
  %v66 = vld [vmem:[%s0 + $0x3c] sm:$0xf]
  %v67 = vld [vmem:[%s1] sm:$0xf]
  %v68 = vld [vmem:[%s1 + $0x4] sm:$0xf]
  %v69 = vld [vmem:[%s1 + $0x8] sm:$0xf]
  %v70 = vld [vmem:[%s1 + $0xc] sm:$0xf]
  %v71 = vld [vmem:[%s1 + $0x10] sm:$0xf]
  %v72 = vld [vmem:[%s1 + $0x14] sm:$0xf]
  %v73 = vld [vmem:[%s1 + $0x18] sm:$0xf]
  %v74 = vld [vmem:[%s1 + $0x1c] sm:$0xf]
  %v75 = vld [vmem:[%s1 + $0x20] sm:$0xf]
  %v76 = vld [vmem:[%s1 + $0x24] sm:$0xf]
  %v77 = vld [vmem:[%s1 + $0x28] sm:$0xf]
  %v78 = vld [vmem:[%s1 + $0x2c] sm:$0xf]
  %v79 = vld [vmem:[%s1 + $0x30] sm:$0xf]
  %v80 = vld [vmem:[%s1 + $0x34] sm:$0xf]
  %v81 = vld [vmem:[%s1 + $0x38] sm:$0xf]
  %v82 = vld [vmem:[%s1 + $0x3c] sm:$0xf]
  %v99 = vunpack.c.l.b16 %v51
  %v100 = vunpack.c.l.b16 %v52
  %v101 = vunpack.c.l.b16 %v53
  %v102 = vunpack.c.l.b16 %v54
  %v103 = vunpack.c.l.b16 %v55
  %v104 = vunpack.c.l.b16 %v56
  %v105 = vunpack.c.l.b16 %v57
  %v106 = vunpack.c.l.b16 %v58
  %v107 = vunpack.c.l.b16 %v59
  %v108 = vunpack.c.l.b16 %v60
  %v109 = vunpack.c.l.b16 %v61
  %v110 = vunpack.c.l.b16 %v62
  %v111 = vunpack.c.l.b16 %v63
  %v112 = vunpack.c.l.b16 %v64
  %v113 = vunpack.c.l.b16 %v65
  %v114 = vunpack.c.l.b16 %v66
  %v115 = vpack.c.b16 %v100, %v99
  %v116 = vpack.c.b16 %v102, %v101
  %v117 = vpack.c.b16 %v104, %v103
  %v118 = vpack.c.b16 %v106, %v105
  %v119 = vpack.c.b16 %v108, %v107
  %v120 = vpack.c.b16 %v110, %v109
  %v121 = vpack.c.b16 %v112, %v111
  %v122 = vpack.c.b16 %v114, %v113
  %v147 = vunpack.c.l.b16 %v67
  %v148 = vunpack.c.l.b16 %v68
  %v149 = vunpack.c.l.b16 %v69
  %v150 = vunpack.c.l.b16 %v70
  %v151 = vunpack.c.l.b16 %v71
  %v152 = vunpack.c.l.b16 %v72
  %v153 = vunpack.c.l.b16 %v73
  %v154 = vunpack.c.l.b16 %v74
  %v155 = vunpack.c.l.b16 %v75
  %v156 = vunpack.c.l.b16 %v76
  %v157 = vunpack.c.l.b16 %v77
  %v158 = vunpack.c.l.b16 %v78
  %v159 = vunpack.c.l.b16 %v79
  %v160 = vunpack.c.l.b16 %v80
  %v161 = vunpack.c.l.b16 %v81
  %v162 = vunpack.c.l.b16 %v82
  %v163 = vpack.c.b16 %v148, %v147
  %v164 = vpack.c.b16 %v150, %v149
  %v165 = vpack.c.b16 %v152, %v151
  %v166 = vpack.c.b16 %v154, %v153
  %v167 = vpack.c.b16 %v156, %v155
  %v168 = vpack.c.b16 %v158, %v157
  %v169 = vpack.c.b16 %v160, %v159
  %v170 = vpack.c.b16 %v162, %v161
  %179 = vmatprep.subr.bf16.mxu0 0
  %180 = vmatpush1.bf16.msra.mxu0 %v170
  %181 = vmatprep.subr.bf16.mxu0 0
  %182 = vmatpush1.bf16.msra.mxu0 %v169
  %183 = vmatprep.subr.bf16.mxu0 0
  %184 = vmatpush1.bf16.msra.mxu0 %v168
  %185 = vmatprep.subr.bf16.mxu0 0
  %186 = vmatpush1.bf16.msra.mxu0 %v167
  %187 = vmatprep.subr.bf16.mxu0 0
  %188 = vmatpush1.bf16.msra.mxu0 %v166
  %189 = vmatprep.subr.bf16.mxu0 0
  %190 = vmatpush1.bf16.msra.mxu0 %v165
  %191 = vmatprep.subr.bf16.mxu0 0
  %192 = vmatpush1.bf16.msra.mxu0 %v164
  %193 = vmatprep.subr.bf16.mxu0 0
  %194 = vmatpush1.bf16.msra.mxu0 %v163
  %195 = vmatprep.subr.bf16.mxu0 0
  %196 = vmatpush2.bf16.msra.mxu0 0
  %197 = vmatprep.subr.bf16.mxu0 0
  %198 = vmatpush2.bf16.msra.mxu0 0
  %199 = vmatprep.subr.bf16.mxu0 0
  %200 = vmatpush2.bf16.msra.mxu0 0
  %201 = vmatprep.subr.bf16.mxu0 0
  %202 = vmatpush2.bf16.msra.mxu0 0
  %203 = vmatprep.subr.bf16.mxu0 0
  %204 = vmatpush2.bf16.msra.mxu0 0
  %205 = vmatprep.subr.bf16.mxu0 0
  %206 = vmatpush2.bf16.msra.mxu0 0
  %207 = vmatprep.subr.bf16.mxu0 0
  %208 = vmatpush2.bf16.msra.mxu0 0
  %209 = vmatprep.subr.bf16.mxu0 0
  %210 = vmatpush2.bf16.msra.mxu0 0
  %211 = vmatprep.mubr.bf16.mxu0 0
  %212 = vmatmul.mubr.bf16.gmra.mxu0 %v115
  %v213 = vpop.f32.mrf.mxu0
  %v214 = vadd.f32 0.0, %v213
  %v215 = vpop.f32.mrf.mxu0
  %v216 = vpop.f32.mrf.mxu0
  %v217 = vadd.f32 0.0, %v216
  %v218 = vpop.f32.mrf.mxu0
  %219 = vmatprep.mubr.bf16.mxu0 0
  %220 = vmatmul.mubr.bf16.gmra.mxu0 %v116
  %v221 = vpop.f32.mrf.mxu0
  %v222 = vadd.f32 0.0, %v221
  %v223 = vpop.f32.mrf.mxu0
  %v224 = vpop.f32.mrf.mxu0
  %v225 = vadd.f32 0.0, %v224
  %v226 = vpop.f32.mrf.mxu0
  %227 = vmatprep.mubr.bf16.mxu0 0
  %228 = vmatmul.mubr.bf16.gmra.mxu0 %v117
  %v229 = vpop.f32.mrf.mxu0
  %v230 = vadd.f32 0.0, %v229
  %v231 = vpop.f32.mrf.mxu0
  %v232 = vpop.f32.mrf.mxu0
  %v233 = vadd.f32 0.0, %v232
  %v234 = vpop.f32.mrf.mxu0
  %235 = vmatprep.mubr.bf16.mxu0 0
  %236 = vmatmul.mubr.bf16.gmra.mxu0 %v118
  %v237 = vpop.f32.mrf.mxu0
  %v238 = vadd.f32 0.0, %v237
  %v239 = vpop.f32.mrf.mxu0
  %v240 = vpop.f32.mrf.mxu0
  %v241 = vadd.f32 0.0, %v240
  %v242 = vpop.f32.mrf.mxu0
  %243 = vmatprep.mubr.bf16.mxu0 0
  %244 = vmatmul.mubr.bf16.gmra.mxu0 %v119
  %v245 = vpop.f32.mrf.mxu0
  %v246 = vadd.f32 0.0, %v245
  %v247 = vpop.f32.mrf.mxu0
  %v248 = vpop.f32.mrf.mxu0
  %v249 = vadd.f32 0.0, %v248
  %v250 = vpop.f32.mrf.mxu0
  %251 = vmatprep.mubr.bf16.mxu0 0
  %252 = vmatmul.mubr.bf16.gmra.mxu0 %v120
  %v253 = vpop.f32.mrf.mxu0
  %v254 = vadd.f32 0.0, %v253
  %v255 = vpop.f32.mrf.mxu0
  %v256 = vpop.f32.mrf.mxu0
  %v257 = vadd.f32 0.0, %v256
  %v258 = vpop.f32.mrf.mxu0
  %259 = vmatprep.mubr.bf16.mxu0 0
  %260 = vmatmul.mubr.bf16.gmra.mxu0 %v121
  %v261 = vpop.f32.mrf.mxu0
  %v262 = vadd.f32 0.0, %v261
  %v263 = vpop.f32.mrf.mxu0
  %v264 = vpop.f32.mrf.mxu0
  %v265 = vadd.f32 0.0, %v264
  %v266 = vpop.f32.mrf.mxu0
  %267 = vmatprep.mubr.bf16.mxu0 0
  %268 = vmatmul.mubr.bf16.gmra.mxu0 %v122
  %v269 = vpop.f32.mrf.mxu0
  %v270 = vadd.f32 0.0, %v269
  %v271 = vpop.f32.mrf.mxu0
  %v272 = vpop.f32.mrf.mxu0
  %v273 = vadd.f32 0.0, %v272
  %v274 = vpop.f32.mrf.mxu0
  %275 = vdwg.mxu0
  %v276 = vadd.f32 %v35, %v214
  %v277 = vadd.f32 %v36, %v217
  %v278 = vadd.f32 %v37, %v222
  %v279 = vadd.f32 %v38, %v225
  %v280 = vadd.f32 %v39, %v230
  %v281 = vadd.f32 %v40, %v233
  %v282 = vadd.f32 %v41, %v238
  %v283 = vadd.f32 %v42, %v241
  %v284 = vadd.f32 %v43, %v246
  %v285 = vadd.f32 %v44, %v249
  %v286 = vadd.f32 %v45, %v254
  %v287 = vadd.f32 %v46, %v257
  %v288 = vadd.f32 %v47, %v262
  %v289 = vadd.f32 %v48, %v265
  %v290 = vadd.f32 %v49, %v270
  %v291 = vadd.f32 %v50, %v273
  %292 = vst [vmem:[#allocation2] sm:$0xff] %v276
  %293 = vst [vmem:[#allocation2 + $0x8] sm:$0xff] %v277
  %294 = vst [vmem:[#allocation2 + $0x10] sm:$0xff] %v278
  %295 = vst [vmem:[#allocation2 + $0x18] sm:$0xff] %v279
  %296 = vst [vmem:[#allocation2 + $0x20] sm:$0xff] %v280
  %297 = vst [vmem:[#allocation2 + $0x28] sm:$0xff] %v281
  %298 = vst [vmem:[#allocation2 + $0x30] sm:$0xff] %v282
  %299 = vst [vmem:[#allocation2 + $0x38] sm:$0xff] %v283
  %300 = vst [vmem:[#allocation2 + $0x40] sm:$0xff] %v284
  %301 = vst [vmem:[#allocation2 + $0x48] sm:$0xff] %v285
  %302 = vst [vmem:[#allocation2 + $0x50] sm:$0xff] %v286
  %303 = vst [vmem:[#allocation2 + $0x58] sm:$0xff] %v287
  %304 = vst [vmem:[#allocation2 + $0x60] sm:$0xff] %v288
  %305 = vst [vmem:[#allocation2 + $0x68] sm:$0xff] %v289
  %306 = vst [vmem:[#allocation2 + $0x70] sm:$0xff] %v290
  %307 = vst [vmem:[#allocation2 + $0x78] sm:$0xff] %v291
  // Predicated region
  $region14: #{block_group_forward.12} parent=0 // pred_check
    %p308 = pneg %p15
  $region15: #{block_group_forward.12} parent=0 // pred_check_branch
    %310 = sbr.rel (%p308) target = $region17
  $region16: #{block_group_forward.12} parent=0 // pred_region
    %v311 = vld [vmem:[#allocation2] sm:$0xff]
    %v312 = vld [vmem:[#allocation2 + $0x8] sm:$0xff]
    %v313 = vld [vmem:[#allocation2 + $0x10] sm:$0xff]
    %v314 = vld [vmem:[#allocation2 + $0x18] sm:$0xff]
    %v315 = vld [vmem:[#allocation2 + $0x20] sm:$0xff]
    %v316 = vld [vmem:[#allocation2 + $0x28] sm:$0xff]
    %v317 = vld [vmem:[#allocation2 + $0x30] sm:$0xff]
    %v318 = vld [vmem:[#allocation2 + $0x38] sm:$0xff]
    %v319 = vld [vmem:[#allocation2 + $0x40] sm:$0xff]
    %v320 = vld [vmem:[#allocation2 + $0x48] sm:$0xff]
    %v321 = vld [vmem:[#allocation2 + $0x50] sm:$0xff]
    %v322 = vld [vmem:[#allocation2 + $0x58] sm:$0xff]
    %v323 = vld [vmem:[#allocation2 + $0x60] sm:$0xff]
    %v324 = vld [vmem:[#allocation2 + $0x68] sm:$0xff]
    %v325 = vld [vmem:[#allocation2 + $0x70] sm:$0xff]
    %v326 = vld [vmem:[#allocation2 + $0x78] sm:$0xff]
    %327 = vst [vmem:[%s2] sm:$0xff] %v311
    %328 = vst [vmem:[%s2 + $0x8] sm:$0xff] %v312
    %329 = vst [vmem:[%s2 + $0x10] sm:$0xff] %v313
    %330 = vst [vmem:[%s2 + $0x18] sm:$0xff] %v314
    %331 = vst [vmem:[%s2 + $0x20] sm:$0xff] %v315
    %332 = vst [vmem:[%s2 + $0x28] sm:$0xff] %v316
    %333 = vst [vmem:[%s2 + $0x30] sm:$0xff] %v317
    %334 = vst [vmem:[%s2 + $0x38] sm:$0xff] %v318
    %335 = vst [vmem:[%s2 + $0x40] sm:$0xff] %v319
    %336 = vst [vmem:[%s2 + $0x48] sm:$0xff] %v320
    %337 = vst [vmem:[%s2 + $0x50] sm:$0xff] %v321
    %338 = vst [vmem:[%s2 + $0x58] sm:$0xff] %v322
    %339 = vst [vmem:[%s2 + $0x60] sm:$0xff] %v323
    %340 = vst [vmem:[%s2 + $0x68] sm:$0xff] %v324
    %341 = vst [vmem:[%s2 + $0x70] sm:$0xff] %v325
    %342 = vst [vmem:[%s2 + $0x78] sm:$0xff] %v326
    %v343 = vadd.f32 %v311, %v312
    %v344 = vadd.f32 %v343, %v313
    %v345 = vadd.f32 %v344, %v314
    %v346 = vadd.f32 %v345, %v315
    %v347 = vadd.f32 %v346, %v316
    %v348 = vadd.f32 %v347, %v317
    %v349 = vadd.f32 %v348, %v318
    %v350 = vadd.f32 %v349, %v319
    %v351 = vadd.f32 %v350, %v320
    %v352 = vadd.f32 %v351, %v321
    %v353 = vadd.f32 %v352, %v322
    %v354 = vadd.f32 %v353, %v323
    %v355 = vadd.f32 %v354, %v324
    %v356 = vadd.f32 %v355, %v325
    %v357 = vadd.f32 %v356, %v326
    %v358 = vrot.slane %v357, 4
    %v359 = vadd.f32 %v357, %v358
    %v360 = vrot.slane %v359, 2
    %v361 = vadd.f32 %v359, %v360
    %v362 = vrot.slane %v361, 1
    %v363 = vadd.f32 %v361, %v362
    %364 = vst [vmem:[%s3] sm:$0x1] %v363
    %v365 = vmul.f32 %v311, %v311
    %v366 = vmul.f32 %v312, %v312
    %v367 = vmul.f32 %v313, %v313
    %v368 = vmul.f32 %v314, %v314
    %v369 = vmul.f32 %v315, %v315
    %v370 = vmul.f32 %v316, %v316
    %v371 = vmul.f32 %v317, %v317
    %v372 = vmul.f32 %v318, %v318
    %v373 = vmul.f32 %v319, %v319
    %v374 = vmul.f32 %v320, %v320
    %v375 = vmul.f32 %v321, %v321
    %v376 = vmul.f32 %v322, %v322
    %v377 = vmul.f32 %v323, %v323
    %v378 = vmul.f32 %v324, %v324
    %v379 = vmul.f32 %v325, %v325
    %v380 = vmul.f32 %v326, %v326
    %v381 = vadd.f32 %v365, %v366
    %v382 = vadd.f32 %v381, %v367
    %v383 = vadd.f32 %v382, %v368
    %v384 = vadd.f32 %v383, %v369
    %v385 = vadd.f32 %v384, %v370
    %v386 = vadd.f32 %v385, %v371
    %v387 = vadd.f32 %v386, %v372
    %v388 = vadd.f32 %v387, %v373
    %v389 = vadd.f32 %v388, %v374
    %v390 = vadd.f32 %v389, %v375
    %v391 = vadd.f32 %v390, %v376
    %v392 = vadd.f32 %v391, %v377
    %v393 = vadd.f32 %v392, %v378
    %v394 = vadd.f32 %v393, %v379
    %v395 = vadd.f32 %v394, %v380
    %v396 = vrot.slane %v395, 4
    %v397 = vadd.f32 %v395, %v396
    %v398 = vrot.slane %v397, 2
    %v399 = vadd.f32 %v397, %v398
    %v400 = vrot.slane %v399, 1
    %v401 = vadd.f32 %v399, %v400
    %402 = vst [vmem:[%s4] sm:$0x1] %v401
  $region17: #{block_group_forward.12} parent=0 // pred_fallthru
    _
  // Predicated region
  $region18: #{block_group_forward.12} parent=0 // pred_check
    _
  $region19: #{block_group_forward.12} parent=0 // pred_check_branch
    %404 = sbr.rel (0) target = $region21
  $region20: #{block_group_forward.12} parent=0 // pred_region
    _
  $region21: #{block_group_forward.12} parent=0 // pred_fallthru
    _
  // Predicated region
  $region22: #{block_group_forward.12} parent=0 // pred_check
    _
  $region23: #{block_group_forward.12} parent=0 // pred_check_branch
    %406 = sbr.rel (0) target = $region25
  $region24: #{block_group_forward.12} parent=0 // pred_region
    _
  $region25: #{block_group_forward.12} parent=0 // pred_fallthru
    _
  // Predicated region
  $region26: #{block_group_forward.12} parent=0 // pred_check
    _
  $region27: #{block_group_forward.12} parent=0 // pred_check_branch
    %408 = sbr.rel (0) target = $region29
  $region28: #{block_group_forward.12} parent=0 // pred_region
    _
  $region29: #{block_group_forward.12} parent=0 // pred_fallthru
    _
  // Predicated region
  $region30: #{block_group_forward.12} parent=0 // pred_check
    _
  $region31: #{block_group_forward.12} parent=0 // pred_check_branch
    %410 = sbr.rel (0) target = $region33
  $region32: #{block_group_forward.12} parent=0 // pred_region
    _
  $region33: #{block_group_forward.12} parent=0 // pred_fallthru
    _
  // Predicated region
  $region34: #{block_group_forward.12} parent=0 // pred_check
    _
  $region35: #{block_group_forward.12} parent=0 // pred_check_branch
    %412 = sbr.rel (0) target = $region37
  $region36: #{block_group_forward.12} parent=0 // pred_region
    _
  $region37: #{block_group_forward.12} parent=0 // pred_fallthru
    _
  // Predicated region
  $region38: #{block_group_forward.12} parent=0 // pred_check
    _
  $region39: #{block_group_forward.12} parent=0 // pred_check_branch
    %414 = sbr.rel (0) target = $region41
  $region40: #{block_group_forward.12} parent=0 // pred_region
    _
  $region41: #{block_group_forward.12} parent=0 // pred_fallthru
    _

// kernel: block_group_forward.9
$region0: #{block_group_forward.9}
  #allocation0 [shape = 'u32[]', space=smem, size = 0x4, offset = 0x4, fixed_abs, tag = 'smem constant byte address 0x4 - core index']
  #allocation1 [shape = 'u32[144,128]{1,0:T(1,128)}', space=vmem, size = 0x12000, scoped, tag = 'internal scratch']
  #allocation2 [shape = 'f32[512,128]{1,0:T(8,128)}', space=vmem, size = 0x40000, scoped, tag = 'scratch operand']
  %s0 = inlined_call_operand.vmem [shape: bf16[512,128], index: 0, kind: input, shape index: {}]
  %s1 = inlined_call_operand.vmem [shape: bf16[128,128], index: 1, kind: input, shape index: {}]
  %s2 = inlined_call_operand.vmem [shape: f32[512,128], index: 2, kind: output, shape index: {0}]
  %s3 = inlined_call_operand.vmem [shape: f32[1,1,128], index: 3, kind: output, shape index: {1}]
  %s4 = inlined_call_operand.vmem [shape: f32[1,1,128], index: 4, kind: output, shape index: {2}]
  %5 = xla_tuple %s2, %s3, %s4
  %s6 = sld [smem:[#allocation0]]
  $region42: #{block_group_forward.9} parent=0
    _
  %s8 = ssub.s32 1, %s6
  %s9 = scalar_select 0, %s8, %s6
  // Predicated region
  $region2: #{block_group_forward.9} parent=0 // pred_check
    _
  $region3: #{block_group_forward.9} parent=0 // pred_check_branch
    %11 = sbr.rel (0) target = $region5
  $region4: #{block_group_forward.9} parent=0 // pred_region
    _
  $region5: #{block_group_forward.9} parent=0 // pred_fallthru
    _
  // Predicated region
  $region6: #{block_group_forward.9} parent=0 // pred_check
    _
  $region7: #{block_group_forward.9} parent=0 // pred_check_branch
    %13 = sbr.rel (0) target = $region9
  $region8: #{block_group_forward.9} parent=0 // pred_region
    _
  $region9: #{block_group_forward.9} parent=0 // pred_fallthru
    _
  %p15 = scmp.eq.s32.totalorder 0, 0
  // Predicated region
  $region10: #{block_group_forward.9} parent=0 // pred_check
    %p16 = pneg %p15
  $region11: #{block_group_forward.9} parent=0 // pred_check_branch
    %18 = sbr.rel (%p16) target = $region13
  $region12: #{block_group_forward.9} parent=0 // pred_region
    %19 = vst [vmem:[#allocation2] sm:$0xff] 0.0
    %20 = vst [vmem:[#allocation2 + $0x8] sm:$0xff] 0.0
    %21 = vst [vmem:[#allocation2 + $0x10] sm:$0xff] 0.0
    %22 = vst [vmem:[#allocation2 + $0x18] sm:$0xff] 0.0
    %23 = vst [vmem:[#allocation2 + $0x20] sm:$0xff] 0.0
    %24 = vst [vmem:[#allocation2 + $0x28] sm:$0xff] 0.0
    %25 = vst [vmem:[#allocation2 + $0x30] sm:$0xff] 0.0
    %26 = vst [vmem:[#allocation2 + $0x38] sm:$0xff] 0.0
    %27 = vst [vmem:[#allocation2 + $0x40] sm:$0xff] 0.0
    %28 = vst [vmem:[#allocation2 + $0x48] sm:$0xff] 0.0
    %29 = vst [vmem:[#allocation2 + $0x50] sm:$0xff] 0.0
    %30 = vst [vmem:[#allocation2 + $0x58] sm:$0xff] 0.0
    %31 = vst [vmem:[#allocation2 + $0x60] sm:$0xff] 0.0
    %32 = vst [vmem:[#allocation2 + $0x68] sm:$0xff] 0.0
    %33 = vst [vmem:[#allocation2 + $0x70] sm:$0xff] 0.0
    %34 = vst [vmem:[#allocation2 + $0x78] sm:$0xff] 0.0
    %35 = vst [vmem:[#allocation2 + $0x80] sm:$0xff] 0.0
    %36 = vst [vmem:[#allocation2 + $0x88] sm:$0xff] 0.0
    %37 = vst [vmem:[#allocation2 + $0x90] sm:$0xff] 0.0
    %38 = vst [vmem:[#allocation2 + $0x98] sm:$0xff] 0.0
    %39 = vst [vmem:[#allocation2 + $0xa0] sm:$0xff] 0.0
    %40 = vst [vmem:[#allocation2 + $0xa8] sm:$0xff] 0.0
    %41 = vst [vmem:[#allocation2 + $0xb0] sm:$0xff] 0.0
    %42 = vst [vmem:[#allocation2 + $0xb8] sm:$0xff] 0.0
    %43 = vst [vmem:[#allocation2 + $0xc0] sm:$0xff] 0.0
    %44 = vst [vmem:[#allocation2 + $0xc8] sm:$0xff] 0.0
    %45 = vst [vmem:[#allocation2 + $0xd0] sm:$0xff] 0.0
    %46 = vst [vmem:[#allocation2 + $0xd8] sm:$0xff] 0.0
    %47 = vst [vmem:[#allocation2 + $0xe0] sm:$0xff] 0.0
    %48 = vst [vmem:[#allocation2 + $0xe8] sm:$0xff] 0.0
    %49 = vst [vmem:[#allocation2 + $0xf0] sm:$0xff] 0.0
    %50 = vst [vmem:[#allocation2 + $0xf8] sm:$0xff] 0.0
    %51 = vst [vmem:[#allocation2 + $0x100] sm:$0xff] 0.0
    %52 = vst [vmem:[#allocation2 + $0x108] sm:$0xff] 0.0
    %53 = vst [vmem:[#allocation2 + $0x110] sm:$0xff] 0.0
    %54 = vst [vmem:[#allocation2 + $0x118] sm:$0xff] 0.0
    %55 = vst [vmem:[#allocation2 + $0x120] sm:$0xff] 0.0
    %56 = vst [vmem:[#allocation2 + $0x128] sm:$0xff] 0.0
    %57 = vst [vmem:[#allocation2 + $0x130] sm:$0xff] 0.0
    %58 = vst [vmem:[#allocation2 + $0x138] sm:$0xff] 0.0
    %59 = vst [vmem:[#allocation2 + $0x140] sm:$0xff] 0.0
    %60 = vst [vmem:[#allocation2 + $0x148] sm:$0xff] 0.0
    %61 = vst [vmem:[#allocation2 + $0x150] sm:$0xff] 0.0
    %62 = vst [vmem:[#allocation2 + $0x158] sm:$0xff] 0.0
    %63 = vst [vmem:[#allocation2 + $0x160] sm:$0xff] 0.0
    %64 = vst [vmem:[#allocation2 + $0x168] sm:$0xff] 0.0
    %65 = vst [vmem:[#allocation2 + $0x170] sm:$0xff] 0.0
    %66 = vst [vmem:[#allocation2 + $0x178] sm:$0xff] 0.0
    %67 = vst [vmem:[#allocation2 + $0x180] sm:$0xff] 0.0
    %68 = vst [vmem:[#allocation2 + $0x188] sm:$0xff] 0.0
    %69 = vst [vmem:[#allocation2 + $0x190] sm:$0xff] 0.0
    %70 = vst [vmem:[#allocation2 + $0x198] sm:$0xff] 0.0
    %71 = vst [vmem:[#allocation2 + $0x1a0] sm:$0xff] 0.0
    %72 = vst [vmem:[#allocation2 + $0x1a8] sm:$0xff] 0.0
    %73 = vst [vmem:[#allocation2 + $0x1b0] sm:$0xff] 0.0
    %74 = vst [vmem:[#allocation2 + $0x1b8] sm:$0xff] 0.0
    %75 = vst [vmem:[#allocation2 + $0x1c0] sm:$0xff] 0.0
    %76 = vst [vmem:[#allocation2 + $0x1c8] sm:$0xff] 0.0
    %77 = vst [vmem:[#allocation2 + $0x1d0] sm:$0xff] 0.0
    %78 = vst [vmem:[#allocation2 + $0x1d8] sm:$0xff] 0.0
    %79 = vst [vmem:[#allocation2 + $0x1e0] sm:$0xff] 0.0
    %80 = vst [vmem:[#allocation2 + $0x1e8] sm:$0xff] 0.0
    %81 = vst [vmem:[#allocation2 + $0x1f0] sm:$0xff] 0.0
    %82 = vst [vmem:[#allocation2 + $0x1f8] sm:$0xff] 0.0
  $region13: #{block_group_forward.9} parent=0 // pred_fallthru
    _
  %v83 = vld [vmem:[#allocation2] sm:$0xff]
  %v84 = vld [vmem:[#allocation2 + $0x8] sm:$0xff]
  %v85 = vld [vmem:[#allocation2 + $0x10] sm:$0xff]
  %v86 = vld [vmem:[#allocation2 + $0x18] sm:$0xff]
  %v87 = vld [vmem:[#allocation2 + $0x20] sm:$0xff]
  %v88 = vld [vmem:[#allocation2 + $0x28] sm:$0xff]
  %v89 = vld [vmem:[#allocation2 + $0x30] sm:$0xff]
  %v90 = vld [vmem:[#allocation2 + $0x38] sm:$0xff]
  %v91 = vld [vmem:[#allocation2 + $0x40] sm:$0xff]
  %v92 = vld [vmem:[#allocation2 + $0x48] sm:$0xff]
  %v93 = vld [vmem:[#allocation2 + $0x50] sm:$0xff]
  %v94 = vld [vmem:[#allocation2 + $0x58] sm:$0xff]
  %v95 = vld [vmem:[#allocation2 + $0x60] sm:$0xff]
  %v96 = vld [vmem:[#allocation2 + $0x68] sm:$0xff]
  %v97 = vld [vmem:[#allocation2 + $0x70] sm:$0xff]
  %v98 = vld [vmem:[#allocation2 + $0x78] sm:$0xff]
  %v99 = vld [vmem:[#allocation2 + $0x80] sm:$0xff]
  %v100 = vld [vmem:[#allocation2 + $0x88] sm:$0xff]
  %v101 = vld [vmem:[#allocation2 + $0x90] sm:$0xff]
  %v102 = vld [vmem:[#allocation2 + $0x98] sm:$0xff]
  %v103 = vld [vmem:[#allocation2 + $0xa0] sm:$0xff]
  %v104 = vld [vmem:[#allocation2 + $0xa8] sm:$0xff]
  %v105 = vld [vmem:[#allocation2 + $0xb0] sm:$0xff]
  %v106 = vld [vmem:[#allocation2 + $0xb8] sm:$0xff]
  %v107 = vld [vmem:[#allocation2 + $0xc0] sm:$0xff]
  %v108 = vld [vmem:[#allocation2 + $0xc8] sm:$0xff]
  %v109 = vld [vmem:[#allocation2 + $0xd0] sm:$0xff]
  %v110 = vld [vmem:[#allocation2 + $0xd8] sm:$0xff]
  %v111 = vld [vmem:[#allocation2 + $0xe0] sm:$0xff]
  %v112 = vld [vmem:[#allocation2 + $0xe8] sm:$0xff]
  %v113 = vld [vmem:[#allocation2 + $0xf0] sm:$0xff]
  %v114 = vld [vmem:[#allocation2 + $0xf8] sm:$0xff]
  %v115 = vld [vmem:[#allocation2 + $0x100] sm:$0xff]
  %v116 = vld [vmem:[#allocation2 + $0x108] sm:$0xff]
  %v117 = vld [vmem:[#allocation2 + $0x110] sm:$0xff]
  %v118 = vld [vmem:[#allocation2 + $0x118] sm:$0xff]
  %v119 = vld [vmem:[#allocation2 + $0x120] sm:$0xff]
  %v120 = vld [vmem:[#allocation2 + $0x128] sm:$0xff]
  %v121 = vld [vmem:[#allocation2 + $0x130] sm:$0xff]
  %v122 = vld [vmem:[#allocation2 + $0x138] sm:$0xff]
  %v123 = vld [vmem:[#allocation2 + $0x140] sm:$0xff]
  %v124 = vld [vmem:[#allocation2 + $0x148] sm:$0xff]
  %v125 = vld [vmem:[#allocation2 + $0x150] sm:$0xff]
  %v126 = vld [vmem:[#allocation2 + $0x158] sm:$0xff]
  %v127 = vld [vmem:[#allocation2 + $0x160] sm:$0xff]
  %v128 = vld [vmem:[#allocation2 + $0x168] sm:$0xff]
  %v129 = vld [vmem:[#allocation2 + $0x170] sm:$0xff]
  %v130 = vld [vmem:[#allocation2 + $0x178] sm:$0xff]
  %v131 = vld [vmem:[#allocation2 + $0x180] sm:$0xff]
  %v132 = vld [vmem:[#allocation2 + $0x188] sm:$0xff]
  %v133 = vld [vmem:[#allocation2 + $0x190] sm:$0xff]
  %v134 = vld [vmem:[#allocation2 + $0x198] sm:$0xff]
  %v135 = vld [vmem:[#allocation2 + $0x1a0] sm:$0xff]
  %v136 = vld [vmem:[#allocation2 + $0x1a8] sm:$0xff]
  %v137 = vld [vmem:[#allocation2 + $0x1b0] sm:$0xff]
  %v138 = vld [vmem:[#allocation2 + $0x1b8] sm:$0xff]
  %v139 = vld [vmem:[#allocation2 + $0x1c0] sm:$0xff]
  %v140 = vld [vmem:[#allocation2 + $0x1c8] sm:$0xff]
  %v141 = vld [vmem:[#allocation2 + $0x1d0] sm:$0xff]
  %v142 = vld [vmem:[#allocation2 + $0x1d8] sm:$0xff]
  %v143 = vld [vmem:[#allocation2 + $0x1e0] sm:$0xff]
  %v144 = vld [vmem:[#allocation2 + $0x1e8] sm:$0xff]
  %v145 = vld [vmem:[#allocation2 + $0x1f0] sm:$0xff]
  %v146 = vld [vmem:[#allocation2 + $0x1f8] sm:$0xff]
  %v147 = vld [vmem:[%s0] sm:$0xf]
  %v148 = vld [vmem:[%s0 + $0x4] sm:$0xf]
  %v149 = vld [vmem:[%s0 + $0x8] sm:$0xf]
  %v150 = vld [vmem:[%s0 + $0xc] sm:$0xf]
  %v151 = vld [vmem:[%s0 + $0x10] sm:$0xf]
  %v152 = vld [vmem:[%s0 + $0x14] sm:$0xf]
  %v153 = vld [vmem:[%s0 + $0x18] sm:$0xf]
  %v154 = vld [vmem:[%s0 + $0x1c] sm:$0xf]
  %v155 = vld [vmem:[%s0 + $0x20] sm:$0xf]
  %v156 = vld [vmem:[%s0 + $0x24] sm:$0xf]
  %v157 = vld [vmem:[%s0 + $0x28] sm:$0xf]
  %v158 = vld [vmem:[%s0 + $0x2c] sm:$0xf]
  %v159 = vld [vmem:[%s0 + $0x30] sm:$0xf]
  %v160 = vld [vmem:[%s0 + $0x34] sm:$0xf]
  %v161 = vld [vmem:[%s0 + $0x38] sm:$0xf]
  %v162 = vld [vmem:[%s0 + $0x3c] sm:$0xf]
  %v163 = vld [vmem:[%s0 + $0x40] sm:$0xf]
  %v164 = vld [vmem:[%s0 + $0x44] sm:$0xf]
  %v165 = vld [vmem:[%s0 + $0x48] sm:$0xf]
  %v166 = vld [vmem:[%s0 + $0x4c] sm:$0xf]
  %v167 = vld [vmem:[%s0 + $0x50] sm:$0xf]
  %v168 = vld [vmem:[%s0 + $0x54] sm:$0xf]
  %v169 = vld [vmem:[%s0 + $0x58] sm:$0xf]
  %v170 = vld [vmem:[%s0 + $0x5c] sm:$0xf]
  %v171 = vld [vmem:[%s0 + $0x60] sm:$0xf]
  %v172 = vld [vmem:[%s0 + $0x64] sm:$0xf]
  %v173 = vld [vmem:[%s0 + $0x68] sm:$0xf]
  %v174 = vld [vmem:[%s0 + $0x6c] sm:$0xf]
  %v175 = vld [vmem:[%s0 + $0x70] sm:$0xf]
  %v176 = vld [vmem:[%s0 + $0x74] sm:$0xf]
  %v177 = vld [vmem:[%s0 + $0x78] sm:$0xf]
  %v178 = vld [vmem:[%s0 + $0x7c] sm:$0xf]
  %v179 = vld [vmem:[%s0 + $0x80] sm:$0xf]
  %v180 = vld [vmem:[%s0 + $0x84] sm:$0xf]
  %v181 = vld [vmem:[%s0 + $0x88] sm:$0xf]
  %v182 = vld [vmem:[%s0 + $0x8c] sm:$0xf]
  %v183 = vld [vmem:[%s0 + $0x90] sm:$0xf]
  %v184 = vld [vmem:[%s0 + $0x94] sm:$0xf]
  %v185 = vld [vmem:[%s0 + $0x98] sm:$0xf]
  %v186 = vld [vmem:[%s0 + $0x9c] sm:$0xf]
  %v187 = vld [vmem:[%s0 + $0xa0] sm:$0xf]
  %v188 = vld [vmem:[%s0 + $0xa4] sm:$0xf]
  %v189 = vld [vmem:[%s0 + $0xa8] sm:$0xf]
  %v190 = vld [vmem:[%s0 + $0xac] sm:$0xf]
  %v191 = vld [vmem:[%s0 + $0xb0] sm:$0xf]
  %v192 = vld [vmem:[%s0 + $0xb4] sm:$0xf]
  %v193 = vld [vmem:[%s0 + $0xb8] sm:$0xf]
  %v194 = vld [vmem:[%s0 + $0xbc] sm:$0xf]
  %v195 = vld [vmem:[%s0 + $0xc0] sm:$0xf]
  %v196 = vld [vmem:[%s0 + $0xc4] sm:$0xf]
  %v197 = vld [vmem:[%s0 + $0xc8] sm:$0xf]
  %v198 = vld [vmem:[%s0 + $0xcc] sm:$0xf]
  %v199 = vld [vmem:[%s0 + $0xd0] sm:$0xf]
  %v200 = vld [vmem:[%s0 + $0xd4] sm:$0xf]
  %v201 = vld [vmem:[%s0 + $0xd8] sm:$0xf]
  %v202 = vld [vmem:[%s0 + $0xdc] sm:$0xf]
  %v203 = vld [vmem:[%s0 + $0xe0] sm:$0xf]
  %v204 = vld [vmem:[%s0 + $0xe4] sm:$0xf]
  %v205 = vld [vmem:[%s0 + $0xe8] sm:$0xf]
  %v206 = vld [vmem:[%s0 + $0xec] sm:$0xf]
  %v207 = vld [vmem:[%s0 + $0xf0] sm:$0xf]
  %v208 = vld [vmem:[%s0 + $0xf4] sm:$0xf]
  %v209 = vld [vmem:[%s0 + $0xf8] sm:$0xf]
  %v210 = vld [vmem:[%s0 + $0xfc] sm:$0xf]
  %v211 = vld [vmem:[%s1] sm:$0xf]
  %v212 = vld [vmem:[%s1 + $0x4] sm:$0xf]
  %v213 = vld [vmem:[%s1 + $0x8] sm:$0xf]
  %v214 = vld [vmem:[%s1 + $0xc] sm:$0xf]
  %v215 = vld [vmem:[%s1 + $0x10] sm:$0xf]
  %v216 = vld [vmem:[%s1 + $0x14] sm:$0xf]
  %v217 = vld [vmem:[%s1 + $0x18] sm:$0xf]
  %v218 = vld [vmem:[%s1 + $0x1c] sm:$0xf]
  %v219 = vld [vmem:[%s1 + $0x20] sm:$0xf]
  %v220 = vld [vmem:[%s1 + $0x24] sm:$0xf]
  %v221 = vld [vmem:[%s1 + $0x28] sm:$0xf]
  %v222 = vld [vmem:[%s1 + $0x2c] sm:$0xf]
  %v223 = vld [vmem:[%s1 + $0x30] sm:$0xf]
  %v224 = vld [vmem:[%s1 + $0x34] sm:$0xf]
  %v225 = vld [vmem:[%s1 + $0x38] sm:$0xf]
  %v226 = vld [vmem:[%s1 + $0x3c] sm:$0xf]
  %v291 = vunpack.c.l.b16 %v147
  %v292 = vunpack.c.l.b16 %v148
  %v293 = vunpack.c.l.b16 %v149
  %v294 = vunpack.c.l.b16 %v150
  %v295 = vunpack.c.l.b16 %v151
  %v296 = vunpack.c.l.b16 %v152
  %v297 = vunpack.c.l.b16 %v153
  %v298 = vunpack.c.l.b16 %v154
  %v299 = vunpack.c.l.b16 %v155
  %v300 = vunpack.c.l.b16 %v156
  %v301 = vunpack.c.l.b16 %v157
  %v302 = vunpack.c.l.b16 %v158
  %v303 = vunpack.c.l.b16 %v159
  %v304 = vunpack.c.l.b16 %v160
  %v305 = vunpack.c.l.b16 %v161
  %v306 = vunpack.c.l.b16 %v162
  %v307 = vunpack.c.l.b16 %v163
  %v308 = vunpack.c.l.b16 %v164
  %v309 = vunpack.c.l.b16 %v165
  %v310 = vunpack.c.l.b16 %v166
  %v311 = vunpack.c.l.b16 %v167
  %v312 = vunpack.c.l.b16 %v168
  %v313 = vunpack.c.l.b16 %v169
  %v314 = vunpack.c.l.b16 %v170
  %v315 = vunpack.c.l.b16 %v171
  %v316 = vunpack.c.l.b16 %v172
  %v317 = vunpack.c.l.b16 %v173
  %v318 = vunpack.c.l.b16 %v174
  %v319 = vunpack.c.l.b16 %v175
  %v320 = vunpack.c.l.b16 %v176
  %v321 = vunpack.c.l.b16 %v177
  %v322 = vunpack.c.l.b16 %v178
  %v323 = vunpack.c.l.b16 %v179
  %v324 = vunpack.c.l.b16 %v180
  %v325 = vunpack.c.l.b16 %v181
  %v326 = vunpack.c.l.b16 %v182
  %v327 = vunpack.c.l.b16 %v183
  %v328 = vunpack.c.l.b16 %v184
  %v329 = vunpack.c.l.b16 %v185
  %v330 = vunpack.c.l.b16 %v186
  %v331 = vunpack.c.l.b16 %v187
  %v332 = vunpack.c.l.b16 %v188
  %v333 = vunpack.c.l.b16 %v189
  %v334 = vunpack.c.l.b16 %v190
  %v335 = vunpack.c.l.b16 %v191
  %v336 = vunpack.c.l.b16 %v192
  %v337 = vunpack.c.l.b16 %v193
  %v338 = vunpack.c.l.b16 %v194
  %v339 = vunpack.c.l.b16 %v195
  %v340 = vunpack.c.l.b16 %v196
  %v341 = vunpack.c.l.b16 %v197
  %v342 = vunpack.c.l.b16 %v198
  %v343 = vunpack.c.l.b16 %v199
  %v344 = vunpack.c.l.b16 %v200
  %v345 = vunpack.c.l.b16 %v201
  %v346 = vunpack.c.l.b16 %v202
  %v347 = vunpack.c.l.b16 %v203
  %v348 = vunpack.c.l.b16 %v204
  %v349 = vunpack.c.l.b16 %v205
  %v350 = vunpack.c.l.b16 %v206
  %v351 = vunpack.c.l.b16 %v207
  %v352 = vunpack.c.l.b16 %v208
  %v353 = vunpack.c.l.b16 %v209
  %v354 = vunpack.c.l.b16 %v210
  %v355 = vpack.c.b16 %v292, %v291
  %v356 = vpack.c.b16 %v294, %v293
  %v357 = vpack.c.b16 %v296, %v295
  %v358 = vpack.c.b16 %v298, %v297
  %v359 = vpack.c.b16 %v300, %v299
  %v360 = vpack.c.b16 %v302, %v301
  %v361 = vpack.c.b16 %v304, %v303
  %v362 = vpack.c.b16 %v306, %v305
  %v363 = vpack.c.b16 %v308, %v307
  %v364 = vpack.c.b16 %v310, %v309
  %v365 = vpack.c.b16 %v312, %v311
  %v366 = vpack.c.b16 %v314, %v313
  %v367 = vpack.c.b16 %v316, %v315
  %v368 = vpack.c.b16 %v318, %v317
  %v369 = vpack.c.b16 %v320, %v319
  %v370 = vpack.c.b16 %v322, %v321
  %v371 = vpack.c.b16 %v324, %v323
  %v372 = vpack.c.b16 %v326, %v325
  %v373 = vpack.c.b16 %v328, %v327
  %v374 = vpack.c.b16 %v330, %v329
  %v375 = vpack.c.b16 %v332, %v331
  %v376 = vpack.c.b16 %v334, %v333
  %v377 = vpack.c.b16 %v336, %v335
  %v378 = vpack.c.b16 %v338, %v337
  %v379 = vpack.c.b16 %v340, %v339
  %v380 = vpack.c.b16 %v342, %v341
  %v381 = vpack.c.b16 %v344, %v343
  %v382 = vpack.c.b16 %v346, %v345
  %v383 = vpack.c.b16 %v348, %v347
  %v384 = vpack.c.b16 %v350, %v349
  %v385 = vpack.c.b16 %v352, %v351
  %v386 = vpack.c.b16 %v354, %v353
  %v435 = vunpack.c.l.b16 %v211
  %v436 = vunpack.c.l.b16 %v212
  %v437 = vunpack.c.l.b16 %v213
  %v438 = vunpack.c.l.b16 %v214
  %v439 = vunpack.c.l.b16 %v215
  %v440 = vunpack.c.l.b16 %v216
  %v441 = vunpack.c.l.b16 %v217
  %v442 = vunpack.c.l.b16 %v218
  %v443 = vunpack.c.l.b16 %v219
  %v444 = vunpack.c.l.b16 %v220
  %v445 = vunpack.c.l.b16 %v221
  %v446 = vunpack.c.l.b16 %v222
  %v447 = vunpack.c.l.b16 %v223
  %v448 = vunpack.c.l.b16 %v224
  %v449 = vunpack.c.l.b16 %v225
  %v450 = vunpack.c.l.b16 %v226
  %v451 = vpack.c.b16 %v436, %v435
  %v452 = vpack.c.b16 %v438, %v437
  %v453 = vpack.c.b16 %v440, %v439
  %v454 = vpack.c.b16 %v442, %v441
  %v455 = vpack.c.b16 %v444, %v443
  %v456 = vpack.c.b16 %v446, %v445
  %v457 = vpack.c.b16 %v448, %v447
  %v458 = vpack.c.b16 %v450, %v449
  %467 = vmatprep.subr.bf16.mxu0 0
  %468 = vmatpush1.bf16.msra.mxu0 %v458
  %469 = vmatprep.subr.bf16.mxu0 0
  %470 = vmatpush1.bf16.msra.mxu0 %v457
  %471 = vmatprep.subr.bf16.mxu0 0
  %472 = vmatpush1.bf16.msra.mxu0 %v456
  %473 = vmatprep.subr.bf16.mxu0 0
  %474 = vmatpush1.bf16.msra.mxu0 %v455
  %475 = vmatprep.subr.bf16.mxu0 0
  %476 = vmatpush1.bf16.msra.mxu0 %v454
  %477 = vmatprep.subr.bf16.mxu0 0
  %478 = vmatpush1.bf16.msra.mxu0 %v453
  %479 = vmatprep.subr.bf16.mxu0 0
  %480 = vmatpush1.bf16.msra.mxu0 %v452
  %481 = vmatprep.subr.bf16.mxu0 0
  %482 = vmatpush1.bf16.msra.mxu0 %v451
  %483 = vmatprep.subr.bf16.mxu0 0
  %484 = vmatpush2.bf16.msra.mxu0 0
  %485 = vmatprep.subr.bf16.mxu0 0
  %486 = vmatpush2.bf16.msra.mxu0 0
  %487 = vmatprep.subr.bf16.mxu0 0
  %488 = vmatpush2.bf16.msra.mxu0 0
  %489 = vmatprep.subr.bf16.mxu0 0
  %490 = vmatpush2.bf16.msra.mxu0 0
  %491 = vmatprep.subr.bf16.mxu0 0
  %492 = vmatpush2.bf16.msra.mxu0 0
  %493 = vmatprep.subr.bf16.mxu0 0
  %494 = vmatpush2.bf16.msra.mxu0 0
  %495 = vmatprep.subr.bf16.mxu0 0
  %496 = vmatpush2.bf16.msra.mxu0 0
  %497 = vmatprep.subr.bf16.mxu0 0
  %498 = vmatpush2.bf16.msra.mxu0 0
  %499 = vmatprep.mubr.bf16.mxu0 0
  %500 = vmatmul.mubr.bf16.gmra.mxu0 %v355
  %v501 = vpop.f32.mrf.mxu0
  %v502 = vadd.f32 0.0, %v501
  %v503 = vpop.f32.mrf.mxu0
  %v504 = vpop.f32.mrf.mxu0
  %v505 = vadd.f32 0.0, %v504
  %v506 = vpop.f32.mrf.mxu0
  %507 = vmatprep.mubr.bf16.mxu0 0
  %508 = vmatmul.mubr.bf16.gmra.mxu0 %v356
  %v509 = vpop.f32.mrf.mxu0
  %v510 = vadd.f32 0.0, %v509
  %v511 = vpop.f32.mrf.mxu0
  %v512 = vpop.f32.mrf.mxu0
  %v513 = vadd.f32 0.0, %v512
  %v514 = vpop.f32.mrf.mxu0
  %515 = vmatprep.mubr.bf16.mxu0 0
  %516 = vmatmul.mubr.bf16.gmra.mxu0 %v357
  %v517 = vpop.f32.mrf.mxu0
  %v518 = vadd.f32 0.0, %v517
  %v519 = vpop.f32.mrf.mxu0
  %v520 = vpop.f32.mrf.mxu0
  %v521 = vadd.f32 0.0, %v520
  %v522 = vpop.f32.mrf.mxu0
  %523 = vmatprep.mubr.bf16.mxu0 0
  %524 = vmatmul.mubr.bf16.gmra.mxu0 %v358
  %v525 = vpop.f32.mrf.mxu0
  %v526 = vadd.f32 0.0, %v525
  %v527 = vpop.f32.mrf.mxu0
  %v528 = vpop.f32.mrf.mxu0
  %v529 = vadd.f32 0.0, %v528
  %v530 = vpop.f32.mrf.mxu0
  %531 = vmatprep.mubr.bf16.mxu0 0
  %532 = vmatmul.mubr.bf16.gmra.mxu0 %v359
  %v533 = vpop.f32.mrf.mxu0
  %v534 = vadd.f32 0.0, %v533
  %v535 = vpop.f32.mrf.mxu0
  %v536 = vpop.f32.mrf.mxu0
  %v537 = vadd.f32 0.0, %v536
  %v538 = vpop.f32.mrf.mxu0
  %539 = vmatprep.mubr.bf16.mxu0 0
  %540 = vmatmul.mubr.bf16.gmra.mxu0 %v360
  %v541 = vpop.f32.mrf.mxu0
  %v542 = vadd.f32 0.0, %v541
  %v543 = vpop.f32.mrf.mxu0
  %v544 = vpop.f32.mrf.mxu0
  %v545 = vadd.f32 0.0, %v544
  %v546 = vpop.f32.mrf.mxu0
  %547 = vmatprep.mubr.bf16.mxu0 0
  %548 = vmatmul.mubr.bf16.gmra.mxu0 %v361
  %v549 = vpop.f32.mrf.mxu0
  %v550 = vadd.f32 0.0, %v549
  %v551 = vpop.f32.mrf.mxu0
  %v552 = vpop.f32.mrf.mxu0
  %v553 = vadd.f32 0.0, %v552
  %v554 = vpop.f32.mrf.mxu0
  %555 = vmatprep.mubr.bf16.mxu0 0
  %556 = vmatmul.mubr.bf16.gmra.mxu0 %v362
  %v557 = vpop.f32.mrf.mxu0
  %v558 = vadd.f32 0.0, %v557
  %v559 = vpop.f32.mrf.mxu0
  %v560 = vpop.f32.mrf.mxu0
  %v561 = vadd.f32 0.0, %v560
  %v562 = vpop.f32.mrf.mxu0
  %563 = vmatprep.mubr.bf16.mxu0 0
  %564 = vmatmul.mubr.bf16.gmra.mxu0 %v363
  %v565 = vpop.f32.mrf.mxu0
  %v566 = vadd.f32 0.0, %v565
  %v567 = vpop.f32.mrf.mxu0
  %v568 = vpop.f32.mrf.mxu0
  %v569 = vadd.f32 0.0, %v568
  %v570 = vpop.f32.mrf.mxu0
  %571 = vmatprep.mubr.bf16.mxu0 0
  %572 = vmatmul.mubr.bf16.gmra.mxu0 %v364
  %v573 = vpop.f32.mrf.mxu0
  %v574 = vadd.f32 0.0, %v573
  %v575 = vpop.f32.mrf.mxu0
  %v576 = vpop.f32.mrf.mxu0
  %v577 = vadd.f32 0.0, %v576
  %v578 = vpop.f32.mrf.mxu0
  %579 = vmatprep.mubr.bf16.mxu0 0
  %580 = vmatmul.mubr.bf16.gmra.mxu0 %v365
  %v581 = vpop.f32.mrf.mxu0
  %v582 = vadd.f32 0.0, %v581
  %v583 = vpop.f32.mrf.mxu0
  %v584 = vpop.f32.mrf.mxu0
  %v585 = vadd.f32 0.0, %v584
  %v586 = vpop.f32.mrf.mxu0
  %587 = vmatprep.mubr.bf16.mxu0 0
  %588 = vmatmul.mubr.bf16.gmra.mxu0 %v366
  %v589 = vpop.f32.mrf.mxu0
  %v590 = vadd.f32 0.0, %v589
  %v591 = vpop.f32.mrf.mxu0
  %v592 = vpop.f32.mrf.mxu0
  %v593 = vadd.f32 0.0, %v592
  %v594 = vpop.f32.mrf.mxu0
  %595 = vmatprep.mubr.bf16.mxu0 0
  %596 = vmatmul.mubr.bf16.gmra.mxu0 %v367
  %v597 = vpop.f32.mrf.mxu0
  %v598 = vadd.f32 0.0, %v597
  %v599 = vpop.f32.mrf.mxu0
  %v600 = vpop.f32.mrf.mxu0
  %v601 = vadd.f32 0.0, %v600
  %v602 = vpop.f32.mrf.mxu0
  %603 = vmatprep.mubr.bf16.mxu0 0
  %604 = vmatmul.mubr.bf16.gmra.mxu0 %v368
  %v605 = vpop.f32.mrf.mxu0
  %v606 = vadd.f32 0.0, %v605
  %v607 = vpop.f32.mrf.mxu0
  %v608 = vpop.f32.mrf.mxu0
  %v609 = vadd.f32 0.0, %v608
  %v610 = vpop.f32.mrf.mxu0
  %611 = vmatprep.mubr.bf16.mxu0 0
  %612 = vmatmul.mubr.bf16.gmra.mxu0 %v369
  %v613 = vpop.f32.mrf.mxu0
  %v614 = vadd.f32 0.0, %v613
  %v615 = vpop.f32.mrf.mxu0
  %v616 = vpop.f32.mrf.mxu0
  %v617 = vadd.f32 0.0, %v616
  %v618 = vpop.f32.mrf.mxu0
  %619 = vmatprep.mubr.bf16.mxu0 0
  %620 = vmatmul.mubr.bf16.gmra.mxu0 %v370
  %v621 = vpop.f32.mrf.mxu0
  %v622 = vadd.f32 0.0, %v621
  %v623 = vpop.f32.mrf.mxu0
  %v624 = vpop.f32.mrf.mxu0
  %v625 = vadd.f32 0.0, %v624
  %v626 = vpop.f32.mrf.mxu0
  %627 = vmatprep.mubr.bf16.mxu0 0
  %628 = vmatmul.mubr.bf16.gmra.mxu0 %v371
  %v629 = vpop.f32.mrf.mxu0
  %v630 = vadd.f32 0.0, %v629
  %v631 = vpop.f32.mrf.mxu0
  %v632 = vpop.f32.mrf.mxu0
  %v633 = vadd.f32 0.0, %v632
  %v634 = vpop.f32.mrf.mxu0
  %635 = vmatprep.mubr.bf16.mxu0 0
  %636 = vmatmul.mubr.bf16.gmra.mxu0 %v372
  %v637 = vpop.f32.mrf.mxu0
  %v638 = vadd.f32 0.0, %v637
  %v639 = vpop.f32.mrf.mxu0
  %v640 = vpop.f32.mrf.mxu0
  %v641 = vadd.f32 0.0, %v640
  %v642 = vpop.f32.mrf.mxu0
  %643 = vmatprep.mubr.bf16.mxu0 0
  %644 = vmatmul.mubr.bf16.gmra.mxu0 %v373
  %v645 = vpop.f32.mrf.mxu0
  %v646 = vadd.f32 0.0, %v645
  %v647 = vpop.f32.mrf.mxu0
  %v648 = vpop.f32.mrf.mxu0
  %v649 = vadd.f32 0.0, %v648
  %v650 = vpop.f32.mrf.mxu0
  %651 = vmatprep.mubr.bf16.mxu0 0
  %652 = vmatmul.mubr.bf16.gmra.mxu0 %v374
  %v653 = vpop.f32.mrf.mxu0
  %v654 = vadd.f32 0.0, %v653
  %v655 = vpop.f32.mrf.mxu0
  %v656 = vpop.f32.mrf.mxu0
  %v657 = vadd.f32 0.0, %v656
  %v658 = vpop.f32.mrf.mxu0
  %659 = vmatprep.mubr.bf16.mxu0 0
  %660 = vmatmul.mubr.bf16.gmra.mxu0 %v375
  %v661 = vpop.f32.mrf.mxu0
  %v662 = vadd.f32 0.0, %v661
  %v663 = vpop.f32.mrf.mxu0
  %v664 = vpop.f32.mrf.mxu0
  %v665 = vadd.f32 0.0, %v664
  %v666 = vpop.f32.mrf.mxu0
  %667 = vmatprep.mubr.bf16.mxu0 0
  %668 = vmatmul.mubr.bf16.gmra.mxu0 %v376
  %v669 = vpop.f32.mrf.mxu0
  %v670 = vadd.f32 0.0, %v669
  %v671 = vpop.f32.mrf.mxu0
  %v672 = vpop.f32.mrf.mxu0
  %v673 = vadd.f32 0.0, %v672
  %v674 = vpop.f32.mrf.mxu0
  %675 = vmatprep.mubr.bf16.mxu0 0
  %676 = vmatmul.mubr.bf16.gmra.mxu0 %v377
  %v677 = vpop.f32.mrf.mxu0
  %v678 = vadd.f32 0.0, %v677
  %v679 = vpop.f32.mrf.mxu0
  %v680 = vpop.f32.mrf.mxu0
  %v681 = vadd.f32 0.0, %v680
  %v682 = vpop.f32.mrf.mxu0
  %683 = vmatprep.mubr.bf16.mxu0 0
  %684 = vmatmul.mubr.bf16.gmra.mxu0 %v378
  %v685 = vpop.f32.mrf.mxu0
  %v686 = vadd.f32 0.0, %v685
  %v687 = vpop.f32.mrf.mxu0
  %v688 = vpop.f32.mrf.mxu0
  %v689 = vadd.f32 0.0, %v688
  %v690 = vpop.f32.mrf.mxu0
  %691 = vmatprep.mubr.bf16.mxu0 0
  %692 = vmatmul.mubr.bf16.gmra.mxu0 %v379
  %v693 = vpop.f32.mrf.mxu0
  %v694 = vadd.f32 0.0, %v693
  %v695 = vpop.f32.mrf.mxu0
  %v696 = vpop.f32.mrf.mxu0
  %v697 = vadd.f32 0.0, %v696
  %v698 = vpop.f32.mrf.mxu0
  %699 = vmatprep.mubr.bf16.mxu0 0
  %700 = vmatmul.mubr.bf16.gmra.mxu0 %v380
  %v701 = vpop.f32.mrf.mxu0
  %v702 = vadd.f32 0.0, %v701
  %v703 = vpop.f32.mrf.mxu0
  %v704 = vpop.f32.mrf.mxu0
  %v705 = vadd.f32 0.0, %v704
  %v706 = vpop.f32.mrf.mxu0
  %707 = vmatprep.mubr.bf16.mxu0 0
  %708 = vmatmul.mubr.bf16.gmra.mxu0 %v381
  %v709 = vpop.f32.mrf.mxu0
  %v710 = vadd.f32 0.0, %v709
  %v711 = vpop.f32.mrf.mxu0
  %v712 = vpop.f32.mrf.mxu0
  %v713 = vadd.f32 0.0, %v712
  %v714 = vpop.f32.mrf.mxu0
  %715 = vmatprep.mubr.bf16.mxu0 0
  %716 = vmatmul.mubr.bf16.gmra.mxu0 %v382
  %v717 = vpop.f32.mrf.mxu0
  %v718 = vadd.f32 0.0, %v717
  %v719 = vpop.f32.mrf.mxu0
  %v720 = vpop.f32.mrf.mxu0
  %v721 = vadd.f32 0.0, %v720
  %v722 = vpop.f32.mrf.mxu0
  %723 = vmatprep.mubr.bf16.mxu0 0
  %724 = vmatmul.mubr.bf16.gmra.mxu0 %v383
  %v725 = vpop.f32.mrf.mxu0
  %v726 = vadd.f32 0.0, %v725
  %v727 = vpop.f32.mrf.mxu0
  %v728 = vpop.f32.mrf.mxu0
  %v729 = vadd.f32 0.0, %v728
  %v730 = vpop.f32.mrf.mxu0
  %731 = vmatprep.mubr.bf16.mxu0 0
  %732 = vmatmul.mubr.bf16.gmra.mxu0 %v384
  %v733 = vpop.f32.mrf.mxu0
  %v734 = vadd.f32 0.0, %v733
  %v735 = vpop.f32.mrf.mxu0
  %v736 = vpop.f32.mrf.mxu0
  %v737 = vadd.f32 0.0, %v736
  %v738 = vpop.f32.mrf.mxu0
  %739 = vmatprep.mubr.bf16.mxu0 0
  %740 = vmatmul.mubr.bf16.gmra.mxu0 %v385
  %v741 = vpop.f32.mrf.mxu0
  %v742 = vadd.f32 0.0, %v741
  %v743 = vpop.f32.mrf.mxu0
  %v744 = vpop.f32.mrf.mxu0
  %v745 = vadd.f32 0.0, %v744
  %v746 = vpop.f32.mrf.mxu0
  %747 = vmatprep.mubr.bf16.mxu0 0
  %748 = vmatmul.mubr.bf16.gmra.mxu0 %v386
  %v749 = vpop.f32.mrf.mxu0
  %v750 = vadd.f32 0.0, %v749
  %v751 = vpop.f32.mrf.mxu0
  %v752 = vpop.f32.mrf.mxu0
  %v753 = vadd.f32 0.0, %v752
  %v754 = vpop.f32.mrf.mxu0
  %755 = vdwg.mxu0
  %v756 = vadd.f32 %v83, %v502
  %v757 = vadd.f32 %v84, %v505
  %v758 = vadd.f32 %v85, %v510
  %v759 = vadd.f32 %v86, %v513
  %v760 = vadd.f32 %v87, %v518
  %v761 = vadd.f32 %v88, %v521
  %v762 = vadd.f32 %v89, %v526
  %v763 = vadd.f32 %v90, %v529
  %v764 = vadd.f32 %v91, %v534
  %v765 = vadd.f32 %v92, %v537
  %v766 = vadd.f32 %v93, %v542
  %v767 = vadd.f32 %v94, %v545
  %v768 = vadd.f32 %v95, %v550
  %v769 = vadd.f32 %v96, %v553
  %v770 = vadd.f32 %v97, %v558
  %v771 = vadd.f32 %v98, %v561
  %v772 = vadd.f32 %v99, %v566
  %v773 = vadd.f32 %v100, %v569
  %v774 = vadd.f32 %v101, %v574
  %v775 = vadd.f32 %v102, %v577
  %v776 = vadd.f32 %v103, %v582
  %v777 = vadd.f32 %v104, %v585
  %v778 = vadd.f32 %v105, %v590
  %v779 = vadd.f32 %v106, %v593
  %v780 = vadd.f32 %v107, %v598
  %v781 = vadd.f32 %v108, %v601
  %v782 = vadd.f32 %v109, %v606
  %v783 = vadd.f32 %v110, %v609
  %v784 = vadd.f32 %v111, %v614
  %v785 = vadd.f32 %v112, %v617
  %v786 = vadd.f32 %v113, %v622
  %v787 = vadd.f32 %v114, %v625
  %v788 = vadd.f32 %v115, %v630
  %v789 = vadd.f32 %v116, %v633
  %v790 = vadd.f32 %v117, %v638
  %v791 = vadd.f32 %v118, %v641
  %v792 = vadd.f32 %v119, %v646
  %v793 = vadd.f32 %v120, %v649
  %v794 = vadd.f32 %v121, %v654
  %v795 = vadd.f32 %v122, %v657
  %v796 = vadd.f32 %v123, %v662
  %v797 = vadd.f32 %v124, %v665
  %v798 = vadd.f32 %v125, %v670
  %v799 = vadd.f32 %v126, %v673
  %v800 = vadd.f32 %v127, %v678
  %v801 = vadd.f32 %v128, %v681
  %v802 = vadd.f32 %v129, %v686
  %v803 = vadd.f32 %v130, %v689
  %v804 = vadd.f32 %v131, %v694
  %v805 = vadd.f32 %v132, %v697
  %v806 = vadd.f32 %v133, %v702
  %v807 = vadd.f32 %v134, %v705
  %v808 = vadd.f32 %v135, %v710
  %v809 = vadd.f32 %v136, %v713
  %v810 = vadd.f32 %v137, %v718
  %v811 = vadd.f32 %v138, %v721
  %v812 = vadd.f32 %v139, %v726
  %v813 = vadd.f32 %v140, %v729
  %v814 = vadd.f32 %v141, %v734
  %v815 = vadd.f32 %v142, %v737
  %v816 = vadd.f32 %v143, %v742
  %v817 = vadd.f32 %v144, %v745
  %v818 = vadd.f32 %v145, %v750
  %v819 = vadd.f32 %v146, %v753
  %820 = vst [vmem:[#allocation2] sm:$0xff] %v756
  %821 = vst [vmem:[#allocation2 + $0x8] sm:$0xff] %v757
  %822 = vst [vmem:[#allocation2 + $0x10] sm:$0xff] %v758
  %823 = vst [vmem:[#allocation2 + $0x18] sm:$0xff] %v759
  %824 = vst [vmem:[#allocation2 + $0x20] sm:$0xff] %v760
  %825 = vst [vmem:[#allocation2 + $0x28] sm:$0xff] %v761
  %826 = vst [vmem:[#allocation2 + $0x30] sm:$0xff] %v762
  %827 = vst [vmem:[#allocation2 + $0x38] sm:$0xff] %v763
  %828 = vst [vmem:[#allocation2 + $0x40] sm:$0xff] %v764
  %829 = vst [vmem:[#allocation2 + $0x48] sm:$0xff] %v765
  %830 = vst [vmem:[#allocation2 + $0x50] sm:$0xff] %v766
  %831 = vst [vmem:[#allocation2 + $0x58] sm:$0xff] %v767
  %832 = vst [vmem:[#allocation2 + $0x60] sm:$0xff] %v768
  %833 = vst [vmem:[#allocation2 + $0x68] sm:$0xff] %v769
  %834 = vst [vmem:[#allocation2 + $0x70] sm:$0xff] %v770
  %835 = vst [vmem:[#allocation2 + $0x78] sm:$0xff] %v771
  %836 = vst [vmem:[#allocation2 + $0x80] sm:$0xff] %v772
  %837 = vst [vmem:[#allocation2 + $0x88] sm:$0xff] %v773
  %838 = vst [vmem:[#allocation2 + $0x90] sm:$0xff] %v774
  %839 = vst [vmem:[#allocation2 + $0x98] sm:$0xff] %v775
  %840 = vst [vmem:[#allocation2 + $0xa0] sm:$0xff] %v776
  %841 = vst [vmem:[#allocation2 + $0xa8] sm:$0xff] %v777
  %842 = vst [vmem:[#allocation2 + $0xb0] sm:$0xff] %v778
  %843 = vst [vmem:[#allocation2 + $0xb8] sm:$0xff] %v779
  %844 = vst [vmem:[#allocation2 + $0xc0] sm:$0xff] %v780
  %845 = vst [vmem:[#allocation2 + $0xc8] sm:$0xff] %v781
  %846 = vst [vmem:[#allocation2 + $0xd0] sm:$0xff] %v782
  %847 = vst [vmem:[#allocation2 + $0xd8] sm:$0xff] %v783
  %848 = vst [vmem:[#allocation2 + $0xe0] sm:$0xff] %v784
  %849 = vst [vmem:[#allocation2 + $0xe8] sm:$0xff] %v785
  %850 = vst [vmem:[#allocation2 + $0xf0] sm:$0xff] %v786
  %851 = vst [vmem:[#allocation2 + $0xf8] sm:$0xff] %v787
  %852 = vst [vmem:[#allocation2 + $0x100] sm:$0xff] %v788
  %853 = vst [vmem:[#allocation2 + $0x108] sm:$0xff] %v789
  %854 = vst [vmem:[#allocation2 + $0x110] sm:$0xff] %v790
  %855 = vst [vmem:[#allocation2 + $0x118] sm:$0xff] %v791
  %856 = vst [vmem:[#allocation2 + $0x120] sm:$0xff] %v792
  %857 = vst [vmem:[#allocation2 + $0x128] sm:$0xff] %v793
  %858 = vst [vmem:[#allocation2 + $0x130] sm:$0xff] %v794
  %859 = vst [vmem:[#allocation2 + $0x138] sm:$0xff] %v795
  %860 = vst [vmem:[#allocation2 + $0x140] sm:$0xff] %v796
  %861 = vst [vmem:[#allocation2 + $0x148] sm:$0xff] %v797
  %862 = vst [vmem:[#allocation2 + $0x150] sm:$0xff] %v798
  %863 = vst [vmem:[#allocation2 + $0x158] sm:$0xff] %v799
  %864 = vst [vmem:[#allocation2 + $0x160] sm:$0xff] %v800
  %865 = vst [vmem:[#allocation2 + $0x168] sm:$0xff] %v801
  %866 = vst [vmem:[#allocation2 + $0x170] sm:$0xff] %v802
  %867 = vst [vmem:[#allocation2 + $0x178] sm:$0xff] %v803
  %868 = vst [vmem:[#allocation2 + $0x180] sm:$0xff] %v804
  %869 = vst [vmem:[#allocation2 + $0x188] sm:$0xff] %v805
  %870 = vst [vmem:[#allocation2 + $0x190] sm:$0xff] %v806
  %871 = vst [vmem:[#allocation2 + $0x198] sm:$0xff] %v807
  %872 = vst [vmem:[#allocation2 + $0x1a0] sm:$0xff] %v808
  %873 = vst [vmem:[#allocation2 + $0x1a8] sm:$0xff] %v809
  %874 = vst [vmem:[#allocation2 + $0x1b0] sm:$0xff] %v810
  %875 = vst [vmem:[#allocation2 + $0x1b8] sm:$0xff] %v811
  %876 = vst [vmem:[#allocation2 + $0x1c0] sm:$0xff] %v812
  %877 = vst [vmem:[#allocation2 + $0x1c8] sm:$0xff] %v813
  %878 = vst [vmem:[#allocation2 + $0x1d0] sm:$0xff] %v814
  %879 = vst [vmem:[#allocation2 + $0x1d8] sm:$0xff] %v815
  %880 = vst [vmem:[#allocation2 + $0x1e0] sm:$0xff] %v816
  %881 = vst [vmem:[#allocation2 + $0x1e8] sm:$0xff] %v817
  %882 = vst [vmem:[#allocation2 + $0x1f0] sm:$0xff] %v818
  %883 = vst [vmem:[#allocation2 + $0x1f8] sm:$0xff] %v819
  // Predicated region
  $region14: #{block_group_forward.9} parent=0 // pred_check
    %p884 = pneg %p15
  $region15: #{block_group_forward.9} parent=0 // pred_check_branch
    %886 = sbr.rel (%p884) target = $region17
  $region16: #{block_group_forward.9} parent=0 // pred_region
    %v887 = vld [vmem:[#allocation2] sm:$0xff]
    %v888 = vld [vmem:[#allocation2 + $0x8] sm:$0xff]
    %v889 = vld [vmem:[#allocation2 + $0x10] sm:$0xff]
    %v890 = vld [vmem:[#allocation2 + $0x18] sm:$0xff]
    %v891 = vld [vmem:[#allocation2 + $0x20] sm:$0xff]
    %v892 = vld [vmem:[#allocation2 + $0x28] sm:$0xff]
    %v893 = vld [vmem:[#allocation2 + $0x30] sm:$0xff]
    %v894 = vld [vmem:[#allocation2 + $0x38] sm:$0xff]
    %v895 = vld [vmem:[#allocation2 + $0x40] sm:$0xff]
    %v896 = vld [vmem:[#allocation2 + $0x48] sm:$0xff]
    %v897 = vld [vmem:[#allocation2 + $0x50] sm:$0xff]
    %v898 = vld [vmem:[#allocation2 + $0x58] sm:$0xff]
    %v899 = vld [vmem:[#allocation2 + $0x60] sm:$0xff]
    %v900 = vld [vmem:[#allocation2 + $0x68] sm:$0xff]
    %v901 = vld [vmem:[#allocation2 + $0x70] sm:$0xff]
    %v902 = vld [vmem:[#allocation2 + $0x78] sm:$0xff]
    %v903 = vld [vmem:[#allocation2 + $0x80] sm:$0xff]
    %v904 = vld [vmem:[#allocation2 + $0x88] sm:$0xff]
    %v905 = vld [vmem:[#allocation2 + $0x90] sm:$0xff]
    %v906 = vld [vmem:[#allocation2 + $0x98] sm:$0xff]
    %v907 = vld [vmem:[#allocation2 + $0xa0] sm:$0xff]
    %v908 = vld [vmem:[#allocation2 + $0xa8] sm:$0xff]
    %v909 = vld [vmem:[#allocation2 + $0xb0] sm:$0xff]
    %v910 = vld [vmem:[#allocation2 + $0xb8] sm:$0xff]
    %v911 = vld [vmem:[#allocation2 + $0xc0] sm:$0xff]
    %v912 = vld [vmem:[#allocation2 + $0xc8] sm:$0xff]
    %v913 = vld [vmem:[#allocation2 + $0xd0] sm:$0xff]
    %v914 = vld [vmem:[#allocation2 + $0xd8] sm:$0xff]
    %v915 = vld [vmem:[#allocation2 + $0xe0] sm:$0xff]
    %v916 = vld [vmem:[#allocation2 + $0xe8] sm:$0xff]
    %v917 = vld [vmem:[#allocation2 + $0xf0] sm:$0xff]
    %v918 = vld [vmem:[#allocation2 + $0xf8] sm:$0xff]
    %v919 = vld [vmem:[#allocation2 + $0x100] sm:$0xff]
    %v920 = vld [vmem:[#allocation2 + $0x108] sm:$0xff]
    %v921 = vld [vmem:[#allocation2 + $0x110] sm:$0xff]
    %v922 = vld [vmem:[#allocation2 + $0x118] sm:$0xff]
    %v923 = vld [vmem:[#allocation2 + $0x120] sm:$0xff]
    %v924 = vld [vmem:[#allocation2 + $0x128] sm:$0xff]
    %v925 = vld [vmem:[#allocation2 + $0x130] sm:$0xff]
    %v926 = vld [vmem:[#allocation2 + $0x138] sm:$0xff]
    %v927 = vld [vmem:[#allocation2 + $0x140] sm:$0xff]
    %v928 = vld [vmem:[#allocation2 + $0x148] sm:$0xff]
    %v929 = vld [vmem:[#allocation2 + $0x150] sm:$0xff]
    %v930 = vld [vmem:[#allocation2 + $0x158] sm:$0xff]
    %v931 = vld [vmem:[#allocation2 + $0x160] sm:$0xff]
    %v932 = vld [vmem:[#allocation2 + $0x168] sm:$0xff]
    %v933 = vld [vmem:[#allocation2 + $0x170] sm:$0xff]
    %v934 = vld [vmem:[#allocation2 + $0x178] sm:$0xff]
    %v935 = vld [vmem:[#allocation2 + $0x180] sm:$0xff]
    %v936 = vld [vmem:[#allocation2 + $0x188] sm:$0xff]
    %v937 = vld [vmem:[#allocation2 + $0x190] sm:$0xff]
    %v938 = vld [vmem:[#allocation2 + $0x198] sm:$0xff]
    %v939 = vld [vmem:[#allocation2 + $0x1a0] sm:$0xff]
    %v940 = vld [vmem:[#allocation2 + $0x1a8] sm:$0xff]
    %v941 = vld [vmem:[#allocation2 + $0x1b0] sm:$0xff]
    %v942 = vld [vmem:[#allocation2 + $0x1b8] sm:$0xff]
    %v943 = vld [vmem:[#allocation2 + $0x1c0] sm:$0xff]
    %v944 = vld [vmem:[#allocation2 + $0x1c8] sm:$0xff]
    %v945 = vld [vmem:[#allocation2 + $0x1d0] sm:$0xff]
    %v946 = vld [vmem:[#allocation2 + $0x1d8] sm:$0xff]
    %v947 = vld [vmem:[#allocation2 + $0x1e0] sm:$0xff]
    %v948 = vld [vmem:[#allocation2 + $0x1e8] sm:$0xff]
    %v949 = vld [vmem:[#allocation2 + $0x1f0] sm:$0xff]
    %v950 = vld [vmem:[#allocation2 + $0x1f8] sm:$0xff]
    %951 = vst [vmem:[%s2] sm:$0xff] %v887
    %952 = vst [vmem:[%s2 + $0x8] sm:$0xff] %v888
    %953 = vst [vmem:[%s2 + $0x10] sm:$0xff] %v889
    %954 = vst [vmem:[%s2 + $0x18] sm:$0xff] %v890
    %955 = vst [vmem:[%s2 + $0x20] sm:$0xff] %v891
    %956 = vst [vmem:[%s2 + $0x28] sm:$0xff] %v892
    %957 = vst [vmem:[%s2 + $0x30] sm:$0xff] %v893
    %958 = vst [vmem:[%s2 + $0x38] sm:$0xff] %v894
    %959 = vst [vmem:[%s2 + $0x40] sm:$0xff] %v895
    %960 = vst [vmem:[%s2 + $0x48] sm:$0xff] %v896
    %961 = vst [vmem:[%s2 + $0x50] sm:$0xff] %v897
    %962 = vst [vmem:[%s2 + $0x58] sm:$0xff] %v898
    %963 = vst [vmem:[%s2 + $0x60] sm:$0xff] %v899
    %964 = vst [vmem:[%s2 + $0x68] sm:$0xff] %v900
    %965 = vst [vmem:[%s2 + $0x70] sm:$0xff] %v901
    %966 = vst [vmem:[%s2 + $0x78] sm:$0xff] %v902
    %967 = vst [vmem:[%s2 + $0x80] sm:$0xff] %v903
    %968 = vst [vmem:[%s2 + $0x88] sm:$0xff] %v904
    %969 = vst [vmem:[%s2 + $0x90] sm:$0xff] %v905
    %970 = vst [vmem:[%s2 + $0x98] sm:$0xff] %v906
    %971 = vst [vmem:[%s2 + $0xa0] sm:$0xff] %v907
    %972 = vst [vmem:[%s2 + $0xa8] sm:$0xff] %v908
    %973 = vst [vmem:[%s2 + $0xb0] sm:$0xff] %v909
    %974 = vst [vmem:[%s2 + $0xb8] sm:$0xff] %v910
    %975 = vst [vmem:[%s2 + $0xc0] sm:$0xff] %v911
    %976 = vst [vmem:[%s2 + $0xc8] sm:$0xff] %v912
    %977 = vst [vmem:[%s2 + $0xd0] sm:$0xff] %v913
    %978 = vst [vmem:[%s2 + $0xd8] sm:$0xff] %v914
    %979 = vst [vmem:[%s2 + $0xe0] sm:$0xff] %v915
    %980 = vst [vmem:[%s2 + $0xe8] sm:$0xff] %v916
    %981 = vst [vmem:[%s2 + $0xf0] sm:$0xff] %v917
    %982 = vst [vmem:[%s2 + $0xf8] sm:$0xff] %v918
    %983 = vst [vmem:[%s2 + $0x100] sm:$0xff] %v919
    %984 = vst [vmem:[%s2 + $0x108] sm:$0xff] %v920
    %985 = vst [vmem:[%s2 + $0x110] sm:$0xff] %v921
    %986 = vst [vmem:[%s2 + $0x118] sm:$0xff] %v922
    %987 = vst [vmem:[%s2 + $0x120] sm:$0xff] %v923
    %988 = vst [vmem:[%s2 + $0x128] sm:$0xff] %v924
    %989 = vst [vmem:[%s2 + $0x130] sm:$0xff] %v925
    %990 = vst [vmem:[%s2 + $0x138] sm:$0xff] %v926
    %991 = vst [vmem:[%s2 + $0x140] sm:$0xff] %v927
    %992 = vst [vmem:[%s2 + $0x148] sm:$0xff] %v928
    %993 = vst [vmem:[%s2 + $0x150] sm:$0xff] %v929
    %994 = vst [vmem:[%s2 + $0x158] sm:$0xff] %v930
    %995 = vst [vmem:[%s2 + $0x160] sm:$0xff] %v931
    %996 = vst [vmem:[%s2 + $0x168] sm:$0xff] %v932
    %997 = vst [vmem:[%s2 + $0x170] sm:$0xff] %v933
    %998 = vst [vmem:[%s2 + $0x178] sm:$0xff] %v934
    %999 = vst [vmem:[%s2 + $0x180] sm:$0xff] %v935
    %1000 = vst [vmem:[%s2 + $0x188] sm:$0xff] %v936
    %1001 = vst [vmem:[%s2 + $0x190] sm:$0xff] %v937
    %1002 = vst [vmem:[%s2 + $0x198] sm:$0xff] %v938
    %1003 = vst [vmem:[%s2 + $0x1a0] sm:$0xff] %v939
    %1004 = vst [vmem:[%s2 + $0x1a8] sm:$0xff] %v940
    %1005 = vst [vmem:[%s2 + $0x1b0] sm:$0xff] %v941
    %1006 = vst [vmem:[%s2 + $0x1b8] sm:$0xff] %v942
    %1007 = vst [vmem:[%s2 + $0x1c0] sm:$0xff] %v943
    %1008 = vst [vmem:[%s2 + $0x1c8] sm:$0xff] %v944
    %1009 = vst [vmem:[%s2 + $0x1d0] sm:$0xff] %v945
    %1010 = vst [vmem:[%s2 + $0x1d8] sm:$0xff] %v946
    %1011 = vst [vmem:[%s2 + $0x1e0] sm:$0xff] %v947
    %1012 = vst [vmem:[%s2 + $0x1e8] sm:$0xff] %v948
    %1013 = vst [vmem:[%s2 + $0x1f0] sm:$0xff] %v949
    %1014 = vst [vmem:[%s2 + $0x1f8] sm:$0xff] %v950
    %v1015 = vadd.f32 %v887, %v888
    %v1016 = vadd.f32 %v1015, %v889
    %v1017 = vadd.f32 %v1016, %v890
    %v1018 = vadd.f32 %v1017, %v891
    %v1019 = vadd.f32 %v1018, %v892
    %v1020 = vadd.f32 %v1019, %v893
    %v1021 = vadd.f32 %v1020, %v894
    %v1022 = vadd.f32 %v1021, %v895
    %v1023 = vadd.f32 %v1022, %v896
    %v1024 = vadd.f32 %v1023, %v897
    %v1025 = vadd.f32 %v1024, %v898
    %v1026 = vadd.f32 %v1025, %v899
    %v1027 = vadd.f32 %v1026, %v900
    %v1028 = vadd.f32 %v1027, %v901
    %v1029 = vadd.f32 %v1028, %v902
    %v1030 = vadd.f32 %v1029, %v903
    %v1031 = vadd.f32 %v1030, %v904
    %v1032 = vadd.f32 %v1031, %v905
    %v1033 = vadd.f32 %v1032, %v906
    %v1034 = vadd.f32 %v1033, %v907
    %v1035 = vadd.f32 %v1034, %v908
    %v1036 = vadd.f32 %v1035, %v909
    %v1037 = vadd.f32 %v1036, %v910
    %v1038 = vadd.f32 %v1037, %v911
    %v1039 = vadd.f32 %v1038, %v912
    %v1040 = vadd.f32 %v1039, %v913
    %v1041 = vadd.f32 %v1040, %v914
    %v1042 = vadd.f32 %v1041, %v915
    %v1043 = vadd.f32 %v1042, %v916
    %v1044 = vadd.f32 %v1043, %v917
    %v1045 = vadd.f32 %v1044, %v918
    %v1046 = vadd.f32 %v1045, %v919
    %v1047 = vadd.f32 %v1046, %v920
    %v1048 = vadd.f32 %v1047, %v921
    %v1049 = vadd.f32 %v1048, %v922
    %v1050 = vadd.f32 %v1049, %v923
    %v1051 = vadd.f32 %v1050, %v924
    %v1052 = vadd.f32 %v1051, %v925
    %v1053 = vadd.f32 %v1052, %v926
    %v1054 = vadd.f32 %v1053, %v927
    %v1055 = vadd.f32 %v1054, %v928
    %v1056 = vadd.f32 %v1055, %v929
    %v1057 = vadd.f32 %v1056, %v930
    %v1058 = vadd.f32 %v1057, %v931
    %v1059 = vadd.f32 %v1058, %v932
    %v1060 = vadd.f32 %v1059, %v933
    %v1061 = vadd.f32 %v1060, %v934
    %v1062 = vadd.f32 %v1061, %v935
    %v1063 = vadd.f32 %v1062, %v936
    %v1064 = vadd.f32 %v1063, %v937
    %v1065 = vadd.f32 %v1064, %v938
    %v1066 = vadd.f32 %v1065, %v939
    %v1067 = vadd.f32 %v1066, %v940
    %v1068 = vadd.f32 %v1067, %v941
    %v1069 = vadd.f32 %v1068, %v942
    %v1070 = vadd.f32 %v1069, %v943
    %v1071 = vadd.f32 %v1070, %v944
    %v1072 = vadd.f32 %v1071, %v945
    %v1073 = vadd.f32 %v1072, %v946
    %v1074 = vadd.f32 %v1073, %v947
    %v1075 = vadd.f32 %v1074, %v948
    %v1076 = vadd.f32 %v1075, %v949
    %v1077 = vadd.f32 %v1076, %v950
    %v1078 = vrot.slane %v1077, 4
    %v1079 = vadd.f32 %v1077, %v1078
    %v1080 = vrot.slane %v1079, 2
    %v1081 = vadd.f32 %v1079, %v1080
    %v1082 = vrot.slane %v1081, 1
    %v1083 = vadd.f32 %v1081, %v1082
    %1084 = vst [vmem:[%s3] sm:$0x1] %v1083
    %v1085 = vmul.f32 %v887, %v887
    %v1086 = vmul.f32 %v888, %v888
    %v1087 = vmul.f32 %v889, %v889
    %v1088 = vmul.f32 %v890, %v890
    %v1089 = vmul.f32 %v891, %v891
    %v1090 = vmul.f32 %v892, %v892
    %v1091 = vmul.f32 %v893, %v893
    %v1092 = vmul.f32 %v894, %v894
    %v1093 = vmul.f32 %v895, %v895
    %v1094 = vmul.f32 %v896, %v896
    %v1095 = vmul.f32 %v897, %v897
    %v1096 = vmul.f32 %v898, %v898
    %v1097 = vmul.f32 %v899, %v899
    %v1098 = vmul.f32 %v900, %v900
    %v1099 = vmul.f32 %v901, %v901
    %v1100 = vmul.f32 %v902, %v902
    %v1101 = vmul.f32 %v903, %v903
    %v1102 = vmul.f32 %v904, %v904
    %v1103 = vmul.f32 %v905, %v905
    %v1104 = vmul.f32 %v906, %v906
    %v1105 = vmul.f32 %v907, %v907
    %v1106 = vmul.f32 %v908, %v908
    %v1107 = vmul.f32 %v909, %v909
    %v1108 = vmul.f32 %v910, %v910
    %v1109 = vmul.f32 %v911, %v911
    %v1110 = vmul.f32 %v912, %v912
    %v1111 = vmul.f32 %v913, %v913
    %v1112 = vmul.f32 %v914, %v914
    %v1113 = vmul.f32 %v915, %v915
    %v1114 = vmul.f32 %v916, %v916
    %v1115 = vmul.f32 %v917, %v917
    %v1116 = vmul.f32 %v918, %v918
    %v1117 = vmul.f32 %v919, %v919
    %v1118 = vmul.f32 %v920, %v920
    %v1119 = vmul.f32 %v921, %v921
    %v1120 = vmul.f32 %v922, %v922
    %v1121 = vmul.f32 %v923, %v923
    %v1122 = vmul.f32 %v924, %v924
    %v1123 = vmul.f32 %v925, %v925
    %v1124 = vmul.f32 %v926, %v926
    %v1125 = vmul.f32 %v927, %v927
    %v1126 = vmul.f32 %v928, %v928
    %v1127 = vmul.f32 %v929, %v929
    %v1128 = vmul.f32 %v930, %v930
    %v1129 = vmul.f32 %v931, %v931
    %v1130 = vmul.f32 %v932, %v932
    %v1131 = vmul.f32 %v933, %v933
    %v1132 = vmul.f32 %v934, %v934
    %v1133 = vmul.f32 %v935, %v935
    %v1134 = vmul.f32 %v936, %v936
    %v1135 = vmul.f32 %v937, %v937
    %v1136 = vmul.f32 %v938, %v938
    %v1137 = vmul.f32 %v939, %v939
    %v1138 = vmul.f32 %v940, %v940
    %v1139 = vmul.f32 %v941, %v941
    %v1140 = vmul.f32 %v942, %v942
    %v1141 = vmul.f32 %v943, %v943
    %v1142 = vmul.f32 %v944, %v944
    %v1143 = vmul.f32 %v945, %v945
    %v1144 = vmul.f32 %v946, %v946
    %v1145 = vmul.f32 %v947, %v947
    %v1146 = vmul.f32 %v948, %v948
    %v1147 = vmul.f32 %v949, %v949
    %v1148 = vmul.f32 %v950, %v950
    %v1149 = vadd.f32 %v1085, %v1086
    %v1150 = vadd.f32 %v1149, %v1087
    %v1151 = vadd.f32 %v1150, %v1088
    %v1152 = vadd.f32 %v1151, %v1089
    %v1153 = vadd.f32 %v1152, %v1090
    %v1154 = vadd.f32 %v1153, %v1091
    %v1155 = vadd.f32 %v1154, %v1092
    %v1156 = vadd.f32 %v1155, %v1093
    %v1157 = vadd.f32 %v1156, %v1094
    %v1158 = vadd.f32 %v1157, %v1095
    %v1159 = vadd.f32 %v1158, %v1096
    %v1160 = vadd.f32 %v1159, %v1097
    %v1161 = vadd.f32 %v1160, %v1098
    %v1162 = vadd.f32 %v1161, %v1099
    %v1163 = vadd.f32 %v1162, %v1100
    %v1164 = vadd.f32 %v1163, %v1101
    %v1165 = vadd.f32 %v1164, %v1102
    %v1166 = vadd.f32 %v1165, %v1103
    %v1167 = vadd.f32 %v1166, %v1104
    %v1168 = vadd.f32 %v1167, %v1105
    %v1169 = vadd.f32 %v1168, %v1106
    %v1170 = vadd.f32 %v1169, %v1107
    %v1171 = vadd.f32 %v1170, %v1108
    %v1172 = vadd.f32 %v1171, %v1109
    %v1173 = vadd.f32 %v1172, %v1110
    %v1174 = vadd.f32 %v1173, %v1111
    %v1175 = vadd.f32 %v1174, %v1112
    %v1176 = vadd.f32 %v1175, %v1113
    %v1177 = vadd.f32 %v1176, %v1114
    %v1178 = vadd.f32 %v1177, %v1115
    %v1179 = vadd.f32 %v1178, %v1116
    %v1180 = vadd.f32 %v1179, %v1117
    %v1181 = vadd.f32 %v1180, %v1118
    %v1182 = vadd.f32 %v1181, %v1119
    %v1183 = vadd.f32 %v1182, %v1120
    %v1184 = vadd.f32 %v1183, %v1121
    %v1185 = vadd.f32 %v1184, %v1122
    %v1186 = vadd.f32 %v1185, %v1123
    %v1187 = vadd.f32 %v1186, %v1124
    %v1188 = vadd.f32 %v1187, %v1125
    %v1189 = vadd.f32 %v1188, %v1126
    %v1190 = vadd.f32 %v1189, %v1127
    %v1191 = vadd.f32 %v1190, %v1128
    %v1192 = vadd.f32 %v1191, %v1129
    %v1193 = vadd.f32 %v1192, %v1130
    %v1194 = vadd.f32 %v1193, %v1131
    %v1195 = vadd.f32 %v1194, %v1132
    %v1196 = vadd.f32 %v1195, %v1133
    %v1197 = vadd.f32 %v1196, %v1134
    %v1198 = vadd.f32 %v1197, %v1135
    %v1199 = vadd.f32 %v1198, %v1136
    %v1200 = vadd.f32 %v1199, %v1137
    %v1201 = vadd.f32 %v1200, %v1138
    %v1202 = vadd.f32 %v1201, %v1139
    %v1203 = vadd.f32 %v1202, %v1140
    %v1204 = vadd.f32 %v1203, %v1141
    %v1205 = vadd.f32 %v1204, %v1142
    %v1206 = vadd.f32 %v1205, %v1143
    %v1207 = vadd.f32 %v1206, %v1144
    %v1208 = vadd.f32 %v1207, %v1145
    %v1209 = vadd.f32 %v1208, %v1146
    %v1210 = vadd.f32 %v1209, %v1147
    %v1211 = vadd.f32 %v1210, %v1148
    %v1212 = vrot.slane %v1211, 4
    %v1213 = vadd.f32 %v1211, %v1212
    %v1214 = vrot.slane %v1213, 2
    %v1215 = vadd.f32 %v1213, %v1214
    %v1216 = vrot.slane %v1215, 1
    %v1217 = vadd.f32 %v1215, %v1216
    %1218 = vst [vmem:[%s4] sm:$0x1] %v1217
  $region17: #{block_group_forward.9} parent=0 // pred_fallthru
    _
  // Predicated region
  $region18: #{block_group_forward.9} parent=0 // pred_check
    _
  $region19: #{block_group_forward.9} parent=0 // pred_check_branch
    %1220 = sbr.rel (0) target = $region21
  $region20: #{block_group_forward.9} parent=0 // pred_region
    _
  $region21: #{block_group_forward.9} parent=0 // pred_fallthru
    _
  // Predicated region
  $region22: #{block_group_forward.9} parent=0 // pred_check
    _
  $region23: #{block_group_forward.9} parent=0 // pred_check_branch
    %1222 = sbr.rel (0) target = $region25
  $region24: #{block_group_forward.9} parent=0 // pred_region
    _
  $region25: #{block_group_forward.9} parent=0 // pred_fallthru
    _
  // Predicated region
  $region26: #{block_group_forward.9} parent=0 // pred_check
    _
  $region27: #{block_group_forward.9} parent=0 // pred_check_branch
    %1224 = sbr.rel (0) target = $region29
  $region28: #{block_group_forward.9} parent=0 // pred_region
    _
  $region29: #{block_group_forward.9} parent=0 // pred_fallthru
    _
  // Predicated region
  $region30: #{block_group_forward.9} parent=0 // pred_check
    _
  $region31: #{block_group_forward.9} parent=0 // pred_check_branch
    %1226 = sbr.rel (0) target = $region33
  $region32: #{block_group_forward.9} parent=0 // pred_region
    _
  $region33: #{block_group_forward.9} parent=0 // pred_fallthru
    _
  // Predicated region
  $region34: #{block_group_forward.9} parent=0 // pred_check
    _
  $region35: #{block_group_forward.9} parent=0 // pred_check_branch
    %1228 = sbr.rel (0) target = $region37
  $region36: #{block_group_forward.9} parent=0 // pred_region
    _
  $region37: #{block_group_forward.9} parent=0 // pred_fallthru
    _
  // Predicated region
  $region38: #{block_group_forward.9} parent=0 // pred_check
    _
  $region39: #{block_group_forward.9} parent=0 // pred_check_branch
    %1230 = sbr.rel (0) target = $region41
  $region40: #{block_group_forward.9} parent=0 // pred_region
    _
  $region41: #{block_group_forward.9} parent=0 // pred_fallthru
    _

// kernel: block_group_forward.11
$region0: #{block_group_forward.11}
  #allocation0 [shape = 'u32[]', space=smem, size = 0x4, offset = 0x4, fixed_abs, tag = 'smem constant byte address 0x4 - core index']
  #allocation1 [shape = 'u32[144,128]{1,0:T(1,128)}', space=vmem, size = 0x12000, scoped, tag = 'internal scratch']
  #allocation2 [shape = 'f32[128,128]{1,0:T(8,128)}', space=vmem, size = 0x10000, scoped, tag = 'scratch operand']
  %s0 = inlined_call_operand.vmem [shape: f32[128,128], index: 0, kind: input, shape index: {}]
  %s1 = inlined_call_operand.vmem [shape: f32[1,128], index: 1, kind: input, shape index: {}]
  %s2 = inlined_call_operand.vmem [shape: f32[1,128], index: 2, kind: input, shape index: {}]
  %s3 = inlined_call_operand.vmem [shape: bf16[128,128], index: 3, kind: input, shape index: {}]
  %s4 = inlined_call_operand.vmem [shape: f32[128,128], index: 4, kind: output, shape index: {0}]
  %s5 = inlined_call_operand.vmem [shape: f32[1,1,128], index: 5, kind: output, shape index: {1}]
  %s6 = inlined_call_operand.vmem [shape: f32[1,1,128], index: 6, kind: output, shape index: {2}]
  %7 = xla_tuple %s4, %s5, %s6
  %s8 = sld [smem:[#allocation0]]
  $region50: #{block_group_forward.11} parent=0
    _
  %s10 = ssub.s32 1, %s8
  %s11 = scalar_select 0, %s10, %s8
  // Predicated region
  $region2: #{block_group_forward.11} parent=0 // pred_check
    _
  $region3: #{block_group_forward.11} parent=0 // pred_check_branch
    %13 = sbr.rel (0) target = $region5
  $region4: #{block_group_forward.11} parent=0 // pred_region
    _
  $region5: #{block_group_forward.11} parent=0 // pred_fallthru
    _
  // Predicated region
  $region6: #{block_group_forward.11} parent=0 // pred_check
    _
  $region7: #{block_group_forward.11} parent=0 // pred_check_branch
    %15 = sbr.rel (0) target = $region9
  $region8: #{block_group_forward.11} parent=0 // pred_region
    _
  $region9: #{block_group_forward.11} parent=0 // pred_fallthru
    _
  // Predicated region
  $region10: #{block_group_forward.11} parent=0 // pred_check
    _
  $region11: #{block_group_forward.11} parent=0 // pred_check_branch
    %17 = sbr.rel (0) target = $region13
  $region12: #{block_group_forward.11} parent=0 // pred_region
    _
  $region13: #{block_group_forward.11} parent=0 // pred_fallthru
    _
  // Predicated region
  $region14: #{block_group_forward.11} parent=0 // pred_check
    _
  $region15: #{block_group_forward.11} parent=0 // pred_check_branch
    %19 = sbr.rel (0) target = $region17
  $region16: #{block_group_forward.11} parent=0 // pred_region
    _
  $region17: #{block_group_forward.11} parent=0 // pred_fallthru
    _
  %p21 = scmp.eq.s32.totalorder 0, 0
  // Predicated region
  $region18: #{block_group_forward.11} parent=0 // pred_check
    %p22 = pneg %p21
  $region19: #{block_group_forward.11} parent=0 // pred_check_branch
    %24 = sbr.rel (%p22) target = $region21
  $region20: #{block_group_forward.11} parent=0 // pred_region
    %25 = vst [vmem:[#allocation2] sm:$0xff] 0.0
    %26 = vst [vmem:[#allocation2 + $0x8] sm:$0xff] 0.0
    %27 = vst [vmem:[#allocation2 + $0x10] sm:$0xff] 0.0
    %28 = vst [vmem:[#allocation2 + $0x18] sm:$0xff] 0.0
    %29 = vst [vmem:[#allocation2 + $0x20] sm:$0xff] 0.0
    %30 = vst [vmem:[#allocation2 + $0x28] sm:$0xff] 0.0
    %31 = vst [vmem:[#allocation2 + $0x30] sm:$0xff] 0.0
    %32 = vst [vmem:[#allocation2 + $0x38] sm:$0xff] 0.0
    %33 = vst [vmem:[#allocation2 + $0x40] sm:$0xff] 0.0
    %34 = vst [vmem:[#allocation2 + $0x48] sm:$0xff] 0.0
    %35 = vst [vmem:[#allocation2 + $0x50] sm:$0xff] 0.0
    %36 = vst [vmem:[#allocation2 + $0x58] sm:$0xff] 0.0
    %37 = vst [vmem:[#allocation2 + $0x60] sm:$0xff] 0.0
    %38 = vst [vmem:[#allocation2 + $0x68] sm:$0xff] 0.0
    %39 = vst [vmem:[#allocation2 + $0x70] sm:$0xff] 0.0
    %40 = vst [vmem:[#allocation2 + $0x78] sm:$0xff] 0.0
  $region21: #{block_group_forward.11} parent=0 // pred_fallthru
    _
  %v41 = vld [vmem:[%s0] sm:$0xff]
  %v42 = vld [vmem:[%s0 + $0x8] sm:$0xff]
  %v43 = vld [vmem:[%s0 + $0x10] sm:$0xff]
  %v44 = vld [vmem:[%s0 + $0x18] sm:$0xff]
  %v45 = vld [vmem:[%s0 + $0x20] sm:$0xff]
  %v46 = vld [vmem:[%s0 + $0x28] sm:$0xff]
  %v47 = vld [vmem:[%s0 + $0x30] sm:$0xff]
  %v48 = vld [vmem:[%s0 + $0x38] sm:$0xff]
  %v49 = vld [vmem:[%s0 + $0x40] sm:$0xff]
  %v50 = vld [vmem:[%s0 + $0x48] sm:$0xff]
  %v51 = vld [vmem:[%s0 + $0x50] sm:$0xff]
  %v52 = vld [vmem:[%s0 + $0x58] sm:$0xff]
  %v53 = vld [vmem:[%s0 + $0x60] sm:$0xff]
  %v54 = vld [vmem:[%s0 + $0x68] sm:$0xff]
  %v55 = vld [vmem:[%s0 + $0x70] sm:$0xff]
  %v56 = vld [vmem:[%s0 + $0x78] sm:$0xff]
  %v57 = vld [vmem:[%s1] sm:$0x1]
  %v59 = vlaneseq
  %v60 = vshrl.u32 %v59, 7
  %v61 = vsub.s32 0, %v60
  %v62 = vrot.slane %v57, %v61
  %v64 = vmul.f32 %v41, %v62
  %v65 = vmul.f32 %v42, %v62
  %v66 = vmul.f32 %v43, %v62
  %v67 = vmul.f32 %v44, %v62
  %v68 = vmul.f32 %v45, %v62
  %v69 = vmul.f32 %v46, %v62
  %v70 = vmul.f32 %v47, %v62
  %v71 = vmul.f32 %v48, %v62
  %v72 = vmul.f32 %v49, %v62
  %v73 = vmul.f32 %v50, %v62
  %v74 = vmul.f32 %v51, %v62
  %v75 = vmul.f32 %v52, %v62
  %v76 = vmul.f32 %v53, %v62
  %v77 = vmul.f32 %v54, %v62
  %v78 = vmul.f32 %v55, %v62
  %v79 = vmul.f32 %v56, %v62
  %v80 = vld [vmem:[%s2] sm:$0x1]
  %v82 = vlaneseq
  %v83 = vshrl.u32 %v82, 7
  %v84 = vsub.s32 0, %v83
  %v85 = vrot.slane %v80, %v84
  %v87 = vadd.f32 %v64, %v85
  %v88 = vadd.f32 %v65, %v85
  %v89 = vadd.f32 %v66, %v85
  %v90 = vadd.f32 %v67, %v85
  %v91 = vadd.f32 %v68, %v85
  %v92 = vadd.f32 %v69, %v85
  %v93 = vadd.f32 %v70, %v85
  %v94 = vadd.f32 %v71, %v85
  %v95 = vadd.f32 %v72, %v85
  %v96 = vadd.f32 %v73, %v85
  %v97 = vadd.f32 %v74, %v85
  %v98 = vadd.f32 %v75, %v85
  %v99 = vadd.f32 %v76, %v85
  %v100 = vadd.f32 %v77, %v85
  %v101 = vadd.f32 %v78, %v85
  %v102 = vadd.f32 %v79, %v85
  %v103 = vmax.f32 %v87, 0.0
  %v104 = vmax.f32 %v88, 0.0
  %v105 = vmax.f32 %v89, 0.0
  %v106 = vmax.f32 %v90, 0.0
  %v107 = vmax.f32 %v91, 0.0
  %v108 = vmax.f32 %v92, 0.0
  %v109 = vmax.f32 %v93, 0.0
  %v110 = vmax.f32 %v94, 0.0
  %v111 = vmax.f32 %v95, 0.0
  %v112 = vmax.f32 %v96, 0.0
  %v113 = vmax.f32 %v97, 0.0
  %v114 = vmax.f32 %v98, 0.0
  %v115 = vmax.f32 %v99, 0.0
  %v116 = vmax.f32 %v100, 0.0
  %v117 = vmax.f32 %v101, 0.0
  %v118 = vmax.f32 %v102, 0.0
  %v119 = vld [vmem:[#allocation2] sm:$0xff]
  %v120 = vld [vmem:[#allocation2 + $0x8] sm:$0xff]
  %v121 = vld [vmem:[#allocation2 + $0x10] sm:$0xff]
  %v122 = vld [vmem:[#allocation2 + $0x18] sm:$0xff]
  %v123 = vld [vmem:[#allocation2 + $0x20] sm:$0xff]
  %v124 = vld [vmem:[#allocation2 + $0x28] sm:$0xff]
  %v125 = vld [vmem:[#allocation2 + $0x30] sm:$0xff]
  %v126 = vld [vmem:[#allocation2 + $0x38] sm:$0xff]
  %v127 = vld [vmem:[#allocation2 + $0x40] sm:$0xff]
  %v128 = vld [vmem:[#allocation2 + $0x48] sm:$0xff]
  %v129 = vld [vmem:[#allocation2 + $0x50] sm:$0xff]
  %v130 = vld [vmem:[#allocation2 + $0x58] sm:$0xff]
  %v131 = vld [vmem:[#allocation2 + $0x60] sm:$0xff]
  %v132 = vld [vmem:[#allocation2 + $0x68] sm:$0xff]
  %v133 = vld [vmem:[#allocation2 + $0x70] sm:$0xff]
  %v134 = vld [vmem:[#allocation2 + $0x78] sm:$0xff]
  %v135 = vpack.c.bf16 %v104, %v103
  %v136 = vpack.c.bf16 %v106, %v105
  %v137 = vpack.c.bf16 %v108, %v107
  %v138 = vpack.c.bf16 %v110, %v109
  %v139 = vpack.c.bf16 %v112, %v111
  %v140 = vpack.c.bf16 %v114, %v113
  %v141 = vpack.c.bf16 %v116, %v115
  %v142 = vpack.c.bf16 %v118, %v117
  %v143 = vld [vmem:[%s3] sm:$0xf]
  %v144 = vld [vmem:[%s3 + $0x4] sm:$0xf]
  %v145 = vld [vmem:[%s3 + $0x8] sm:$0xf]
  %v146 = vld [vmem:[%s3 + $0xc] sm:$0xf]
  %v147 = vld [vmem:[%s3 + $0x10] sm:$0xf]
  %v148 = vld [vmem:[%s3 + $0x14] sm:$0xf]
  %v149 = vld [vmem:[%s3 + $0x18] sm:$0xf]
  %v150 = vld [vmem:[%s3 + $0x1c] sm:$0xf]
  %v151 = vld [vmem:[%s3 + $0x20] sm:$0xf]
  %v152 = vld [vmem:[%s3 + $0x24] sm:$0xf]
  %v153 = vld [vmem:[%s3 + $0x28] sm:$0xf]
  %v154 = vld [vmem:[%s3 + $0x2c] sm:$0xf]
  %v155 = vld [vmem:[%s3 + $0x30] sm:$0xf]
  %v156 = vld [vmem:[%s3 + $0x34] sm:$0xf]
  %v157 = vld [vmem:[%s3 + $0x38] sm:$0xf]
  %v158 = vld [vmem:[%s3 + $0x3c] sm:$0xf]
  %v175 = vunpack.c.l.b16 %v143
  %v176 = vunpack.c.l.b16 %v144
  %v177 = vunpack.c.l.b16 %v145
  %v178 = vunpack.c.l.b16 %v146
  %v179 = vunpack.c.l.b16 %v147
  %v180 = vunpack.c.l.b16 %v148
  %v181 = vunpack.c.l.b16 %v149
  %v182 = vunpack.c.l.b16 %v150
  %v183 = vunpack.c.l.b16 %v151
  %v184 = vunpack.c.l.b16 %v152
  %v185 = vunpack.c.l.b16 %v153
  %v186 = vunpack.c.l.b16 %v154
  %v187 = vunpack.c.l.b16 %v155
  %v188 = vunpack.c.l.b16 %v156
  %v189 = vunpack.c.l.b16 %v157
  %v190 = vunpack.c.l.b16 %v158
  %v191 = vpack.c.b16 %v176, %v175
  %v192 = vpack.c.b16 %v178, %v177
  %v193 = vpack.c.b16 %v180, %v179
  %v194 = vpack.c.b16 %v182, %v181
  %v195 = vpack.c.b16 %v184, %v183
  %v196 = vpack.c.b16 %v186, %v185
  %v197 = vpack.c.b16 %v188, %v187
  %v198 = vpack.c.b16 %v190, %v189
  %207 = vmatprep.subr.bf16.mxu0 0
  %208 = vmatpush1.bf16.msra.mxu0 %v198
  %209 = vmatprep.subr.bf16.mxu0 0
  %210 = vmatpush1.bf16.msra.mxu0 %v197
  %211 = vmatprep.subr.bf16.mxu0 0
  %212 = vmatpush1.bf16.msra.mxu0 %v196
  %213 = vmatprep.subr.bf16.mxu0 0
  %214 = vmatpush1.bf16.msra.mxu0 %v195
  %215 = vmatprep.subr.bf16.mxu0 0
  %216 = vmatpush1.bf16.msra.mxu0 %v194
  %217 = vmatprep.subr.bf16.mxu0 0
  %218 = vmatpush1.bf16.msra.mxu0 %v193
  %219 = vmatprep.subr.bf16.mxu0 0
  %220 = vmatpush1.bf16.msra.mxu0 %v192
  %221 = vmatprep.subr.bf16.mxu0 0
  %222 = vmatpush1.bf16.msra.mxu0 %v191
  %223 = vmatprep.subr.bf16.mxu0 0
  %224 = vmatpush2.bf16.msra.mxu0 0
  %225 = vmatprep.subr.bf16.mxu0 0
  %226 = vmatpush2.bf16.msra.mxu0 0
  %227 = vmatprep.subr.bf16.mxu0 0
  %228 = vmatpush2.bf16.msra.mxu0 0
  %229 = vmatprep.subr.bf16.mxu0 0
  %230 = vmatpush2.bf16.msra.mxu0 0
  %231 = vmatprep.subr.bf16.mxu0 0
  %232 = vmatpush2.bf16.msra.mxu0 0
  %233 = vmatprep.subr.bf16.mxu0 0
  %234 = vmatpush2.bf16.msra.mxu0 0
  %235 = vmatprep.subr.bf16.mxu0 0
  %236 = vmatpush2.bf16.msra.mxu0 0
  %237 = vmatprep.subr.bf16.mxu0 0
  %238 = vmatpush2.bf16.msra.mxu0 0
  %239 = vmatprep.mubr.bf16.mxu0 0
  %240 = vmatmul.mubr.bf16.gmra.mxu0 %v135
  %v241 = vpop.f32.mrf.mxu0
  %v242 = vadd.f32 0.0, %v241
  %v243 = vpop.f32.mrf.mxu0
  %v244 = vpop.f32.mrf.mxu0
  %v245 = vadd.f32 0.0, %v244
  %v246 = vpop.f32.mrf.mxu0
  %247 = vmatprep.mubr.bf16.mxu0 0
  %248 = vmatmul.mubr.bf16.gmra.mxu0 %v136
  %v249 = vpop.f32.mrf.mxu0
  %v250 = vadd.f32 0.0, %v249
  %v251 = vpop.f32.mrf.mxu0
  %v252 = vpop.f32.mrf.mxu0
  %v253 = vadd.f32 0.0, %v252
  %v254 = vpop.f32.mrf.mxu0
  %255 = vmatprep.mubr.bf16.mxu0 0
  %256 = vmatmul.mubr.bf16.gmra.mxu0 %v137
  %v257 = vpop.f32.mrf.mxu0
  %v258 = vadd.f32 0.0, %v257
  %v259 = vpop.f32.mrf.mxu0
  %v260 = vpop.f32.mrf.mxu0
  %v261 = vadd.f32 0.0, %v260
  %v262 = vpop.f32.mrf.mxu0
  %263 = vmatprep.mubr.bf16.mxu0 0
  %264 = vmatmul.mubr.bf16.gmra.mxu0 %v138
  %v265 = vpop.f32.mrf.mxu0
  %v266 = vadd.f32 0.0, %v265
  %v267 = vpop.f32.mrf.mxu0
  %v268 = vpop.f32.mrf.mxu0
  %v269 = vadd.f32 0.0, %v268
  %v270 = vpop.f32.mrf.mxu0
  %271 = vmatprep.mubr.bf16.mxu0 0
  %272 = vmatmul.mubr.bf16.gmra.mxu0 %v139
  %v273 = vpop.f32.mrf.mxu0
  %v274 = vadd.f32 0.0, %v273
  %v275 = vpop.f32.mrf.mxu0
  %v276 = vpop.f32.mrf.mxu0
  %v277 = vadd.f32 0.0, %v276
  %v278 = vpop.f32.mrf.mxu0
  %279 = vmatprep.mubr.bf16.mxu0 0
  %280 = vmatmul.mubr.bf16.gmra.mxu0 %v140
  %v281 = vpop.f32.mrf.mxu0
  %v282 = vadd.f32 0.0, %v281
  %v283 = vpop.f32.mrf.mxu0
  %v284 = vpop.f32.mrf.mxu0
  %v285 = vadd.f32 0.0, %v284
  %v286 = vpop.f32.mrf.mxu0
  %287 = vmatprep.mubr.bf16.mxu0 0
  %288 = vmatmul.mubr.bf16.gmra.mxu0 %v141
  %v289 = vpop.f32.mrf.mxu0
  %v290 = vadd.f32 0.0, %v289
  %v291 = vpop.f32.mrf.mxu0
  %v292 = vpop.f32.mrf.mxu0
  %v293 = vadd.f32 0.0, %v292
  %v294 = vpop.f32.mrf.mxu0
  %295 = vmatprep.mubr.bf16.mxu0 0
  %296 = vmatmul.mubr.bf16.gmra.mxu0 %v142
  %v297 = vpop.f32.mrf.mxu0
  %v298 = vadd.f32 0.0, %v297
  %v299 = vpop.f32.mrf.mxu0
  %v300 = vpop.f32.mrf.mxu0
  %v301 = vadd.f32 0.0, %v300
  %v302 = vpop.f32.mrf.mxu0
  %303 = vdwg.mxu0
  %v304 = vadd.f32 %v119, %v242
  %v305 = vadd.f32 %v120, %v245
  %v306 = vadd.f32 %v121, %v250
  %v307 = vadd.f32 %v122, %v253
  %v308 = vadd.f32 %v123, %v258
  %v309 = vadd.f32 %v124, %v261
  %v310 = vadd.f32 %v125, %v266
  %v311 = vadd.f32 %v126, %v269
  %v312 = vadd.f32 %v127, %v274
  %v313 = vadd.f32 %v128, %v277
  %v314 = vadd.f32 %v129, %v282
  %v315 = vadd.f32 %v130, %v285
  %v316 = vadd.f32 %v131, %v290
  %v317 = vadd.f32 %v132, %v293
  %v318 = vadd.f32 %v133, %v298
  %v319 = vadd.f32 %v134, %v301
  %320 = vst [vmem:[#allocation2] sm:$0xff] %v304
  %321 = vst [vmem:[#allocation2 + $0x8] sm:$0xff] %v305
  %322 = vst [vmem:[#allocation2 + $0x10] sm:$0xff] %v306
  %323 = vst [vmem:[#allocation2 + $0x18] sm:$0xff] %v307
  %324 = vst [vmem:[#allocation2 + $0x20] sm:$0xff] %v308
  %325 = vst [vmem:[#allocation2 + $0x28] sm:$0xff] %v309
  %326 = vst [vmem:[#allocation2 + $0x30] sm:$0xff] %v310
  %327 = vst [vmem:[#allocation2 + $0x38] sm:$0xff] %v311
  %328 = vst [vmem:[#allocation2 + $0x40] sm:$0xff] %v312
  %329 = vst [vmem:[#allocation2 + $0x48] sm:$0xff] %v313
  %330 = vst [vmem:[#allocation2 + $0x50] sm:$0xff] %v314
  %331 = vst [vmem:[#allocation2 + $0x58] sm:$0xff] %v315
  %332 = vst [vmem:[#allocation2 + $0x60] sm:$0xff] %v316
  %333 = vst [vmem:[#allocation2 + $0x68] sm:$0xff] %v317
  %334 = vst [vmem:[#allocation2 + $0x70] sm:$0xff] %v318
  %335 = vst [vmem:[#allocation2 + $0x78] sm:$0xff] %v319
  // Predicated region
  $region22: #{block_group_forward.11} parent=0 // pred_check
    %p336 = pneg %p21
  $region23: #{block_group_forward.11} parent=0 // pred_check_branch
    %338 = sbr.rel (%p336) target = $region25
  $region24: #{block_group_forward.11} parent=0 // pred_region
    %v339 = vld [vmem:[#allocation2] sm:$0xff]
    %v340 = vld [vmem:[#allocation2 + $0x8] sm:$0xff]
    %v341 = vld [vmem:[#allocation2 + $0x10] sm:$0xff]
    %v342 = vld [vmem:[#allocation2 + $0x18] sm:$0xff]
    %v343 = vld [vmem:[#allocation2 + $0x20] sm:$0xff]
    %v344 = vld [vmem:[#allocation2 + $0x28] sm:$0xff]
    %v345 = vld [vmem:[#allocation2 + $0x30] sm:$0xff]
    %v346 = vld [vmem:[#allocation2 + $0x38] sm:$0xff]
    %v347 = vld [vmem:[#allocation2 + $0x40] sm:$0xff]
    %v348 = vld [vmem:[#allocation2 + $0x48] sm:$0xff]
    %v349 = vld [vmem:[#allocation2 + $0x50] sm:$0xff]
    %v350 = vld [vmem:[#allocation2 + $0x58] sm:$0xff]
    %v351 = vld [vmem:[#allocation2 + $0x60] sm:$0xff]
    %v352 = vld [vmem:[#allocation2 + $0x68] sm:$0xff]
    %v353 = vld [vmem:[#allocation2 + $0x70] sm:$0xff]
    %v354 = vld [vmem:[#allocation2 + $0x78] sm:$0xff]
    %355 = vst [vmem:[%s4] sm:$0xff] %v339
    %356 = vst [vmem:[%s4 + $0x8] sm:$0xff] %v340
    %357 = vst [vmem:[%s4 + $0x10] sm:$0xff] %v341
    %358 = vst [vmem:[%s4 + $0x18] sm:$0xff] %v342
    %359 = vst [vmem:[%s4 + $0x20] sm:$0xff] %v343
    %360 = vst [vmem:[%s4 + $0x28] sm:$0xff] %v344
    %361 = vst [vmem:[%s4 + $0x30] sm:$0xff] %v345
    %362 = vst [vmem:[%s4 + $0x38] sm:$0xff] %v346
    %363 = vst [vmem:[%s4 + $0x40] sm:$0xff] %v347
    %364 = vst [vmem:[%s4 + $0x48] sm:$0xff] %v348
    %365 = vst [vmem:[%s4 + $0x50] sm:$0xff] %v349
    %366 = vst [vmem:[%s4 + $0x58] sm:$0xff] %v350
    %367 = vst [vmem:[%s4 + $0x60] sm:$0xff] %v351
    %368 = vst [vmem:[%s4 + $0x68] sm:$0xff] %v352
    %369 = vst [vmem:[%s4 + $0x70] sm:$0xff] %v353
    %370 = vst [vmem:[%s4 + $0x78] sm:$0xff] %v354
    %v371 = vadd.f32 %v339, %v340
    %v372 = vadd.f32 %v371, %v341
    %v373 = vadd.f32 %v372, %v342
    %v374 = vadd.f32 %v373, %v343
    %v375 = vadd.f32 %v374, %v344
    %v376 = vadd.f32 %v375, %v345
    %v377 = vadd.f32 %v376, %v346
    %v378 = vadd.f32 %v377, %v347
    %v379 = vadd.f32 %v378, %v348
    %v380 = vadd.f32 %v379, %v349
    %v381 = vadd.f32 %v380, %v350
    %v382 = vadd.f32 %v381, %v351
    %v383 = vadd.f32 %v382, %v352
    %v384 = vadd.f32 %v383, %v353
    %v385 = vadd.f32 %v384, %v354
    %v386 = vrot.slane %v385, 4
    %v387 = vadd.f32 %v385, %v386
    %v388 = vrot.slane %v387, 2
    %v389 = vadd.f32 %v387, %v388
    %v390 = vrot.slane %v389, 1
    %v391 = vadd.f32 %v389, %v390
    %392 = vst [vmem:[%s5] sm:$0x1] %v391
    %v393 = vmul.f32 %v339, %v339
    %v394 = vmul.f32 %v340, %v340
    %v395 = vmul.f32 %v341, %v341
    %v396 = vmul.f32 %v342, %v342
    %v397 = vmul.f32 %v343, %v343
    %v398 = vmul.f32 %v344, %v344
    %v399 = vmul.f32 %v345, %v345
    %v400 = vmul.f32 %v346, %v346
    %v401 = vmul.f32 %v347, %v347
    %v402 = vmul.f32 %v348, %v348
    %v403 = vmul.f32 %v349, %v349
    %v404 = vmul.f32 %v350, %v350
    %v405 = vmul.f32 %v351, %v351
    %v406 = vmul.f32 %v352, %v352
    %v407 = vmul.f32 %v353, %v353
    %v408 = vmul.f32 %v354, %v354
    %v409 = vadd.f32 %v393, %v394
    %v410 = vadd.f32 %v409, %v395
    %v411 = vadd.f32 %v410, %v396
    %v412 = vadd.f32 %v411, %v397
    %v413 = vadd.f32 %v412, %v398
    %v414 = vadd.f32 %v413, %v399
    %v415 = vadd.f32 %v414, %v400
    %v416 = vadd.f32 %v415, %v401
    %v417 = vadd.f32 %v416, %v402
    %v418 = vadd.f32 %v417, %v403
    %v419 = vadd.f32 %v418, %v404
    %v420 = vadd.f32 %v419, %v405
    %v421 = vadd.f32 %v420, %v406
    %v422 = vadd.f32 %v421, %v407
    %v423 = vadd.f32 %v422, %v408
    %v424 = vrot.slane %v423, 4
    %v425 = vadd.f32 %v423, %v424
    %v426 = vrot.slane %v425, 2
    %v427 = vadd.f32 %v425, %v426
    %v428 = vrot.slane %v427, 1
    %v429 = vadd.f32 %v427, %v428
    %430 = vst [vmem:[%s6] sm:$0x1] %v429
  $region25: #{block_group_forward.11} parent=0 // pred_fallthru
    _
  // Predicated region
  $region26: #{block_group_forward.11} parent=0 // pred_check
    _
  $region27: #{block_group_forward.11} parent=0 // pred_check_branch
    %432 = sbr.rel (0) target = $region29
  $region28: #{block_group_forward.11} parent=0 // pred_region
    _
  $region29: #{block_group_forward.11} parent=0 // pred_fallthru
    _
  // Predicated region
  $region30: #{block_group_forward.11} parent=0 // pred_check
    _
  $region31: #{block_group_forward.11} parent=0 // pred_check_branch
    %434 = sbr.rel (0) target = $region33
  $region32: #{block_group_forward.11} parent=0 // pred_region
    _
  $region33: #{block_group_forward.11} parent=0 // pred_fallthru
    _
  // Predicated region
  $region34: #{block_group_forward.11} parent=0 // pred_check
    _
  $region35: #{block_group_forward.11} parent=0 // pred_check_branch
    %436 = sbr.rel (0) target = $region37
  $region36: #{block_group_forward.11} parent=0 // pred_region
    _
  $region37: #{block_group_forward.11} parent=0 // pred_fallthru
    _
  // Predicated region
  $region38: #{block_group_forward.11} parent=0 // pred_check
    _
  $region39: #{block_group_forward.11} parent=0 // pred_check_branch
    %438 = sbr.rel (0) target = $region41
  $region40: #{block_group_forward.11} parent=0 // pred_region
    _
  $region41: #{block_group_forward.11} parent=0 // pred_fallthru
    _
  // Predicated region
  $region42: #{block_group_forward.11} parent=0 // pred_check
    _
  $region43: #{block_group_forward.11} parent=0 // pred_check_branch
    %440 = sbr.rel (0) target = $region45
  $region44: #{block_group_forward.11} parent=0 // pred_region
    _
  $region45: #{block_group_forward.11} parent=0 // pred_fallthru
    _
  // Predicated region
  $region46: #{block_group_forward.11} parent=0 // pred_check
    _
  $region47: #{block_group_forward.11} parent=0 // pred_check_branch
    %442 = sbr.rel (0) target = $region49
  $region48: #{block_group_forward.11} parent=0 // pred_region
    _
  $region49: #{block_group_forward.11} parent=0 // pred_fallthru
    _

// kernel: block_group_forward.13
$region0: #{block_group_forward.13}
  #allocation0 [shape = 'u32[]', space=smem, size = 0x4, offset = 0x4, fixed_abs, tag = 'smem constant byte address 0x4 - core index']
  #allocation1 [shape = 'u32[144,128]{1,0:T(1,128)}', space=vmem, size = 0x12000, scoped, tag = 'internal scratch']
  %s0 = inlined_call_operand.vmem [shape: f32[128,128], index: 0, kind: input, shape index: {}]
  %s1 = inlined_call_operand.vmem [shape: f32[1,128], index: 1, kind: input, shape index: {}]
  %s2 = inlined_call_operand.vmem [shape: f32[1,128], index: 2, kind: input, shape index: {}]
  %s3 = inlined_call_operand.vmem [shape: f32[128,128], index: 3, kind: input, shape index: {}]
  %s4 = inlined_call_operand.vmem [shape: f32[1,128], index: 4, kind: input, shape index: {}]
  %s5 = inlined_call_operand.vmem [shape: f32[1,128], index: 5, kind: input, shape index: {}]
  %s6 = inlined_call_operand.vmem [shape: bf16[128,128], index: 6, kind: output, shape index: {}]
  %s7 = sld [smem:[#allocation0]]
  $region34: #{block_group_forward.13} parent=0
    _
  %s9 = ssub.s32 1, %s7
  %s10 = scalar_select 0, %s9, %s7
  // Predicated region
  $region2: #{block_group_forward.13} parent=0 // pred_check
    _
  $region3: #{block_group_forward.13} parent=0 // pred_check_branch
    %12 = sbr.rel (0) target = $region5
  $region4: #{block_group_forward.13} parent=0 // pred_region
    _
  $region5: #{block_group_forward.13} parent=0 // pred_fallthru
    _
  // Predicated region
  $region6: #{block_group_forward.13} parent=0 // pred_check
    _
  $region7: #{block_group_forward.13} parent=0 // pred_check_branch
    %14 = sbr.rel (0) target = $region9
  $region8: #{block_group_forward.13} parent=0 // pred_region
    _
  $region9: #{block_group_forward.13} parent=0 // pred_fallthru
    _
  // Predicated region
  $region10: #{block_group_forward.13} parent=0 // pred_check
    _
  $region11: #{block_group_forward.13} parent=0 // pred_check_branch
    %16 = sbr.rel (0) target = $region13
  $region12: #{block_group_forward.13} parent=0 // pred_region
    _
  $region13: #{block_group_forward.13} parent=0 // pred_fallthru
    _
  // Predicated region
  $region14: #{block_group_forward.13} parent=0 // pred_check
    _
  $region15: #{block_group_forward.13} parent=0 // pred_check_branch
    %18 = sbr.rel (0) target = $region17
  $region16: #{block_group_forward.13} parent=0 // pred_region
    _
  $region17: #{block_group_forward.13} parent=0 // pred_fallthru
    _
  // Predicated region
  $region18: #{block_group_forward.13} parent=0 // pred_check
    _
  $region19: #{block_group_forward.13} parent=0 // pred_check_branch
    %20 = sbr.rel (0) target = $region21
  $region20: #{block_group_forward.13} parent=0 // pred_region
    _
  $region21: #{block_group_forward.13} parent=0 // pred_fallthru
    _
  // Predicated region
  $region22: #{block_group_forward.13} parent=0 // pred_check
    _
  $region23: #{block_group_forward.13} parent=0 // pred_check_branch
    %22 = sbr.rel (0) target = $region25
  $region24: #{block_group_forward.13} parent=0 // pred_region
    _
  $region25: #{block_group_forward.13} parent=0 // pred_fallthru
    _
  %v23 = vld [vmem:[%s0] sm:$0xff]
  %v24 = vld [vmem:[%s0 + $0x8] sm:$0xff]
  %v25 = vld [vmem:[%s0 + $0x10] sm:$0xff]
  %v26 = vld [vmem:[%s0 + $0x18] sm:$0xff]
  %v27 = vld [vmem:[%s0 + $0x20] sm:$0xff]
  %v28 = vld [vmem:[%s0 + $0x28] sm:$0xff]
  %v29 = vld [vmem:[%s0 + $0x30] sm:$0xff]
  %v30 = vld [vmem:[%s0 + $0x38] sm:$0xff]
  %v31 = vld [vmem:[%s0 + $0x40] sm:$0xff]
  %v32 = vld [vmem:[%s0 + $0x48] sm:$0xff]
  %v33 = vld [vmem:[%s0 + $0x50] sm:$0xff]
  %v34 = vld [vmem:[%s0 + $0x58] sm:$0xff]
  %v35 = vld [vmem:[%s0 + $0x60] sm:$0xff]
  %v36 = vld [vmem:[%s0 + $0x68] sm:$0xff]
  %v37 = vld [vmem:[%s0 + $0x70] sm:$0xff]
  %v38 = vld [vmem:[%s0 + $0x78] sm:$0xff]
  %v39 = vld [vmem:[%s1] sm:$0x1]
  %v41 = vlaneseq
  %v42 = vshrl.u32 %v41, 7
  %v43 = vsub.s32 0, %v42
  %v44 = vrot.slane %v39, %v43
  %v46 = vmul.f32 %v23, %v44
  %v47 = vmul.f32 %v24, %v44
  %v48 = vmul.f32 %v25, %v44
  %v49 = vmul.f32 %v26, %v44
  %v50 = vmul.f32 %v27, %v44
  %v51 = vmul.f32 %v28, %v44
  %v52 = vmul.f32 %v29, %v44
  %v53 = vmul.f32 %v30, %v44
  %v54 = vmul.f32 %v31, %v44
  %v55 = vmul.f32 %v32, %v44
  %v56 = vmul.f32 %v33, %v44
  %v57 = vmul.f32 %v34, %v44
  %v58 = vmul.f32 %v35, %v44
  %v59 = vmul.f32 %v36, %v44
  %v60 = vmul.f32 %v37, %v44
  %v61 = vmul.f32 %v38, %v44
  %v62 = vld [vmem:[%s2] sm:$0x1]
  %v64 = vlaneseq
  %v65 = vshrl.u32 %v64, 7
  %v66 = vsub.s32 0, %v65
  %v67 = vrot.slane %v62, %v66
  %v69 = vadd.f32 %v46, %v67
  %v70 = vadd.f32 %v47, %v67
  %v71 = vadd.f32 %v48, %v67
  %v72 = vadd.f32 %v49, %v67
  %v73 = vadd.f32 %v50, %v67
  %v74 = vadd.f32 %v51, %v67
  %v75 = vadd.f32 %v52, %v67
  %v76 = vadd.f32 %v53, %v67
  %v77 = vadd.f32 %v54, %v67
  %v78 = vadd.f32 %v55, %v67
  %v79 = vadd.f32 %v56, %v67
  %v80 = vadd.f32 %v57, %v67
  %v81 = vadd.f32 %v58, %v67
  %v82 = vadd.f32 %v59, %v67
  %v83 = vadd.f32 %v60, %v67
  %v84 = vadd.f32 %v61, %v67
  %v85 = vmax.f32 %v69, 0.0
  %v86 = vmax.f32 %v70, 0.0
  %v87 = vmax.f32 %v71, 0.0
  %v88 = vmax.f32 %v72, 0.0
  %v89 = vmax.f32 %v73, 0.0
  %v90 = vmax.f32 %v74, 0.0
  %v91 = vmax.f32 %v75, 0.0
  %v92 = vmax.f32 %v76, 0.0
  %v93 = vmax.f32 %v77, 0.0
  %v94 = vmax.f32 %v78, 0.0
  %v95 = vmax.f32 %v79, 0.0
  %v96 = vmax.f32 %v80, 0.0
  %v97 = vmax.f32 %v81, 0.0
  %v98 = vmax.f32 %v82, 0.0
  %v99 = vmax.f32 %v83, 0.0
  %v100 = vmax.f32 %v84, 0.0
  %v101 = vld [vmem:[%s3] sm:$0xff]
  %v102 = vld [vmem:[%s3 + $0x8] sm:$0xff]
  %v103 = vld [vmem:[%s3 + $0x10] sm:$0xff]
  %v104 = vld [vmem:[%s3 + $0x18] sm:$0xff]
  %v105 = vld [vmem:[%s3 + $0x20] sm:$0xff]
  %v106 = vld [vmem:[%s3 + $0x28] sm:$0xff]
  %v107 = vld [vmem:[%s3 + $0x30] sm:$0xff]
  %v108 = vld [vmem:[%s3 + $0x38] sm:$0xff]
  %v109 = vld [vmem:[%s3 + $0x40] sm:$0xff]
  %v110 = vld [vmem:[%s3 + $0x48] sm:$0xff]
  %v111 = vld [vmem:[%s3 + $0x50] sm:$0xff]
  %v112 = vld [vmem:[%s3 + $0x58] sm:$0xff]
  %v113 = vld [vmem:[%s3 + $0x60] sm:$0xff]
  %v114 = vld [vmem:[%s3 + $0x68] sm:$0xff]
  %v115 = vld [vmem:[%s3 + $0x70] sm:$0xff]
  %v116 = vld [vmem:[%s3 + $0x78] sm:$0xff]
  %v117 = vld [vmem:[%s4] sm:$0x1]
  %v119 = vlaneseq
  %v120 = vshrl.u32 %v119, 7
  %v121 = vsub.s32 0, %v120
  %v122 = vrot.slane %v117, %v121
  %v124 = vmul.f32 %v101, %v122
  %v125 = vmul.f32 %v102, %v122
  %v126 = vmul.f32 %v103, %v122
  %v127 = vmul.f32 %v104, %v122
  %v128 = vmul.f32 %v105, %v122
  %v129 = vmul.f32 %v106, %v122
  %v130 = vmul.f32 %v107, %v122
  %v131 = vmul.f32 %v108, %v122
  %v132 = vmul.f32 %v109, %v122
  %v133 = vmul.f32 %v110, %v122
  %v134 = vmul.f32 %v111, %v122
  %v135 = vmul.f32 %v112, %v122
  %v136 = vmul.f32 %v113, %v122
  %v137 = vmul.f32 %v114, %v122
  %v138 = vmul.f32 %v115, %v122
  %v139 = vmul.f32 %v116, %v122
  %v140 = vld [vmem:[%s5] sm:$0x1]
  %v142 = vlaneseq
  %v143 = vshrl.u32 %v142, 7
  %v144 = vsub.s32 0, %v143
  %v145 = vrot.slane %v140, %v144
  %v147 = vadd.f32 %v124, %v145
  %v148 = vadd.f32 %v125, %v145
  %v149 = vadd.f32 %v126, %v145
  %v150 = vadd.f32 %v127, %v145
  %v151 = vadd.f32 %v128, %v145
  %v152 = vadd.f32 %v129, %v145
  %v153 = vadd.f32 %v130, %v145
  %v154 = vadd.f32 %v131, %v145
  %v155 = vadd.f32 %v132, %v145
  %v156 = vadd.f32 %v133, %v145
  %v157 = vadd.f32 %v134, %v145
  %v158 = vadd.f32 %v135, %v145
  %v159 = vadd.f32 %v136, %v145
  %v160 = vadd.f32 %v137, %v145
  %v161 = vadd.f32 %v138, %v145
  %v162 = vadd.f32 %v139, %v145
  %v163 = vadd.f32 %v85, %v147
  %v164 = vadd.f32 %v86, %v148
  %v165 = vadd.f32 %v87, %v149
  %v166 = vadd.f32 %v88, %v150
  %v167 = vadd.f32 %v89, %v151
  %v168 = vadd.f32 %v90, %v152
  %v169 = vadd.f32 %v91, %v153
  %v170 = vadd.f32 %v92, %v154
  %v171 = vadd.f32 %v93, %v155
  %v172 = vadd.f32 %v94, %v156
  %v173 = vadd.f32 %v95, %v157
  %v174 = vadd.f32 %v96, %v158
  %v175 = vadd.f32 %v97, %v159
  %v176 = vadd.f32 %v98, %v160
  %v177 = vadd.f32 %v99, %v161
  %v178 = vadd.f32 %v100, %v162
  %v179 = vmax.f32 %v163, 0.0
  %v180 = vmax.f32 %v164, 0.0
  %v181 = vmax.f32 %v165, 0.0
  %v182 = vmax.f32 %v166, 0.0
  %v183 = vmax.f32 %v167, 0.0
  %v184 = vmax.f32 %v168, 0.0
  %v185 = vmax.f32 %v169, 0.0
  %v186 = vmax.f32 %v170, 0.0
  %v187 = vmax.f32 %v171, 0.0
  %v188 = vmax.f32 %v172, 0.0
  %v189 = vmax.f32 %v173, 0.0
  %v190 = vmax.f32 %v174, 0.0
  %v191 = vmax.f32 %v175, 0.0
  %v192 = vmax.f32 %v176, 0.0
  %v193 = vmax.f32 %v177, 0.0
  %v194 = vmax.f32 %v178, 0.0
  %v195 = vpack.c.bf16 %v180, %v179
  %v196 = vpack.c.bf16 %v182, %v181
  %v197 = vpack.c.bf16 %v184, %v183
  %v198 = vpack.c.bf16 %v186, %v185
  %v199 = vpack.c.bf16 %v188, %v187
  %v200 = vpack.c.bf16 %v190, %v189
  %v201 = vpack.c.bf16 %v192, %v191
  %v202 = vpack.c.bf16 %v194, %v193
  %v211 = vunpack.c.l.b16 %v195
  %v212 = vunpack.c.h.b16 %v195
  %v213 = vunpack.c.l.b16 %v196
  %v214 = vunpack.c.h.b16 %v196
  %v215 = vunpack.c.l.b16 %v197
  %v216 = vunpack.c.h.b16 %v197
  %v217 = vunpack.c.l.b16 %v198
  %v218 = vunpack.c.h.b16 %v198
  %v219 = vunpack.c.l.b16 %v199
  %v220 = vunpack.c.h.b16 %v199
  %v221 = vunpack.c.l.b16 %v200
  %v222 = vunpack.c.h.b16 %v200
  %v223 = vunpack.c.l.b16 %v201
  %v224 = vunpack.c.h.b16 %v201
  %v225 = vunpack.c.l.b16 %v202
  %v226 = vunpack.c.h.b16 %v202
  %v227 = vpack.c.b16 %v211, %v211
  %v228 = vpack.c.b16 %v212, %v212
  %v229 = vpack.c.b16 %v213, %v213
  %v230 = vpack.c.b16 %v214, %v214
  %v231 = vpack.c.b16 %v215, %v215
  %v232 = vpack.c.b16 %v216, %v216
  %v233 = vpack.c.b16 %v217, %v217
  %v234 = vpack.c.b16 %v218, %v218
  %v235 = vpack.c.b16 %v219, %v219
  %v236 = vpack.c.b16 %v220, %v220
  %v237 = vpack.c.b16 %v221, %v221
  %v238 = vpack.c.b16 %v222, %v222
  %v239 = vpack.c.b16 %v223, %v223
  %v240 = vpack.c.b16 %v224, %v224
  %v241 = vpack.c.b16 %v225, %v225
  %v242 = vpack.c.b16 %v226, %v226
  %259 = vst [vmem:[%s6] sm:$0xf] %v227
  %260 = vst [vmem:[%s6 + $0x4] sm:$0xf] %v228
  %261 = vst [vmem:[%s6 + $0x8] sm:$0xf] %v229
  %262 = vst [vmem:[%s6 + $0xc] sm:$0xf] %v230
  %263 = vst [vmem:[%s6 + $0x10] sm:$0xf] %v231
  %264 = vst [vmem:[%s6 + $0x14] sm:$0xf] %v232
  %265 = vst [vmem:[%s6 + $0x18] sm:$0xf] %v233
  %266 = vst [vmem:[%s6 + $0x1c] sm:$0xf] %v234
  %267 = vst [vmem:[%s6 + $0x20] sm:$0xf] %v235
  %268 = vst [vmem:[%s6 + $0x24] sm:$0xf] %v236
  %269 = vst [vmem:[%s6 + $0x28] sm:$0xf] %v237
  %270 = vst [vmem:[%s6 + $0x2c] sm:$0xf] %v238
  %271 = vst [vmem:[%s6 + $0x30] sm:$0xf] %v239
  %272 = vst [vmem:[%s6 + $0x34] sm:$0xf] %v240
  %273 = vst [vmem:[%s6 + $0x38] sm:$0xf] %v241
  %274 = vst [vmem:[%s6 + $0x3c] sm:$0xf] %v242
  // Predicated region
  $region26: #{block_group_forward.13} parent=0 // pred_check
    _
  $region27: #{block_group_forward.13} parent=0 // pred_check_branch
    %276 = sbr.rel (0) target = $region29
  $region28: #{block_group_forward.13} parent=0 // pred_region
    _
  $region29: #{block_group_forward.13} parent=0 // pred_fallthru
    _
  // Predicated region
  $region30: #{block_group_forward.13} parent=0 // pred_check
    _
  $region31: #{block_group_forward.13} parent=0 // pred_check_branch
    %278 = sbr.rel (0) target = $region33
  $region32: #{block_group_forward.13} parent=0 // pred_region
    _
  $region33: #{block_group_forward.13} parent=0 // pred_fallthru
    _

// kernel: block_group_forward.17
$region0: #{block_group_forward.17}
  #allocation0 [shape = 'u32[]', space=smem, size = 0x4, offset = 0x4, fixed_abs, tag = 'smem constant byte address 0x4 - core index']
  #allocation1 [shape = 'u32[144,128]{1,0:T(1,128)}', space=vmem, size = 0x12000, scoped, tag = 'internal scratch']
  %s0 = inlined_call_operand.vmem [shape: f32[128,128], index: 0, kind: input, shape index: {}]
  %s1 = inlined_call_operand.vmem [shape: f32[1,128], index: 1, kind: input, shape index: {}]
  %s2 = inlined_call_operand.vmem [shape: f32[1,128], index: 2, kind: input, shape index: {}]
  %s3 = inlined_call_operand.vmem [shape: bf16[128,128], index: 3, kind: input, shape index: {}]
  %s4 = inlined_call_operand.vmem [shape: bf16[128,128], index: 4, kind: output, shape index: {}]
  %s5 = sld [smem:[#allocation0]]
  $region26: #{block_group_forward.17} parent=0
    _
  %s7 = ssub.s32 1, %s5
  %s8 = scalar_select 0, %s7, %s5
  // Predicated region
  $region2: #{block_group_forward.17} parent=0 // pred_check
    _
  $region3: #{block_group_forward.17} parent=0 // pred_check_branch
    %10 = sbr.rel (0) target = $region5
  $region4: #{block_group_forward.17} parent=0 // pred_region
    _
  $region5: #{block_group_forward.17} parent=0 // pred_fallthru
    _
  // Predicated region
  $region6: #{block_group_forward.17} parent=0 // pred_check
    _
  $region7: #{block_group_forward.17} parent=0 // pred_check_branch
    %12 = sbr.rel (0) target = $region9
  $region8: #{block_group_forward.17} parent=0 // pred_region
    _
  $region9: #{block_group_forward.17} parent=0 // pred_fallthru
    _
  // Predicated region
  $region10: #{block_group_forward.17} parent=0 // pred_check
    _
  $region11: #{block_group_forward.17} parent=0 // pred_check_branch
    %14 = sbr.rel (0) target = $region13
  $region12: #{block_group_forward.17} parent=0 // pred_region
    _
  $region13: #{block_group_forward.17} parent=0 // pred_fallthru
    _
  // Predicated region
  $region14: #{block_group_forward.17} parent=0 // pred_check
    _
  $region15: #{block_group_forward.17} parent=0 // pred_check_branch
    %16 = sbr.rel (0) target = $region17
  $region16: #{block_group_forward.17} parent=0 // pred_region
    _
  $region17: #{block_group_forward.17} parent=0 // pred_fallthru
    _
  %v17 = vld [vmem:[%s0] sm:$0xff]
  %v18 = vld [vmem:[%s0 + $0x8] sm:$0xff]
  %v19 = vld [vmem:[%s0 + $0x10] sm:$0xff]
  %v20 = vld [vmem:[%s0 + $0x18] sm:$0xff]
  %v21 = vld [vmem:[%s0 + $0x20] sm:$0xff]
  %v22 = vld [vmem:[%s0 + $0x28] sm:$0xff]
  %v23 = vld [vmem:[%s0 + $0x30] sm:$0xff]
  %v24 = vld [vmem:[%s0 + $0x38] sm:$0xff]
  %v25 = vld [vmem:[%s0 + $0x40] sm:$0xff]
  %v26 = vld [vmem:[%s0 + $0x48] sm:$0xff]
  %v27 = vld [vmem:[%s0 + $0x50] sm:$0xff]
  %v28 = vld [vmem:[%s0 + $0x58] sm:$0xff]
  %v29 = vld [vmem:[%s0 + $0x60] sm:$0xff]
  %v30 = vld [vmem:[%s0 + $0x68] sm:$0xff]
  %v31 = vld [vmem:[%s0 + $0x70] sm:$0xff]
  %v32 = vld [vmem:[%s0 + $0x78] sm:$0xff]
  %v33 = vld [vmem:[%s1] sm:$0x1]
  %v35 = vlaneseq
  %v36 = vshrl.u32 %v35, 7
  %v37 = vsub.s32 0, %v36
  %v38 = vrot.slane %v33, %v37
  %v40 = vmul.f32 %v17, %v38
  %v41 = vmul.f32 %v18, %v38
  %v42 = vmul.f32 %v19, %v38
  %v43 = vmul.f32 %v20, %v38
  %v44 = vmul.f32 %v21, %v38
  %v45 = vmul.f32 %v22, %v38
  %v46 = vmul.f32 %v23, %v38
  %v47 = vmul.f32 %v24, %v38
  %v48 = vmul.f32 %v25, %v38
  %v49 = vmul.f32 %v26, %v38
  %v50 = vmul.f32 %v27, %v38
  %v51 = vmul.f32 %v28, %v38
  %v52 = vmul.f32 %v29, %v38
  %v53 = vmul.f32 %v30, %v38
  %v54 = vmul.f32 %v31, %v38
  %v55 = vmul.f32 %v32, %v38
  %v56 = vld [vmem:[%s2] sm:$0x1]
  %v58 = vlaneseq
  %v59 = vshrl.u32 %v58, 7
  %v60 = vsub.s32 0, %v59
  %v61 = vrot.slane %v56, %v60
  %v63 = vadd.f32 %v40, %v61
  %v64 = vadd.f32 %v41, %v61
  %v65 = vadd.f32 %v42, %v61
  %v66 = vadd.f32 %v43, %v61
  %v67 = vadd.f32 %v44, %v61
  %v68 = vadd.f32 %v45, %v61
  %v69 = vadd.f32 %v46, %v61
  %v70 = vadd.f32 %v47, %v61
  %v71 = vadd.f32 %v48, %v61
  %v72 = vadd.f32 %v49, %v61
  %v73 = vadd.f32 %v50, %v61
  %v74 = vadd.f32 %v51, %v61
  %v75 = vadd.f32 %v52, %v61
  %v76 = vadd.f32 %v53, %v61
  %v77 = vadd.f32 %v54, %v61
  %v78 = vadd.f32 %v55, %v61
  %v79 = vmax.f32 %v63, 0.0
  %v80 = vmax.f32 %v64, 0.0
  %v81 = vmax.f32 %v65, 0.0
  %v82 = vmax.f32 %v66, 0.0
  %v83 = vmax.f32 %v67, 0.0
  %v84 = vmax.f32 %v68, 0.0
  %v85 = vmax.f32 %v69, 0.0
  %v86 = vmax.f32 %v70, 0.0
  %v87 = vmax.f32 %v71, 0.0
  %v88 = vmax.f32 %v72, 0.0
  %v89 = vmax.f32 %v73, 0.0
  %v90 = vmax.f32 %v74, 0.0
  %v91 = vmax.f32 %v75, 0.0
  %v92 = vmax.f32 %v76, 0.0
  %v93 = vmax.f32 %v77, 0.0
  %v94 = vmax.f32 %v78, 0.0
  %v95 = vld [vmem:[%s3] sm:$0xf]
  %v96 = vld [vmem:[%s3 + $0x4] sm:$0xf]
  %v97 = vld [vmem:[%s3 + $0x8] sm:$0xf]
  %v98 = vld [vmem:[%s3 + $0xc] sm:$0xf]
  %v99 = vld [vmem:[%s3 + $0x10] sm:$0xf]
  %v100 = vld [vmem:[%s3 + $0x14] sm:$0xf]
  %v101 = vld [vmem:[%s3 + $0x18] sm:$0xf]
  %v102 = vld [vmem:[%s3 + $0x1c] sm:$0xf]
  %v103 = vld [vmem:[%s3 + $0x20] sm:$0xf]
  %v104 = vld [vmem:[%s3 + $0x24] sm:$0xf]
  %v105 = vld [vmem:[%s3 + $0x28] sm:$0xf]
  %v106 = vld [vmem:[%s3 + $0x2c] sm:$0xf]
  %v107 = vld [vmem:[%s3 + $0x30] sm:$0xf]
  %v108 = vld [vmem:[%s3 + $0x34] sm:$0xf]
  %v109 = vld [vmem:[%s3 + $0x38] sm:$0xf]
  %v110 = vld [vmem:[%s3 + $0x3c] sm:$0xf]
  %v111 = vunpack.c.l.bf16 %v95
  %v112 = vunpack.c.l.bf16 %v96
  %v113 = vunpack.c.l.bf16 %v97
  %v114 = vunpack.c.l.bf16 %v98
  %v115 = vunpack.c.l.bf16 %v99
  %v116 = vunpack.c.l.bf16 %v100
  %v117 = vunpack.c.l.bf16 %v101
  %v118 = vunpack.c.l.bf16 %v102
  %v119 = vunpack.c.l.bf16 %v103
  %v120 = vunpack.c.l.bf16 %v104
  %v121 = vunpack.c.l.bf16 %v105
  %v122 = vunpack.c.l.bf16 %v106
  %v123 = vunpack.c.l.bf16 %v107
  %v124 = vunpack.c.l.bf16 %v108
  %v125 = vunpack.c.l.bf16 %v109
  %v126 = vunpack.c.l.bf16 %v110
  %v127 = vadd.f32 %v79, %v111
  %v128 = vadd.f32 %v80, %v112
  %v129 = vadd.f32 %v81, %v113
  %v130 = vadd.f32 %v82, %v114
  %v131 = vadd.f32 %v83, %v115
  %v132 = vadd.f32 %v84, %v116
  %v133 = vadd.f32 %v85, %v117
  %v134 = vadd.f32 %v86, %v118
  %v135 = vadd.f32 %v87, %v119
  %v136 = vadd.f32 %v88, %v120
  %v137 = vadd.f32 %v89, %v121
  %v138 = vadd.f32 %v90, %v122
  %v139 = vadd.f32 %v91, %v123
  %v140 = vadd.f32 %v92, %v124
  %v141 = vadd.f32 %v93, %v125
  %v142 = vadd.f32 %v94, %v126
  %v143 = vmax.f32 %v127, 0.0
  %v144 = vmax.f32 %v128, 0.0
  %v145 = vmax.f32 %v129, 0.0
  %v146 = vmax.f32 %v130, 0.0
  %v147 = vmax.f32 %v131, 0.0
  %v148 = vmax.f32 %v132, 0.0
  %v149 = vmax.f32 %v133, 0.0
  %v150 = vmax.f32 %v134, 0.0
  %v151 = vmax.f32 %v135, 0.0
  %v152 = vmax.f32 %v136, 0.0
  %v153 = vmax.f32 %v137, 0.0
  %v154 = vmax.f32 %v138, 0.0
  %v155 = vmax.f32 %v139, 0.0
  %v156 = vmax.f32 %v140, 0.0
  %v157 = vmax.f32 %v141, 0.0
  %v158 = vmax.f32 %v142, 0.0
  %v159 = vpack.c.bf16 %v144, %v143
  %v160 = vpack.c.bf16 %v146, %v145
  %v161 = vpack.c.bf16 %v148, %v147
  %v162 = vpack.c.bf16 %v150, %v149
  %v163 = vpack.c.bf16 %v152, %v151
  %v164 = vpack.c.bf16 %v154, %v153
  %v165 = vpack.c.bf16 %v156, %v155
  %v166 = vpack.c.bf16 %v158, %v157
  %v175 = vunpack.c.l.b16 %v159
  %v176 = vunpack.c.h.b16 %v159
  %v177 = vunpack.c.l.b16 %v160
  %v178 = vunpack.c.h.b16 %v160
  %v179 = vunpack.c.l.b16 %v161
  %v180 = vunpack.c.h.b16 %v161
  %v181 = vunpack.c.l.b16 %v162
  %v182 = vunpack.c.h.b16 %v162
  %v183 = vunpack.c.l.b16 %v163
  %v184 = vunpack.c.h.b16 %v163
  %v185 = vunpack.c.l.b16 %v164
  %v186 = vunpack.c.h.b16 %v164
  %v187 = vunpack.c.l.b16 %v165
  %v188 = vunpack.c.h.b16 %v165
  %v189 = vunpack.c.l.b16 %v166
  %v190 = vunpack.c.h.b16 %v166
  %v191 = vpack.c.b16 %v175, %v175
  %v192 = vpack.c.b16 %v176, %v176
  %v193 = vpack.c.b16 %v177, %v177
  %v194 = vpack.c.b16 %v178, %v178
  %v195 = vpack.c.b16 %v179, %v179
  %v196 = vpack.c.b16 %v180, %v180
  %v197 = vpack.c.b16 %v181, %v181
  %v198 = vpack.c.b16 %v182, %v182
  %v199 = vpack.c.b16 %v183, %v183
  %v200 = vpack.c.b16 %v184, %v184
  %v201 = vpack.c.b16 %v185, %v185
  %v202 = vpack.c.b16 %v186, %v186
  %v203 = vpack.c.b16 %v187, %v187
  %v204 = vpack.c.b16 %v188, %v188
  %v205 = vpack.c.b16 %v189, %v189
  %v206 = vpack.c.b16 %v190, %v190
  %223 = vst [vmem:[%s4] sm:$0xf] %v191
  %224 = vst [vmem:[%s4 + $0x4] sm:$0xf] %v192
  %225 = vst [vmem:[%s4 + $0x8] sm:$0xf] %v193
  %226 = vst [vmem:[%s4 + $0xc] sm:$0xf] %v194
  %227 = vst [vmem:[%s4 + $0x10] sm:$0xf] %v195
  %228 = vst [vmem:[%s4 + $0x14] sm:$0xf] %v196
  %229 = vst [vmem:[%s4 + $0x18] sm:$0xf] %v197
  %230 = vst [vmem:[%s4 + $0x1c] sm:$0xf] %v198
  %231 = vst [vmem:[%s4 + $0x20] sm:$0xf] %v199
  %232 = vst [vmem:[%s4 + $0x24] sm:$0xf] %v200
  %233 = vst [vmem:[%s4 + $0x28] sm:$0xf] %v201
  %234 = vst [vmem:[%s4 + $0x2c] sm:$0xf] %v202
  %235 = vst [vmem:[%s4 + $0x30] sm:$0xf] %v203
  %236 = vst [vmem:[%s4 + $0x34] sm:$0xf] %v204
  %237 = vst [vmem:[%s4 + $0x38] sm:$0xf] %v205
  %238 = vst [vmem:[%s4 + $0x3c] sm:$0xf] %v206
  // Predicated region
  $region18: #{block_group_forward.17} parent=0 // pred_check
    _
  $region19: #{block_group_forward.17} parent=0 // pred_check_branch
    %240 = sbr.rel (0) target = $region21
  $region20: #{block_group_forward.17} parent=0 // pred_region
    _
  $region21: #{block_group_forward.17} parent=0 // pred_fallthru
    _
  // Predicated region
  $region22: #{block_group_forward.17} parent=0 // pred_check
    _
  $region23: #{block_group_forward.17} parent=0 // pred_check_branch
    %242 = sbr.rel (0) target = $region25
  $region24: #{block_group_forward.17} parent=0 // pred_region
    _
  $region25: #{block_group_forward.17} parent=0 // pred_fallthru
    _

// kernel: block_group_forward.10
$region0: #{block_group_forward.10}
  #allocation0 [shape = 'u32[]', space=smem, size = 0x4, offset = 0x4, fixed_abs, tag = 'smem constant byte address 0x4 - core index']
  #allocation1 [shape = 'u32[144,128]{1,0:T(1,128)}', space=vmem, size = 0x12000, scoped, tag = 'internal scratch']
  #allocation2 [shape = 'bf16[4,10,9,128]{3,2,1,0:T(8,128)(2,1)}', space=vmem, size = 0x28000, scoped, tag = 'scratch operand']
  %s0 = inlined_call_operand.vmem [shape: bf16[8,10,9,128], index: 0, kind: input, shape index: {}, may-alias: {0,1}]
  %s1 = inlined_call_operand.vmem [shape: bf16[8,10,9,128], index: 1, kind: input, shape index: {}, may-alias: {0,1}]
  %s2 = inlined_call_operand.vmem [shape: bf16[9,128,128], index: 2, kind: input, shape index: {}]
  %s3 = inlined_call_operand.vmem [shape: f32[2,8,8,128], index: 3, kind: output, shape index: {0}]
  %s4 = inlined_call_operand.vmem [shape: f32[2,1,128], index: 4, kind: output, shape index: {1}]
  %s5 = inlined_call_operand.vmem [shape: f32[2,1,128], index: 5, kind: output, shape index: {2}]
  %6 = xla_tuple %s3, %s4, %s5
  %s7 = sld [smem:[#allocation0]]
  $region164: #{block_group_forward.10} parent=0
    _
  %s9 = ssub.s32 1, %s7
  %s10 = scalar_select 0, %s9, %s7
  $region1: #{block_group_forward.10} parent=0
    #allocation3 [shape = 'u8[262144]{0}', space=vmem, size = 0x40000, scoped, tag = 'input window, operand 0']
    #allocation4 [shape = 'u8[65536]{0}', space=vmem, size = 0x10000, scoped, tag = 'input window, operand 1']
    loop: start=0, step=1, limit=4
    $region2: #{block_group_forward.10} parent=1 // loop_pre_header
      _
    $region3: #{block_group_forward.10} parent=1 // loop_header
      %s12 = sphi 0, %s16
      %p13 = scmp.ge.s32.totalorder %s12, 4
      %s19 = sphi 0, %s38
      %s20 = sphi 0, %s34
      %s21 = sphi 0, %s30
      %s22 = sphi 0, %s19
      %s23 = sphi 0, %s20
      %s24 = sphi 0, %s21
      %s25 = sphi 0, %s22
      %s26 = sphi 0, %s23
      %s27 = sphi 0, %s24
      %s43 = sphi 0, %s45
      %s46 = sphi 0, %s43
      %s47 = sphi 0, %s46
      %s63 = sphi 0, %s47
      %s75 = sphi 0, %s77
      %s78 = sphi 0, %s75
      %s79 = sphi 0, %s78
      %s95 = sphi 0, %s79
      %s101 = sphi 0, %s103
      %s104 = sphi 0, %s101
      %s105 = sphi 0, %s104
      %s121 = sphi 0, %s105
      %s131 = sphi 0, %s133
      %s134 = sphi 0, %s131
      %s135 = sphi 0, %s134
      %s151 = sphi 0, %s135
      %s161 = sphi 0, %s163
      %s164 = sphi 0, %s161
      %s165 = sphi 0, %s164
      %s181 = sphi 0, %s165
      %s191 = sphi 0, %s193
      %s194 = sphi 0, %s191
      %s195 = sphi 0, %s194
      %s211 = sphi 0, %s195
    $region4: #{block_group_forward.10} parent=1 // loop_header_branch
      %15 = sbr.rel (%p13) target = $region8
    $region5: #{block_group_forward.10} parent=1 // loop_body
      %s17 = ssub.s32 %s12, 1
      %s18 = ssub.s32 %s12, 2
      %s28 = sadd.s32 1, %s21
      %p29 = scmp.ge.s32.totalorder %s28, 1
      %s30 = scalar_select %p29, 0, %s28
      %s31 = sadd.s32 1, %s20
      %s32 = scalar_select %p29, %s31, %s20
      %p33 = scmp.ge.s32.totalorder %s32, 1
      %s34 = scalar_select %p33, 0, %s32
      %s35 = sadd.s32 1, %s19
      %s36 = scalar_select %p33, %s35, %s19
      %p37 = scmp.ge.s32.totalorder %s36, 2
      %s38 = scalar_select %p37, 0, %s36
      %s39 = ssub.s32 %s19, %s38
      %s40 = ssub.s32 %s20, %s34
      %s41 = sor.u32 %s39, %s40
      %p42 = scmp.eq.s32.totalorder %s41, 0
      %s44 = sadd.s32 %s43, 1
      %s45 = scalar_select %p42, %s43, %s44
      %p48 = pneg %p42
      %p49 = scmp.eq.s32.totalorder %s12, 1
      %p50 = por %p48, %p49
      %p51 = scmp.ne.s32.totalorder %s43, %s46
      %p52 = scmp.eq.s32.totalorder %s12, 0
      %p53 = por %p51, %p52
      %p54 = scmp.ne.s32.totalorder %s43, %s46
      %p55 = scmp.eq.s32.totalorder %s17, 1
      %p56 = por %p54, %p55
      %p57 = scmp.ne.s32.totalorder %s46, %s47
      %p58 = scmp.eq.s32.totalorder %s17, 0
      %p59 = por %p57, %p58
      %p60 = scmp.ne.s32.totalorder %s46, %s47
      %p61 = scmp.eq.s32.totalorder %s18, 1
      %p62 = por %p60, %p61
      %p64 = scmp.ne.s32.totalorder %s47, %s63
      %p65 = scmp.eq.s32.totalorder %s18, 0
      %p66 = por %p64, %p65
      %s67 = sadd.s32 %s20, 1
      %s68 = smul.u32 %s67, 4
      %s69 = sadd.s32 %s34, 1
      %s70 = smul.u32 %s69, 4
      %s71 = ssub.s32 %s19, %s38
      %s72 = ssub.s32 %s68, %s70
      %s73 = sor.u32 %s71, %s72
      %p74 = scmp.eq.s32.totalorder %s73, 0
      %s76 = sadd.s32 %s75, 1
      %s77 = scalar_select %p74, %s75, %s76
      %p80 = pneg %p74
      %p81 = scmp.eq.s32.totalorder %s12, 1
      %p82 = por %p80, %p81
      %p83 = scmp.ne.s32.totalorder %s75, %s78
      %p84 = scmp.eq.s32.totalorder %s12, 0
      %p85 = por %p83, %p84
      %p86 = scmp.ne.s32.totalorder %s75, %s78
      %p87 = scmp.eq.s32.totalorder %s17, 1
      %p88 = por %p86, %p87
      %p89 = scmp.ne.s32.totalorder %s78, %s79
      %p90 = scmp.eq.s32.totalorder %s17, 0
      %p91 = por %p89, %p90
      %p92 = scmp.ne.s32.totalorder %s78, %s79
      %p93 = scmp.eq.s32.totalorder %s18, 1
      %p94 = por %p92, %p93
      %p96 = scmp.ne.s32.totalorder %s79, %s95
      %p97 = scmp.eq.s32.totalorder %s18, 0
      %p98 = por %p96, %p97
      %s99 = ssub.s32 %s21, %s30
      %p100 = scmp.eq.s32.totalorder %s99, 0
      %s102 = sadd.s32 %s101, 1
      %s103 = scalar_select %p100, %s101, %s102
      %p106 = pneg %p100
      %p107 = scmp.eq.s32.totalorder %s12, 1
      %p108 = por %p106, %p107
      %p109 = scmp.ne.s32.totalorder %s101, %s104
      %p110 = scmp.eq.s32.totalorder %s12, 0
      %p111 = por %p109, %p110
      %p112 = scmp.ne.s32.totalorder %s101, %s104
      %p113 = scmp.eq.s32.totalorder %s17, 1
      %p114 = por %p112, %p113
      %p115 = scmp.ne.s32.totalorder %s104, %s105
      %p116 = scmp.eq.s32.totalorder %s17, 0
      %p117 = por %p115, %p116
      %p118 = scmp.ne.s32.totalorder %s104, %s105
      %p119 = scmp.eq.s32.totalorder %s18, 1
      %p120 = por %p118, %p119
      %p122 = scmp.ne.s32.totalorder %s105, %s121
      %p123 = scmp.eq.s32.totalorder %s18, 0
      %p124 = por %p122, %p123
      %s125 = ssub.s32 %s19, %s38
      %s126 = ssub.s32 %s20, %s34
      %s127 = sor.u32 %s125, %s126
      %s128 = ssub.s32 %s21, %s30
      %s129 = sor.u32 %s127, %s128
      %p130 = scmp.eq.s32.totalorder %s129, 0
      %s132 = sadd.s32 %s131, 1
      %s133 = scalar_select %p130, %s131, %s132
      %p136 = pneg %p130
      %p137 = scmp.eq.s32.totalorder %s12, 1
      %p138 = por %p136, %p137
      %p139 = scmp.ne.s32.totalorder %s131, %s134
      %p140 = scmp.eq.s32.totalorder %s12, 0
      %p141 = por %p139, %p140
      %p142 = scmp.ne.s32.totalorder %s131, %s134
      %p143 = scmp.eq.s32.totalorder %s17, 1
      %p144 = por %p142, %p143
      %p145 = scmp.ne.s32.totalorder %s134, %s135
      %p146 = scmp.eq.s32.totalorder %s17, 0
      %p147 = por %p145, %p146
      %p148 = scmp.ne.s32.totalorder %s134, %s135
      %p149 = scmp.eq.s32.totalorder %s18, 1
      %p150 = por %p148, %p149
      %p152 = scmp.ne.s32.totalorder %s135, %s151
      %p153 = scmp.eq.s32.totalorder %s18, 0
      %p154 = por %p152, %p153
      %s155 = sadd.s32 %s19, %s20
      %s156 = sadd.s32 %s38, %s34
      %s157 = ssub.s32 %s155, %s156
      %s158 = ssub.s32 %s21, %s30
      %s159 = sor.u32 %s157, %s158
      %p160 = scmp.eq.s32.totalorder %s159, 0
      %s162 = sadd.s32 %s161, 1
      %s163 = scalar_select %p160, %s161, %s162
      %p166 = pneg %p160
      %p167 = scmp.eq.s32.totalorder %s12, 1
      %p168 = por %p166, %p167
      %p169 = scmp.ne.s32.totalorder %s161, %s164
      %p170 = scmp.eq.s32.totalorder %s12, 0
      %p171 = por %p169, %p170
      %p172 = scmp.ne.s32.totalorder %s161, %s164
      %p173 = scmp.eq.s32.totalorder %s17, 1
      %p174 = por %p172, %p173
      %p175 = scmp.ne.s32.totalorder %s164, %s165
      %p176 = scmp.eq.s32.totalorder %s17, 0
      %p177 = por %p175, %p176
      %p178 = scmp.ne.s32.totalorder %s164, %s165
      %p179 = scmp.eq.s32.totalorder %s18, 1
      %p180 = por %p178, %p179
      %p182 = scmp.ne.s32.totalorder %s165, %s181
      %p183 = scmp.eq.s32.totalorder %s18, 0
      %p184 = por %p182, %p183
      %s185 = sadd.s32 %s19, %s20
      %s186 = sadd.s32 %s38, %s34
      %s187 = ssub.s32 %s185, %s186
      %s188 = ssub.s32 %s21, %s30
      %s189 = sor.u32 %s187, %s188
      %p190 = scmp.eq.s32.totalorder %s189, 0
      %s192 = sadd.s32 %s191, 1
      %s193 = scalar_select %p190, %s191, %s192
      %p196 = pneg %p190
      %p197 = scmp.eq.s32.totalorder %s12, 1
      %p198 = por %p196, %p197
      %p199 = scmp.ne.s32.totalorder %s191, %s194
      %p200 = scmp.eq.s32.totalorder %s12, 0
      %p201 = por %p199, %p200
      %p202 = scmp.ne.s32.totalorder %s191, %s194
      %p203 = scmp.eq.s32.totalorder %s17, 1
      %p204 = por %p202, %p203
      %p205 = scmp.ne.s32.totalorder %s194, %s195
      %p206 = scmp.eq.s32.totalorder %s17, 0
      %p207 = por %p205, %p206
      %p208 = scmp.ne.s32.totalorder %s194, %s195
      %p209 = scmp.eq.s32.totalorder %s18, 1
      %p210 = por %p208, %p209
      %p212 = scmp.ne.s32.totalorder %s195, %s211
      %p213 = scmp.eq.s32.totalorder %s18, 0
      %p214 = por %p212, %p213
      %p215 = scmp.le.s32.totalorder 1, %s12
      %p216 = scmp.lt.s32.totalorder %s12, 3
      %p217 = pnand %p215, %p216
      %p218 = pneg %p217
      // Predicated region
      $region9: #{block_group_forward.10} parent=5 // pred_check
        _
      $region10: #{block_group_forward.10} parent=5 // pred_check_branch
        %220 = sbr.rel (%p217) target = $region12
      $region11: #{block_group_forward.10} parent=5 // pred_region
        %s221 = ssub.s32 %s12, 1
        // Predicated region
        $region13: #{block_group_forward.10} parent=11 // pred_check
          %p222 = pneg %p117
        $region14: #{block_group_forward.10} parent=11 // pred_check_branch
          %224 = sbr.rel (%p222) target = $region16
        $region15: #{block_group_forward.10} parent=11 // pred_region
          %p225 = scmp.lt.s32.totalorder %s24, 0
          %s226 = scalar_select %p225, %s24, 0
          %s227 = smul.addr %s226, 4
          %s228 = scalar_lea.vmem %s2, %s227
        $region16: #{block_group_forward.10} parent=11 // pred_fallthru
          _
      $region12: #{block_group_forward.10} parent=5 // pred_fallthru
        _
      %p229 = scmp.lt.s32.totalorder %s12, 2
      // Predicated region
      $region17: #{block_group_forward.10} parent=5 // pred_check
        %p230 = pneg %p229
      $region18: #{block_group_forward.10} parent=5 // pred_check_branch
        %232 = sbr.rel (%p230) target = $region20
      $region19: #{block_group_forward.10} parent=5 // pred_region
        // Predicated region
        $region21: #{block_group_forward.10} parent=19 // pred_check
          %p233 = pneg %p53
        $region22: #{block_group_forward.10} parent=19 // pred_check_branch
          %235 = sbr.rel (%p233) target = $region24
        $region23: #{block_group_forward.10} parent=19 // pred_region
          %s236 = sand.u32 %s43, 1
          %s237 = sand.u32 %s43, 1
          %s238 = smul.addr %s237, 256
          %s239 = scalar_lea.vmem [#allocation3], %s238
          %s240 = smul.u32 4, %s19
          %s241 = smul.u32 8, %s20
          %s242 = ssub.s32 10, %s241
          %p243 = scmp.lt.s32.totalorder %s242, 8
          %s244 = scalar_select %p243, %s242, 8
          %s245 = smul.u32 256, %s244
          %s246 = smul.u32 %s245, 2
          %p247 = scmp.ne.s32.totalorder 0, %s246
          %s248 = smul.addr %s241, 2
          %s249 = smul.addr %s240, 20
          %s250 = sadd.s32 %s248, %s249
          %s251 = smul.addr %s250, 4
          %s252 = scalar_lea.vmem %s0, %s251
          %s253 = smul.u32 %s244, 2
          // Predicated region
          $region25: #{block_group_forward.10} parent=23 // pred_check
            %p254 = pneg %p247
          $region26: #{block_group_forward.10} parent=23 // pred_check_branch
            %256 = sbr.rel (%p254) target = $region28
          $region27: #{block_group_forward.10} parent=23 // pred_region
            // Predicated region
            $region29: #{block_group_forward.10} parent=27 // pred_check
              _
            $region30: #{block_group_forward.10} parent=27 // pred_check_branch
              %258 = sbr.rel target = $region32
            $region31: #{block_group_forward.10} parent=27 // pred_region
              // Predicated region
              $region51: #{block_group_forward.10} parent=31 // pred_check
                _
              $region52: #{block_group_forward.10} parent=31 // pred_check_branch
                %440 = sbr.rel (0) target = $region54
              $region53: #{block_group_forward.10} parent=31 // pred_region
                %s441 = sshrl.u32 %s253, 4
                // While loop
                $region55: #{block_group_forward.10} parent=53 // loop_pre_header
                  _
                $region56: #{block_group_forward.10} parent=53 // loop_header
                  %s443 = sphi 0, %s445
                  %p444 = scmp.ge.s32.totalorder %s443, %s441
                  %s448 = sphi 0, %s453
                  %s449 = sphi %s252, %s456
                  %s450 = sphi %s239, %s457
                $region57: #{block_group_forward.10} parent=53 // loop_header_branch
                  %447 = sbr.rel (%p444) target = $region61
                $region58: #{block_group_forward.10} parent=53 // loop_body
                  %s451 = sadd.s32 1, %s448
                  %p452 = scmp.ge.s32.totalorder %s451, %s441
                  %s453 = scalar_select %p452, 0, %s451
                  %s454 = smul.u32 %s453, 64
                  %s455 = smul.u32 %s453, 64
                  %s456 = scalar_lea.vmem %s252, %s454
                  %s457 = scalar_lea.vmem %s239, %s455 [#allocation3]
                $region59: #{block_group_forward.10} parent=53 // loop_footer
                  %s445 = sadd.s32 %s443, 1
                $region60: #{block_group_forward.10} parent=53 // loop_footer_branch
                  %442 = sbr.rel target = $region56
                $region61: #{block_group_forward.10} parent=53 // loop_exit
                  _
                %s458 = sshrl.u32 %s253, 4
                %s459 = sand.u32 %s253, 15
                %s460 = smul.u32 %s458, 16
                %s461 = smul.u32 4, %s460
                %s462 = scalar_lea.vmem %s252, %s461
                %s463 = smul.u32 4, %s460
                %s464 = scalar_lea.vmem %s239, %s463 [#allocation3]
                // While loop
                $region62: #{block_group_forward.10} parent=53 // loop_pre_header
                  _
                $region63: #{block_group_forward.10} parent=53 // loop_header
                  %s466 = sphi 0, %s468
                  %p467 = scmp.ge.s32.totalorder %s466, %s459
                  %s471 = sphi 0, %s476
                  %s472 = sphi %s462, %s479
                  %s473 = sphi %s464, %s480
                $region64: #{block_group_forward.10} parent=53 // loop_header_branch
                  %470 = sbr.rel (%p467) target = $region68
                $region65: #{block_group_forward.10} parent=53 // loop_body
                  %s474 = sadd.s32 1, %s471
                  %p475 = scmp.ge.s32.totalorder %s474, %s459
                  %s476 = scalar_select %p475, 0, %s474
                  %s477 = smul.u32 %s476, 4
                  %s478 = smul.u32 %s476, 4
                  %s479 = scalar_lea.vmem %s462, %s477
                  %s480 = scalar_lea.vmem %s464, %s478 [#allocation3]
                $region66: #{block_group_forward.10} parent=53 // loop_footer
                  %s468 = sadd.s32 %s466, 1
                $region67: #{block_group_forward.10} parent=53 // loop_footer_branch
                  %465 = sbr.rel target = $region63
                $region68: #{block_group_forward.10} parent=53 // loop_exit
                  _
                %s482 = ssub.s32 16, 1
                %s483 = sshrl.u32 %s253, 4
                // While loop
                $region69: #{block_group_forward.10} parent=53 // loop_pre_header
                  _
                $region70: #{block_group_forward.10} parent=53 // loop_header
                  %s485 = sphi 0, %s487
                  %p486 = scmp.ge.s32.totalorder %s485, %s483
                  %s490 = sphi 0, %s623
                  %s491 = sphi %s252, %s626
                  %s492 = sphi %s239, %s627
                $region71: #{block_group_forward.10} parent=53 // loop_header_branch
                  %489 = sbr.rel (%p486) target = $region75
                $region72: #{block_group_forward.10} parent=53 // loop_body
                  %v493 = vld [vmem:[%s491] sm:%s482]
                  %494 = vst [vmem:[%s492] sm:%s482] %v493
                  %v495 = vld [vmem:[%s491 + $0x4] sm:%s482]
                  %496 = vst [vmem:[%s492 + $0x4] sm:%s482] %v495
                  %v497 = vld [vmem:[%s491 + $0x8] sm:%s482]
                  %498 = vst [vmem:[%s492 + $0x8] sm:%s482] %v497
                  %v499 = vld [vmem:[%s491 + $0xc] sm:%s482]
                  %500 = vst [vmem:[%s492 + $0xc] sm:%s482] %v499
                  %v501 = vld [vmem:[%s491 + $0x10] sm:%s482]
                  %502 = vst [vmem:[%s492 + $0x10] sm:%s482] %v501
                  %v503 = vld [vmem:[%s491 + $0x14] sm:%s482]
                  %504 = vst [vmem:[%s492 + $0x14] sm:%s482] %v503
                  %v505 = vld [vmem:[%s491 + $0x18] sm:%s482]
                  %506 = vst [vmem:[%s492 + $0x18] sm:%s482] %v505
                  %v507 = vld [vmem:[%s491 + $0x1c] sm:%s482]
                  %508 = vst [vmem:[%s492 + $0x1c] sm:%s482] %v507
                  %v509 = vld [vmem:[%s491 + $0x20] sm:%s482]
                  %510 = vst [vmem:[%s492 + $0x20] sm:%s482] %v509
                  %v511 = vld [vmem:[%s491 + $0x24] sm:%s482]
                  %512 = vst [vmem:[%s492 + $0x24] sm:%s482] %v511
                  %v513 = vld [vmem:[%s491 + $0x28] sm:%s482]
                  %514 = vst [vmem:[%s492 + $0x28] sm:%s482] %v513
                  %v515 = vld [vmem:[%s491 + $0x2c] sm:%s482]
                  %516 = vst [vmem:[%s492 + $0x2c] sm:%s482] %v515
                  %v517 = vld [vmem:[%s491 + $0x30] sm:%s482]
                  %518 = vst [vmem:[%s492 + $0x30] sm:%s482] %v517
                  %v519 = vld [vmem:[%s491 + $0x34] sm:%s482]
                  %520 = vst [vmem:[%s492 + $0x34] sm:%s482] %v519
                  %v521 = vld [vmem:[%s491 + $0x38] sm:%s482]
                  %522 = vst [vmem:[%s492 + $0x38] sm:%s482] %v521
                  %v523 = vld [vmem:[%s491 + $0x3c] sm:%s482]
                  %524 = vst [vmem:[%s492 + $0x3c] sm:%s482] %v523
                  %v525 = vld [vmem:[%s491 + $0x50] sm:%s482]
                  %526 = vst [vmem:[%s492 + $0x40] sm:%s482] %v525
                  %v527 = vld [vmem:[%s491 + $0x54] sm:%s482]
                  %528 = vst [vmem:[%s492 + $0x44] sm:%s482] %v527
                  %v529 = vld [vmem:[%s491 + $0x58] sm:%s482]
                  %530 = vst [vmem:[%s492 + $0x48] sm:%s482] %v529
                  %v531 = vld [vmem:[%s491 + $0x5c] sm:%s482]
                  %532 = vst [vmem:[%s492 + $0x4c] sm:%s482] %v531
                  %v533 = vld [vmem:[%s491 + $0x60] sm:%s482]
                  %534 = vst [vmem:[%s492 + $0x50] sm:%s482] %v533
                  %v535 = vld [vmem:[%s491 + $0x64] sm:%s482]
                  %536 = vst [vmem:[%s492 + $0x54] sm:%s482] %v535
                  %v537 = vld [vmem:[%s491 + $0x68] sm:%s482]
                  %538 = vst [vmem:[%s492 + $0x58] sm:%s482] %v537
                  %v539 = vld [vmem:[%s491 + $0x6c] sm:%s482]
                  %540 = vst [vmem:[%s492 + $0x5c] sm:%s482] %v539
                  %v541 = vld [vmem:[%s491 + $0x70] sm:%s482]
                  %542 = vst [vmem:[%s492 + $0x60] sm:%s482] %v541
                  %v543 = vld [vmem:[%s491 + $0x74] sm:%s482]
                  %544 = vst [vmem:[%s492 + $0x64] sm:%s482] %v543
                  %v545 = vld [vmem:[%s491 + $0x78] sm:%s482]
                  %546 = vst [vmem:[%s492 + $0x68] sm:%s482] %v545
                  %v547 = vld [vmem:[%s491 + $0x7c] sm:%s482]
                  %548 = vst [vmem:[%s492 + $0x6c] sm:%s482] %v547
                  %v549 = vld [vmem:[%s491 + $0x80] sm:%s482]
                  %550 = vst [vmem:[%s492 + $0x70] sm:%s482] %v549
                  %v551 = vld [vmem:[%s491 + $0x84] sm:%s482]
                  %552 = vst [vmem:[%s492 + $0x74] sm:%s482] %v551
                  %v553 = vld [vmem:[%s491 + $0x88] sm:%s482]
                  %554 = vst [vmem:[%s492 + $0x78] sm:%s482] %v553
                  %v555 = vld [vmem:[%s491 + $0x8c] sm:%s482]
                  %556 = vst [vmem:[%s492 + $0x7c] sm:%s482] %v555
                  %v557 = vld [vmem:[%s491 + $0xa0] sm:%s482]
                  %558 = vst [vmem:[%s492 + $0x80] sm:%s482] %v557
                  %v559 = vld [vmem:[%s491 + $0xa4] sm:%s482]
                  %560 = vst [vmem:[%s492 + $0x84] sm:%s482] %v559
                  %v561 = vld [vmem:[%s491 + $0xa8] sm:%s482]
                  %562 = vst [vmem:[%s492 + $0x88] sm:%s482] %v561
                  %v563 = vld [vmem:[%s491 + $0xac] sm:%s482]
                  %564 = vst [vmem:[%s492 + $0x8c] sm:%s482] %v563
                  %v565 = vld [vmem:[%s491 + $0xb0] sm:%s482]
                  %566 = vst [vmem:[%s492 + $0x90] sm:%s482] %v565
                  %v567 = vld [vmem:[%s491 + $0xb4] sm:%s482]
                  %568 = vst [vmem:[%s492 + $0x94] sm:%s482] %v567
                  %v569 = vld [vmem:[%s491 + $0xb8] sm:%s482]
                  %570 = vst [vmem:[%s492 + $0x98] sm:%s482] %v569
                  %v571 = vld [vmem:[%s491 + $0xbc] sm:%s482]
                  %572 = vst [vmem:[%s492 + $0x9c] sm:%s482] %v571
                  %v573 = vld [vmem:[%s491 + $0xc0] sm:%s482]
                  %574 = vst [vmem:[%s492 + $0xa0] sm:%s482] %v573
                  %v575 = vld [vmem:[%s491 + $0xc4] sm:%s482]
                  %576 = vst [vmem:[%s492 + $0xa4] sm:%s482] %v575
                  %v577 = vld [vmem:[%s491 + $0xc8] sm:%s482]
                  %578 = vst [vmem:[%s492 + $0xa8] sm:%s482] %v577
                  %v579 = vld [vmem:[%s491 + $0xcc] sm:%s482]
                  %580 = vst [vmem:[%s492 + $0xac] sm:%s482] %v579
                  %v581 = vld [vmem:[%s491 + $0xd0] sm:%s482]
                  %582 = vst [vmem:[%s492 + $0xb0] sm:%s482] %v581
                  %v583 = vld [vmem:[%s491 + $0xd4] sm:%s482]
                  %584 = vst [vmem:[%s492 + $0xb4] sm:%s482] %v583
                  %v585 = vld [vmem:[%s491 + $0xd8] sm:%s482]
                  %586 = vst [vmem:[%s492 + $0xb8] sm:%s482] %v585
                  %v587 = vld [vmem:[%s491 + $0xdc] sm:%s482]
                  %588 = vst [vmem:[%s492 + $0xbc] sm:%s482] %v587
                  %v589 = vld [vmem:[%s491 + $0xf0] sm:%s482]
                  %590 = vst [vmem:[%s492 + $0xc0] sm:%s482] %v589
                  %v591 = vld [vmem:[%s491 + $0xf4] sm:%s482]
                  %592 = vst [vmem:[%s492 + $0xc4] sm:%s482] %v591
                  %v593 = vld [vmem:[%s491 + $0xf8] sm:%s482]
                  %594 = vst [vmem:[%s492 + $0xc8] sm:%s482] %v593
                  %v595 = vld [vmem:[%s491 + $0xfc] sm:%s482]
                  %596 = vst [vmem:[%s492 + $0xcc] sm:%s482] %v595
                  %v597 = vld [vmem:[%s491 + $0x100] sm:%s482]
                  %598 = vst [vmem:[%s492 + $0xd0] sm:%s482] %v597
                  %v599 = vld [vmem:[%s491 + $0x104] sm:%s482]
                  %600 = vst [vmem:[%s492 + $0xd4] sm:%s482] %v599
                  %v601 = vld [vmem:[%s491 + $0x108] sm:%s482]
                  %602 = vst [vmem:[%s492 + $0xd8] sm:%s482] %v601
                  %v603 = vld [vmem:[%s491 + $0x10c] sm:%s482]
                  %604 = vst [vmem:[%s492 + $0xdc] sm:%s482] %v603
                  %v605 = vld [vmem:[%s491 + $0x110] sm:%s482]
                  %606 = vst [vmem:[%s492 + $0xe0] sm:%s482] %v605
                  %v607 = vld [vmem:[%s491 + $0x114] sm:%s482]
                  %608 = vst [vmem:[%s492 + $0xe4] sm:%s482] %v607
                  %v609 = vld [vmem:[%s491 + $0x118] sm:%s482]
                  %610 = vst [vmem:[%s492 + $0xe8] sm:%s482] %v609
                  %v611 = vld [vmem:[%s491 + $0x11c] sm:%s482]
                  %612 = vst [vmem:[%s492 + $0xec] sm:%s482] %v611
                  %v613 = vld [vmem:[%s491 + $0x120] sm:%s482]
                  %614 = vst [vmem:[%s492 + $0xf0] sm:%s482] %v613
                  %v615 = vld [vmem:[%s491 + $0x124] sm:%s482]
                  %616 = vst [vmem:[%s492 + $0xf4] sm:%s482] %v615
                  %v617 = vld [vmem:[%s491 + $0x128] sm:%s482]
                  %618 = vst [vmem:[%s492 + $0xf8] sm:%s482] %v617
                  %v619 = vld [vmem:[%s491 + $0x12c] sm:%s482]
                  %620 = vst [vmem:[%s492 + $0xfc] sm:%s482] %v619
                  %s621 = sadd.s32 1, %s490
                  %p622 = scmp.ge.s32.totalorder %s621, %s483
                  %s623 = scalar_select %p622, 0, %s621
                  %s624 = smul.u32 %s623, 64
                  %s625 = smul.u32 %s623, 64
                  %s626 = scalar_lea.vmem %s252, %s624
                  %s627 = scalar_lea.vmem %s239, %s625 [#allocation3]
                $region73: #{block_group_forward.10} parent=53 // loop_footer
                  %s487 = sadd.s32 %s485, 1
                $region74: #{block_group_forward.10} parent=53 // loop_footer_branch
                  %484 = sbr.rel target = $region70
                $region75: #{block_group_forward.10} parent=53 // loop_exit
                  _
                %s628 = sshrl.u32 %s253, 4
                %s629 = sand.u32 %s253, 15
                %s630 = smul.u32 %s628, 16
                %s631 = smul.u32 4, %s630
                %s632 = scalar_lea.vmem %s252, %s631
                %s633 = smul.u32 4, %s630
                %s634 = scalar_lea.vmem %s239, %s633 [#allocation3]
                // While loop
                $region76: #{block_group_forward.10} parent=53 // loop_pre_header
                  _
                $region77: #{block_group_forward.10} parent=53 // loop_header
                  %s636 = sphi 0, %s638
                  %p637 = scmp.ge.s32.totalorder %s636, %s629
                  %s641 = sphi 0, %s654
                  %s642 = sphi %s632, %s657
                  %s643 = sphi %s634, %s658
                $region78: #{block_group_forward.10} parent=53 // loop_header_branch
                  %640 = sbr.rel (%p637) target = $region82
                $region79: #{block_group_forward.10} parent=53 // loop_body
                  %v644 = vld [vmem:[%s642] sm:%s482]
                  %645 = vst [vmem:[%s643] sm:%s482] %v644
                  %v646 = vld [vmem:[%s642 + $0x50] sm:%s482]
                  %647 = vst [vmem:[%s643 + $0x40] sm:%s482] %v646
                  %v648 = vld [vmem:[%s642 + $0xa0] sm:%s482]
                  %649 = vst [vmem:[%s643 + $0x80] sm:%s482] %v648
                  %v650 = vld [vmem:[%s642 + $0xf0] sm:%s482]
                  %651 = vst [vmem:[%s643 + $0xc0] sm:%s482] %v650
                  %s652 = sadd.s32 1, %s641
                  %p653 = scmp.ge.s32.totalorder %s652, %s629
                  %s654 = scalar_select %p653, 0, %s652
                  %s655 = smul.u32 %s654, 4
                  %s656 = smul.u32 %s654, 4
                  %s657 = scalar_lea.vmem %s632, %s655
                  %s658 = scalar_lea.vmem %s634, %s656 [#allocation3]
                $region80: #{block_group_forward.10} parent=53 // loop_footer
                  %s638 = sadd.s32 %s636, 1
                $region81: #{block_group_forward.10} parent=53 // loop_footer_branch
                  %635 = sbr.rel target = $region77
                $region82: #{block_group_forward.10} parent=53 // loop_exit
                  _
              $region54: #{block_group_forward.10} parent=31 // pred_fallthru
                _
            $region32: #{block_group_forward.10} parent=27 // pred_fallthru
              _
            // Predicated region
            $region33: #{block_group_forward.10} parent=27 // pred_check
              _
            $region34: #{block_group_forward.10} parent=27 // pred_check_branch
              %260 = sbr.rel (0) target = $region36
            $region35: #{block_group_forward.10} parent=27 // pred_region
              %s262 = ssub.s32 16, 1
              %s263 = sshrl.u32 %s253, 4
              // While loop
              $region37: #{block_group_forward.10} parent=35 // loop_pre_header
                _
              $region38: #{block_group_forward.10} parent=35 // loop_header
                %s265 = sphi 0, %s267
                %p266 = scmp.ge.s32.totalorder %s265, %s263
                %s270 = sphi 0, %s403
                %s271 = sphi %s252, %s406
                %s272 = sphi %s239, %s407
              $region39: #{block_group_forward.10} parent=35 // loop_header_branch
                %269 = sbr.rel (%p266) target = $region43
              $region40: #{block_group_forward.10} parent=35 // loop_body
                %v273 = vld [vmem:[%s271] sm:%s262]
                %274 = vst [vmem:[%s272] sm:%s262] %v273
                %v275 = vld [vmem:[%s271 + $0x4] sm:%s262]
                %276 = vst [vmem:[%s272 + $0x4] sm:%s262] %v275
                %v277 = vld [vmem:[%s271 + $0x8] sm:%s262]
                %278 = vst [vmem:[%s272 + $0x8] sm:%s262] %v277
                %v279 = vld [vmem:[%s271 + $0xc] sm:%s262]
                %280 = vst [vmem:[%s272 + $0xc] sm:%s262] %v279
                %v281 = vld [vmem:[%s271 + $0x10] sm:%s262]
                %282 = vst [vmem:[%s272 + $0x10] sm:%s262] %v281
                %v283 = vld [vmem:[%s271 + $0x14] sm:%s262]
                %284 = vst [vmem:[%s272 + $0x14] sm:%s262] %v283
                %v285 = vld [vmem:[%s271 + $0x18] sm:%s262]
                %286 = vst [vmem:[%s272 + $0x18] sm:%s262] %v285
                %v287 = vld [vmem:[%s271 + $0x1c] sm:%s262]
                %288 = vst [vmem:[%s272 + $0x1c] sm:%s262] %v287
                %v289 = vld [vmem:[%s271 + $0x20] sm:%s262]
                %290 = vst [vmem:[%s272 + $0x20] sm:%s262] %v289
                %v291 = vld [vmem:[%s271 + $0x24] sm:%s262]
                %292 = vst [vmem:[%s272 + $0x24] sm:%s262] %v291
                %v293 = vld [vmem:[%s271 + $0x28] sm:%s262]
                %294 = vst [vmem:[%s272 + $0x28] sm:%s262] %v293
                %v295 = vld [vmem:[%s271 + $0x2c] sm:%s262]
                %296 = vst [vmem:[%s272 + $0x2c] sm:%s262] %v295
                %v297 = vld [vmem:[%s271 + $0x30] sm:%s262]
                %298 = vst [vmem:[%s272 + $0x30] sm:%s262] %v297
                %v299 = vld [vmem:[%s271 + $0x34] sm:%s262]
                %300 = vst [vmem:[%s272 + $0x34] sm:%s262] %v299
                %v301 = vld [vmem:[%s271 + $0x38] sm:%s262]
                %302 = vst [vmem:[%s272 + $0x38] sm:%s262] %v301
                %v303 = vld [vmem:[%s271 + $0x3c] sm:%s262]
                %304 = vst [vmem:[%s272 + $0x3c] sm:%s262] %v303
                %v305 = vld [vmem:[%s271 + $0x50] sm:%s262]
                %306 = vst [vmem:[%s272 + $0x40] sm:%s262] %v305
                %v307 = vld [vmem:[%s271 + $0x54] sm:%s262]
                %308 = vst [vmem:[%s272 + $0x44] sm:%s262] %v307
                %v309 = vld [vmem:[%s271 + $0x58] sm:%s262]
                %310 = vst [vmem:[%s272 + $0x48] sm:%s262] %v309
                %v311 = vld [vmem:[%s271 + $0x5c] sm:%s262]
                %312 = vst [vmem:[%s272 + $0x4c] sm:%s262] %v311
                %v313 = vld [vmem:[%s271 + $0x60] sm:%s262]
                %314 = vst [vmem:[%s272 + $0x50] sm:%s262] %v313
                %v315 = vld [vmem:[%s271 + $0x64] sm:%s262]
                %316 = vst [vmem:[%s272 + $0x54] sm:%s262] %v315
                %v317 = vld [vmem:[%s271 + $0x68] sm:%s262]
                %318 = vst [vmem:[%s272 + $0x58] sm:%s262] %v317
                %v319 = vld [vmem:[%s271 + $0x6c] sm:%s262]
                %320 = vst [vmem:[%s272 + $0x5c] sm:%s262] %v319
                %v321 = vld [vmem:[%s271 + $0x70] sm:%s262]
                %322 = vst [vmem:[%s272 + $0x60] sm:%s262] %v321
                %v323 = vld [vmem:[%s271 + $0x74] sm:%s262]
                %324 = vst [vmem:[%s272 + $0x64] sm:%s262] %v323
                %v325 = vld [vmem:[%s271 + $0x78] sm:%s262]
                %326 = vst [vmem:[%s272 + $0x68] sm:%s262] %v325
                %v327 = vld [vmem:[%s271 + $0x7c] sm:%s262]
                %328 = vst [vmem:[%s272 + $0x6c] sm:%s262] %v327
                %v329 = vld [vmem:[%s271 + $0x80] sm:%s262]
                %330 = vst [vmem:[%s272 + $0x70] sm:%s262] %v329
                %v331 = vld [vmem:[%s271 + $0x84] sm:%s262]
                %332 = vst [vmem:[%s272 + $0x74] sm:%s262] %v331
                %v333 = vld [vmem:[%s271 + $0x88] sm:%s262]
                %334 = vst [vmem:[%s272 + $0x78] sm:%s262] %v333
                %v335 = vld [vmem:[%s271 + $0x8c] sm:%s262]
                %336 = vst [vmem:[%s272 + $0x7c] sm:%s262] %v335
                %v337 = vld [vmem:[%s271 + $0xa0] sm:%s262]
                %338 = vst [vmem:[%s272 + $0x80] sm:%s262] %v337
                %v339 = vld [vmem:[%s271 + $0xa4] sm:%s262]
                %340 = vst [vmem:[%s272 + $0x84] sm:%s262] %v339
                %v341 = vld [vmem:[%s271 + $0xa8] sm:%s262]
                %342 = vst [vmem:[%s272 + $0x88] sm:%s262] %v341
                %v343 = vld [vmem:[%s271 + $0xac] sm:%s262]
                %344 = vst [vmem:[%s272 + $0x8c] sm:%s262] %v343
                %v345 = vld [vmem:[%s271 + $0xb0] sm:%s262]
                %346 = vst [vmem:[%s272 + $0x90] sm:%s262] %v345
                %v347 = vld [vmem:[%s271 + $0xb4] sm:%s262]
                %348 = vst [vmem:[%s272 + $0x94] sm:%s262] %v347
                %v349 = vld [vmem:[%s271 + $0xb8] sm:%s262]
                %350 = vst [vmem:[%s272 + $0x98] sm:%s262] %v349
                %v351 = vld [vmem:[%s271 + $0xbc] sm:%s262]
                %352 = vst [vmem:[%s272 + $0x9c] sm:%s262] %v351
                %v353 = vld [vmem:[%s271 + $0xc0] sm:%s262]
                %354 = vst [vmem:[%s272 + $0xa0] sm:%s262] %v353
                %v355 = vld [vmem:[%s271 + $0xc4] sm:%s262]
                %356 = vst [vmem:[%s272 + $0xa4] sm:%s262] %v355
                %v357 = vld [vmem:[%s271 + $0xc8] sm:%s262]
                %358 = vst [vmem:[%s272 + $0xa8] sm:%s262] %v357
                %v359 = vld [vmem:[%s271 + $0xcc] sm:%s262]
                %360 = vst [vmem:[%s272 + $0xac] sm:%s262] %v359
                %v361 = vld [vmem:[%s271 + $0xd0] sm:%s262]
                %362 = vst [vmem:[%s272 + $0xb0] sm:%s262] %v361
                %v363 = vld [vmem:[%s271 + $0xd4] sm:%s262]
                %364 = vst [vmem:[%s272 + $0xb4] sm:%s262] %v363
                %v365 = vld [vmem:[%s271 + $0xd8] sm:%s262]
                %366 = vst [vmem:[%s272 + $0xb8] sm:%s262] %v365
                %v367 = vld [vmem:[%s271 + $0xdc] sm:%s262]
                %368 = vst [vmem:[%s272 + $0xbc] sm:%s262] %v367
                %v369 = vld [vmem:[%s271 + $0xf0] sm:%s262]
                %370 = vst [vmem:[%s272 + $0xc0] sm:%s262] %v369
                %v371 = vld [vmem:[%s271 + $0xf4] sm:%s262]
                %372 = vst [vmem:[%s272 + $0xc4] sm:%s262] %v371
                %v373 = vld [vmem:[%s271 + $0xf8] sm:%s262]
                %374 = vst [vmem:[%s272 + $0xc8] sm:%s262] %v373
                %v375 = vld [vmem:[%s271 + $0xfc] sm:%s262]
                %376 = vst [vmem:[%s272 + $0xcc] sm:%s262] %v375
                %v377 = vld [vmem:[%s271 + $0x100] sm:%s262]
                %378 = vst [vmem:[%s272 + $0xd0] sm:%s262] %v377
                %v379 = vld [vmem:[%s271 + $0x104] sm:%s262]
                %380 = vst [vmem:[%s272 + $0xd4] sm:%s262] %v379
                %v381 = vld [vmem:[%s271 + $0x108] sm:%s262]
                %382 = vst [vmem:[%s272 + $0xd8] sm:%s262] %v381
                %v383 = vld [vmem:[%s271 + $0x10c] sm:%s262]
                %384 = vst [vmem:[%s272 + $0xdc] sm:%s262] %v383
                %v385 = vld [vmem:[%s271 + $0x110] sm:%s262]
                %386 = vst [vmem:[%s272 + $0xe0] sm:%s262] %v385
                %v387 = vld [vmem:[%s271 + $0x114] sm:%s262]
                %388 = vst [vmem:[%s272 + $0xe4] sm:%s262] %v387
                %v389 = vld [vmem:[%s271 + $0x118] sm:%s262]
                %390 = vst [vmem:[%s272 + $0xe8] sm:%s262] %v389
                %v391 = vld [vmem:[%s271 + $0x11c] sm:%s262]
                %392 = vst [vmem:[%s272 + $0xec] sm:%s262] %v391
                %v393 = vld [vmem:[%s271 + $0x120] sm:%s262]
                %394 = vst [vmem:[%s272 + $0xf0] sm:%s262] %v393
                %v395 = vld [vmem:[%s271 + $0x124] sm:%s262]
                %396 = vst [vmem:[%s272 + $0xf4] sm:%s262] %v395
                %v397 = vld [vmem:[%s271 + $0x128] sm:%s262]
                %398 = vst [vmem:[%s272 + $0xf8] sm:%s262] %v397
                %v399 = vld [vmem:[%s271 + $0x12c] sm:%s262]
                %400 = vst [vmem:[%s272 + $0xfc] sm:%s262] %v399
                %s401 = sadd.s32 1, %s270
                %p402 = scmp.ge.s32.totalorder %s401, %s263
                %s403 = scalar_select %p402, 0, %s401
                %s404 = smul.u32 %s403, 64
                %s405 = smul.u32 %s403, 64
                %s406 = scalar_lea.vmem %s252, %s404
                %s407 = scalar_lea.vmem %s239, %s405 [#allocation3]
              $region41: #{block_group_forward.10} parent=35 // loop_footer
                %s267 = sadd.s32 %s265, 1
              $region42: #{block_group_forward.10} parent=35 // loop_footer_branch
                %264 = sbr.rel target = $region38
              $region43: #{block_group_forward.10} parent=35 // loop_exit
                _
              %s408 = sshrl.u32 %s253, 4
              %s409 = sand.u32 %s253, 15
              %s410 = smul.u32 %s408, 16
              %s411 = smul.u32 4, %s410
              %s412 = scalar_lea.vmem %s252, %s411
              %s413 = smul.u32 4, %s410
              %s414 = scalar_lea.vmem %s239, %s413 [#allocation3]
              // While loop
              $region44: #{block_group_forward.10} parent=35 // loop_pre_header
                _
              $region45: #{block_group_forward.10} parent=35 // loop_header
                %s416 = sphi 0, %s418
                %p417 = scmp.ge.s32.totalorder %s416, %s409
                %s421 = sphi 0, %s434
                %s422 = sphi %s412, %s437
                %s423 = sphi %s414, %s438
              $region46: #{block_group_forward.10} parent=35 // loop_header_branch
                %420 = sbr.rel (%p417) target = $region50
              $region47: #{block_group_forward.10} parent=35 // loop_body
                %v424 = vld [vmem:[%s422] sm:%s262]
                %425 = vst [vmem:[%s423] sm:%s262] %v424
                %v426 = vld [vmem:[%s422 + $0x50] sm:%s262]
                %427 = vst [vmem:[%s423 + $0x40] sm:%s262] %v426
                %v428 = vld [vmem:[%s422 + $0xa0] sm:%s262]
                %429 = vst [vmem:[%s423 + $0x80] sm:%s262] %v428
                %v430 = vld [vmem:[%s422 + $0xf0] sm:%s262]
                %431 = vst [vmem:[%s423 + $0xc0] sm:%s262] %v430
                %s432 = sadd.s32 1, %s421
                %p433 = scmp.ge.s32.totalorder %s432, %s409
                %s434 = scalar_select %p433, 0, %s432
                %s435 = smul.u32 %s434, 4
                %s436 = smul.u32 %s434, 4
                %s437 = scalar_lea.vmem %s412, %s435
                %s438 = scalar_lea.vmem %s414, %s436 [#allocation3]
              $region48: #{block_group_forward.10} parent=35 // loop_footer
                %s418 = sadd.s32 %s416, 1
              $region49: #{block_group_forward.10} parent=35 // loop_footer_branch
                %415 = sbr.rel target = $region45
              $region50: #{block_group_forward.10} parent=35 // loop_exit
                _
            $region36: #{block_group_forward.10} parent=27 // pred_fallthru
              _
          $region28: #{block_group_forward.10} parent=23 // pred_fallthru
            _
          %659 = vnop
        $region24: #{block_group_forward.10} parent=19 // pred_fallthru
          _
        // Predicated region
        $region83: #{block_group_forward.10} parent=19 // pred_check
          %p660 = pneg %p85
        $region84: #{block_group_forward.10} parent=19 // pred_check_branch
          %662 = sbr.rel (%p660) target = $region86
        $region85: #{block_group_forward.10} parent=19 // pred_region
          %s663 = sand.u32 %s75, 1
          %s664 = sand.u32 %s75, 1
          %s665 = smul.addr %s664, 64
          %s666 = scalar_lea.vmem [#allocation4], %s665
          %s667 = sadd.s32 %s20, 1
          %s668 = smul.u32 %s667, 4
          %s669 = smul.u32 4, %s19
          %s670 = smul.u32 2, %s668
          %s671 = smul.addr %s670, 2
          %s672 = smul.addr %s669, 20
          %s673 = sadd.s32 %s671, %s672
          %s674 = smul.addr %s673, 4
          %s675 = scalar_lea.vmem %s1, %s674
          // Predicated region
          $region87: #{block_group_forward.10} parent=85 // pred_check
            _
          $region88: #{block_group_forward.10} parent=85 // pred_check_branch
            %677 = sbr.rel (0) target = $region90
          $region89: #{block_group_forward.10} parent=85 // pred_region
            // Predicated region
            $region91: #{block_group_forward.10} parent=89 // pred_check
              _
            $region92: #{block_group_forward.10} parent=89 // pred_check_branch
              %679 = sbr.rel target = $region94
            $region93: #{block_group_forward.10} parent=89 // pred_region
              // Predicated region
              $region106: #{block_group_forward.10} parent=93 // pred_check
                _
              $region107: #{block_group_forward.10} parent=93 // pred_check_branch
                %725 = sbr.rel (0) target = $region109
              $region108: #{block_group_forward.10} parent=93 // pred_region
                loop: start=0, step=1, limit=1
                $region110: #{block_group_forward.10} parent=108 // loop_pre_header
                  _
                $region111: #{block_group_forward.10} parent=108 // loop_header
                  %s727 = sphi 0, %s731
                  %p728 = scmp.ge.s32.totalorder %s727, 1
                  %s732 = sphi %s675, %s675
                  %s733 = sphi %s666, %s666
                $region112: #{block_group_forward.10} parent=108 // loop_header_branch
                  %730 = sbr.rel (%p728) target = $region116
                $region113: #{block_group_forward.10} parent=108 // loop_body
                  _
                $region114: #{block_group_forward.10} parent=108 // loop_footer
                  %s731 = sadd.s32 1, %s727
                $region115: #{block_group_forward.10} parent=108 // loop_footer_branch
                  %726 = sbr.rel target = $region111
                $region116: #{block_group_forward.10} parent=108 // loop_exit
                  _
                %s735 = ssub.s32 16, 1
                loop: start=0, step=1, limit=1
                $region117: #{block_group_forward.10} parent=108 // loop_pre_header
                  _
                $region118: #{block_group_forward.10} parent=108 // loop_header
                  %s737 = sphi 0, %s741
                  %p738 = scmp.ge.s32.totalorder %s737, 1
                  %s742 = sphi %s675, %s675
                  %s743 = sphi %s666, %s666
                $region119: #{block_group_forward.10} parent=108 // loop_header_branch
                  %740 = sbr.rel (%p738) target = $region123
                $region120: #{block_group_forward.10} parent=108 // loop_body
                  %v744 = vld [vmem:[%s742] sm:%s735]
                  %745 = vst [vmem:[%s743] sm:%s735] %v744
                  %v746 = vld [vmem:[%s742 + $0x4] sm:%s735]
                  %747 = vst [vmem:[%s743 + $0x4] sm:%s735] %v746
                  %v748 = vld [vmem:[%s742 + $0x8] sm:%s735]
                  %749 = vst [vmem:[%s743 + $0x8] sm:%s735] %v748
                  %v750 = vld [vmem:[%s742 + $0xc] sm:%s735]
                  %751 = vst [vmem:[%s743 + $0xc] sm:%s735] %v750
                  %v752 = vld [vmem:[%s742 + $0x50] sm:%s735]
                  %753 = vst [vmem:[%s743 + $0x10] sm:%s735] %v752
                  %v754 = vld [vmem:[%s742 + $0x54] sm:%s735]
                  %755 = vst [vmem:[%s743 + $0x14] sm:%s735] %v754
                  %v756 = vld [vmem:[%s742 + $0x58] sm:%s735]
                  %757 = vst [vmem:[%s743 + $0x18] sm:%s735] %v756
                  %v758 = vld [vmem:[%s742 + $0x5c] sm:%s735]
                  %759 = vst [vmem:[%s743 + $0x1c] sm:%s735] %v758
                  %v760 = vld [vmem:[%s742 + $0xa0] sm:%s735]
                  %761 = vst [vmem:[%s743 + $0x20] sm:%s735] %v760
                  %v762 = vld [vmem:[%s742 + $0xa4] sm:%s735]
                  %763 = vst [vmem:[%s743 + $0x24] sm:%s735] %v762
                  %v764 = vld [vmem:[%s742 + $0xa8] sm:%s735]
                  %765 = vst [vmem:[%s743 + $0x28] sm:%s735] %v764
                  %v766 = vld [vmem:[%s742 + $0xac] sm:%s735]
                  %767 = vst [vmem:[%s743 + $0x2c] sm:%s735] %v766
                  %v768 = vld [vmem:[%s742 + $0xf0] sm:%s735]
                  %769 = vst [vmem:[%s743 + $0x30] sm:%s735] %v768
                  %v770 = vld [vmem:[%s742 + $0xf4] sm:%s735]
                  %771 = vst [vmem:[%s743 + $0x34] sm:%s735] %v770
                  %v772 = vld [vmem:[%s742 + $0xf8] sm:%s735]
                  %773 = vst [vmem:[%s743 + $0x38] sm:%s735] %v772
                  %v774 = vld [vmem:[%s742 + $0xfc] sm:%s735]
                  %775 = vst [vmem:[%s743 + $0x3c] sm:%s735] %v774
                $region121: #{block_group_forward.10} parent=108 // loop_footer
                  %s741 = sadd.s32 1, %s737
                $region122: #{block_group_forward.10} parent=108 // loop_footer_branch
                  %736 = sbr.rel target = $region118
                $region123: #{block_group_forward.10} parent=108 // loop_exit
                  _
              $region109: #{block_group_forward.10} parent=93 // pred_fallthru
                _
            $region94: #{block_group_forward.10} parent=89 // pred_fallthru
              _
            // Predicated region
            $region95: #{block_group_forward.10} parent=89 // pred_check
              _
            $region96: #{block_group_forward.10} parent=89 // pred_check_branch
              %681 = sbr.rel (0) target = $region98
            $region97: #{block_group_forward.10} parent=89 // pred_region
              %s683 = ssub.s32 16, 1
              loop: start=0, step=1, limit=1
              $region99: #{block_group_forward.10} parent=97 // loop_pre_header
                _
              $region100: #{block_group_forward.10} parent=97 // loop_header
                %s685 = sphi 0, %s689
                %p686 = scmp.ge.s32.totalorder %s685, 1
                %s690 = sphi %s675, %s675
                %s691 = sphi %s666, %s666
              $region101: #{block_group_forward.10} parent=97 // loop_header_branch
                %688 = sbr.rel (%p686) target = $region105
              $region102: #{block_group_forward.10} parent=97 // loop_body
                %v692 = vld [vmem:[%s690] sm:%s683]
                %693 = vst [vmem:[%s691] sm:%s683] %v692
                %v694 = vld [vmem:[%s690 + $0x4] sm:%s683]
                %695 = vst [vmem:[%s691 + $0x4] sm:%s683] %v694
                %v696 = vld [vmem:[%s690 + $0x8] sm:%s683]
                %697 = vst [vmem:[%s691 + $0x8] sm:%s683] %v696
                %v698 = vld [vmem:[%s690 + $0xc] sm:%s683]
                %699 = vst [vmem:[%s691 + $0xc] sm:%s683] %v698
                %v700 = vld [vmem:[%s690 + $0x50] sm:%s683]
                %701 = vst [vmem:[%s691 + $0x10] sm:%s683] %v700
                %v702 = vld [vmem:[%s690 + $0x54] sm:%s683]
                %703 = vst [vmem:[%s691 + $0x14] sm:%s683] %v702
                %v704 = vld [vmem:[%s690 + $0x58] sm:%s683]
                %705 = vst [vmem:[%s691 + $0x18] sm:%s683] %v704
                %v706 = vld [vmem:[%s690 + $0x5c] sm:%s683]
                %707 = vst [vmem:[%s691 + $0x1c] sm:%s683] %v706
                %v708 = vld [vmem:[%s690 + $0xa0] sm:%s683]
                %709 = vst [vmem:[%s691 + $0x20] sm:%s683] %v708
                %v710 = vld [vmem:[%s690 + $0xa4] sm:%s683]
                %711 = vst [vmem:[%s691 + $0x24] sm:%s683] %v710
                %v712 = vld [vmem:[%s690 + $0xa8] sm:%s683]
                %713 = vst [vmem:[%s691 + $0x28] sm:%s683] %v712
                %v714 = vld [vmem:[%s690 + $0xac] sm:%s683]
                %715 = vst [vmem:[%s691 + $0x2c] sm:%s683] %v714
                %v716 = vld [vmem:[%s690 + $0xf0] sm:%s683]
                %717 = vst [vmem:[%s691 + $0x30] sm:%s683] %v716
                %v718 = vld [vmem:[%s690 + $0xf4] sm:%s683]
                %719 = vst [vmem:[%s691 + $0x34] sm:%s683] %v718
                %v720 = vld [vmem:[%s690 + $0xf8] sm:%s683]
                %721 = vst [vmem:[%s691 + $0x38] sm:%s683] %v720
                %v722 = vld [vmem:[%s690 + $0xfc] sm:%s683]
                %723 = vst [vmem:[%s691 + $0x3c] sm:%s683] %v722
              $region103: #{block_group_forward.10} parent=97 // loop_footer
                %s689 = sadd.s32 1, %s685
              $region104: #{block_group_forward.10} parent=97 // loop_footer_branch
                %684 = sbr.rel target = $region100
              $region105: #{block_group_forward.10} parent=97 // loop_exit
                _
            $region98: #{block_group_forward.10} parent=89 // pred_fallthru
              _
          $region90: #{block_group_forward.10} parent=85 // pred_fallthru
            _
          %776 = vnop
        $region86: #{block_group_forward.10} parent=19 // pred_fallthru
          _
      $region20: #{block_group_forward.10} parent=5 // pred_fallthru
        _
      %p777 = scmp.le.s32.totalorder 1, %s12
      %p778 = scmp.lt.s32.totalorder %s12, 3
      %p779 = pnand %p777, %p778
      %p780 = pneg %p779
      // Predicated region
      $region124: #{block_group_forward.10} parent=5 // pred_check
        _
      $region125: #{block_group_forward.10} parent=5 // pred_check_branch
        %782 = sbr.rel (%p779) target = $region127
      $region126: #{block_group_forward.10} parent=5 // pred_region
        %s783 = ssub.s32 %s12, 1
        %s784 = sand.u32 %s46, 1
        %s785 = sand.u32 %s46, 1
        %s786 = smul.addr %s785, 256
        %s787 = scalar_lea.vmem [#allocation3], %s786
        // Predicated region
        $region128: #{block_group_forward.10} parent=126 // pred_check
          %p788 = pneg %p59
        $region129: #{block_group_forward.10} parent=126 // pred_check_branch
          %790 = sbr.rel (%p788) target = $region131
        $region130: #{block_group_forward.10} parent=126 // pred_region
          _
        $region131: #{block_group_forward.10} parent=126 // pred_fallthru
          _
        %s791 = sand.u32 %s78, 1
        %s792 = sand.u32 %s78, 1
        %s793 = smul.addr %s792, 64
        %s794 = scalar_lea.vmem [#allocation4], %s793
        // Predicated region
        $region132: #{block_group_forward.10} parent=126 // pred_check
          %p795 = pneg %p91
        $region133: #{block_group_forward.10} parent=126 // pred_check_branch
          %797 = sbr.rel (%p795) target = $region135
        $region134: #{block_group_forward.10} parent=126 // pred_region
          _
        $region135: #{block_group_forward.10} parent=126 // pred_fallthru
          _
        %s798 = sand.u32 %s46, 1
        %s799 = sand.u32 %s46, 1
        %s800 = smul.addr %s799, 256
        %s801 = scalar_lea.vmem [#allocation3], %s800
        %p802 = pneg %p59
        %p803 = pneg %p56
        %s804 = sand.u32 %s78, 1
        %s805 = sand.u32 %s78, 1
        %s806 = smul.addr %s805, 64
        %s807 = scalar_lea.vmem [#allocation4], %s806
        %p808 = pneg %p91
        %p809 = pneg %p88
        %p810 = scmp.lt.s32.totalorder %s24, 0
        %s811 = scalar_select %p810, %s24, 0
        %s812 = smul.addr %s811, 4
        %s813 = scalar_lea.vmem %s2, %s812
        %p814 = pneg %p117
        %p815 = pneg %p114
        %p816 = pneg %p147
        %p817 = pneg %p144
        %s818 = smul.u32 8, %s23
        %p819 = scmp.lt.s32.totalorder %s22, 1
        %s820 = scalar_select %p819, %s22, 1
        %p821 = scmp.lt.s32.totalorder %s818, 7
        %s822 = scalar_select %p821, %s818, 7
        %p823 = scmp.lt.s32.totalorder %s24, 0
        %s824 = scalar_select %p823, %s24, 0
        %s825 = sadd.s32 %s824, %s822
        %s826 = smul.addr %s820, 8
        %s827 = sadd.s32 %s825, %s826
        %s828 = smul.addr %s827, 8
        %s829 = scalar_lea.vmem %s3, %s828
        %p830 = pneg %p177
        %p831 = pneg %p174
        %s832 = sadd.s32 %s22, %s23
        %p833 = scmp.lt.s32.totalorder %s832, 1
        %s834 = scalar_select %p833, %s832, 1
        %p835 = scmp.lt.s32.totalorder %s24, 0
        %s836 = scalar_select %p835, %s24, 0
        %s837 = sadd.s32 %s836, %s834
        %s838 = scalar_lea.vmem %s4, %s837
        %p839 = pneg %p207
        %p840 = pneg %p204
        %s841 = sadd.s32 %s22, %s23
        %p842 = scmp.lt.s32.totalorder %s841, 1
        %s843 = scalar_select %p842, %s841, 1
        %p844 = scmp.lt.s32.totalorder %s24, 0
        %s845 = scalar_select %p844, %s24, 0
        %s846 = sadd.s32 %s845, %s843
        %s847 = scalar_lea.vmem %s5, %s846
        %s848 = smul.u32 4, %s22
        %s849 = smul.u32 8, %s23
        %s850 = ssub.s32 10, %s849
        %p851 = scmp.lt.s32.totalorder %s850, 8
        %s852 = scalar_select %p851, %s850, 8
        %s853 = smul.u32 256, %s852
        %s854 = smul.u32 %s853, 2
        %s855 = sadd.s32 %s23, 1
        %s856 = smul.u32 %s855, 4
        %s857 = smul.u32 4, %s22
        %s858 = smul.u32 2, %s856
        %p859 = scmp.lt.s32.totalorder %s24, 0
        %s860 = scalar_select %p859, %s24, 0
        %s861 = smul.addr %s860, 4
        %s862 = scalar_lea.vmem %s2, %s861
        %s863 = smul.u32 8, %s23
        %p864 = scmp.lt.s32.totalorder %s22, 1
        %s865 = scalar_select %p864, %s22, 1
        %p866 = scmp.lt.s32.totalorder %s863, 7
        %s867 = scalar_select %p866, %s863, 7
        %p868 = scmp.lt.s32.totalorder %s24, 0
        %s869 = scalar_select %p868, %s24, 0
        %s870 = sadd.s32 %s869, %s867
        %s871 = smul.addr %s865, 8
        %s872 = sadd.s32 %s870, %s871
        %s873 = smul.addr %s872, 8
        %s874 = scalar_lea.vmem %s3, %s873
        %s875 = smul.u32 8, %s23
        %s876 = sadd.s32 %s22, %s23
        %p877 = scmp.lt.s32.totalorder %s876, 1
        %s878 = scalar_select %p877, %s876, 1
        %p879 = scmp.lt.s32.totalorder %s24, 0
        %s880 = scalar_select %p879, %s24, 0
        %s881 = sadd.s32 %s880, %s878
        %s882 = scalar_lea.vmem %s4, %s881
        %s883 = sadd.s32 %s22, %s23
        %s884 = sadd.s32 %s22, %s23
        %p885 = scmp.lt.s32.totalorder %s884, 1
        %s886 = scalar_select %p885, %s884, 1
        %p887 = scmp.lt.s32.totalorder %s24, 0
        %s888 = scalar_select %p887, %s24, 0
        %s889 = sadd.s32 %s888, %s886
        %s890 = scalar_lea.vmem %s5, %s889
        %s891 = sadd.s32 %s22, %s23
        %v893 = vld [vmem:[%s787] sm:$0xf]
        %v894 = vld [vmem:[%s787 + $0x4] sm:$0x1]
        %v895 = vld [vmem:[%s787 + $0x8] sm:$0xf]
        %v896 = vld [vmem:[%s787 + $0xc] sm:$0x1]
        %v897 = vld [vmem:[%s787 + $0x10] sm:$0xf]
        %v898 = vld [vmem:[%s787 + $0x14] sm:$0x1]
        %v899 = vld [vmem:[%s787 + $0x18] sm:$0xf]
        %v900 = vld [vmem:[%s787 + $0x1c] sm:$0x1]
        %v901 = vld [vmem:[%s787 + $0x20] sm:$0xf]
        %v902 = vld [vmem:[%s787 + $0x24] sm:$0x1]
        %v903 = vld [vmem:[%s787 + $0x28] sm:$0xf]
        %v904 = vld [vmem:[%s787 + $0x2c] sm:$0x1]
        %v905 = vld [vmem:[%s787 + $0x30] sm:$0xf]
        %v906 = vld [vmem:[%s787 + $0x34] sm:$0x1]
        %v907 = vld [vmem:[%s787 + $0x38] sm:$0xf]
        %v908 = vld [vmem:[%s787 + $0x3c] sm:$0x1]
        %v909 = vld [vmem:[%s787 + $0x40] sm:$0xf]
        %v910 = vld [vmem:[%s787 + $0x44] sm:$0x1]
        %v911 = vld [vmem:[%s787 + $0x48] sm:$0xf]
        %v912 = vld [vmem:[%s787 + $0x4c] sm:$0x1]
        %v913 = vld [vmem:[%s787 + $0x50] sm:$0xf]
        %v914 = vld [vmem:[%s787 + $0x54] sm:$0x1]
        %v915 = vld [vmem:[%s787 + $0x58] sm:$0xf]
        %v916 = vld [vmem:[%s787 + $0x5c] sm:$0x1]
        %v917 = vld [vmem:[%s787 + $0x60] sm:$0xf]
        %v918 = vld [vmem:[%s787 + $0x64] sm:$0x1]
        %v919 = vld [vmem:[%s787 + $0x68] sm:$0xf]
        %v920 = vld [vmem:[%s787 + $0x6c] sm:$0x1]
        %v921 = vld [vmem:[%s787 + $0x70] sm:$0xf]
        %v922 = vld [vmem:[%s787 + $0x74] sm:$0x1]
        %v923 = vld [vmem:[%s787 + $0x78] sm:$0xf]
        %v924 = vld [vmem:[%s787 + $0x7c] sm:$0x1]
        %v925 = vld [vmem:[%s787 + $0x80] sm:$0xf]
        %v926 = vld [vmem:[%s787 + $0x84] sm:$0x1]
        %v927 = vld [vmem:[%s787 + $0x88] sm:$0xf]
        %v928 = vld [vmem:[%s787 + $0x8c] sm:$0x1]
        %v929 = vld [vmem:[%s787 + $0x90] sm:$0xf]
        %v930 = vld [vmem:[%s787 + $0x94] sm:$0x1]
        %v931 = vld [vmem:[%s787 + $0x98] sm:$0xf]
        %v932 = vld [vmem:[%s787 + $0x9c] sm:$0x1]
        %v933 = vld [vmem:[%s787 + $0xa0] sm:$0xf]
        %v934 = vld [vmem:[%s787 + $0xa4] sm:$0x1]
        %v935 = vld [vmem:[%s787 + $0xa8] sm:$0xf]
        %v936 = vld [vmem:[%s787 + $0xac] sm:$0x1]
        %v937 = vld [vmem:[%s787 + $0xb0] sm:$0xf]
        %v938 = vld [vmem:[%s787 + $0xb4] sm:$0x1]
        %v939 = vld [vmem:[%s787 + $0xb8] sm:$0xf]
        %v940 = vld [vmem:[%s787 + $0xbc] sm:$0x1]
        %v941 = vld [vmem:[%s787 + $0xc0] sm:$0xf]
        %v942 = vld [vmem:[%s787 + $0xc4] sm:$0x1]
        %v943 = vld [vmem:[%s787 + $0xc8] sm:$0xf]
        %v944 = vld [vmem:[%s787 + $0xcc] sm:$0x1]
        %v945 = vld [vmem:[%s787 + $0xd0] sm:$0xf]
        %v946 = vld [vmem:[%s787 + $0xd4] sm:$0x1]
        %v947 = vld [vmem:[%s787 + $0xd8] sm:$0xf]
        %v948 = vld [vmem:[%s787 + $0xdc] sm:$0x1]
        %v949 = vld [vmem:[%s787 + $0xe0] sm:$0xf]
        %v950 = vld [vmem:[%s787 + $0xe4] sm:$0x1]
        %v951 = vld [vmem:[%s787 + $0xe8] sm:$0xf]
        %v952 = vld [vmem:[%s787 + $0xec] sm:$0x1]
        %v953 = vld [vmem:[%s787 + $0xf0] sm:$0xf]
        %v954 = vld [vmem:[%s787 + $0xf4] sm:$0x1]
        %v955 = vld [vmem:[%s787 + $0xf8] sm:$0xf]
        %v956 = vld [vmem:[%s787 + $0xfc] sm:$0x1]
        %957 = vst [vmem:[#allocation2] sm:$0xf] %v893
        %vm958 = vcmask 1040384
        %vm959 = vsmask.f32 256
        %vm960 = vmand %vm958, %vm959
        %v961 = vld [vmem:[#allocation2 + $0x4] sm:$0x1]
        %v962 = vsel %vm960, %v894, %v961
        %963 = vst [vmem:[#allocation2 + $0x4] sm:$0x1] %v962
        %964 = vst [vmem:[#allocation2 + $0x8] sm:$0xf] %v895
        %v965 = vld [vmem:[#allocation2 + $0xc] sm:$0x1]
        %v966 = vsel %vm960, %v896, %v965
        %967 = vst [vmem:[#allocation2 + $0xc] sm:$0x1] %v966
        %968 = vst [vmem:[#allocation2 + $0x10] sm:$0xf] %v897
        %v969 = vld [vmem:[#allocation2 + $0x14] sm:$0x1]
        %v970 = vsel %vm960, %v898, %v969
        %971 = vst [vmem:[#allocation2 + $0x14] sm:$0x1] %v970
        %972 = vst [vmem:[#allocation2 + $0x18] sm:$0xf] %v899
        %v973 = vld [vmem:[#allocation2 + $0x1c] sm:$0x1]
        %v974 = vsel %vm960, %v900, %v973
        %975 = vst [vmem:[#allocation2 + $0x1c] sm:$0x1] %v974
        %976 = vst [vmem:[#allocation2 + $0x20] sm:$0xf] %v901
        %v977 = vld [vmem:[#allocation2 + $0x24] sm:$0x1]
        %v978 = vsel %vm960, %v902, %v977
        %979 = vst [vmem:[#allocation2 + $0x24] sm:$0x1] %v978
        %980 = vst [vmem:[#allocation2 + $0x28] sm:$0xf] %v903
        %v981 = vld [vmem:[#allocation2 + $0x2c] sm:$0x1]
        %v982 = vsel %vm960, %v904, %v981
        %983 = vst [vmem:[#allocation2 + $0x2c] sm:$0x1] %v982
        %984 = vst [vmem:[#allocation2 + $0x30] sm:$0xf] %v905
        %v985 = vld [vmem:[#allocation2 + $0x34] sm:$0x1]
        %v986 = vsel %vm960, %v906, %v985
        %987 = vst [vmem:[#allocation2 + $0x34] sm:$0x1] %v986
        %988 = vst [vmem:[#allocation2 + $0x38] sm:$0xf] %v907
        %v989 = vld [vmem:[#allocation2 + $0x3c] sm:$0x1]
        %v990 = vsel %vm960, %v908, %v989
        %991 = vst [vmem:[#allocation2 + $0x3c] sm:$0x1] %v990
        %992 = vst [vmem:[#allocation2 + $0x50] sm:$0xf] %v909
        %v993 = vld [vmem:[#allocation2 + $0x54] sm:$0x1]
        %v994 = vsel %vm960, %v910, %v993
        %995 = vst [vmem:[#allocation2 + $0x54] sm:$0x1] %v994
        %996 = vst [vmem:[#allocation2 + $0x58] sm:$0xf] %v911
        %v997 = vld [vmem:[#allocation2 + $0x5c] sm:$0x1]
        %v998 = vsel %vm960, %v912, %v997
        %999 = vst [vmem:[#allocation2 + $0x5c] sm:$0x1] %v998
        %1000 = vst [vmem:[#allocation2 + $0x60] sm:$0xf] %v913
        %v1001 = vld [vmem:[#allocation2 + $0x64] sm:$0x1]
        %v1002 = vsel %vm960, %v914, %v1001
        %1003 = vst [vmem:[#allocation2 + $0x64] sm:$0x1] %v1002
        %1004 = vst [vmem:[#allocation2 + $0x68] sm:$0xf] %v915
        %v1005 = vld [vmem:[#allocation2 + $0x6c] sm:$0x1]
        %v1006 = vsel %vm960, %v916, %v1005
        %1007 = vst [vmem:[#allocation2 + $0x6c] sm:$0x1] %v1006
        %1008 = vst [vmem:[#allocation2 + $0x70] sm:$0xf] %v917
        %v1009 = vld [vmem:[#allocation2 + $0x74] sm:$0x1]
        %v1010 = vsel %vm960, %v918, %v1009
        %1011 = vst [vmem:[#allocation2 + $0x74] sm:$0x1] %v1010
        %1012 = vst [vmem:[#allocation2 + $0x78] sm:$0xf] %v919
        %v1013 = vld [vmem:[#allocation2 + $0x7c] sm:$0x1]
        %v1014 = vsel %vm960, %v920, %v1013
        %1015 = vst [vmem:[#allocation2 + $0x7c] sm:$0x1] %v1014
        %1016 = vst [vmem:[#allocation2 + $0x80] sm:$0xf] %v921
        %v1017 = vld [vmem:[#allocation2 + $0x84] sm:$0x1]
        %v1018 = vsel %vm960, %v922, %v1017
        %1019 = vst [vmem:[#allocation2 + $0x84] sm:$0x1] %v1018
        %1020 = vst [vmem:[#allocation2 + $0x88] sm:$0xf] %v923
        %v1021 = vld [vmem:[#allocation2 + $0x8c] sm:$0x1]
        %v1022 = vsel %vm960, %v924, %v1021
        %1023 = vst [vmem:[#allocation2 + $0x8c] sm:$0x1] %v1022
        %1024 = vst [vmem:[#allocation2 + $0xa0] sm:$0xf] %v925
        %v1025 = vld [vmem:[#allocation2 + $0xa4] sm:$0x1]
        %v1026 = vsel %vm960, %v926, %v1025
        %1027 = vst [vmem:[#allocation2 + $0xa4] sm:$0x1] %v1026
        %1028 = vst [vmem:[#allocation2 + $0xa8] sm:$0xf] %v927
        %v1029 = vld [vmem:[#allocation2 + $0xac] sm:$0x1]
        %v1030 = vsel %vm960, %v928, %v1029
        %1031 = vst [vmem:[#allocation2 + $0xac] sm:$0x1] %v1030
        %1032 = vst [vmem:[#allocation2 + $0xb0] sm:$0xf] %v929
        %v1033 = vld [vmem:[#allocation2 + $0xb4] sm:$0x1]
        %v1034 = vsel %vm960, %v930, %v1033
        %1035 = vst [vmem:[#allocation2 + $0xb4] sm:$0x1] %v1034
        %1036 = vst [vmem:[#allocation2 + $0xb8] sm:$0xf] %v931
        %v1037 = vld [vmem:[#allocation2 + $0xbc] sm:$0x1]
        %v1038 = vsel %vm960, %v932, %v1037
        %1039 = vst [vmem:[#allocation2 + $0xbc] sm:$0x1] %v1038
        %1040 = vst [vmem:[#allocation2 + $0xc0] sm:$0xf] %v933
        %v1041 = vld [vmem:[#allocation2 + $0xc4] sm:$0x1]
        %v1042 = vsel %vm960, %v934, %v1041
        %1043 = vst [vmem:[#allocation2 + $0xc4] sm:$0x1] %v1042
        %1044 = vst [vmem:[#allocation2 + $0xc8] sm:$0xf] %v935
        %v1045 = vld [vmem:[#allocation2 + $0xcc] sm:$0x1]
        %v1046 = vsel %vm960, %v936, %v1045
        %1047 = vst [vmem:[#allocation2 + $0xcc] sm:$0x1] %v1046
        %1048 = vst [vmem:[#allocation2 + $0xd0] sm:$0xf] %v937
        %v1049 = vld [vmem:[#allocation2 + $0xd4] sm:$0x1]
        %v1050 = vsel %vm960, %v938, %v1049
        %1051 = vst [vmem:[#allocation2 + $0xd4] sm:$0x1] %v1050
        %1052 = vst [vmem:[#allocation2 + $0xd8] sm:$0xf] %v939
        %v1053 = vld [vmem:[#allocation2 + $0xdc] sm:$0x1]
        %v1054 = vsel %vm960, %v940, %v1053
        %1055 = vst [vmem:[#allocation2 + $0xdc] sm:$0x1] %v1054
        %1056 = vst [vmem:[#allocation2 + $0xf0] sm:$0xf] %v941
        %v1057 = vld [vmem:[#allocation2 + $0xf4] sm:$0x1]
        %v1058 = vsel %vm960, %v942, %v1057
        %1059 = vst [vmem:[#allocation2 + $0xf4] sm:$0x1] %v1058
        %1060 = vst [vmem:[#allocation2 + $0xf8] sm:$0xf] %v943
        %v1061 = vld [vmem:[#allocation2 + $0xfc] sm:$0x1]
        %v1062 = vsel %vm960, %v944, %v1061
        %1063 = vst [vmem:[#allocation2 + $0xfc] sm:$0x1] %v1062
        %1064 = vst [vmem:[#allocation2 + $0x100] sm:$0xf] %v945
        %v1065 = vld [vmem:[#allocation2 + $0x104] sm:$0x1]
        %v1066 = vsel %vm960, %v946, %v1065
        %1067 = vst [vmem:[#allocation2 + $0x104] sm:$0x1] %v1066
        %1068 = vst [vmem:[#allocation2 + $0x108] sm:$0xf] %v947
        %v1069 = vld [vmem:[#allocation2 + $0x10c] sm:$0x1]
        %v1070 = vsel %vm960, %v948, %v1069
        %1071 = vst [vmem:[#allocation2 + $0x10c] sm:$0x1] %v1070
        %1072 = vst [vmem:[#allocation2 + $0x110] sm:$0xf] %v949
        %v1073 = vld [vmem:[#allocation2 + $0x114] sm:$0x1]
        %v1074 = vsel %vm960, %v950, %v1073
        %1075 = vst [vmem:[#allocation2 + $0x114] sm:$0x1] %v1074
        %1076 = vst [vmem:[#allocation2 + $0x118] sm:$0xf] %v951
        %v1077 = vld [vmem:[#allocation2 + $0x11c] sm:$0x1]
        %v1078 = vsel %vm960, %v952, %v1077
        %1079 = vst [vmem:[#allocation2 + $0x11c] sm:$0x1] %v1078
        %1080 = vst [vmem:[#allocation2 + $0x120] sm:$0xf] %v953
        %v1081 = vld [vmem:[#allocation2 + $0x124] sm:$0x1]
        %v1082 = vsel %vm960, %v954, %v1081
        %1083 = vst [vmem:[#allocation2 + $0x124] sm:$0x1] %v1082
        %1084 = vst [vmem:[#allocation2 + $0x128] sm:$0xf] %v955
        %v1085 = vld [vmem:[#allocation2 + $0x12c] sm:$0x1]
        %v1086 = vsel %vm960, %v956, %v1085
        %1087 = vst [vmem:[#allocation2 + $0x12c] sm:$0x1] %v1086
        %v1088 = vld [vmem:[%s794] sm:$0xf]
        %v1089 = vld [vmem:[%s794 + $0x4] sm:$0x1]
        %v1090 = vld [vmem:[%s794 + $0x8] sm:$0xf]
        %v1091 = vld [vmem:[%s794 + $0xc] sm:$0x1]
        %v1092 = vld [vmem:[%s794 + $0x10] sm:$0xf]
        %v1093 = vld [vmem:[%s794 + $0x14] sm:$0x1]
        %v1094 = vld [vmem:[%s794 + $0x18] sm:$0xf]
        %v1095 = vld [vmem:[%s794 + $0x1c] sm:$0x1]
        %v1096 = vld [vmem:[%s794 + $0x20] sm:$0xf]
        %v1097 = vld [vmem:[%s794 + $0x24] sm:$0x1]
        %v1098 = vld [vmem:[%s794 + $0x28] sm:$0xf]
        %v1099 = vld [vmem:[%s794 + $0x2c] sm:$0x1]
        %v1100 = vld [vmem:[%s794 + $0x30] sm:$0xf]
        %v1101 = vld [vmem:[%s794 + $0x34] sm:$0x1]
        %v1102 = vld [vmem:[%s794 + $0x38] sm:$0xf]
        %v1103 = vld [vmem:[%s794 + $0x3c] sm:$0x1]
        %s1104 = scalar_lea.vmem [#allocation2], 64
        %1105 = vst [vmem:[%s1104] sm:$0xf] %v1088
        %v1106 = vld [vmem:[%s1104 + $0x4] sm:$0x1]
        %v1107 = vsel %vm960, %v1089, %v1106
        %1108 = vst [vmem:[%s1104 + $0x4] sm:$0x1] %v1107
        %1109 = vst [vmem:[%s1104 + $0x8] sm:$0xf] %v1090
        %v1110 = vld [vmem:[%s1104 + $0xc] sm:$0x1]
        %v1111 = vsel %vm960, %v1091, %v1110
        %1112 = vst [vmem:[%s1104 + $0xc] sm:$0x1] %v1111
        %1113 = vst [vmem:[%s1104 + $0x50] sm:$0xf] %v1092
        %v1114 = vld [vmem:[%s1104 + $0x54] sm:$0x1]
        %v1115 = vsel %vm960, %v1093, %v1114
        %1116 = vst [vmem:[%s1104 + $0x54] sm:$0x1] %v1115
        %1117 = vst [vmem:[%s1104 + $0x58] sm:$0xf] %v1094
        %v1118 = vld [vmem:[%s1104 + $0x5c] sm:$0x1]
        %v1119 = vsel %vm960, %v1095, %v1118
        %1120 = vst [vmem:[%s1104 + $0x5c] sm:$0x1] %v1119
        %1121 = vst [vmem:[%s1104 + $0xa0] sm:$0xf] %v1096
        %v1122 = vld [vmem:[%s1104 + $0xa4] sm:$0x1]
        %v1123 = vsel %vm960, %v1097, %v1122
        %1124 = vst [vmem:[%s1104 + $0xa4] sm:$0x1] %v1123
        %1125 = vst [vmem:[%s1104 + $0xa8] sm:$0xf] %v1098
        %v1126 = vld [vmem:[%s1104 + $0xac] sm:$0x1]
        %v1127 = vsel %vm960, %v1099, %v1126
        %1128 = vst [vmem:[%s1104 + $0xac] sm:$0x1] %v1127
        %1129 = vst [vmem:[%s1104 + $0xf0] sm:$0xf] %v1100
        %v1130 = vld [vmem:[%s1104 + $0xf4] sm:$0x1]
        %v1131 = vsel %vm960, %v1101, %v1130
        %1132 = vst [vmem:[%s1104 + $0xf4] sm:$0x1] %v1131
        %1133 = vst [vmem:[%s1104 + $0xf8] sm:$0xf] %v1102
        %v1134 = vld [vmem:[%s1104 + $0xfc] sm:$0x1]
        %v1135 = vsel %vm960, %v1103, %v1134
        %1136 = vst [vmem:[%s1104 + $0xfc] sm:$0x1] %v1135
        %v1137 = vld [vmem:[#allocation2] sm:$0xf]
        %v1138 = vld [vmem:[#allocation2 + $0x8] sm:$0xf]
        %v1139 = vld [vmem:[#allocation2 + $0x10] sm:$0xf]
        %v1140 = vld [vmem:[#allocation2 + $0x18] sm:$0xf]
        %v1141 = vld [vmem:[#allocation2 + $0x20] sm:$0xf]
        %v1142 = vld [vmem:[#allocation2 + $0x28] sm:$0xf]
        %v1143 = vld [vmem:[#allocation2 + $0x30] sm:$0xf]
        %v1144 = vld [vmem:[#allocation2 + $0x38] sm:$0xf]
        %v1145 = vld [vmem:[%s862] sm:$0xf]
        %v1146 = vld [vmem:[%s862 + $0x4] sm:$0xf]
        %v1147 = vld [vmem:[%s862 + $0x8] sm:$0xf]
        %v1148 = vld [vmem:[%s862 + $0xc] sm:$0xf]
        %v1149 = vld [vmem:[%s862 + $0x10] sm:$0xf]
        %v1150 = vld [vmem:[%s862 + $0x14] sm:$0xf]
        %v1151 = vld [vmem:[%s862 + $0x18] sm:$0xf]
        %v1152 = vld [vmem:[%s862 + $0x1c] sm:$0xf]
        %v1153 = vld [vmem:[%s862 + $0x20] sm:$0xf]
        %v1154 = vld [vmem:[%s862 + $0x24] sm:$0xf]
        %v1155 = vld [vmem:[%s862 + $0x28] sm:$0xf]
        %v1156 = vld [vmem:[%s862 + $0x2c] sm:$0xf]
        %v1157 = vld [vmem:[%s862 + $0x30] sm:$0xf]
        %v1158 = vld [vmem:[%s862 + $0x34] sm:$0xf]
        %v1159 = vld [vmem:[%s862 + $0x38] sm:$0xf]
        %v1160 = vld [vmem:[%s862 + $0x3c] sm:$0xf]
        %s1161 = scalar_lea.vmem [#allocation2], 80
        %v1162 = vld [vmem:[%s1161] sm:$0xf]
        %v1163 = vld [vmem:[%s1161 + $0x8] sm:$0xf]
        %v1164 = vld [vmem:[%s1161 + $0x10] sm:$0xf]
        %v1165 = vld [vmem:[%s1161 + $0x18] sm:$0xf]
        %v1166 = vld [vmem:[%s1161 + $0x20] sm:$0xf]
        %v1167 = vld [vmem:[%s1161 + $0x28] sm:$0xf]
        %v1168 = vld [vmem:[%s1161 + $0x30] sm:$0xf]
        %v1169 = vld [vmem:[%s1161 + $0x38] sm:$0xf]
        %s1170 = scalar_lea.vmem %s862, 64
        %v1171 = vld [vmem:[%s1170] sm:$0xf]
        %v1172 = vld [vmem:[%s1170 + $0x4] sm:$0xf]
        %v1173 = vld [vmem:[%s1170 + $0x8] sm:$0xf]
        %v1174 = vld [vmem:[%s1170 + $0xc] sm:$0xf]
        %v1175 = vld [vmem:[%s1170 + $0x10] sm:$0xf]
        %v1176 = vld [vmem:[%s1170 + $0x14] sm:$0xf]
        %v1177 = vld [vmem:[%s1170 + $0x18] sm:$0xf]
        %v1178 = vld [vmem:[%s1170 + $0x1c] sm:$0xf]
        %v1179 = vld [vmem:[%s1170 + $0x20] sm:$0xf]
        %v1180 = vld [vmem:[%s1170 + $0x24] sm:$0xf]
        %v1181 = vld [vmem:[%s1170 + $0x28] sm:$0xf]
        %v1182 = vld [vmem:[%s1170 + $0x2c] sm:$0xf]
        %v1183 = vld [vmem:[%s1170 + $0x30] sm:$0xf]
        %v1184 = vld [vmem:[%s1170 + $0x34] sm:$0xf]
        %v1185 = vld [vmem:[%s1170 + $0x38] sm:$0xf]
        %v1186 = vld [vmem:[%s1170 + $0x3c] sm:$0xf]
        %v1195 = vunpack.c.l.b16 %v1162
        %v1196 = vunpack.c.l.b16 %v1163
        %v1197 = vunpack.c.l.b16 %v1164
        %v1198 = vunpack.c.l.b16 %v1165
        %v1199 = vunpack.c.l.b16 %v1166
        %v1200 = vunpack.c.l.b16 %v1167
        %v1201 = vunpack.c.l.b16 %v1168
        %v1202 = vunpack.c.l.b16 %v1169
        %v1203 = vpack.c.b16 %v1196, %v1195
        %v1204 = vpack.c.b16 %v1198, %v1197
        %v1205 = vpack.c.b16 %v1200, %v1199
        %v1206 = vpack.c.b16 %v1202, %v1201
        %v1227 = vunpack.c.l.b16 %v1171
        %v1228 = vunpack.c.l.b16 %v1172
        %v1229 = vunpack.c.l.b16 %v1173
        %v1230 = vunpack.c.l.b16 %v1174
        %v1231 = vunpack.c.l.b16 %v1175
        %v1232 = vunpack.c.l.b16 %v1176
        %v1233 = vunpack.c.l.b16 %v1177
        %v1234 = vunpack.c.l.b16 %v1178
        %v1235 = vunpack.c.l.b16 %v1179
        %v1236 = vunpack.c.l.b16 %v1180
        %v1237 = vunpack.c.l.b16 %v1181
        %v1238 = vunpack.c.l.b16 %v1182
        %v1239 = vunpack.c.l.b16 %v1183
        %v1240 = vunpack.c.l.b16 %v1184
        %v1241 = vunpack.c.l.b16 %v1185
        %v1242 = vunpack.c.l.b16 %v1186
        %v1243 = vpack.c.b16 %v1228, %v1227
        %v1244 = vpack.c.b16 %v1230, %v1229
        %v1245 = vpack.c.b16 %v1232, %v1231
        %v1246 = vpack.c.b16 %v1234, %v1233
        %v1247 = vpack.c.b16 %v1236, %v1235
        %v1248 = vpack.c.b16 %v1238, %v1237
        %v1249 = vpack.c.b16 %v1240, %v1239
        %v1250 = vpack.c.b16 %v1242, %v1241
        %1259 = vmatprep.subr.bf16.mxu0 0
        %1260 = vmatpush1.bf16.msra.mxu0 %v1250
        %1261 = vmatprep.subr.bf16.mxu0 0
        %1262 = vmatpush1.bf16.msra.mxu0 %v1249
        %1263 = vmatprep.subr.bf16.mxu0 0
        %1264 = vmatpush1.bf16.msra.mxu0 %v1248
        %1265 = vmatprep.subr.bf16.mxu0 0
        %1266 = vmatpush1.bf16.msra.mxu0 %v1247
        %1267 = vmatprep.subr.bf16.mxu0 0
        %1268 = vmatpush1.bf16.msra.mxu0 %v1246
        %1269 = vmatprep.subr.bf16.mxu0 0
        %1270 = vmatpush1.bf16.msra.mxu0 %v1245
        %1271 = vmatprep.subr.bf16.mxu0 0
        %1272 = vmatpush1.bf16.msra.mxu0 %v1244
        %1273 = vmatprep.subr.bf16.mxu0 0
        %1274 = vmatpush1.bf16.msra.mxu0 %v1243
        %1275 = vmatprep.subr.bf16.mxu0 0
        %1276 = vmatpush2.bf16.msra.mxu0 0
        %1277 = vmatprep.subr.bf16.mxu0 0
        %1278 = vmatpush2.bf16.msra.mxu0 0
        %1279 = vmatprep.subr.bf16.mxu0 0
        %1280 = vmatpush2.bf16.msra.mxu0 0
        %1281 = vmatprep.subr.bf16.mxu0 0
        %1282 = vmatpush2.bf16.msra.mxu0 0
        %1283 = vmatprep.subr.bf16.mxu0 0
        %1284 = vmatpush2.bf16.msra.mxu0 0
        %1285 = vmatprep.subr.bf16.mxu0 0
        %1286 = vmatpush2.bf16.msra.mxu0 0
        %1287 = vmatprep.subr.bf16.mxu0 0
        %1288 = vmatpush2.bf16.msra.mxu0 0
        %1289 = vmatprep.subr.bf16.mxu0 0
        %1290 = vmatpush2.bf16.msra.mxu0 0
        %1291 = vmatprep.mubr.bf16.mxu0 0
        %1292 = vmatmul.mubr.bf16.gmra.mxu0 %v1203
        %v1293 = vpop.f32.mrf.mxu0
        %v1294 = vadd.f32 0.0, %v1293
        %v1295 = vpop.f32.mrf.mxu0
        %v1296 = vpop.f32.mrf.mxu0
        %v1297 = vadd.f32 0.0, %v1296
        %v1298 = vpop.f32.mrf.mxu0
        %1299 = vmatprep.mubr.bf16.mxu0 0
        %1300 = vmatmul.mubr.bf16.gmra.mxu0 %v1204
        %v1301 = vpop.f32.mrf.mxu0
        %v1302 = vadd.f32 0.0, %v1301
        %v1303 = vpop.f32.mrf.mxu0
        %v1304 = vpop.f32.mrf.mxu0
        %v1305 = vadd.f32 0.0, %v1304
        %v1306 = vpop.f32.mrf.mxu0
        %1307 = vmatprep.mubr.bf16.mxu0 0
        %1308 = vmatmul.mubr.bf16.gmra.mxu0 %v1205
        %v1309 = vpop.f32.mrf.mxu0
        %v1310 = vadd.f32 0.0, %v1309
        %v1311 = vpop.f32.mrf.mxu0
        %v1312 = vpop.f32.mrf.mxu0
        %v1313 = vadd.f32 0.0, %v1312
        %v1314 = vpop.f32.mrf.mxu0
        %1315 = vmatprep.mubr.bf16.mxu0 0
        %1316 = vmatmul.mubr.bf16.gmra.mxu0 %v1206
        %v1317 = vpop.f32.mrf.mxu0
        %v1318 = vadd.f32 0.0, %v1317
        %v1319 = vpop.f32.mrf.mxu0
        %v1320 = vpop.f32.mrf.mxu0
        %v1321 = vadd.f32 0.0, %v1320
        %v1322 = vpop.f32.mrf.mxu0
        %1323 = vdwg.mxu0
        %v1332 = vunpack.c.l.b16 %v1137
        %v1333 = vunpack.c.l.b16 %v1138
        %v1334 = vunpack.c.l.b16 %v1139
        %v1335 = vunpack.c.l.b16 %v1140
        %v1336 = vunpack.c.l.b16 %v1141
        %v1337 = vunpack.c.l.b16 %v1142
        %v1338 = vunpack.c.l.b16 %v1143
        %v1339 = vunpack.c.l.b16 %v1144
        %v1340 = vpack.c.b16 %v1333, %v1332
        %v1341 = vpack.c.b16 %v1335, %v1334
        %v1342 = vpack.c.b16 %v1337, %v1336
        %v1343 = vpack.c.b16 %v1339, %v1338
        %v1364 = vunpack.c.l.b16 %v1145
        %v1365 = vunpack.c.l.b16 %v1146
        %v1366 = vunpack.c.l.b16 %v1147
        %v1367 = vunpack.c.l.b16 %v1148
        %v1368 = vunpack.c.l.b16 %v1149
        %v1369 = vunpack.c.l.b16 %v1150
        %v1370 = vunpack.c.l.b16 %v1151
        %v1371 = vunpack.c.l.b16 %v1152
        %v1372 = vunpack.c.l.b16 %v1153
        %v1373 = vunpack.c.l.b16 %v1154
        %v1374 = vunpack.c.l.b16 %v1155
        %v1375 = vunpack.c.l.b16 %v1156
        %v1376 = vunpack.c.l.b16 %v1157
        %v1377 = vunpack.c.l.b16 %v1158
        %v1378 = vunpack.c.l.b16 %v1159
        %v1379 = vunpack.c.l.b16 %v1160
        %v1380 = vpack.c.b16 %v1365, %v1364
        %v1381 = vpack.c.b16 %v1367, %v1366
        %v1382 = vpack.c.b16 %v1369, %v1368
        %v1383 = vpack.c.b16 %v1371, %v1370
        %v1384 = vpack.c.b16 %v1373, %v1372
        %v1385 = vpack.c.b16 %v1375, %v1374
        %v1386 = vpack.c.b16 %v1377, %v1376
        %v1387 = vpack.c.b16 %v1379, %v1378
        %1396 = vmatprep.subr.bf16.mxu0 0
        %1397 = vmatpush1.bf16.msra.mxu0 %v1387
        %1398 = vmatprep.subr.bf16.mxu0 0
        %1399 = vmatpush1.bf16.msra.mxu0 %v1386
        %1400 = vmatprep.subr.bf16.mxu0 0
        %1401 = vmatpush1.bf16.msra.mxu0 %v1385
        %1402 = vmatprep.subr.bf16.mxu0 0
        %1403 = vmatpush1.bf16.msra.mxu0 %v1384
        %1404 = vmatprep.subr.bf16.mxu0 0
        %1405 = vmatpush1.bf16.msra.mxu0 %v1383
        %1406 = vmatprep.subr.bf16.mxu0 0
        %1407 = vmatpush1.bf16.msra.mxu0 %v1382
        %1408 = vmatprep.subr.bf16.mxu0 0
        %1409 = vmatpush1.bf16.msra.mxu0 %v1381
        %1410 = vmatprep.subr.bf16.mxu0 0
        %1411 = vmatpush1.bf16.msra.mxu0 %v1380
        %1412 = vmatprep.subr.bf16.mxu0 0
        %1413 = vmatpush2.bf16.msra.mxu0 0
        %1414 = vmatprep.subr.bf16.mxu0 0
        %1415 = vmatpush2.bf16.msra.mxu0 0
        %1416 = vmatprep.subr.bf16.mxu0 0
        %1417 = vmatpush2.bf16.msra.mxu0 0
        %1418 = vmatprep.subr.bf16.mxu0 0
        %1419 = vmatpush2.bf16.msra.mxu0 0
        %1420 = vmatprep.subr.bf16.mxu0 0
        %1421 = vmatpush2.bf16.msra.mxu0 0
        %1422 = vmatprep.subr.bf16.mxu0 0
        %1423 = vmatpush2.bf16.msra.mxu0 0
        %1424 = vmatprep.subr.bf16.mxu0 0
        %1425 = vmatpush2.bf16.msra.mxu0 0
        %1426 = vmatprep.subr.bf16.mxu0 0
        %1427 = vmatpush2.bf16.msra.mxu0 0
        %1428 = vmatprep.mubr.bf16.mxu0 0
        %1429 = vmatmul.mubr.bf16.gmra.mxu0 %v1340
        %v1430 = vpop.f32.mrf.mxu0
        %v1431 = vadd.f32 %v1294, %v1430
        %v1432 = vpop.f32.mrf.mxu0
        %v1433 = vpop.f32.mrf.mxu0
        %v1434 = vadd.f32 %v1297, %v1433
        %v1435 = vpop.f32.mrf.mxu0
        %1436 = vmatprep.mubr.bf16.mxu0 0
        %1437 = vmatmul.mubr.bf16.gmra.mxu0 %v1341
        %v1438 = vpop.f32.mrf.mxu0
        %v1439 = vadd.f32 %v1302, %v1438
        %v1440 = vpop.f32.mrf.mxu0
        %v1441 = vpop.f32.mrf.mxu0
        %v1442 = vadd.f32 %v1305, %v1441
        %v1443 = vpop.f32.mrf.mxu0
        %1444 = vmatprep.mubr.bf16.mxu0 0
        %1445 = vmatmul.mubr.bf16.gmra.mxu0 %v1342
        %v1446 = vpop.f32.mrf.mxu0
        %v1447 = vadd.f32 %v1310, %v1446
        %v1448 = vpop.f32.mrf.mxu0
        %v1449 = vpop.f32.mrf.mxu0
        %v1450 = vadd.f32 %v1313, %v1449
        %v1451 = vpop.f32.mrf.mxu0
        %1452 = vmatprep.mubr.bf16.mxu0 0
        %1453 = vmatmul.mubr.bf16.gmra.mxu0 %v1343
        %v1454 = vpop.f32.mrf.mxu0
        %v1455 = vadd.f32 %v1318, %v1454
        %v1456 = vpop.f32.mrf.mxu0
        %v1457 = vpop.f32.mrf.mxu0
        %v1458 = vadd.f32 %v1321, %v1457
        %v1459 = vpop.f32.mrf.mxu0
        %1460 = vdwg.mxu0
        %v1461 = vld [vmem:[#allocation2] sm:$0xf]
        %v1462 = vld [vmem:[#allocation2 + $0x4] sm:$0x1]
        %v1463 = vld [vmem:[#allocation2 + $0x8] sm:$0xf]
        %v1464 = vld [vmem:[#allocation2 + $0xc] sm:$0x1]
        %v1465 = vld [vmem:[#allocation2 + $0x10] sm:$0xf]
        %v1466 = vld [vmem:[#allocation2 + $0x14] sm:$0x1]
        %v1467 = vld [vmem:[#allocation2 + $0x18] sm:$0xf]
        %v1468 = vld [vmem:[#allocation2 + $0x1c] sm:$0x1]
        %v1469 = vld [vmem:[#allocation2 + $0x20] sm:$0xf]
        %v1470 = vld [vmem:[#allocation2 + $0x24] sm:$0x1]
        %v1471 = vld [vmem:[#allocation2 + $0x28] sm:$0xf]
        %v1472 = vld [vmem:[#allocation2 + $0x2c] sm:$0x1]
        %v1473 = vld [vmem:[#allocation2 + $0x30] sm:$0xf]
        %v1474 = vld [vmem:[#allocation2 + $0x34] sm:$0x1]
        %v1475 = vld [vmem:[#allocation2 + $0x38] sm:$0xf]
        %v1476 = vld [vmem:[#allocation2 + $0x3c] sm:$0x1]
        %vm1477 = vsmask.f32 3328
        %vm1478 = vsmask.f32 7440
        %vm1479 = vmor %vm1477, %vm1478
        %v1481 = vshrl.u32 %v1461, 16
        %v1483 = vrot.slane %v1481, 4
        %v1484 = vshll.u32 %v1461, 16
        %v1486 = vrot.slane %v1484, 5
        %v1487 = vor.u32 %v1483, %v1486
        %v1488 = vrot.slane %v1487, 4
        %v1490 = vshll.u32 %v1462, 16
        %v1492 = vrot.slane %v1490, 5
        %v1493 = vsel %vm1479, %v1488, %v1492
        %v1495 = vshrl.u32 %v1463, 16
        %v1497 = vrot.slane %v1495, 4
        %v1498 = vshll.u32 %v1463, 16
        %v1500 = vrot.slane %v1498, 5
        %v1501 = vor.u32 %v1497, %v1500
        %v1502 = vrot.slane %v1501, 4
        %v1504 = vshll.u32 %v1464, 16
        %v1506 = vrot.slane %v1504, 5
        %v1507 = vsel %vm1479, %v1502, %v1506
        %v1509 = vshrl.u32 %v1465, 16
        %v1511 = vrot.slane %v1509, 4
        %v1512 = vshll.u32 %v1465, 16
        %v1514 = vrot.slane %v1512, 5
        %v1515 = vor.u32 %v1511, %v1514
        %v1516 = vrot.slane %v1515, 4
        %v1518 = vshll.u32 %v1466, 16
        %v1520 = vrot.slane %v1518, 5
        %v1521 = vsel %vm1479, %v1516, %v1520
        %v1523 = vshrl.u32 %v1467, 16
        %v1525 = vrot.slane %v1523, 4
        %v1526 = vshll.u32 %v1467, 16
        %v1528 = vrot.slane %v1526, 5
        %v1529 = vor.u32 %v1525, %v1528
        %v1530 = vrot.slane %v1529, 4
        %v1532 = vshll.u32 %v1468, 16
        %v1534 = vrot.slane %v1532, 5
        %v1535 = vsel %vm1479, %v1530, %v1534
        %v1537 = vshrl.u32 %v1469, 16
        %v1539 = vrot.slane %v1537, 4
        %v1540 = vshll.u32 %v1469, 16
        %v1542 = vrot.slane %v1540, 5
        %v1543 = vor.u32 %v1539, %v1542
        %v1544 = vrot.slane %v1543, 4
        %v1546 = vshll.u32 %v1470, 16
        %v1548 = vrot.slane %v1546, 5
        %v1549 = vsel %vm1479, %v1544, %v1548
        %v1551 = vshrl.u32 %v1471, 16
        %v1553 = vrot.slane %v1551, 4
        %v1554 = vshll.u32 %v1471, 16
        %v1556 = vrot.slane %v1554, 5
        %v1557 = vor.u32 %v1553, %v1556
        %v1558 = vrot.slane %v1557, 4
        %v1560 = vshll.u32 %v1472, 16
        %v1562 = vrot.slane %v1560, 5
        %v1563 = vsel %vm1479, %v1558, %v1562
        %v1565 = vshrl.u32 %v1473, 16
        %v1567 = vrot.slane %v1565, 4
        %v1568 = vshll.u32 %v1473, 16
        %v1570 = vrot.slane %v1568, 5
        %v1571 = vor.u32 %v1567, %v1570
        %v1572 = vrot.slane %v1571, 4
        %v1574 = vshll.u32 %v1474, 16
        %v1576 = vrot.slane %v1574, 5
        %v1577 = vsel %vm1479, %v1572, %v1576
        %v1579 = vshrl.u32 %v1475, 16
        %v1581 = vrot.slane %v1579, 4
        %v1582 = vshll.u32 %v1475, 16
        %v1584 = vrot.slane %v1582, 5
        %v1585 = vor.u32 %v1581, %v1584
        %v1586 = vrot.slane %v1585, 4
        %v1588 = vshll.u32 %v1476, 16
        %v1590 = vrot.slane %v1588, 5
        %v1591 = vsel %vm1479, %v1586, %v1590
        %s1592 = scalar_lea.vmem %s862, 128
        %v1593 = vld [vmem:[%s1592] sm:$0xf]
        %v1594 = vld [vmem:[%s1592 + $0x4] sm:$0xf]
        %v1595 = vld [vmem:[%s1592 + $0x8] sm:$0xf]
        %v1596 = vld [vmem:[%s1592 + $0xc] sm:$0xf]
        %v1597 = vld [vmem:[%s1592 + $0x10] sm:$0xf]
        %v1598 = vld [vmem:[%s1592 + $0x14] sm:$0xf]
        %v1599 = vld [vmem:[%s1592 + $0x18] sm:$0xf]
        %v1600 = vld [vmem:[%s1592 + $0x1c] sm:$0xf]
        %v1601 = vld [vmem:[%s1592 + $0x20] sm:$0xf]
        %v1602 = vld [vmem:[%s1592 + $0x24] sm:$0xf]
        %v1603 = vld [vmem:[%s1592 + $0x28] sm:$0xf]
        %v1604 = vld [vmem:[%s1592 + $0x2c] sm:$0xf]
        %v1605 = vld [vmem:[%s1592 + $0x30] sm:$0xf]
        %v1606 = vld [vmem:[%s1592 + $0x34] sm:$0xf]
        %v1607 = vld [vmem:[%s1592 + $0x38] sm:$0xf]
        %v1608 = vld [vmem:[%s1592 + $0x3c] sm:$0xf]
        %v1609 = vunpack.c.l.b16 %v1493
        %v1610 = vunpack.c.l.b16 %v1507
        %v1611 = vunpack.c.l.b16 %v1521
        %v1612 = vunpack.c.l.b16 %v1535
        %v1613 = vunpack.c.l.b16 %v1549
        %v1614 = vunpack.c.l.b16 %v1563
        %v1615 = vunpack.c.l.b16 %v1577
        %v1616 = vunpack.c.l.b16 %v1591
        %v1617 = vpack.c.b16 %v1610, %v1609
        %v1618 = vpack.c.b16 %v1612, %v1611
        %v1619 = vpack.c.b16 %v1614, %v1613
        %v1620 = vpack.c.b16 %v1616, %v1615
        %v1641 = vunpack.c.l.b16 %v1593
        %v1642 = vunpack.c.l.b16 %v1594
        %v1643 = vunpack.c.l.b16 %v1595
        %v1644 = vunpack.c.l.b16 %v1596
        %v1645 = vunpack.c.l.b16 %v1597
        %v1646 = vunpack.c.l.b16 %v1598
        %v1647 = vunpack.c.l.b16 %v1599
        %v1648 = vunpack.c.l.b16 %v1600
        %v1649 = vunpack.c.l.b16 %v1601
        %v1650 = vunpack.c.l.b16 %v1602
        %v1651 = vunpack.c.l.b16 %v1603
        %v1652 = vunpack.c.l.b16 %v1604
        %v1653 = vunpack.c.l.b16 %v1605
        %v1654 = vunpack.c.l.b16 %v1606
        %v1655 = vunpack.c.l.b16 %v1607
        %v1656 = vunpack.c.l.b16 %v1608
        %v1657 = vpack.c.b16 %v1642, %v1641
        %v1658 = vpack.c.b16 %v1644, %v1643
        %v1659 = vpack.c.b16 %v1646, %v1645
        %v1660 = vpack.c.b16 %v1648, %v1647
        %v1661 = vpack.c.b16 %v1650, %v1649
        %v1662 = vpack.c.b16 %v1652, %v1651
        %v1663 = vpack.c.b16 %v1654, %v1653
        %v1664 = vpack.c.b16 %v1656, %v1655
        %1673 = vmatprep.subr.bf16.mxu0 0
        %1674 = vmatpush1.bf16.msra.mxu0 %v1664
        %1675 = vmatprep.subr.bf16.mxu0 0
        %1676 = vmatpush1.bf16.msra.mxu0 %v1663
        %1677 = vmatprep.subr.bf16.mxu0 0
        %1678 = vmatpush1.bf16.msra.mxu0 %v1662
        %1679 = vmatprep.subr.bf16.mxu0 0
        %1680 = vmatpush1.bf16.msra.mxu0 %v1661
        %1681 = vmatprep.subr.bf16.mxu0 0
        %1682 = vmatpush1.bf16.msra.mxu0 %v1660
        %1683 = vmatprep.subr.bf16.mxu0 0
        %1684 = vmatpush1.bf16.msra.mxu0 %v1659
        %1685 = vmatprep.subr.bf16.mxu0 0
        %1686 = vmatpush1.bf16.msra.mxu0 %v1658
        %1687 = vmatprep.subr.bf16.mxu0 0
        %1688 = vmatpush1.bf16.msra.mxu0 %v1657
        %1689 = vmatprep.subr.bf16.mxu0 0
        %1690 = vmatpush2.bf16.msra.mxu0 0
        %1691 = vmatprep.subr.bf16.mxu0 0
        %1692 = vmatpush2.bf16.msra.mxu0 0
        %1693 = vmatprep.subr.bf16.mxu0 0
        %1694 = vmatpush2.bf16.msra.mxu0 0
        %1695 = vmatprep.subr.bf16.mxu0 0
        %1696 = vmatpush2.bf16.msra.mxu0 0
        %1697 = vmatprep.subr.bf16.mxu0 0
        %1698 = vmatpush2.bf16.msra.mxu0 0
        %1699 = vmatprep.subr.bf16.mxu0 0
        %1700 = vmatpush2.bf16.msra.mxu0 0
        %1701 = vmatprep.subr.bf16.mxu0 0
        %1702 = vmatpush2.bf16.msra.mxu0 0
        %1703 = vmatprep.subr.bf16.mxu0 0
        %1704 = vmatpush2.bf16.msra.mxu0 0
        %1705 = vmatprep.mubr.bf16.mxu0 0
        %1706 = vmatmul.mubr.bf16.gmra.mxu0 %v1617
        %v1707 = vpop.f32.mrf.mxu0
        %v1708 = vadd.f32 0.0, %v1707
        %v1709 = vpop.f32.mrf.mxu0
        %v1710 = vpop.f32.mrf.mxu0
        %v1711 = vadd.f32 0.0, %v1710
        %v1712 = vpop.f32.mrf.mxu0
        %1713 = vmatprep.mubr.bf16.mxu0 0
        %1714 = vmatmul.mubr.bf16.gmra.mxu0 %v1618
        %v1715 = vpop.f32.mrf.mxu0
        %v1716 = vadd.f32 0.0, %v1715
        %v1717 = vpop.f32.mrf.mxu0
        %v1718 = vpop.f32.mrf.mxu0
        %v1719 = vadd.f32 0.0, %v1718
        %v1720 = vpop.f32.mrf.mxu0
        %1721 = vmatprep.mubr.bf16.mxu0 0
        %1722 = vmatmul.mubr.bf16.gmra.mxu0 %v1619
        %v1723 = vpop.f32.mrf.mxu0
        %v1724 = vadd.f32 0.0, %v1723
        %v1725 = vpop.f32.mrf.mxu0
        %v1726 = vpop.f32.mrf.mxu0
        %v1727 = vadd.f32 0.0, %v1726
        %v1728 = vpop.f32.mrf.mxu0
        %1729 = vmatprep.mubr.bf16.mxu0 0
        %1730 = vmatmul.mubr.bf16.gmra.mxu0 %v1620
        %v1731 = vpop.f32.mrf.mxu0
        %v1732 = vadd.f32 0.0, %v1731
        %v1733 = vpop.f32.mrf.mxu0
        %v1734 = vpop.f32.mrf.mxu0
        %v1735 = vadd.f32 0.0, %v1734
        %v1736 = vpop.f32.mrf.mxu0
        %1737 = vdwg.mxu0
        %v1738 = vadd.f32 %v1431, %v1708
        %v1739 = vadd.f32 %v1434, %v1711
        %v1740 = vadd.f32 %v1439, %v1716
        %v1741 = vadd.f32 %v1442, %v1719
        %v1742 = vadd.f32 %v1447, %v1724
        %v1743 = vadd.f32 %v1450, %v1727
        %v1744 = vadd.f32 %v1455, %v1732
        %v1745 = vadd.f32 %v1458, %v1735
        %s1746 = scalar_lea.vmem [#allocation2], 160
        %v1747 = vld [vmem:[%s1746] sm:$0xf]
        %v1748 = vld [vmem:[%s1746 + $0x8] sm:$0xf]
        %v1749 = vld [vmem:[%s1746 + $0x10] sm:$0xf]
        %v1750 = vld [vmem:[%s1746 + $0x18] sm:$0xf]
        %v1751 = vld [vmem:[%s1746 + $0x20] sm:$0xf]
        %v1752 = vld [vmem:[%s1746 + $0x28] sm:$0xf]
        %v1753 = vld [vmem:[%s1746 + $0x30] sm:$0xf]
        %v1754 = vld [vmem:[%s1746 + $0x38] sm:$0xf]
        %s1755 = scalar_lea.vmem %s862, 192
        %v1756 = vld [vmem:[%s1755] sm:$0xf]
        %v1757 = vld [vmem:[%s1755 + $0x4] sm:$0xf]
        %v1758 = vld [vmem:[%s1755 + $0x8] sm:$0xf]
        %v1759 = vld [vmem:[%s1755 + $0xc] sm:$0xf]
        %v1760 = vld [vmem:[%s1755 + $0x10] sm:$0xf]
        %v1761 = vld [vmem:[%s1755 + $0x14] sm:$0xf]
        %v1762 = vld [vmem:[%s1755 + $0x18] sm:$0xf]
        %v1763 = vld [vmem:[%s1755 + $0x1c] sm:$0xf]
        %v1764 = vld [vmem:[%s1755 + $0x20] sm:$0xf]
        %v1765 = vld [vmem:[%s1755 + $0x24] sm:$0xf]
        %v1766 = vld [vmem:[%s1755 + $0x28] sm:$0xf]
        %v1767 = vld [vmem:[%s1755 + $0x2c] sm:$0xf]
        %v1768 = vld [vmem:[%s1755 + $0x30] sm:$0xf]
        %v1769 = vld [vmem:[%s1755 + $0x34] sm:$0xf]
        %v1770 = vld [vmem:[%s1755 + $0x38] sm:$0xf]
        %v1771 = vld [vmem:[%s1755 + $0x3c] sm:$0xf]
        %v1780 = vunpack.c.l.b16 %v1747
        %v1781 = vunpack.c.l.b16 %v1748
        %v1782 = vunpack.c.l.b16 %v1749
        %v1783 = vunpack.c.l.b16 %v1750
        %v1784 = vunpack.c.l.b16 %v1751
        %v1785 = vunpack.c.l.b16 %v1752
        %v1786 = vunpack.c.l.b16 %v1753
        %v1787 = vunpack.c.l.b16 %v1754
        %v1788 = vpack.c.b16 %v1781, %v1780
        %v1789 = vpack.c.b16 %v1783, %v1782
        %v1790 = vpack.c.b16 %v1785, %v1784
        %v1791 = vpack.c.b16 %v1787, %v1786
        %v1812 = vunpack.c.l.b16 %v1756
        %v1813 = vunpack.c.l.b16 %v1757
        %v1814 = vunpack.c.l.b16 %v1758
        %v1815 = vunpack.c.l.b16 %v1759
        %v1816 = vunpack.c.l.b16 %v1760
        %v1817 = vunpack.c.l.b16 %v1761
        %v1818 = vunpack.c.l.b16 %v1762
        %v1819 = vunpack.c.l.b16 %v1763
        %v1820 = vunpack.c.l.b16 %v1764
        %v1821 = vunpack.c.l.b16 %v1765
        %v1822 = vunpack.c.l.b16 %v1766
        %v1823 = vunpack.c.l.b16 %v1767
        %v1824 = vunpack.c.l.b16 %v1768
        %v1825 = vunpack.c.l.b16 %v1769
        %v1826 = vunpack.c.l.b16 %v1770
        %v1827 = vunpack.c.l.b16 %v1771
        %v1828 = vpack.c.b16 %v1813, %v1812
        %v1829 = vpack.c.b16 %v1815, %v1814
        %v1830 = vpack.c.b16 %v1817, %v1816
        %v1831 = vpack.c.b16 %v1819, %v1818
        %v1832 = vpack.c.b16 %v1821, %v1820
        %v1833 = vpack.c.b16 %v1823, %v1822
        %v1834 = vpack.c.b16 %v1825, %v1824
        %v1835 = vpack.c.b16 %v1827, %v1826
        %1844 = vmatprep.subr.bf16.mxu0 0
        %1845 = vmatpush1.bf16.msra.mxu0 %v1835
        %1846 = vmatprep.subr.bf16.mxu0 0
        %1847 = vmatpush1.bf16.msra.mxu0 %v1834
        %1848 = vmatprep.subr.bf16.mxu0 0
        %1849 = vmatpush1.bf16.msra.mxu0 %v1833
        %1850 = vmatprep.subr.bf16.mxu0 0
        %1851 = vmatpush1.bf16.msra.mxu0 %v1832
        %1852 = vmatprep.subr.bf16.mxu0 0
        %1853 = vmatpush1.bf16.msra.mxu0 %v1831
        %1854 = vmatprep.subr.bf16.mxu0 0
        %1855 = vmatpush1.bf16.msra.mxu0 %v1830
        %1856 = vmatprep.subr.bf16.mxu0 0
        %1857 = vmatpush1.bf16.msra.mxu0 %v1829
        %1858 = vmatprep.subr.bf16.mxu0 0
        %1859 = vmatpush1.bf16.msra.mxu0 %v1828
        %1860 = vmatprep.subr.bf16.mxu0 0
        %1861 = vmatpush2.bf16.msra.mxu0 0
        %1862 = vmatprep.subr.bf16.mxu0 0
        %1863 = vmatpush2.bf16.msra.mxu0 0
        %1864 = vmatprep.subr.bf16.mxu0 0
        %1865 = vmatpush2.bf16.msra.mxu0 0
        %1866 = vmatprep.subr.bf16.mxu0 0
        %1867 = vmatpush2.bf16.msra.mxu0 0
        %1868 = vmatprep.subr.bf16.mxu0 0
        %1869 = vmatpush2.bf16.msra.mxu0 0
        %1870 = vmatprep.subr.bf16.mxu0 0
        %1871 = vmatpush2.bf16.msra.mxu0 0
        %1872 = vmatprep.subr.bf16.mxu0 0
        %1873 = vmatpush2.bf16.msra.mxu0 0
        %1874 = vmatprep.subr.bf16.mxu0 0
        %1875 = vmatpush2.bf16.msra.mxu0 0
        %1876 = vmatprep.mubr.bf16.mxu0 0
        %1877 = vmatmul.mubr.bf16.gmra.mxu0 %v1788
        %v1878 = vpop.f32.mrf.mxu0
        %v1879 = vadd.f32 0.0, %v1878
        %v1880 = vpop.f32.mrf.mxu0
        %v1881 = vpop.f32.mrf.mxu0
        %v1882 = vadd.f32 0.0, %v1881
        %v1883 = vpop.f32.mrf.mxu0
        %1884 = vmatprep.mubr.bf16.mxu0 0
        %1885 = vmatmul.mubr.bf16.gmra.mxu0 %v1789
        %v1886 = vpop.f32.mrf.mxu0
        %v1887 = vadd.f32 0.0, %v1886
        %v1888 = vpop.f32.mrf.mxu0
        %v1889 = vpop.f32.mrf.mxu0
        %v1890 = vadd.f32 0.0, %v1889
        %v1891 = vpop.f32.mrf.mxu0
        %1892 = vmatprep.mubr.bf16.mxu0 0
        %1893 = vmatmul.mubr.bf16.gmra.mxu0 %v1790
        %v1894 = vpop.f32.mrf.mxu0
        %v1895 = vadd.f32 0.0, %v1894
        %v1896 = vpop.f32.mrf.mxu0
        %v1897 = vpop.f32.mrf.mxu0
        %v1898 = vadd.f32 0.0, %v1897
        %v1899 = vpop.f32.mrf.mxu0
        %1900 = vmatprep.mubr.bf16.mxu0 0
        %1901 = vmatmul.mubr.bf16.gmra.mxu0 %v1791
        %v1902 = vpop.f32.mrf.mxu0
        %v1903 = vadd.f32 0.0, %v1902
        %v1904 = vpop.f32.mrf.mxu0
        %v1905 = vpop.f32.mrf.mxu0
        %v1906 = vadd.f32 0.0, %v1905
        %v1907 = vpop.f32.mrf.mxu0
        %1908 = vdwg.mxu0
        %v1909 = vadd.f32 %v1738, %v1879
        %v1910 = vadd.f32 %v1739, %v1882
        %v1911 = vadd.f32 %v1740, %v1887
        %v1912 = vadd.f32 %v1741, %v1890
        %v1913 = vadd.f32 %v1742, %v1895
        %v1914 = vadd.f32 %v1743, %v1898
        %v1915 = vadd.f32 %v1744, %v1903
        %v1916 = vadd.f32 %v1745, %v1906
        %s1917 = scalar_lea.vmem [#allocation2], 240
        %v1918 = vld [vmem:[%s1917] sm:$0xf]
        %v1919 = vld [vmem:[%s1917 + $0x8] sm:$0xf]
        %v1920 = vld [vmem:[%s1917 + $0x10] sm:$0xf]
        %v1921 = vld [vmem:[%s1917 + $0x18] sm:$0xf]
        %v1922 = vld [vmem:[%s1917 + $0x20] sm:$0xf]
        %v1923 = vld [vmem:[%s1917 + $0x28] sm:$0xf]
        %v1924 = vld [vmem:[%s1917 + $0x30] sm:$0xf]
        %v1925 = vld [vmem:[%s1917 + $0x38] sm:$0xf]
        %s1926 = scalar_lea.vmem %s862, 256
        %v1927 = vld [vmem:[%s1926] sm:$0xf]
        %v1928 = vld [vmem:[%s1926 + $0x4] sm:$0xf]
        %v1929 = vld [vmem:[%s1926 + $0x8] sm:$0xf]
        %v1930 = vld [vmem:[%s1926 + $0xc] sm:$0xf]
        %v1931 = vld [vmem:[%s1926 + $0x10] sm:$0xf]
        %v1932 = vld [vmem:[%s1926 + $0x14] sm:$0xf]
        %v1933 = vld [vmem:[%s1926 + $0x18] sm:$0xf]
        %v1934 = vld [vmem:[%s1926 + $0x1c] sm:$0xf]
        %v1935 = vld [vmem:[%s1926 + $0x20] sm:$0xf]
        %v1936 = vld [vmem:[%s1926 + $0x24] sm:$0xf]
        %v1937 = vld [vmem:[%s1926 + $0x28] sm:$0xf]
        %v1938 = vld [vmem:[%s1926 + $0x2c] sm:$0xf]
        %v1939 = vld [vmem:[%s1926 + $0x30] sm:$0xf]
        %v1940 = vld [vmem:[%s1926 + $0x34] sm:$0xf]
        %v1941 = vld [vmem:[%s1926 + $0x38] sm:$0xf]
        %v1942 = vld [vmem:[%s1926 + $0x3c] sm:$0xf]
        %v1951 = vunpack.c.l.b16 %v1918
        %v1952 = vunpack.c.l.b16 %v1919
        %v1953 = vunpack.c.l.b16 %v1920
        %v1954 = vunpack.c.l.b16 %v1921
        %v1955 = vunpack.c.l.b16 %v1922
        %v1956 = vunpack.c.l.b16 %v1923
        %v1957 = vunpack.c.l.b16 %v1924
        %v1958 = vunpack.c.l.b16 %v1925
        %v1959 = vpack.c.b16 %v1952, %v1951
        %v1960 = vpack.c.b16 %v1954, %v1953
        %v1961 = vpack.c.b16 %v1956, %v1955
        %v1962 = vpack.c.b16 %v1958, %v1957
        %v1983 = vunpack.c.l.b16 %v1927
        %v1984 = vunpack.c.l.b16 %v1928
        %v1985 = vunpack.c.l.b16 %v1929
        %v1986 = vunpack.c.l.b16 %v1930
        %v1987 = vunpack.c.l.b16 %v1931
        %v1988 = vunpack.c.l.b16 %v1932
        %v1989 = vunpack.c.l.b16 %v1933
        %v1990 = vunpack.c.l.b16 %v1934
        %v1991 = vunpack.c.l.b16 %v1935
        %v1992 = vunpack.c.l.b16 %v1936
        %v1993 = vunpack.c.l.b16 %v1937
        %v1994 = vunpack.c.l.b16 %v1938
        %v1995 = vunpack.c.l.b16 %v1939
        %v1996 = vunpack.c.l.b16 %v1940
        %v1997 = vunpack.c.l.b16 %v1941
        %v1998 = vunpack.c.l.b16 %v1942
        %v1999 = vpack.c.b16 %v1984, %v1983
        %v2000 = vpack.c.b16 %v1986, %v1985
        %v2001 = vpack.c.b16 %v1988, %v1987
        %v2002 = vpack.c.b16 %v1990, %v1989
        %v2003 = vpack.c.b16 %v1992, %v1991
        %v2004 = vpack.c.b16 %v1994, %v1993
        %v2005 = vpack.c.b16 %v1996, %v1995
        %v2006 = vpack.c.b16 %v1998, %v1997
        %2015 = vmatprep.subr.bf16.mxu0 0
        %2016 = vmatpush1.bf16.msra.mxu0 %v2006
        %2017 = vmatprep.subr.bf16.mxu0 0
        %2018 = vmatpush1.bf16.msra.mxu0 %v2005
        %2019 = vmatprep.subr.bf16.mxu0 0
        %2020 = vmatpush1.bf16.msra.mxu0 %v2004
        %2021 = vmatprep.subr.bf16.mxu0 0
        %2022 = vmatpush1.bf16.msra.mxu0 %v2003
        %2023 = vmatprep.subr.bf16.mxu0 0
        %2024 = vmatpush1.bf16.msra.mxu0 %v2002
        %2025 = vmatprep.subr.bf16.mxu0 0
        %2026 = vmatpush1.bf16.msra.mxu0 %v2001
        %2027 = vmatprep.subr.bf16.mxu0 0
        %2028 = vmatpush1.bf16.msra.mxu0 %v2000
        %2029 = vmatprep.subr.bf16.mxu0 0
        %2030 = vmatpush1.bf16.msra.mxu0 %v1999
        %2031 = vmatprep.subr.bf16.mxu0 0
        %2032 = vmatpush2.bf16.msra.mxu0 0
        %2033 = vmatprep.subr.bf16.mxu0 0
        %2034 = vmatpush2.bf16.msra.mxu0 0
        %2035 = vmatprep.subr.bf16.mxu0 0
        %2036 = vmatpush2.bf16.msra.mxu0 0
        %2037 = vmatprep.subr.bf16.mxu0 0
        %2038 = vmatpush2.bf16.msra.mxu0 0
        %2039 = vmatprep.subr.bf16.mxu0 0
        %2040 = vmatpush2.bf16.msra.mxu0 0
        %2041 = vmatprep.subr.bf16.mxu0 0
        %2042 = vmatpush2.bf16.msra.mxu0 0
        %2043 = vmatprep.subr.bf16.mxu0 0
        %2044 = vmatpush2.bf16.msra.mxu0 0
        %2045 = vmatprep.subr.bf16.mxu0 0
        %2046 = vmatpush2.bf16.msra.mxu0 0
        %2047 = vmatprep.mubr.bf16.mxu0 0
        %2048 = vmatmul.mubr.bf16.gmra.mxu0 %v1959
        %v2049 = vpop.f32.mrf.mxu0
        %v2050 = vadd.f32 0.0, %v2049
        %v2051 = vpop.f32.mrf.mxu0
        %v2052 = vpop.f32.mrf.mxu0
        %v2053 = vadd.f32 0.0, %v2052
        %v2054 = vpop.f32.mrf.mxu0
        %2055 = vmatprep.mubr.bf16.mxu0 0
        %2056 = vmatmul.mubr.bf16.gmra.mxu0 %v1960
        %v2057 = vpop.f32.mrf.mxu0
        %v2058 = vadd.f32 0.0, %v2057
        %v2059 = vpop.f32.mrf.mxu0
        %v2060 = vpop.f32.mrf.mxu0
        %v2061 = vadd.f32 0.0, %v2060
        %v2062 = vpop.f32.mrf.mxu0
        %2063 = vmatprep.mubr.bf16.mxu0 0
        %2064 = vmatmul.mubr.bf16.gmra.mxu0 %v1961
        %v2065 = vpop.f32.mrf.mxu0
        %v2066 = vadd.f32 0.0, %v2065
        %v2067 = vpop.f32.mrf.mxu0
        %v2068 = vpop.f32.mrf.mxu0
        %v2069 = vadd.f32 0.0, %v2068
        %v2070 = vpop.f32.mrf.mxu0
        %2071 = vmatprep.mubr.bf16.mxu0 0
        %2072 = vmatmul.mubr.bf16.gmra.mxu0 %v1962
        %v2073 = vpop.f32.mrf.mxu0
        %v2074 = vadd.f32 0.0, %v2073
        %v2075 = vpop.f32.mrf.mxu0
        %v2076 = vpop.f32.mrf.mxu0
        %v2077 = vadd.f32 0.0, %v2076
        %v2078 = vpop.f32.mrf.mxu0
        %2079 = vdwg.mxu0
        %v2080 = vadd.f32 %v1909, %v2050
        %v2081 = vadd.f32 %v1910, %v2053
        %v2082 = vadd.f32 %v1911, %v2058
        %v2083 = vadd.f32 %v1912, %v2061
        %v2084 = vadd.f32 %v1913, %v2066
        %v2085 = vadd.f32 %v1914, %v2069
        %v2086 = vadd.f32 %v1915, %v2074
        %v2087 = vadd.f32 %v1916, %v2077
        %v2088 = vld [vmem:[%s1746] sm:$0xf]
        %v2089 = vld [vmem:[%s1746 + $0x4] sm:$0x1]
        %v2090 = vld [vmem:[%s1746 + $0x8] sm:$0xf]
        %v2091 = vld [vmem:[%s1746 + $0xc] sm:$0x1]
        %v2092 = vld [vmem:[%s1746 + $0x10] sm:$0xf]
        %v2093 = vld [vmem:[%s1746 + $0x14] sm:$0x1]
        %v2094 = vld [vmem:[%s1746 + $0x18] sm:$0xf]
        %v2095 = vld [vmem:[%s1746 + $0x1c] sm:$0x1]
        %v2096 = vld [vmem:[%s1746 + $0x20] sm:$0xf]
        %v2097 = vld [vmem:[%s1746 + $0x24] sm:$0x1]
        %v2098 = vld [vmem:[%s1746 + $0x28] sm:$0xf]
        %v2099 = vld [vmem:[%s1746 + $0x2c] sm:$0x1]
        %v2100 = vld [vmem:[%s1746 + $0x30] sm:$0xf]
        %v2101 = vld [vmem:[%s1746 + $0x34] sm:$0x1]
        %v2102 = vld [vmem:[%s1746 + $0x38] sm:$0xf]
        %v2103 = vld [vmem:[%s1746 + $0x3c] sm:$0x1]
        %v2105 = vshrl.u32 %v2088, 16
        %v2107 = vrot.slane %v2105, 4
        %v2108 = vshll.u32 %v2088, 16
        %v2110 = vrot.slane %v2108, 5
        %v2111 = vor.u32 %v2107, %v2110
        %v2112 = vrot.slane %v2111, 4
        %v2114 = vshll.u32 %v2089, 16
        %v2116 = vrot.slane %v2114, 5
        %v2117 = vsel %vm1479, %v2112, %v2116
        %v2119 = vshrl.u32 %v2090, 16
        %v2121 = vrot.slane %v2119, 4
        %v2122 = vshll.u32 %v2090, 16
        %v2124 = vrot.slane %v2122, 5
        %v2125 = vor.u32 %v2121, %v2124
        %v2126 = vrot.slane %v2125, 4
        %v2128 = vshll.u32 %v2091, 16
        %v2130 = vrot.slane %v2128, 5
        %v2131 = vsel %vm1479, %v2126, %v2130
        %v2133 = vshrl.u32 %v2092, 16
        %v2135 = vrot.slane %v2133, 4
        %v2136 = vshll.u32 %v2092, 16
        %v2138 = vrot.slane %v2136, 5
        %v2139 = vor.u32 %v2135, %v2138
        %v2140 = vrot.slane %v2139, 4
        %v2142 = vshll.u32 %v2093, 16
        %v2144 = vrot.slane %v2142, 5
        %v2145 = vsel %vm1479, %v2140, %v2144
        %v2147 = vshrl.u32 %v2094, 16
        %v2149 = vrot.slane %v2147, 4
        %v2150 = vshll.u32 %v2094, 16
        %v2152 = vrot.slane %v2150, 5
        %v2153 = vor.u32 %v2149, %v2152
        %v2154 = vrot.slane %v2153, 4
        %v2156 = vshll.u32 %v2095, 16
        %v2158 = vrot.slane %v2156, 5
        %v2159 = vsel %vm1479, %v2154, %v2158
        %v2161 = vshrl.u32 %v2096, 16
        %v2163 = vrot.slane %v2161, 4
        %v2164 = vshll.u32 %v2096, 16
        %v2166 = vrot.slane %v2164, 5
        %v2167 = vor.u32 %v2163, %v2166
        %v2168 = vrot.slane %v2167, 4
        %v2170 = vshll.u32 %v2097, 16
        %v2172 = vrot.slane %v2170, 5
        %v2173 = vsel %vm1479, %v2168, %v2172
        %v2175 = vshrl.u32 %v2098, 16
        %v2177 = vrot.slane %v2175, 4
        %v2178 = vshll.u32 %v2098, 16
        %v2180 = vrot.slane %v2178, 5
        %v2181 = vor.u32 %v2177, %v2180
        %v2182 = vrot.slane %v2181, 4
        %v2184 = vshll.u32 %v2099, 16
        %v2186 = vrot.slane %v2184, 5
        %v2187 = vsel %vm1479, %v2182, %v2186
        %v2189 = vshrl.u32 %v2100, 16
        %v2191 = vrot.slane %v2189, 4
        %v2192 = vshll.u32 %v2100, 16
        %v2194 = vrot.slane %v2192, 5
        %v2195 = vor.u32 %v2191, %v2194
        %v2196 = vrot.slane %v2195, 4
        %v2198 = vshll.u32 %v2101, 16
        %v2200 = vrot.slane %v2198, 5
        %v2201 = vsel %vm1479, %v2196, %v2200
        %v2203 = vshrl.u32 %v2102, 16
        %v2205 = vrot.slane %v2203, 4
        %v2206 = vshll.u32 %v2102, 16
        %v2208 = vrot.slane %v2206, 5
        %v2209 = vor.u32 %v2205, %v2208
        %v2210 = vrot.slane %v2209, 4
        %v2212 = vshll.u32 %v2103, 16
        %v2214 = vrot.slane %v2212, 5
        %v2215 = vsel %vm1479, %v2210, %v2214
        %s2216 = scalar_lea.vmem %s862, 320
        %v2217 = vld [vmem:[%s2216] sm:$0xf]
        %v2218 = vld [vmem:[%s2216 + $0x4] sm:$0xf]
        %v2219 = vld [vmem:[%s2216 + $0x8] sm:$0xf]
        %v2220 = vld [vmem:[%s2216 + $0xc] sm:$0xf]
        %v2221 = vld [vmem:[%s2216 + $0x10] sm:$0xf]
        %v2222 = vld [vmem:[%s2216 + $0x14] sm:$0xf]
        %v2223 = vld [vmem:[%s2216 + $0x18] sm:$0xf]
        %v2224 = vld [vmem:[%s2216 + $0x1c] sm:$0xf]
        %v2225 = vld [vmem:[%s2216 + $0x20] sm:$0xf]
        %v2226 = vld [vmem:[%s2216 + $0x24] sm:$0xf]
        %v2227 = vld [vmem:[%s2216 + $0x28] sm:$0xf]
        %v2228 = vld [vmem:[%s2216 + $0x2c] sm:$0xf]
        %v2229 = vld [vmem:[%s2216 + $0x30] sm:$0xf]
        %v2230 = vld [vmem:[%s2216 + $0x34] sm:$0xf]
        %v2231 = vld [vmem:[%s2216 + $0x38] sm:$0xf]
        %v2232 = vld [vmem:[%s2216 + $0x3c] sm:$0xf]
        %v2233 = vunpack.c.l.b16 %v2117
        %v2234 = vunpack.c.l.b16 %v2131
        %v2235 = vunpack.c.l.b16 %v2145
        %v2236 = vunpack.c.l.b16 %v2159
        %v2237 = vunpack.c.l.b16 %v2173
        %v2238 = vunpack.c.l.b16 %v2187
        %v2239 = vunpack.c.l.b16 %v2201
        %v2240 = vunpack.c.l.b16 %v2215
        %v2241 = vpack.c.b16 %v2234, %v2233
        %v2242 = vpack.c.b16 %v2236, %v2235
        %v2243 = vpack.c.b16 %v2238, %v2237
        %v2244 = vpack.c.b16 %v2240, %v2239
        %v2265 = vunpack.c.l.b16 %v2217
        %v2266 = vunpack.c.l.b16 %v2218
        %v2267 = vunpack.c.l.b16 %v2219
        %v2268 = vunpack.c.l.b16 %v2220
        %v2269 = vunpack.c.l.b16 %v2221
        %v2270 = vunpack.c.l.b16 %v2222
        %v2271 = vunpack.c.l.b16 %v2223
        %v2272 = vunpack.c.l.b16 %v2224
        %v2273 = vunpack.c.l.b16 %v2225
        %v2274 = vunpack.c.l.b16 %v2226
        %v2275 = vunpack.c.l.b16 %v2227
        %v2276 = vunpack.c.l.b16 %v2228
        %v2277 = vunpack.c.l.b16 %v2229
        %v2278 = vunpack.c.l.b16 %v2230
        %v2279 = vunpack.c.l.b16 %v2231
        %v2280 = vunpack.c.l.b16 %v2232
        %v2281 = vpack.c.b16 %v2266, %v2265
        %v2282 = vpack.c.b16 %v2268, %v2267
        %v2283 = vpack.c.b16 %v2270, %v2269
        %v2284 = vpack.c.b16 %v2272, %v2271
        %v2285 = vpack.c.b16 %v2274, %v2273
        %v2286 = vpack.c.b16 %v2276, %v2275
        %v2287 = vpack.c.b16 %v2278, %v2277
        %v2288 = vpack.c.b16 %v2280, %v2279
        %2297 = vmatprep.subr.bf16.mxu0 0
        %2298 = vmatpush1.bf16.msra.mxu0 %v2288
        %2299 = vmatprep.subr.bf16.mxu0 0
        %2300 = vmatpush1.bf16.msra.mxu0 %v2287
        %2301 = vmatprep.subr.bf16.mxu0 0
        %2302 = vmatpush1.bf16.msra.mxu0 %v2286
        %2303 = vmatprep.subr.bf16.mxu0 0
        %2304 = vmatpush1.bf16.msra.mxu0 %v2285
        %2305 = vmatprep.subr.bf16.mxu0 0
        %2306 = vmatpush1.bf16.msra.mxu0 %v2284
        %2307 = vmatprep.subr.bf16.mxu0 0
        %2308 = vmatpush1.bf16.msra.mxu0 %v2283
        %2309 = vmatprep.subr.bf16.mxu0 0
        %2310 = vmatpush1.bf16.msra.mxu0 %v2282
        %2311 = vmatprep.subr.bf16.mxu0 0
        %2312 = vmatpush1.bf16.msra.mxu0 %v2281
        %2313 = vmatprep.subr.bf16.mxu0 0
        %2314 = vmatpush2.bf16.msra.mxu0 0
        %2315 = vmatprep.subr.bf16.mxu0 0
        %2316 = vmatpush2.bf16.msra.mxu0 0
        %2317 = vmatprep.subr.bf16.mxu0 0
        %2318 = vmatpush2.bf16.msra.mxu0 0
        %2319 = vmatprep.subr.bf16.mxu0 0
        %2320 = vmatpush2.bf16.msra.mxu0 0
        %2321 = vmatprep.subr.bf16.mxu0 0
        %2322 = vmatpush2.bf16.msra.mxu0 0
        %2323 = vmatprep.subr.bf16.mxu0 0
        %2324 = vmatpush2.bf16.msra.mxu0 0
        %2325 = vmatprep.subr.bf16.mxu0 0
        %2326 = vmatpush2.bf16.msra.mxu0 0
        %2327 = vmatprep.subr.bf16.mxu0 0
        %2328 = vmatpush2.bf16.msra.mxu0 0
        %2329 = vmatprep.mubr.bf16.mxu0 0
        %2330 = vmatmul.mubr.bf16.gmra.mxu0 %v2241
        %v2331 = vpop.f32.mrf.mxu0
        %v2332 = vadd.f32 0.0, %v2331
        %v2333 = vpop.f32.mrf.mxu0
        %v2334 = vpop.f32.mrf.mxu0
        %v2335 = vadd.f32 0.0, %v2334
        %v2336 = vpop.f32.mrf.mxu0
        %2337 = vmatprep.mubr.bf16.mxu0 0
        %2338 = vmatmul.mubr.bf16.gmra.mxu0 %v2242
        %v2339 = vpop.f32.mrf.mxu0
        %v2340 = vadd.f32 0.0, %v2339
        %v2341 = vpop.f32.mrf.mxu0
        %v2342 = vpop.f32.mrf.mxu0
        %v2343 = vadd.f32 0.0, %v2342
        %v2344 = vpop.f32.mrf.mxu0
        %2345 = vmatprep.mubr.bf16.mxu0 0
        %2346 = vmatmul.mubr.bf16.gmra.mxu0 %v2243
        %v2347 = vpop.f32.mrf.mxu0
        %v2348 = vadd.f32 0.0, %v2347
        %v2349 = vpop.f32.mrf.mxu0
        %v2350 = vpop.f32.mrf.mxu0
        %v2351 = vadd.f32 0.0, %v2350
        %v2352 = vpop.f32.mrf.mxu0
        %2353 = vmatprep.mubr.bf16.mxu0 0
        %2354 = vmatmul.mubr.bf16.gmra.mxu0 %v2244
        %v2355 = vpop.f32.mrf.mxu0
        %v2356 = vadd.f32 0.0, %v2355
        %v2357 = vpop.f32.mrf.mxu0
        %v2358 = vpop.f32.mrf.mxu0
        %v2359 = vadd.f32 0.0, %v2358
        %v2360 = vpop.f32.mrf.mxu0
        %2361 = vdwg.mxu0
        %v2362 = vadd.f32 %v2080, %v2332
        %v2363 = vadd.f32 %v2081, %v2335
        %v2364 = vadd.f32 %v2082, %v2340
        %v2365 = vadd.f32 %v2083, %v2343
        %v2366 = vadd.f32 %v2084, %v2348
        %v2367 = vadd.f32 %v2085, %v2351
        %v2368 = vadd.f32 %v2086, %v2356
        %v2369 = vadd.f32 %v2087, %v2359
        %s2370 = scalar_lea.vmem [#allocation2], 8
        %v2371 = vld [vmem:[%s2370] sm:$0xf]
        %v2372 = vld [vmem:[%s2370 + $0x8] sm:$0xf]
        %v2373 = vld [vmem:[%s2370 + $0x10] sm:$0xf]
        %v2374 = vld [vmem:[%s2370 + $0x18] sm:$0xf]
        %v2375 = vld [vmem:[%s2370 + $0x20] sm:$0xf]
        %v2376 = vld [vmem:[%s2370 + $0x28] sm:$0xf]
        %v2377 = vld [vmem:[%s2370 + $0x30] sm:$0xf]
        %v2378 = vld [vmem:[%s2370 + $0x38] sm:$0xf]
        %s2379 = scalar_lea.vmem %s862, 384
        %v2380 = vld [vmem:[%s2379] sm:$0xf]
        %v2381 = vld [vmem:[%s2379 + $0x4] sm:$0xf]
        %v2382 = vld [vmem:[%s2379 + $0x8] sm:$0xf]
        %v2383 = vld [vmem:[%s2379 + $0xc] sm:$0xf]
        %v2384 = vld [vmem:[%s2379 + $0x10] sm:$0xf]
        %v2385 = vld [vmem:[%s2379 + $0x14] sm:$0xf]
        %v2386 = vld [vmem:[%s2379 + $0x18] sm:$0xf]
        %v2387 = vld [vmem:[%s2379 + $0x1c] sm:$0xf]
        %v2388 = vld [vmem:[%s2379 + $0x20] sm:$0xf]
        %v2389 = vld [vmem:[%s2379 + $0x24] sm:$0xf]
        %v2390 = vld [vmem:[%s2379 + $0x28] sm:$0xf]
        %v2391 = vld [vmem:[%s2379 + $0x2c] sm:$0xf]
        %v2392 = vld [vmem:[%s2379 + $0x30] sm:$0xf]
        %v2393 = vld [vmem:[%s2379 + $0x34] sm:$0xf]
        %v2394 = vld [vmem:[%s2379 + $0x38] sm:$0xf]
        %v2395 = vld [vmem:[%s2379 + $0x3c] sm:$0xf]
        %v2404 = vunpack.c.l.b16 %v2371
        %v2405 = vunpack.c.l.b16 %v2372
        %v2406 = vunpack.c.l.b16 %v2373
        %v2407 = vunpack.c.l.b16 %v2374
        %v2408 = vunpack.c.l.b16 %v2375
        %v2409 = vunpack.c.l.b16 %v2376
        %v2410 = vunpack.c.l.b16 %v2377
        %v2411 = vunpack.c.l.b16 %v2378
        %v2412 = vpack.c.b16 %v2405, %v2404
        %v2413 = vpack.c.b16 %v2407, %v2406
        %v2414 = vpack.c.b16 %v2409, %v2408
        %v2415 = vpack.c.b16 %v2411, %v2410
        %v2436 = vunpack.c.l.b16 %v2380
        %v2437 = vunpack.c.l.b16 %v2381
        %v2438 = vunpack.c.l.b16 %v2382
        %v2439 = vunpack.c.l.b16 %v2383
        %v2440 = vunpack.c.l.b16 %v2384
        %v2441 = vunpack.c.l.b16 %v2385
        %v2442 = vunpack.c.l.b16 %v2386
        %v2443 = vunpack.c.l.b16 %v2387
        %v2444 = vunpack.c.l.b16 %v2388
        %v2445 = vunpack.c.l.b16 %v2389
        %v2446 = vunpack.c.l.b16 %v2390
        %v2447 = vunpack.c.l.b16 %v2391
        %v2448 = vunpack.c.l.b16 %v2392
        %v2449 = vunpack.c.l.b16 %v2393
        %v2450 = vunpack.c.l.b16 %v2394
        %v2451 = vunpack.c.l.b16 %v2395
        %v2452 = vpack.c.b16 %v2437, %v2436
        %v2453 = vpack.c.b16 %v2439, %v2438
        %v2454 = vpack.c.b16 %v2441, %v2440
        %v2455 = vpack.c.b16 %v2443, %v2442
        %v2456 = vpack.c.b16 %v2445, %v2444
        %v2457 = vpack.c.b16 %v2447, %v2446
        %v2458 = vpack.c.b16 %v2449, %v2448
        %v2459 = vpack.c.b16 %v2451, %v2450
        %2468 = vmatprep.subr.bf16.mxu0 0
        %2469 = vmatpush1.bf16.msra.mxu0 %v2459
        %2470 = vmatprep.subr.bf16.mxu0 0
        %2471 = vmatpush1.bf16.msra.mxu0 %v2458
        %2472 = vmatprep.subr.bf16.mxu0 0
        %2473 = vmatpush1.bf16.msra.mxu0 %v2457
        %2474 = vmatprep.subr.bf16.mxu0 0
        %2475 = vmatpush1.bf16.msra.mxu0 %v2456
        %2476 = vmatprep.subr.bf16.mxu0 0
        %2477 = vmatpush1.bf16.msra.mxu0 %v2455
        %2478 = vmatprep.subr.bf16.mxu0 0
        %2479 = vmatpush1.bf16.msra.mxu0 %v2454
        %2480 = vmatprep.subr.bf16.mxu0 0
        %2481 = vmatpush1.bf16.msra.mxu0 %v2453
        %2482 = vmatprep.subr.bf16.mxu0 0
        %2483 = vmatpush1.bf16.msra.mxu0 %v2452
        %2484 = vmatprep.subr.bf16.mxu0 0
        %2485 = vmatpush2.bf16.msra.mxu0 0
        %2486 = vmatprep.subr.bf16.mxu0 0
        %2487 = vmatpush2.bf16.msra.mxu0 0
        %2488 = vmatprep.subr.bf16.mxu0 0
        %2489 = vmatpush2.bf16.msra.mxu0 0
        %2490 = vmatprep.subr.bf16.mxu0 0
        %2491 = vmatpush2.bf16.msra.mxu0 0
        %2492 = vmatprep.subr.bf16.mxu0 0
        %2493 = vmatpush2.bf16.msra.mxu0 0
        %2494 = vmatprep.subr.bf16.mxu0 0
        %2495 = vmatpush2.bf16.msra.mxu0 0
        %2496 = vmatprep.subr.bf16.mxu0 0
        %2497 = vmatpush2.bf16.msra.mxu0 0
        %2498 = vmatprep.subr.bf16.mxu0 0
        %2499 = vmatpush2.bf16.msra.mxu0 0
        %2500 = vmatprep.mubr.bf16.mxu0 0
        %2501 = vmatmul.mubr.bf16.gmra.mxu0 %v2412
        %v2502 = vpop.f32.mrf.mxu0
        %v2503 = vadd.f32 0.0, %v2502
        %v2504 = vpop.f32.mrf.mxu0
        %v2505 = vpop.f32.mrf.mxu0
        %v2506 = vadd.f32 0.0, %v2505
        %v2507 = vpop.f32.mrf.mxu0
        %2508 = vmatprep.mubr.bf16.mxu0 0
        %2509 = vmatmul.mubr.bf16.gmra.mxu0 %v2413
        %v2510 = vpop.f32.mrf.mxu0
        %v2511 = vadd.f32 0.0, %v2510
        %v2512 = vpop.f32.mrf.mxu0
        %v2513 = vpop.f32.mrf.mxu0
        %v2514 = vadd.f32 0.0, %v2513
        %v2515 = vpop.f32.mrf.mxu0
        %2516 = vmatprep.mubr.bf16.mxu0 0
        %2517 = vmatmul.mubr.bf16.gmra.mxu0 %v2414
        %v2518 = vpop.f32.mrf.mxu0
        %v2519 = vadd.f32 0.0, %v2518
        %v2520 = vpop.f32.mrf.mxu0
        %v2521 = vpop.f32.mrf.mxu0
        %v2522 = vadd.f32 0.0, %v2521
        %v2523 = vpop.f32.mrf.mxu0
        %2524 = vmatprep.mubr.bf16.mxu0 0
        %2525 = vmatmul.mubr.bf16.gmra.mxu0 %v2415
        %v2526 = vpop.f32.mrf.mxu0
        %v2527 = vadd.f32 0.0, %v2526
        %v2528 = vpop.f32.mrf.mxu0
        %v2529 = vpop.f32.mrf.mxu0
        %v2530 = vadd.f32 0.0, %v2529
        %v2531 = vpop.f32.mrf.mxu0
        %2532 = vdwg.mxu0
        %v2533 = vadd.f32 %v2362, %v2503
        %v2534 = vadd.f32 %v2363, %v2506
        %v2535 = vadd.f32 %v2364, %v2511
        %v2536 = vadd.f32 %v2365, %v2514
        %v2537 = vadd.f32 %v2366, %v2519
        %v2538 = vadd.f32 %v2367, %v2522
        %v2539 = vadd.f32 %v2368, %v2527
        %v2540 = vadd.f32 %v2369, %v2530
        %s2541 = scalar_lea.vmem [#allocation2], 88
        %v2542 = vld [vmem:[%s2541] sm:$0xf]
        %v2543 = vld [vmem:[%s2541 + $0x8] sm:$0xf]
        %v2544 = vld [vmem:[%s2541 + $0x10] sm:$0xf]
        %v2545 = vld [vmem:[%s2541 + $0x18] sm:$0xf]
        %v2546 = vld [vmem:[%s2541 + $0x20] sm:$0xf]
        %v2547 = vld [vmem:[%s2541 + $0x28] sm:$0xf]
        %v2548 = vld [vmem:[%s2541 + $0x30] sm:$0xf]
        %v2549 = vld [vmem:[%s2541 + $0x38] sm:$0xf]
        %s2550 = scalar_lea.vmem %s862, 448
        %v2551 = vld [vmem:[%s2550] sm:$0xf]
        %v2552 = vld [vmem:[%s2550 + $0x4] sm:$0xf]
        %v2553 = vld [vmem:[%s2550 + $0x8] sm:$0xf]
        %v2554 = vld [vmem:[%s2550 + $0xc] sm:$0xf]
        %v2555 = vld [vmem:[%s2550 + $0x10] sm:$0xf]
        %v2556 = vld [vmem:[%s2550 + $0x14] sm:$0xf]
        %v2557 = vld [vmem:[%s2550 + $0x18] sm:$0xf]
        %v2558 = vld [vmem:[%s2550 + $0x1c] sm:$0xf]
        %v2559 = vld [vmem:[%s2550 + $0x20] sm:$0xf]
        %v2560 = vld [vmem:[%s2550 + $0x24] sm:$0xf]
        %v2561 = vld [vmem:[%s2550 + $0x28] sm:$0xf]
        %v2562 = vld [vmem:[%s2550 + $0x2c] sm:$0xf]
        %v2563 = vld [vmem:[%s2550 + $0x30] sm:$0xf]
        %v2564 = vld [vmem:[%s2550 + $0x34] sm:$0xf]
        %v2565 = vld [vmem:[%s2550 + $0x38] sm:$0xf]
        %v2566 = vld [vmem:[%s2550 + $0x3c] sm:$0xf]
        %v2575 = vunpack.c.l.b16 %v2542
        %v2576 = vunpack.c.l.b16 %v2543
        %v2577 = vunpack.c.l.b16 %v2544
        %v2578 = vunpack.c.l.b16 %v2545
        %v2579 = vunpack.c.l.b16 %v2546
        %v2580 = vunpack.c.l.b16 %v2547
        %v2581 = vunpack.c.l.b16 %v2548
        %v2582 = vunpack.c.l.b16 %v2549
        %v2583 = vpack.c.b16 %v2576, %v2575
        %v2584 = vpack.c.b16 %v2578, %v2577
        %v2585 = vpack.c.b16 %v2580, %v2579
        %v2586 = vpack.c.b16 %v2582, %v2581
        %v2607 = vunpack.c.l.b16 %v2551
        %v2608 = vunpack.c.l.b16 %v2552
        %v2609 = vunpack.c.l.b16 %v2553
        %v2610 = vunpack.c.l.b16 %v2554
        %v2611 = vunpack.c.l.b16 %v2555
        %v2612 = vunpack.c.l.b16 %v2556
        %v2613 = vunpack.c.l.b16 %v2557
        %v2614 = vunpack.c.l.b16 %v2558
        %v2615 = vunpack.c.l.b16 %v2559
        %v2616 = vunpack.c.l.b16 %v2560
        %v2617 = vunpack.c.l.b16 %v2561
        %v2618 = vunpack.c.l.b16 %v2562
        %v2619 = vunpack.c.l.b16 %v2563
        %v2620 = vunpack.c.l.b16 %v2564
        %v2621 = vunpack.c.l.b16 %v2565
        %v2622 = vunpack.c.l.b16 %v2566
        %v2623 = vpack.c.b16 %v2608, %v2607
        %v2624 = vpack.c.b16 %v2610, %v2609
        %v2625 = vpack.c.b16 %v2612, %v2611
        %v2626 = vpack.c.b16 %v2614, %v2613
        %v2627 = vpack.c.b16 %v2616, %v2615
        %v2628 = vpack.c.b16 %v2618, %v2617
        %v2629 = vpack.c.b16 %v2620, %v2619
        %v2630 = vpack.c.b16 %v2622, %v2621
        %2639 = vmatprep.subr.bf16.mxu0 0
        %2640 = vmatpush1.bf16.msra.mxu0 %v2630
        %2641 = vmatprep.subr.bf16.mxu0 0
        %2642 = vmatpush1.bf16.msra.mxu0 %v2629
        %2643 = vmatprep.subr.bf16.mxu0 0
        %2644 = vmatpush1.bf16.msra.mxu0 %v2628
        %2645 = vmatprep.subr.bf16.mxu0 0
        %2646 = vmatpush1.bf16.msra.mxu0 %v2627
        %2647 = vmatprep.subr.bf16.mxu0 0
        %2648 = vmatpush1.bf16.msra.mxu0 %v2626
        %2649 = vmatprep.subr.bf16.mxu0 0
        %2650 = vmatpush1.bf16.msra.mxu0 %v2625
        %2651 = vmatprep.subr.bf16.mxu0 0
        %2652 = vmatpush1.bf16.msra.mxu0 %v2624
        %2653 = vmatprep.subr.bf16.mxu0 0
        %2654 = vmatpush1.bf16.msra.mxu0 %v2623
        %2655 = vmatprep.subr.bf16.mxu0 0
        %2656 = vmatpush2.bf16.msra.mxu0 0
        %2657 = vmatprep.subr.bf16.mxu0 0
        %2658 = vmatpush2.bf16.msra.mxu0 0
        %2659 = vmatprep.subr.bf16.mxu0 0
        %2660 = vmatpush2.bf16.msra.mxu0 0
        %2661 = vmatprep.subr.bf16.mxu0 0
        %2662 = vmatpush2.bf16.msra.mxu0 0
        %2663 = vmatprep.subr.bf16.mxu0 0
        %2664 = vmatpush2.bf16.msra.mxu0 0
        %2665 = vmatprep.subr.bf16.mxu0 0
        %2666 = vmatpush2.bf16.msra.mxu0 0
        %2667 = vmatprep.subr.bf16.mxu0 0
        %2668 = vmatpush2.bf16.msra.mxu0 0
        %2669 = vmatprep.subr.bf16.mxu0 0
        %2670 = vmatpush2.bf16.msra.mxu0 0
        %2671 = vmatprep.mubr.bf16.mxu0 0
        %2672 = vmatmul.mubr.bf16.gmra.mxu0 %v2583
        %v2673 = vpop.f32.mrf.mxu0
        %v2674 = vadd.f32 0.0, %v2673
        %v2675 = vpop.f32.mrf.mxu0
        %v2676 = vpop.f32.mrf.mxu0
        %v2677 = vadd.f32 0.0, %v2676
        %v2678 = vpop.f32.mrf.mxu0
        %2679 = vmatprep.mubr.bf16.mxu0 0
        %2680 = vmatmul.mubr.bf16.gmra.mxu0 %v2584
        %v2681 = vpop.f32.mrf.mxu0
        %v2682 = vadd.f32 0.0, %v2681
        %v2683 = vpop.f32.mrf.mxu0
        %v2684 = vpop.f32.mrf.mxu0
        %v2685 = vadd.f32 0.0, %v2684
        %v2686 = vpop.f32.mrf.mxu0
        %2687 = vmatprep.mubr.bf16.mxu0 0
        %2688 = vmatmul.mubr.bf16.gmra.mxu0 %v2585
        %v2689 = vpop.f32.mrf.mxu0
        %v2690 = vadd.f32 0.0, %v2689
        %v2691 = vpop.f32.mrf.mxu0
        %v2692 = vpop.f32.mrf.mxu0
        %v2693 = vadd.f32 0.0, %v2692
        %v2694 = vpop.f32.mrf.mxu0
        %2695 = vmatprep.mubr.bf16.mxu0 0
        %2696 = vmatmul.mubr.bf16.gmra.mxu0 %v2586
        %v2697 = vpop.f32.mrf.mxu0
        %v2698 = vadd.f32 0.0, %v2697
        %v2699 = vpop.f32.mrf.mxu0
        %v2700 = vpop.f32.mrf.mxu0
        %v2701 = vadd.f32 0.0, %v2700
        %v2702 = vpop.f32.mrf.mxu0
        %2703 = vdwg.mxu0
        %v2704 = vadd.f32 %v2533, %v2674
        %v2705 = vadd.f32 %v2534, %v2677
        %v2706 = vadd.f32 %v2535, %v2682
        %v2707 = vadd.f32 %v2536, %v2685
        %v2708 = vadd.f32 %v2537, %v2690
        %v2709 = vadd.f32 %v2538, %v2693
        %v2710 = vadd.f32 %v2539, %v2698
        %v2711 = vadd.f32 %v2540, %v2701
        %v2712 = vld [vmem:[%s2370] sm:$0xf]
        %v2713 = vld [vmem:[%s2370 + $0x4] sm:$0x1]
        %v2714 = vld [vmem:[%s2370 + $0x8] sm:$0xf]
        %v2715 = vld [vmem:[%s2370 + $0xc] sm:$0x1]
        %v2716 = vld [vmem:[%s2370 + $0x10] sm:$0xf]
        %v2717 = vld [vmem:[%s2370 + $0x14] sm:$0x1]
        %v2718 = vld [vmem:[%s2370 + $0x18] sm:$0xf]
        %v2719 = vld [vmem:[%s2370 + $0x1c] sm:$0x1]
        %v2720 = vld [vmem:[%s2370 + $0x20] sm:$0xf]
        %v2721 = vld [vmem:[%s2370 + $0x24] sm:$0x1]
        %v2722 = vld [vmem:[%s2370 + $0x28] sm:$0xf]
        %v2723 = vld [vmem:[%s2370 + $0x2c] sm:$0x1]
        %v2724 = vld [vmem:[%s2370 + $0x30] sm:$0xf]
        %v2725 = vld [vmem:[%s2370 + $0x34] sm:$0x1]
        %v2726 = vld [vmem:[%s2370 + $0x38] sm:$0xf]
        %v2727 = vld [vmem:[%s2370 + $0x3c] sm:$0x1]
        %v2729 = vshrl.u32 %v2712, 16
        %v2731 = vrot.slane %v2729, 4
        %v2732 = vshll.u32 %v2712, 16
        %v2734 = vrot.slane %v2732, 5
        %v2735 = vor.u32 %v2731, %v2734
        %v2736 = vrot.slane %v2735, 4
        %v2738 = vshll.u32 %v2713, 16
        %v2740 = vrot.slane %v2738, 5
        %v2741 = vsel %vm1479, %v2736, %v2740
        %v2743 = vshrl.u32 %v2714, 16
        %v2745 = vrot.slane %v2743, 4
        %v2746 = vshll.u32 %v2714, 16
        %v2748 = vrot.slane %v2746, 5
        %v2749 = vor.u32 %v2745, %v2748
        %v2750 = vrot.slane %v2749, 4
        %v2752 = vshll.u32 %v2715, 16
        %v2754 = vrot.slane %v2752, 5
        %v2755 = vsel %vm1479, %v2750, %v2754
        %v2757 = vshrl.u32 %v2716, 16
        %v2759 = vrot.slane %v2757, 4
        %v2760 = vshll.u32 %v2716, 16
        %v2762 = vrot.slane %v2760, 5
        %v2763 = vor.u32 %v2759, %v2762
        %v2764 = vrot.slane %v2763, 4
        %v2766 = vshll.u32 %v2717, 16
        %v2768 = vrot.slane %v2766, 5
        %v2769 = vsel %vm1479, %v2764, %v2768
        %v2771 = vshrl.u32 %v2718, 16
        %v2773 = vrot.slane %v2771, 4
        %v2774 = vshll.u32 %v2718, 16
        %v2776 = vrot.slane %v2774, 5
        %v2777 = vor.u32 %v2773, %v2776
        %v2778 = vrot.slane %v2777, 4
        %v2780 = vshll.u32 %v2719, 16
        %v2782 = vrot.slane %v2780, 5
        %v2783 = vsel %vm1479, %v2778, %v2782
        %v2785 = vshrl.u32 %v2720, 16
        %v2787 = vrot.slane %v2785, 4
        %v2788 = vshll.u32 %v2720, 16
        %v2790 = vrot.slane %v2788, 5
        %v2791 = vor.u32 %v2787, %v2790
        %v2792 = vrot.slane %v2791, 4
        %v2794 = vshll.u32 %v2721, 16
        %v2796 = vrot.slane %v2794, 5
        %v2797 = vsel %vm1479, %v2792, %v2796
        %v2799 = vshrl.u32 %v2722, 16
        %v2801 = vrot.slane %v2799, 4
        %v2802 = vshll.u32 %v2722, 16
        %v2804 = vrot.slane %v2802, 5
        %v2805 = vor.u32 %v2801, %v2804
        %v2806 = vrot.slane %v2805, 4
        %v2808 = vshll.u32 %v2723, 16
        %v2810 = vrot.slane %v2808, 5
        %v2811 = vsel %vm1479, %v2806, %v2810
        %v2813 = vshrl.u32 %v2724, 16
        %v2815 = vrot.slane %v2813, 4
        %v2816 = vshll.u32 %v2724, 16
        %v2818 = vrot.slane %v2816, 5
        %v2819 = vor.u32 %v2815, %v2818
        %v2820 = vrot.slane %v2819, 4
        %v2822 = vshll.u32 %v2725, 16
        %v2824 = vrot.slane %v2822, 5
        %v2825 = vsel %vm1479, %v2820, %v2824
        %v2827 = vshrl.u32 %v2726, 16
        %v2829 = vrot.slane %v2827, 4
        %v2830 = vshll.u32 %v2726, 16
        %v2832 = vrot.slane %v2830, 5
        %v2833 = vor.u32 %v2829, %v2832
        %v2834 = vrot.slane %v2833, 4
        %v2836 = vshll.u32 %v2727, 16
        %v2838 = vrot.slane %v2836, 5
        %v2839 = vsel %vm1479, %v2834, %v2838
        %s2840 = scalar_lea.vmem %s862, 512
        %v2841 = vld [vmem:[%s2840] sm:$0xf]
        %v2842 = vld [vmem:[%s2840 + $0x4] sm:$0xf]
        %v2843 = vld [vmem:[%s2840 + $0x8] sm:$0xf]
        %v2844 = vld [vmem:[%s2840 + $0xc] sm:$0xf]
        %v2845 = vld [vmem:[%s2840 + $0x10] sm:$0xf]
        %v2846 = vld [vmem:[%s2840 + $0x14] sm:$0xf]
        %v2847 = vld [vmem:[%s2840 + $0x18] sm:$0xf]
        %v2848 = vld [vmem:[%s2840 + $0x1c] sm:$0xf]
        %v2849 = vld [vmem:[%s2840 + $0x20] sm:$0xf]
        %v2850 = vld [vmem:[%s2840 + $0x24] sm:$0xf]
        %v2851 = vld [vmem:[%s2840 + $0x28] sm:$0xf]
        %v2852 = vld [vmem:[%s2840 + $0x2c] sm:$0xf]
        %v2853 = vld [vmem:[%s2840 + $0x30] sm:$0xf]
        %v2854 = vld [vmem:[%s2840 + $0x34] sm:$0xf]
        %v2855 = vld [vmem:[%s2840 + $0x38] sm:$0xf]
        %v2856 = vld [vmem:[%s2840 + $0x3c] sm:$0xf]
        %v2857 = vunpack.c.l.b16 %v2741
        %v2858 = vunpack.c.l.b16 %v2755
        %v2859 = vunpack.c.l.b16 %v2769
        %v2860 = vunpack.c.l.b16 %v2783
        %v2861 = vunpack.c.l.b16 %v2797
        %v2862 = vunpack.c.l.b16 %v2811
        %v2863 = vunpack.c.l.b16 %v2825
        %v2864 = vunpack.c.l.b16 %v2839
        %v2865 = vpack.c.b16 %v2858, %v2857
        %v2866 = vpack.c.b16 %v2860, %v2859
        %v2867 = vpack.c.b16 %v2862, %v2861
        %v2868 = vpack.c.b16 %v2864, %v2863
        %v2889 = vunpack.c.l.b16 %v2841
        %v2890 = vunpack.c.l.b16 %v2842
        %v2891 = vunpack.c.l.b16 %v2843
        %v2892 = vunpack.c.l.b16 %v2844
        %v2893 = vunpack.c.l.b16 %v2845
        %v2894 = vunpack.c.l.b16 %v2846
        %v2895 = vunpack.c.l.b16 %v2847
        %v2896 = vunpack.c.l.b16 %v2848
        %v2897 = vunpack.c.l.b16 %v2849
        %v2898 = vunpack.c.l.b16 %v2850
        %v2899 = vunpack.c.l.b16 %v2851
        %v2900 = vunpack.c.l.b16 %v2852
        %v2901 = vunpack.c.l.b16 %v2853
        %v2902 = vunpack.c.l.b16 %v2854
        %v2903 = vunpack.c.l.b16 %v2855
        %v2904 = vunpack.c.l.b16 %v2856
        %v2905 = vpack.c.b16 %v2890, %v2889
        %v2906 = vpack.c.b16 %v2892, %v2891
        %v2907 = vpack.c.b16 %v2894, %v2893
        %v2908 = vpack.c.b16 %v2896, %v2895
        %v2909 = vpack.c.b16 %v2898, %v2897
        %v2910 = vpack.c.b16 %v2900, %v2899
        %v2911 = vpack.c.b16 %v2902, %v2901
        %v2912 = vpack.c.b16 %v2904, %v2903
        %2921 = vmatprep.subr.bf16.mxu0 0
        %2922 = vmatpush1.bf16.msra.mxu0 %v2912
        %2923 = vmatprep.subr.bf16.mxu0 0
        %2924 = vmatpush1.bf16.msra.mxu0 %v2911
        %2925 = vmatprep.subr.bf16.mxu0 0
        %2926 = vmatpush1.bf16.msra.mxu0 %v2910
        %2927 = vmatprep.subr.bf16.mxu0 0
        %2928 = vmatpush1.bf16.msra.mxu0 %v2909
        %2929 = vmatprep.subr.bf16.mxu0 0
        %2930 = vmatpush1.bf16.msra.mxu0 %v2908
        %2931 = vmatprep.subr.bf16.mxu0 0
        %2932 = vmatpush1.bf16.msra.mxu0 %v2907
        %2933 = vmatprep.subr.bf16.mxu0 0
        %2934 = vmatpush1.bf16.msra.mxu0 %v2906
        %2935 = vmatprep.subr.bf16.mxu0 0
        %2936 = vmatpush1.bf16.msra.mxu0 %v2905
        %2937 = vmatprep.subr.bf16.mxu0 0
        %2938 = vmatpush2.bf16.msra.mxu0 0
        %2939 = vmatprep.subr.bf16.mxu0 0
        %2940 = vmatpush2.bf16.msra.mxu0 0
        %2941 = vmatprep.subr.bf16.mxu0 0
        %2942 = vmatpush2.bf16.msra.mxu0 0
        %2943 = vmatprep.subr.bf16.mxu0 0
        %2944 = vmatpush2.bf16.msra.mxu0 0
        %2945 = vmatprep.subr.bf16.mxu0 0
        %2946 = vmatpush2.bf16.msra.mxu0 0
        %2947 = vmatprep.subr.bf16.mxu0 0
        %2948 = vmatpush2.bf16.msra.mxu0 0
        %2949 = vmatprep.subr.bf16.mxu0 0
        %2950 = vmatpush2.bf16.msra.mxu0 0
        %2951 = vmatprep.subr.bf16.mxu0 0
        %2952 = vmatpush2.bf16.msra.mxu0 0
        %2953 = vmatprep.mubr.bf16.mxu0 0
        %2954 = vmatmul.mubr.bf16.gmra.mxu0 %v2865
        %v2955 = vpop.f32.mrf.mxu0
        %v2956 = vadd.f32 0.0, %v2955
        %v2957 = vpop.f32.mrf.mxu0
        %v2958 = vpop.f32.mrf.mxu0
        %v2959 = vadd.f32 0.0, %v2958
        %v2960 = vpop.f32.mrf.mxu0
        %2961 = vmatprep.mubr.bf16.mxu0 0
        %2962 = vmatmul.mubr.bf16.gmra.mxu0 %v2866
        %v2963 = vpop.f32.mrf.mxu0
        %v2964 = vadd.f32 0.0, %v2963
        %v2965 = vpop.f32.mrf.mxu0
        %v2966 = vpop.f32.mrf.mxu0
        %v2967 = vadd.f32 0.0, %v2966
        %v2968 = vpop.f32.mrf.mxu0
        %2969 = vmatprep.mubr.bf16.mxu0 0
        %2970 = vmatmul.mubr.bf16.gmra.mxu0 %v2867
        %v2971 = vpop.f32.mrf.mxu0
        %v2972 = vadd.f32 0.0, %v2971
        %v2973 = vpop.f32.mrf.mxu0
        %v2974 = vpop.f32.mrf.mxu0
        %v2975 = vadd.f32 0.0, %v2974
        %v2976 = vpop.f32.mrf.mxu0
        %2977 = vmatprep.mubr.bf16.mxu0 0
        %2978 = vmatmul.mubr.bf16.gmra.mxu0 %v2868
        %v2979 = vpop.f32.mrf.mxu0
        %v2980 = vadd.f32 0.0, %v2979
        %v2981 = vpop.f32.mrf.mxu0
        %v2982 = vpop.f32.mrf.mxu0
        %v2983 = vadd.f32 0.0, %v2982
        %v2984 = vpop.f32.mrf.mxu0
        %2985 = vdwg.mxu0
        %v2986 = vadd.f32 %v2704, %v2956
        %v2987 = vadd.f32 %v2705, %v2959
        %v2988 = vadd.f32 %v2706, %v2964
        %v2989 = vadd.f32 %v2707, %v2967
        %v2990 = vadd.f32 %v2708, %v2972
        %v2991 = vadd.f32 %v2709, %v2975
        %v2992 = vadd.f32 %v2710, %v2980
        %v2993 = vadd.f32 %v2711, %v2983
        %2994 = vst [vmem:[%s874] sm:$0xff] %v2986
        %2995 = vst [vmem:[%s874 + $0x8] sm:$0xff] %v2987
        %2996 = vst [vmem:[%s874 + $0x10] sm:$0xff] %v2988
        %2997 = vst [vmem:[%s874 + $0x18] sm:$0xff] %v2989
        %2998 = vst [vmem:[%s874 + $0x20] sm:$0xff] %v2990
        %2999 = vst [vmem:[%s874 + $0x28] sm:$0xff] %v2991
        %3000 = vst [vmem:[%s874 + $0x30] sm:$0xff] %v2992
        %3001 = vst [vmem:[%s874 + $0x38] sm:$0xff] %v2993
        %v3002 = vadd.f32 %v2986, %v2987
        %v3003 = vadd.f32 %v3002, %v2988
        %v3004 = vadd.f32 %v3003, %v2989
        %v3005 = vadd.f32 %v3004, %v2990
        %v3006 = vadd.f32 %v3005, %v2991
        %v3007 = vadd.f32 %v3006, %v2992
        %v3008 = vadd.f32 %v3007, %v2993
        %v3009 = vrot.slane %v3008, 4
        %v3010 = vadd.f32 %v3008, %v3009
        %v3011 = vrot.slane %v3010, 2
        %v3012 = vadd.f32 %v3010, %v3011
        %v3013 = vrot.slane %v3012, 1
        %v3014 = vadd.f32 %v3012, %v3013
        %3015 = vst [vmem:[%s882] sm:$0x1] %v3014
        %v3016 = vmul.f32 %v2986, %v2986
        %v3017 = vmul.f32 %v2987, %v2987
        %v3018 = vmul.f32 %v2988, %v2988
        %v3019 = vmul.f32 %v2989, %v2989
        %v3020 = vmul.f32 %v2990, %v2990
        %v3021 = vmul.f32 %v2991, %v2991
        %v3022 = vmul.f32 %v2992, %v2992
        %v3023 = vmul.f32 %v2993, %v2993
        %v3024 = vadd.f32 %v3016, %v3017
        %v3025 = vadd.f32 %v3024, %v3018
        %v3026 = vadd.f32 %v3025, %v3019
        %v3027 = vadd.f32 %v3026, %v3020
        %v3028 = vadd.f32 %v3027, %v3021
        %v3029 = vadd.f32 %v3028, %v3022
        %v3030 = vadd.f32 %v3029, %v3023
        %v3031 = vrot.slane %v3030, 4
        %v3032 = vadd.f32 %v3030, %v3031
        %v3033 = vrot.slane %v3032, 2
        %v3034 = vadd.f32 %v3032, %v3033
        %v3035 = vrot.slane %v3034, 1
        %v3036 = vadd.f32 %v3034, %v3035
        %3037 = vst [vmem:[%s890] sm:$0x1] %v3036
        %s3038 = smul.u32 8, %s23
        %p3039 = scmp.lt.s32.totalorder %s22, 1
        %s3040 = scalar_select %p3039, %s22, 1
        %p3041 = scmp.lt.s32.totalorder %s3038, 7
        %s3042 = scalar_select %p3041, %s3038, 7
        %p3043 = scmp.lt.s32.totalorder %s24, 0
        %s3044 = scalar_select %p3043, %s24, 0
        %s3045 = sadd.s32 %s3044, %s3042
        %s3046 = smul.addr %s3040, 8
        %s3047 = sadd.s32 %s3045, %s3046
        %s3048 = smul.addr %s3047, 8
        %s3049 = scalar_lea.vmem %s3, %s3048
        %s3050 = sadd.s32 %s22, %s23
        %p3051 = scmp.lt.s32.totalorder %s3050, 1
        %s3052 = scalar_select %p3051, %s3050, 1
        %p3053 = scmp.lt.s32.totalorder %s24, 0
        %s3054 = scalar_select %p3053, %s24, 0
        %s3055 = sadd.s32 %s3054, %s3052
        %s3056 = scalar_lea.vmem %s4, %s3055
        %s3057 = sadd.s32 %s22, %s23
        %p3058 = scmp.lt.s32.totalorder %s3057, 1
        %s3059 = scalar_select %p3058, %s3057, 1
        %p3060 = scmp.lt.s32.totalorder %s24, 0
        %s3061 = scalar_select %p3060, %s24, 0
        %s3062 = sadd.s32 %s3061, %s3059
        %s3063 = scalar_lea.vmem %s5, %s3062
        // Predicated region
        $region136: #{block_group_forward.10} parent=126 // pred_check
          %p3064 = pneg %p144
        $region137: #{block_group_forward.10} parent=126 // pred_check_branch
          %3066 = sbr.rel (%p3064) target = $region139
        $region138: #{block_group_forward.10} parent=126 // pred_region
          %s3067 = smul.u32 8, %s23
        $region139: #{block_group_forward.10} parent=126 // pred_fallthru
          _
        // Predicated region
        $region140: #{block_group_forward.10} parent=126 // pred_check
          %p3068 = pneg %p174
        $region141: #{block_group_forward.10} parent=126 // pred_check_branch
          %3070 = sbr.rel (%p3068) target = $region143
        $region142: #{block_group_forward.10} parent=126 // pred_region
          %s3071 = sadd.s32 %s22, %s23
        $region143: #{block_group_forward.10} parent=126 // pred_fallthru
          _
        // Predicated region
        $region144: #{block_group_forward.10} parent=126 // pred_check
          %p3072 = pneg %p204
        $region145: #{block_group_forward.10} parent=126 // pred_check_branch
          %3074 = sbr.rel (%p3072) target = $region147
        $region146: #{block_group_forward.10} parent=126 // pred_region
          %s3075 = sadd.s32 %s22, %s23
        $region147: #{block_group_forward.10} parent=126 // pred_fallthru
          _
      $region127: #{block_group_forward.10} parent=5 // pred_fallthru
        _
      %p3076 = scmp.le.s32.totalorder 2, %s12
      // Predicated region
      $region148: #{block_group_forward.10} parent=5 // pred_check
        %p3077 = pneg %p3076
      $region149: #{block_group_forward.10} parent=5 // pred_check_branch
        %3079 = sbr.rel (%p3077) target = $region151
      $region150: #{block_group_forward.10} parent=5 // pred_region
        %s3080 = ssub.s32 %s12, 2
        // Predicated region
        $region152: #{block_group_forward.10} parent=150 // pred_check
          %p3081 = pneg %p150
        $region153: #{block_group_forward.10} parent=150 // pred_check_branch
          %3083 = sbr.rel (%p3081) target = $region155
        $region154: #{block_group_forward.10} parent=150 // pred_region
          %s3084 = smul.u32 8, %s26
          %p3085 = scmp.lt.s32.totalorder %s25, 1
          %s3086 = scalar_select %p3085, %s25, 1
          %p3087 = scmp.lt.s32.totalorder %s3084, 7
          %s3088 = scalar_select %p3087, %s3084, 7
          %p3089 = scmp.lt.s32.totalorder %s27, 0
          %s3090 = scalar_select %p3089, %s27, 0
          %s3091 = sadd.s32 %s3090, %s3088
          %s3092 = smul.addr %s3086, 8
          %s3093 = sadd.s32 %s3091, %s3092
          %s3094 = smul.addr %s3093, 8
          %s3095 = scalar_lea.vmem %s3, %s3094
        $region155: #{block_group_forward.10} parent=150 // pred_fallthru
          _
        // Predicated region
        $region156: #{block_group_forward.10} parent=150 // pred_check
          %p3096 = pneg %p180
        $region157: #{block_group_forward.10} parent=150 // pred_check_branch
          %3098 = sbr.rel (%p3096) target = $region159
        $region158: #{block_group_forward.10} parent=150 // pred_region
          %s3099 = sadd.s32 %s25, %s26
          %p3100 = scmp.lt.s32.totalorder %s3099, 1
          %s3101 = scalar_select %p3100, %s3099, 1
          %p3102 = scmp.lt.s32.totalorder %s27, 0
          %s3103 = scalar_select %p3102, %s27, 0
          %s3104 = sadd.s32 %s3103, %s3101
          %s3105 = scalar_lea.vmem %s4, %s3104
        $region159: #{block_group_forward.10} parent=150 // pred_fallthru
          _
        // Predicated region
        $region160: #{block_group_forward.10} parent=150 // pred_check
          %p3106 = pneg %p210
        $region161: #{block_group_forward.10} parent=150 // pred_check_branch
          %3108 = sbr.rel (%p3106) target = $region163
        $region162: #{block_group_forward.10} parent=150 // pred_region
          %s3109 = sadd.s32 %s25, %s26
          %p3110 = scmp.lt.s32.totalorder %s3109, 1
          %s3111 = scalar_select %p3110, %s3109, 1
          %p3112 = scmp.lt.s32.totalorder %s27, 0
          %s3113 = scalar_select %p3112, %s27, 0
          %s3114 = sadd.s32 %s3113, %s3111
          %s3115 = scalar_lea.vmem %s5, %s3114
        $region163: #{block_group_forward.10} parent=150 // pred_fallthru
          _
      $region151: #{block_group_forward.10} parent=5 // pred_fallthru
        _
    $region6: #{block_group_forward.10} parent=1 // loop_footer
      %s16 = sadd.s32 1, %s12
    $region7: #{block_group_forward.10} parent=1 // loop_footer_branch
      %11 = sbr.rel target = $region3
    $region8: #{block_group_forward.10} parent=1 // loop_exit
      _

// kernel: block_group_forward.15
$region0: #{block_group_forward.15}
  #allocation0 [shape = 'u32[]', space=smem, size = 0x4, offset = 0x4, fixed_abs, tag = 'smem constant byte address 0x4 - core index']
  #allocation1 [shape = 'u32[144,128]{1,0:T(1,128)}', space=vmem, size = 0x12000, scoped, tag = 'internal scratch']
  #allocation2 [shape = 'bf16[1,10,10,128]{3,2,1,0:T(8,128)(2,1)}', space=vmem, size = 0xa000, scoped, tag = 'scratch operand']
  %s0 = inlined_call_operand.vmem [shape: bf16[2,10,10,128], index: 0, kind: input, shape index: {}, may-alias: {0,1}]
  %s1 = inlined_call_operand.vmem [shape: bf16[2,10,10,128], index: 1, kind: input, shape index: {}, may-alias: {0,1}]
  %s2 = inlined_call_operand.vmem [shape: bf16[9,128,128], index: 2, kind: input, shape index: {}]
  %s3 = inlined_call_operand.vmem [shape: f32[2,8,8,128], index: 3, kind: output, shape index: {0}]
  %s4 = inlined_call_operand.vmem [shape: f32[2,1,128], index: 4, kind: output, shape index: {1}]
  %s5 = inlined_call_operand.vmem [shape: f32[2,1,128], index: 5, kind: output, shape index: {2}]
  %6 = xla_tuple %s3, %s4, %s5
  %s7 = sld [smem:[#allocation0]]
  $region61: #{block_group_forward.15} parent=0
    _
  %s9 = ssub.s32 1, %s7
  %s10 = scalar_select 0, %s9, %s7
  loop: start=0, step=1, limit=4
  $region2: #{block_group_forward.15} parent=0 // loop_pre_header
    _
  $region3: #{block_group_forward.15} parent=0 // loop_header
    %s12 = sphi 0, %s16
    %p13 = scmp.ge.s32.totalorder %s12, 4
    %s19 = sphi 0, %s38
    %s20 = sphi 0, %s34
    %s21 = sphi 0, %s30
    %s22 = sphi 0, %s19
    %s23 = sphi 0, %s20
    %s24 = sphi 0, %s21
    %s25 = sphi 0, %s22
    %s26 = sphi 0, %s23
    %s27 = sphi 0, %s24
    %s43 = sphi 0, %s45
    %s46 = sphi 0, %s43
    %s47 = sphi 0, %s46
    %s63 = sphi 0, %s47
    %s75 = sphi 0, %s77
    %s78 = sphi 0, %s75
    %s79 = sphi 0, %s78
    %s95 = sphi 0, %s79
    %s101 = sphi 0, %s103
    %s104 = sphi 0, %s101
    %s105 = sphi 0, %s104
    %s121 = sphi 0, %s105
    %s131 = sphi 0, %s133
    %s134 = sphi 0, %s131
    %s135 = sphi 0, %s134
    %s151 = sphi 0, %s135
    %s161 = sphi 0, %s163
    %s164 = sphi 0, %s161
    %s165 = sphi 0, %s164
    %s181 = sphi 0, %s165
    %s191 = sphi 0, %s193
    %s194 = sphi 0, %s191
    %s195 = sphi 0, %s194
    %s211 = sphi 0, %s195
  $region4: #{block_group_forward.15} parent=0 // loop_header_branch
    %15 = sbr.rel (%p13) target = $region8
  $region5: #{block_group_forward.15} parent=0 // loop_body
    %s17 = ssub.s32 %s12, 1
    %s18 = ssub.s32 %s12, 2
    %s28 = sadd.s32 1, %s21
    %p29 = scmp.ge.s32.totalorder %s28, 1
    %s30 = scalar_select %p29, 0, %s28
    %s31 = sadd.s32 1, %s20
    %s32 = scalar_select %p29, %s31, %s20
    %p33 = scmp.ge.s32.totalorder %s32, 1
    %s34 = scalar_select %p33, 0, %s32
    %s35 = sadd.s32 1, %s19
    %s36 = scalar_select %p33, %s35, %s19
    %p37 = scmp.ge.s32.totalorder %s36, 2
    %s38 = scalar_select %p37, 0, %s36
    %s39 = ssub.s32 %s19, %s38
    %s40 = ssub.s32 %s20, %s34
    %s41 = sor.u32 %s39, %s40
    %p42 = scmp.eq.s32.totalorder %s41, 0
    %s44 = sadd.s32 %s43, 1
    %s45 = scalar_select %p42, %s43, %s44
    %p48 = pneg %p42
    %p49 = scmp.eq.s32.totalorder %s12, 1
    %p50 = por %p48, %p49
    %p51 = scmp.ne.s32.totalorder %s43, %s46
    %p52 = scmp.eq.s32.totalorder %s12, 0
    %p53 = por %p51, %p52
    %p54 = scmp.ne.s32.totalorder %s43, %s46
    %p55 = scmp.eq.s32.totalorder %s17, 1
    %p56 = por %p54, %p55
    %p57 = scmp.ne.s32.totalorder %s46, %s47
    %p58 = scmp.eq.s32.totalorder %s17, 0
    %p59 = por %p57, %p58
    %p60 = scmp.ne.s32.totalorder %s46, %s47
    %p61 = scmp.eq.s32.totalorder %s18, 1
    %p62 = por %p60, %p61
    %p64 = scmp.ne.s32.totalorder %s47, %s63
    %p65 = scmp.eq.s32.totalorder %s18, 0
    %p66 = por %p64, %p65
    %s67 = sadd.s32 %s20, 1
    %s68 = smul.u32 %s67, 4
    %s69 = sadd.s32 %s34, 1
    %s70 = smul.u32 %s69, 4
    %s71 = ssub.s32 %s19, %s38
    %s72 = ssub.s32 %s68, %s70
    %s73 = sor.u32 %s71, %s72
    %p74 = scmp.eq.s32.totalorder %s73, 0
    %s76 = sadd.s32 %s75, 1
    %s77 = scalar_select %p74, %s75, %s76
    %p80 = pneg %p74
    %p81 = scmp.eq.s32.totalorder %s12, 1
    %p82 = por %p80, %p81
    %p83 = scmp.ne.s32.totalorder %s75, %s78
    %p84 = scmp.eq.s32.totalorder %s12, 0
    %p85 = por %p83, %p84
    %p86 = scmp.ne.s32.totalorder %s75, %s78
    %p87 = scmp.eq.s32.totalorder %s17, 1
    %p88 = por %p86, %p87
    %p89 = scmp.ne.s32.totalorder %s78, %s79
    %p90 = scmp.eq.s32.totalorder %s17, 0
    %p91 = por %p89, %p90
    %p92 = scmp.ne.s32.totalorder %s78, %s79
    %p93 = scmp.eq.s32.totalorder %s18, 1
    %p94 = por %p92, %p93
    %p96 = scmp.ne.s32.totalorder %s79, %s95
    %p97 = scmp.eq.s32.totalorder %s18, 0
    %p98 = por %p96, %p97
    %s99 = ssub.s32 %s21, %s30
    %p100 = scmp.eq.s32.totalorder %s99, 0
    %s102 = sadd.s32 %s101, 1
    %s103 = scalar_select %p100, %s101, %s102
    %p106 = pneg %p100
    %p107 = scmp.eq.s32.totalorder %s12, 1
    %p108 = por %p106, %p107
    %p109 = scmp.ne.s32.totalorder %s101, %s104
    %p110 = scmp.eq.s32.totalorder %s12, 0
    %p111 = por %p109, %p110
    %p112 = scmp.ne.s32.totalorder %s101, %s104
    %p113 = scmp.eq.s32.totalorder %s17, 1
    %p114 = por %p112, %p113
    %p115 = scmp.ne.s32.totalorder %s104, %s105
    %p116 = scmp.eq.s32.totalorder %s17, 0
    %p117 = por %p115, %p116
    %p118 = scmp.ne.s32.totalorder %s104, %s105
    %p119 = scmp.eq.s32.totalorder %s18, 1
    %p120 = por %p118, %p119
    %p122 = scmp.ne.s32.totalorder %s105, %s121
    %p123 = scmp.eq.s32.totalorder %s18, 0
    %p124 = por %p122, %p123
    %s125 = ssub.s32 %s19, %s38
    %s126 = ssub.s32 %s20, %s34
    %s127 = sor.u32 %s125, %s126
    %s128 = ssub.s32 %s21, %s30
    %s129 = sor.u32 %s127, %s128
    %p130 = scmp.eq.s32.totalorder %s129, 0
    %s132 = sadd.s32 %s131, 1
    %s133 = scalar_select %p130, %s131, %s132
    %p136 = pneg %p130
    %p137 = scmp.eq.s32.totalorder %s12, 1
    %p138 = por %p136, %p137
    %p139 = scmp.ne.s32.totalorder %s131, %s134
    %p140 = scmp.eq.s32.totalorder %s12, 0
    %p141 = por %p139, %p140
    %p142 = scmp.ne.s32.totalorder %s131, %s134
    %p143 = scmp.eq.s32.totalorder %s17, 1
    %p144 = por %p142, %p143
    %p145 = scmp.ne.s32.totalorder %s134, %s135
    %p146 = scmp.eq.s32.totalorder %s17, 0
    %p147 = por %p145, %p146
    %p148 = scmp.ne.s32.totalorder %s134, %s135
    %p149 = scmp.eq.s32.totalorder %s18, 1
    %p150 = por %p148, %p149
    %p152 = scmp.ne.s32.totalorder %s135, %s151
    %p153 = scmp.eq.s32.totalorder %s18, 0
    %p154 = por %p152, %p153
    %s155 = sadd.s32 %s19, %s20
    %s156 = sadd.s32 %s38, %s34
    %s157 = ssub.s32 %s155, %s156
    %s158 = ssub.s32 %s21, %s30
    %s159 = sor.u32 %s157, %s158
    %p160 = scmp.eq.s32.totalorder %s159, 0
    %s162 = sadd.s32 %s161, 1
    %s163 = scalar_select %p160, %s161, %s162
    %p166 = pneg %p160
    %p167 = scmp.eq.s32.totalorder %s12, 1
    %p168 = por %p166, %p167
    %p169 = scmp.ne.s32.totalorder %s161, %s164
    %p170 = scmp.eq.s32.totalorder %s12, 0
    %p171 = por %p169, %p170
    %p172 = scmp.ne.s32.totalorder %s161, %s164
    %p173 = scmp.eq.s32.totalorder %s17, 1
    %p174 = por %p172, %p173
    %p175 = scmp.ne.s32.totalorder %s164, %s165
    %p176 = scmp.eq.s32.totalorder %s17, 0
    %p177 = por %p175, %p176
    %p178 = scmp.ne.s32.totalorder %s164, %s165
    %p179 = scmp.eq.s32.totalorder %s18, 1
    %p180 = por %p178, %p179
    %p182 = scmp.ne.s32.totalorder %s165, %s181
    %p183 = scmp.eq.s32.totalorder %s18, 0
    %p184 = por %p182, %p183
    %s185 = sadd.s32 %s19, %s20
    %s186 = sadd.s32 %s38, %s34
    %s187 = ssub.s32 %s185, %s186
    %s188 = ssub.s32 %s21, %s30
    %s189 = sor.u32 %s187, %s188
    %p190 = scmp.eq.s32.totalorder %s189, 0
    %s192 = sadd.s32 %s191, 1
    %s193 = scalar_select %p190, %s191, %s192
    %p196 = pneg %p190
    %p197 = scmp.eq.s32.totalorder %s12, 1
    %p198 = por %p196, %p197
    %p199 = scmp.ne.s32.totalorder %s191, %s194
    %p200 = scmp.eq.s32.totalorder %s12, 0
    %p201 = por %p199, %p200
    %p202 = scmp.ne.s32.totalorder %s191, %s194
    %p203 = scmp.eq.s32.totalorder %s17, 1
    %p204 = por %p202, %p203
    %p205 = scmp.ne.s32.totalorder %s194, %s195
    %p206 = scmp.eq.s32.totalorder %s17, 0
    %p207 = por %p205, %p206
    %p208 = scmp.ne.s32.totalorder %s194, %s195
    %p209 = scmp.eq.s32.totalorder %s18, 1
    %p210 = por %p208, %p209
    %p212 = scmp.ne.s32.totalorder %s195, %s211
    %p213 = scmp.eq.s32.totalorder %s18, 0
    %p214 = por %p212, %p213
    %p215 = scmp.le.s32.totalorder 1, %s12
    %p216 = scmp.lt.s32.totalorder %s12, 3
    %p217 = pnand %p215, %p216
    %p218 = pneg %p217
    // Predicated region
    $region9: #{block_group_forward.15} parent=5 // pred_check
      _
    $region10: #{block_group_forward.15} parent=5 // pred_check_branch
      %220 = sbr.rel (%p217) target = $region12
    $region11: #{block_group_forward.15} parent=5 // pred_region
      %s221 = ssub.s32 %s12, 1
      // Predicated region
      $region13: #{block_group_forward.15} parent=11 // pred_check
        %p222 = pneg %p117
      $region14: #{block_group_forward.15} parent=11 // pred_check_branch
        %224 = sbr.rel (%p222) target = $region16
      $region15: #{block_group_forward.15} parent=11 // pred_region
        %p225 = scmp.lt.s32.totalorder %s24, 0
        %s226 = scalar_select %p225, %s24, 0
        %s227 = smul.addr %s226, 4
        %s228 = scalar_lea.vmem %s2, %s227
      $region16: #{block_group_forward.15} parent=11 // pred_fallthru
        _
    $region12: #{block_group_forward.15} parent=5 // pred_fallthru
      _
    %p229 = scmp.lt.s32.totalorder %s12, 2
    // Predicated region
    $region17: #{block_group_forward.15} parent=5 // pred_check
      %p230 = pneg %p229
    $region18: #{block_group_forward.15} parent=5 // pred_check_branch
      %232 = sbr.rel (%p230) target = $region20
    $region19: #{block_group_forward.15} parent=5 // pred_region
      // Predicated region
      $region21: #{block_group_forward.15} parent=19 // pred_check
        %p233 = pneg %p53
      $region22: #{block_group_forward.15} parent=19 // pred_check_branch
        %235 = sbr.rel (%p233) target = $region24
      $region23: #{block_group_forward.15} parent=19 // pred_region
        %s236 = smul.u32 8, %s20
        %s237 = ssub.s32 10, %s236
        %p238 = scmp.lt.s32.totalorder %s237, 8
        %s239 = scalar_select %p238, %s237, 8
        %s240 = smul.u32 64, %s239
        %s241 = smul.u32 %s240, 2
        %p242 = scmp.lt.s32.totalorder %s19, 1
        %s243 = scalar_select %p242, %s19, 1
        %p244 = scmp.lt.s32.totalorder %s236, 9
        %s245 = scalar_select %p244, %s236, 9
        %s246 = smul.addr %s245, 2
        %s247 = smul.addr %s243, 20
        %s248 = sadd.s32 %s246, %s247
        %s249 = smul.addr %s248, 4
        %s250 = scalar_lea.vmem %s0, %s249
        %s251 = smul.u32 8, %s20
        %s252 = ssub.s32 10, %s251
        %p253 = scmp.lt.s32.totalorder %s252, 8
        %s254 = scalar_select %p253, %s252, 8
        %s255 = smul.u32 64, %s254
        %s256 = smul.u32 %s255, 2
      $region24: #{block_group_forward.15} parent=19 // pred_fallthru
        _
      // Predicated region
      $region25: #{block_group_forward.15} parent=19 // pred_check
        %p257 = pneg %p85
      $region26: #{block_group_forward.15} parent=19 // pred_check_branch
        %259 = sbr.rel (%p257) target = $region28
      $region27: #{block_group_forward.15} parent=19 // pred_region
        %s260 = sadd.s32 %s20, 1
        %s261 = smul.u32 %s260, 4
        %s262 = smul.u32 2, %s261
        %p263 = scmp.lt.s32.totalorder %s19, 1
        %s264 = scalar_select %p263, %s19, 1
        %p265 = scmp.lt.s32.totalorder %s262, 9
        %s266 = scalar_select %p265, %s262, 9
        %s267 = smul.addr %s266, 2
        %s268 = smul.addr %s264, 20
        %s269 = sadd.s32 %s267, %s268
        %s270 = smul.addr %s269, 4
        %s271 = scalar_lea.vmem %s1, %s270
        %s272 = sadd.s32 %s20, 1
        %s273 = smul.u32 %s272, 4
        %s274 = smul.u32 2, %s273
      $region28: #{block_group_forward.15} parent=19 // pred_fallthru
        _
    $region20: #{block_group_forward.15} parent=5 // pred_fallthru
      _
    %p275 = scmp.le.s32.totalorder 1, %s12
    %p276 = scmp.lt.s32.totalorder %s12, 3
    %p277 = pnand %p275, %p276
    %p278 = pneg %p277
    // Predicated region
    $region29: #{block_group_forward.15} parent=5 // pred_check
      _
    $region30: #{block_group_forward.15} parent=5 // pred_check_branch
      %280 = sbr.rel (%p277) target = $region32
    $region31: #{block_group_forward.15} parent=5 // pred_region
      %s281 = ssub.s32 %s12, 1
      %s282 = smul.u32 8, %s23
      %s283 = ssub.s32 10, %s282
      %p284 = scmp.lt.s32.totalorder %s283, 8
      %s285 = scalar_select %p284, %s283, 8
      %s286 = smul.u32 64, %s285
      %s287 = smul.u32 %s286, 2
      %p288 = scmp.lt.s32.totalorder %s22, 1
      %s289 = scalar_select %p288, %s22, 1
      %p290 = scmp.lt.s32.totalorder %s282, 9
      %s291 = scalar_select %p290, %s282, 9
      %s292 = smul.addr %s291, 2
      %s293 = smul.addr %s289, 20
      %s294 = sadd.s32 %s292, %s293
      %s295 = smul.addr %s294, 4
      %s296 = scalar_lea.vmem %s0, %s295
      %p297 = pneg %p59
      %p298 = pneg %p56
      %s299 = sadd.s32 %s23, 1
      %s300 = smul.u32 %s299, 4
      %s301 = smul.u32 2, %s300
      %p302 = scmp.lt.s32.totalorder %s22, 1
      %s303 = scalar_select %p302, %s22, 1
      %p304 = scmp.lt.s32.totalorder %s301, 9
      %s305 = scalar_select %p304, %s301, 9
      %s306 = smul.addr %s305, 2
      %s307 = smul.addr %s303, 20
      %s308 = sadd.s32 %s306, %s307
      %s309 = smul.addr %s308, 4
      %s310 = scalar_lea.vmem %s1, %s309
      %p311 = pneg %p91
      %p312 = pneg %p88
      %p313 = scmp.lt.s32.totalorder %s24, 0
      %s314 = scalar_select %p313, %s24, 0
      %s315 = smul.addr %s314, 4
      %s316 = scalar_lea.vmem %s2, %s315
      %p317 = pneg %p117
      %p318 = pneg %p114
      %p319 = pneg %p147
      %p320 = pneg %p144
      %s321 = smul.u32 8, %s23
      %p322 = scmp.lt.s32.totalorder %s22, 1
      %s323 = scalar_select %p322, %s22, 1
      %p324 = scmp.lt.s32.totalorder %s321, 7
      %s325 = scalar_select %p324, %s321, 7
      %p326 = scmp.lt.s32.totalorder %s24, 0
      %s327 = scalar_select %p326, %s24, 0
      %s328 = sadd.s32 %s327, %s325
      %s329 = smul.addr %s323, 8
      %s330 = sadd.s32 %s328, %s329
      %s331 = smul.addr %s330, 8
      %s332 = scalar_lea.vmem %s3, %s331
      %p333 = pneg %p177
      %p334 = pneg %p174
      %s335 = sadd.s32 %s22, %s23
      %p336 = scmp.lt.s32.totalorder %s335, 1
      %s337 = scalar_select %p336, %s335, 1
      %p338 = scmp.lt.s32.totalorder %s24, 0
      %s339 = scalar_select %p338, %s24, 0
      %s340 = sadd.s32 %s339, %s337
      %s341 = scalar_lea.vmem %s4, %s340
      %p342 = pneg %p207
      %p343 = pneg %p204
      %s344 = sadd.s32 %s22, %s23
      %p345 = scmp.lt.s32.totalorder %s344, 1
      %s346 = scalar_select %p345, %s344, 1
      %p347 = scmp.lt.s32.totalorder %s24, 0
      %s348 = scalar_select %p347, %s24, 0
      %s349 = sadd.s32 %s348, %s346
      %s350 = scalar_lea.vmem %s5, %s349
      %s351 = smul.u32 8, %s23
      %s352 = ssub.s32 10, %s351
      %p353 = scmp.lt.s32.totalorder %s352, 8
      %s354 = scalar_select %p353, %s352, 8
      %s355 = smul.u32 64, %s354
      %s356 = smul.u32 %s355, 2
      %p357 = scmp.lt.s32.totalorder %s22, 1
      %s358 = scalar_select %p357, %s22, 1
      %p359 = scmp.lt.s32.totalorder %s351, 9
      %s360 = scalar_select %p359, %s351, 9
      %s361 = smul.addr %s360, 2
      %s362 = smul.addr %s358, 20
      %s363 = sadd.s32 %s361, %s362
      %s364 = smul.addr %s363, 4
      %s365 = scalar_lea.vmem %s0, %s364
      %s366 = smul.u32 8, %s23
      %s367 = ssub.s32 10, %s366
      %p368 = scmp.lt.s32.totalorder %s367, 8
      %s369 = scalar_select %p368, %s367, 8
      %s370 = smul.u32 64, %s369
      %s371 = smul.u32 %s370, 2
      %s372 = sadd.s32 %s23, 1
      %s373 = smul.u32 %s372, 4
      %s374 = smul.u32 2, %s373
      %p375 = scmp.lt.s32.totalorder %s22, 1
      %s376 = scalar_select %p375, %s22, 1
      %p377 = scmp.lt.s32.totalorder %s374, 9
      %s378 = scalar_select %p377, %s374, 9
      %s379 = smul.addr %s378, 2
      %s380 = smul.addr %s376, 20
      %s381 = sadd.s32 %s379, %s380
      %s382 = smul.addr %s381, 4
      %s383 = scalar_lea.vmem %s1, %s382
      %s384 = sadd.s32 %s23, 1
      %s385 = smul.u32 %s384, 4
      %s386 = smul.u32 2, %s385
      %p387 = scmp.lt.s32.totalorder %s24, 0
      %s388 = scalar_select %p387, %s24, 0
      %s389 = smul.addr %s388, 4
      %s390 = scalar_lea.vmem %s2, %s389
      %s391 = smul.u32 8, %s23
      %p392 = scmp.lt.s32.totalorder %s22, 1
      %s393 = scalar_select %p392, %s22, 1
      %p394 = scmp.lt.s32.totalorder %s391, 7
      %s395 = scalar_select %p394, %s391, 7
      %p396 = scmp.lt.s32.totalorder %s24, 0
      %s397 = scalar_select %p396, %s24, 0
      %s398 = sadd.s32 %s397, %s395
      %s399 = smul.addr %s393, 8
      %s400 = sadd.s32 %s398, %s399
      %s401 = smul.addr %s400, 8
      %s402 = scalar_lea.vmem %s3, %s401
      %s403 = smul.u32 8, %s23
      %s404 = sadd.s32 %s22, %s23
      %p405 = scmp.lt.s32.totalorder %s404, 1
      %s406 = scalar_select %p405, %s404, 1
      %p407 = scmp.lt.s32.totalorder %s24, 0
      %s408 = scalar_select %p407, %s24, 0
      %s409 = sadd.s32 %s408, %s406
      %s410 = scalar_lea.vmem %s4, %s409
      %s411 = sadd.s32 %s22, %s23
      %s412 = sadd.s32 %s22, %s23
      %p413 = scmp.lt.s32.totalorder %s412, 1
      %s414 = scalar_select %p413, %s412, 1
      %p415 = scmp.lt.s32.totalorder %s24, 0
      %s416 = scalar_select %p415, %s24, 0
      %s417 = sadd.s32 %s416, %s414
      %s418 = scalar_lea.vmem %s5, %s417
      %s419 = sadd.s32 %s22, %s23
      %v421 = vld [vmem:[%s365] sm:$0xf]
      %v422 = vld [vmem:[%s365 + $0x4] sm:$0x1]
      %v423 = vld [vmem:[%s365 + $0x8] sm:$0xf]
      %v424 = vld [vmem:[%s365 + $0xc] sm:$0x1]
      %v425 = vld [vmem:[%s365 + $0x10] sm:$0xf]
      %v426 = vld [vmem:[%s365 + $0x14] sm:$0x1]
      %v427 = vld [vmem:[%s365 + $0x18] sm:$0xf]
      %v428 = vld [vmem:[%s365 + $0x1c] sm:$0x1]
      %v429 = vld [vmem:[%s365 + $0x20] sm:$0xf]
      %v430 = vld [vmem:[%s365 + $0x24] sm:$0x1]
      %v431 = vld [vmem:[%s365 + $0x28] sm:$0xf]
      %v432 = vld [vmem:[%s365 + $0x2c] sm:$0x1]
      %v433 = vld [vmem:[%s365 + $0x30] sm:$0xf]
      %v434 = vld [vmem:[%s365 + $0x34] sm:$0x1]
      %v435 = vld [vmem:[%s365 + $0x38] sm:$0xf]
      %v436 = vld [vmem:[%s365 + $0x3c] sm:$0x1]
      %437 = vst [vmem:[#allocation2] sm:$0xf] %v421
      %438 = vst [vmem:[#allocation2 + $0x4] sm:$0x1] %v422
      %439 = vst [vmem:[#allocation2 + $0x8] sm:$0xf] %v423
      %440 = vst [vmem:[#allocation2 + $0xc] sm:$0x1] %v424
      %441 = vst [vmem:[#allocation2 + $0x10] sm:$0xf] %v425
      %442 = vst [vmem:[#allocation2 + $0x14] sm:$0x1] %v426
      %443 = vst [vmem:[#allocation2 + $0x18] sm:$0xf] %v427
      %444 = vst [vmem:[#allocation2 + $0x1c] sm:$0x1] %v428
      %445 = vst [vmem:[#allocation2 + $0x20] sm:$0xf] %v429
      %446 = vst [vmem:[#allocation2 + $0x24] sm:$0x1] %v430
      %447 = vst [vmem:[#allocation2 + $0x28] sm:$0xf] %v431
      %448 = vst [vmem:[#allocation2 + $0x2c] sm:$0x1] %v432
      %449 = vst [vmem:[#allocation2 + $0x30] sm:$0xf] %v433
      %450 = vst [vmem:[#allocation2 + $0x34] sm:$0x1] %v434
      %451 = vst [vmem:[#allocation2 + $0x38] sm:$0xf] %v435
      %452 = vst [vmem:[#allocation2 + $0x3c] sm:$0x1] %v436
      %v453 = vld [vmem:[%s383] sm:$0xf]
      %v454 = vld [vmem:[%s383 + $0x4] sm:$0x1]
      %v455 = vld [vmem:[%s383 + $0x8] sm:$0xf]
      %v456 = vld [vmem:[%s383 + $0xc] sm:$0x1]
      %s457 = scalar_lea.vmem [#allocation2], 64
      %458 = vst [vmem:[%s457] sm:$0xf] %v453
      %459 = vst [vmem:[%s457 + $0x4] sm:$0x1] %v454
      %460 = vst [vmem:[%s457 + $0x8] sm:$0xf] %v455
      %461 = vst [vmem:[%s457 + $0xc] sm:$0x1] %v456
      %v462 = vld [vmem:[#allocation2] sm:$0xf]
      %v463 = vld [vmem:[#allocation2 + $0x8] sm:$0xf]
      %v464 = vld [vmem:[#allocation2 + $0x10] sm:$0xf]
      %v465 = vld [vmem:[#allocation2 + $0x18] sm:$0xf]
      %v466 = vld [vmem:[#allocation2 + $0x20] sm:$0xf]
      %v467 = vld [vmem:[#allocation2 + $0x28] sm:$0xf]
      %v468 = vld [vmem:[#allocation2 + $0x30] sm:$0xf]
      %v469 = vld [vmem:[#allocation2 + $0x38] sm:$0xf]
      %v470 = vld [vmem:[%s390] sm:$0xf]
      %v471 = vld [vmem:[%s390 + $0x4] sm:$0xf]
      %v472 = vld [vmem:[%s390 + $0x8] sm:$0xf]
      %v473 = vld [vmem:[%s390 + $0xc] sm:$0xf]
      %v474 = vld [vmem:[%s390 + $0x10] sm:$0xf]
      %v475 = vld [vmem:[%s390 + $0x14] sm:$0xf]
      %v476 = vld [vmem:[%s390 + $0x18] sm:$0xf]
      %v477 = vld [vmem:[%s390 + $0x1c] sm:$0xf]
      %v478 = vld [vmem:[%s390 + $0x20] sm:$0xf]
      %v479 = vld [vmem:[%s390 + $0x24] sm:$0xf]
      %v480 = vld [vmem:[%s390 + $0x28] sm:$0xf]
      %v481 = vld [vmem:[%s390 + $0x2c] sm:$0xf]
      %v482 = vld [vmem:[%s390 + $0x30] sm:$0xf]
      %v483 = vld [vmem:[%s390 + $0x34] sm:$0xf]
      %v484 = vld [vmem:[%s390 + $0x38] sm:$0xf]
      %v485 = vld [vmem:[%s390 + $0x3c] sm:$0xf]
      %v486 = vld [vmem:[#allocation2 + $0x4] sm:$0x1]
      %v487 = vld [vmem:[#allocation2 + $0xc] sm:$0x1]
      %v488 = vld [vmem:[#allocation2 + $0x14] sm:$0x1]
      %v489 = vld [vmem:[#allocation2 + $0x1c] sm:$0x1]
      %v490 = vld [vmem:[#allocation2 + $0x24] sm:$0x1]
      %v491 = vld [vmem:[#allocation2 + $0x2c] sm:$0x1]
      %v492 = vld [vmem:[#allocation2 + $0x34] sm:$0x1]
      %v493 = vld [vmem:[#allocation2 + $0x3c] sm:$0x1]
      %vm494 = vsmask.f32 3328
      %vm495 = vsmask.f32 7440
      %vm496 = vmor %vm494, %vm495
      %v498 = vshrl.u32 %v462, 16
      %v500 = vrot.slane %v498, 4
      %v501 = vshll.u32 %v462, 16
      %v503 = vrot.slane %v501, 5
      %v504 = vor.u32 %v500, %v503
      %v505 = vrot.slane %v504, 4
      %v507 = vshll.u32 %v486, 16
      %v509 = vrot.slane %v507, 5
      %v510 = vsel %vm496, %v505, %v509
      %v512 = vshrl.u32 %v463, 16
      %v514 = vrot.slane %v512, 4
      %v515 = vshll.u32 %v463, 16
      %v517 = vrot.slane %v515, 5
      %v518 = vor.u32 %v514, %v517
      %v519 = vrot.slane %v518, 4
      %v521 = vshll.u32 %v487, 16
      %v523 = vrot.slane %v521, 5
      %v524 = vsel %vm496, %v519, %v523
      %v526 = vshrl.u32 %v464, 16
      %v528 = vrot.slane %v526, 4
      %v529 = vshll.u32 %v464, 16
      %v531 = vrot.slane %v529, 5
      %v532 = vor.u32 %v528, %v531
      %v533 = vrot.slane %v532, 4
      %v535 = vshll.u32 %v488, 16
      %v537 = vrot.slane %v535, 5
      %v538 = vsel %vm496, %v533, %v537
      %v540 = vshrl.u32 %v465, 16
      %v542 = vrot.slane %v540, 4
      %v543 = vshll.u32 %v465, 16
      %v545 = vrot.slane %v543, 5
      %v546 = vor.u32 %v542, %v545
      %v547 = vrot.slane %v546, 4
      %v549 = vshll.u32 %v489, 16
      %v551 = vrot.slane %v549, 5
      %v552 = vsel %vm496, %v547, %v551
      %v554 = vshrl.u32 %v466, 16
      %v556 = vrot.slane %v554, 4
      %v557 = vshll.u32 %v466, 16
      %v559 = vrot.slane %v557, 5
      %v560 = vor.u32 %v556, %v559
      %v561 = vrot.slane %v560, 4
      %v563 = vshll.u32 %v490, 16
      %v565 = vrot.slane %v563, 5
      %v566 = vsel %vm496, %v561, %v565
      %v568 = vshrl.u32 %v467, 16
      %v570 = vrot.slane %v568, 4
      %v571 = vshll.u32 %v467, 16
      %v573 = vrot.slane %v571, 5
      %v574 = vor.u32 %v570, %v573
      %v575 = vrot.slane %v574, 4
      %v577 = vshll.u32 %v491, 16
      %v579 = vrot.slane %v577, 5
      %v580 = vsel %vm496, %v575, %v579
      %v582 = vshrl.u32 %v468, 16
      %v584 = vrot.slane %v582, 4
      %v585 = vshll.u32 %v468, 16
      %v587 = vrot.slane %v585, 5
      %v588 = vor.u32 %v584, %v587
      %v589 = vrot.slane %v588, 4
      %v591 = vshll.u32 %v492, 16
      %v593 = vrot.slane %v591, 5
      %v594 = vsel %vm496, %v589, %v593
      %v596 = vshrl.u32 %v469, 16
      %v598 = vrot.slane %v596, 4
      %v599 = vshll.u32 %v469, 16
      %v601 = vrot.slane %v599, 5
      %v602 = vor.u32 %v598, %v601
      %v603 = vrot.slane %v602, 4
      %v605 = vshll.u32 %v493, 16
      %v607 = vrot.slane %v605, 5
      %v608 = vsel %vm496, %v603, %v607
      %s609 = scalar_lea.vmem %s390, 64
      %v610 = vld [vmem:[%s609] sm:$0xf]
      %v611 = vld [vmem:[%s609 + $0x4] sm:$0xf]
      %v612 = vld [vmem:[%s609 + $0x8] sm:$0xf]
      %v613 = vld [vmem:[%s609 + $0xc] sm:$0xf]
      %v614 = vld [vmem:[%s609 + $0x10] sm:$0xf]
      %v615 = vld [vmem:[%s609 + $0x14] sm:$0xf]
      %v616 = vld [vmem:[%s609 + $0x18] sm:$0xf]
      %v617 = vld [vmem:[%s609 + $0x1c] sm:$0xf]
      %v618 = vld [vmem:[%s609 + $0x20] sm:$0xf]
      %v619 = vld [vmem:[%s609 + $0x24] sm:$0xf]
      %v620 = vld [vmem:[%s609 + $0x28] sm:$0xf]
      %v621 = vld [vmem:[%s609 + $0x2c] sm:$0xf]
      %v622 = vld [vmem:[%s609 + $0x30] sm:$0xf]
      %v623 = vld [vmem:[%s609 + $0x34] sm:$0xf]
      %v624 = vld [vmem:[%s609 + $0x38] sm:$0xf]
      %v625 = vld [vmem:[%s609 + $0x3c] sm:$0xf]
      %v626 = vunpack.c.l.b16 %v510
      %v627 = vunpack.c.l.b16 %v524
      %v628 = vunpack.c.l.b16 %v538
      %v629 = vunpack.c.l.b16 %v552
      %v630 = vunpack.c.l.b16 %v566
      %v631 = vunpack.c.l.b16 %v580
      %v632 = vunpack.c.l.b16 %v594
      %v633 = vunpack.c.l.b16 %v608
      %v634 = vpack.c.b16 %v627, %v626
      %v635 = vpack.c.b16 %v629, %v628
      %v636 = vpack.c.b16 %v631, %v630
      %v637 = vpack.c.b16 %v633, %v632
      %v658 = vunpack.c.l.b16 %v610
      %v659 = vunpack.c.l.b16 %v611
      %v660 = vunpack.c.l.b16 %v612
      %v661 = vunpack.c.l.b16 %v613
      %v662 = vunpack.c.l.b16 %v614
      %v663 = vunpack.c.l.b16 %v615
      %v664 = vunpack.c.l.b16 %v616
      %v665 = vunpack.c.l.b16 %v617
      %v666 = vunpack.c.l.b16 %v618
      %v667 = vunpack.c.l.b16 %v619
      %v668 = vunpack.c.l.b16 %v620
      %v669 = vunpack.c.l.b16 %v621
      %v670 = vunpack.c.l.b16 %v622
      %v671 = vunpack.c.l.b16 %v623
      %v672 = vunpack.c.l.b16 %v624
      %v673 = vunpack.c.l.b16 %v625
      %v674 = vpack.c.b16 %v659, %v658
      %v675 = vpack.c.b16 %v661, %v660
      %v676 = vpack.c.b16 %v663, %v662
      %v677 = vpack.c.b16 %v665, %v664
      %v678 = vpack.c.b16 %v667, %v666
      %v679 = vpack.c.b16 %v669, %v668
      %v680 = vpack.c.b16 %v671, %v670
      %v681 = vpack.c.b16 %v673, %v672
      %690 = vmatprep.subr.bf16.mxu0 0
      %691 = vmatpush1.bf16.msra.mxu0 %v681
      %692 = vmatprep.subr.bf16.mxu0 0
      %693 = vmatpush1.bf16.msra.mxu0 %v680
      %694 = vmatprep.subr.bf16.mxu0 0
      %695 = vmatpush1.bf16.msra.mxu0 %v679
      %696 = vmatprep.subr.bf16.mxu0 0
      %697 = vmatpush1.bf16.msra.mxu0 %v678
      %698 = vmatprep.subr.bf16.mxu0 0
      %699 = vmatpush1.bf16.msra.mxu0 %v677
      %700 = vmatprep.subr.bf16.mxu0 0
      %701 = vmatpush1.bf16.msra.mxu0 %v676
      %702 = vmatprep.subr.bf16.mxu0 0
      %703 = vmatpush1.bf16.msra.mxu0 %v675
      %704 = vmatprep.subr.bf16.mxu0 0
      %705 = vmatpush1.bf16.msra.mxu0 %v674
      %706 = vmatprep.subr.bf16.mxu0 0
      %707 = vmatpush2.bf16.msra.mxu0 0
      %708 = vmatprep.subr.bf16.mxu0 0
      %709 = vmatpush2.bf16.msra.mxu0 0
      %710 = vmatprep.subr.bf16.mxu0 0
      %711 = vmatpush2.bf16.msra.mxu0 0
      %712 = vmatprep.subr.bf16.mxu0 0
      %713 = vmatpush2.bf16.msra.mxu0 0
      %714 = vmatprep.subr.bf16.mxu0 0
      %715 = vmatpush2.bf16.msra.mxu0 0
      %716 = vmatprep.subr.bf16.mxu0 0
      %717 = vmatpush2.bf16.msra.mxu0 0
      %718 = vmatprep.subr.bf16.mxu0 0
      %719 = vmatpush2.bf16.msra.mxu0 0
      %720 = vmatprep.subr.bf16.mxu0 0
      %721 = vmatpush2.bf16.msra.mxu0 0
      %722 = vmatprep.mubr.bf16.mxu0 0
      %723 = vmatmul.mubr.bf16.gmra.mxu0 %v634
      %v724 = vpop.f32.mrf.mxu0
      %v725 = vadd.f32 0.0, %v724
      %v726 = vpop.f32.mrf.mxu0
      %v727 = vpop.f32.mrf.mxu0
      %v728 = vadd.f32 0.0, %v727
      %v729 = vpop.f32.mrf.mxu0
      %730 = vmatprep.mubr.bf16.mxu0 0
      %731 = vmatmul.mubr.bf16.gmra.mxu0 %v635
      %v732 = vpop.f32.mrf.mxu0
      %v733 = vadd.f32 0.0, %v732
      %v734 = vpop.f32.mrf.mxu0
      %v735 = vpop.f32.mrf.mxu0
      %v736 = vadd.f32 0.0, %v735
      %v737 = vpop.f32.mrf.mxu0
      %738 = vmatprep.mubr.bf16.mxu0 0
      %739 = vmatmul.mubr.bf16.gmra.mxu0 %v636
      %v740 = vpop.f32.mrf.mxu0
      %v741 = vadd.f32 0.0, %v740
      %v742 = vpop.f32.mrf.mxu0
      %v743 = vpop.f32.mrf.mxu0
      %v744 = vadd.f32 0.0, %v743
      %v745 = vpop.f32.mrf.mxu0
      %746 = vmatprep.mubr.bf16.mxu0 0
      %747 = vmatmul.mubr.bf16.gmra.mxu0 %v637
      %v748 = vpop.f32.mrf.mxu0
      %v749 = vadd.f32 0.0, %v748
      %v750 = vpop.f32.mrf.mxu0
      %v751 = vpop.f32.mrf.mxu0
      %v752 = vadd.f32 0.0, %v751
      %v753 = vpop.f32.mrf.mxu0
      %754 = vdwg.mxu0
      %v763 = vunpack.c.l.b16 %v462
      %v764 = vunpack.c.l.b16 %v463
      %v765 = vunpack.c.l.b16 %v464
      %v766 = vunpack.c.l.b16 %v465
      %v767 = vunpack.c.l.b16 %v466
      %v768 = vunpack.c.l.b16 %v467
      %v769 = vunpack.c.l.b16 %v468
      %v770 = vunpack.c.l.b16 %v469
      %v771 = vpack.c.b16 %v764, %v763
      %v772 = vpack.c.b16 %v766, %v765
      %v773 = vpack.c.b16 %v768, %v767
      %v774 = vpack.c.b16 %v770, %v769
      %v795 = vunpack.c.l.b16 %v470
      %v796 = vunpack.c.l.b16 %v471
      %v797 = vunpack.c.l.b16 %v472
      %v798 = vunpack.c.l.b16 %v473
      %v799 = vunpack.c.l.b16 %v474
      %v800 = vunpack.c.l.b16 %v475
      %v801 = vunpack.c.l.b16 %v476
      %v802 = vunpack.c.l.b16 %v477
      %v803 = vunpack.c.l.b16 %v478
      %v804 = vunpack.c.l.b16 %v479
      %v805 = vunpack.c.l.b16 %v480
      %v806 = vunpack.c.l.b16 %v481
      %v807 = vunpack.c.l.b16 %v482
      %v808 = vunpack.c.l.b16 %v483
      %v809 = vunpack.c.l.b16 %v484
      %v810 = vunpack.c.l.b16 %v485
      %v811 = vpack.c.b16 %v796, %v795
      %v812 = vpack.c.b16 %v798, %v797
      %v813 = vpack.c.b16 %v800, %v799
      %v814 = vpack.c.b16 %v802, %v801
      %v815 = vpack.c.b16 %v804, %v803
      %v816 = vpack.c.b16 %v806, %v805
      %v817 = vpack.c.b16 %v808, %v807
      %v818 = vpack.c.b16 %v810, %v809
      %827 = vmatprep.subr.bf16.mxu0 0
      %828 = vmatpush1.bf16.msra.mxu0 %v818
      %829 = vmatprep.subr.bf16.mxu0 0
      %830 = vmatpush1.bf16.msra.mxu0 %v817
      %831 = vmatprep.subr.bf16.mxu0 0
      %832 = vmatpush1.bf16.msra.mxu0 %v816
      %833 = vmatprep.subr.bf16.mxu0 0
      %834 = vmatpush1.bf16.msra.mxu0 %v815
      %835 = vmatprep.subr.bf16.mxu0 0
      %836 = vmatpush1.bf16.msra.mxu0 %v814
      %837 = vmatprep.subr.bf16.mxu0 0
      %838 = vmatpush1.bf16.msra.mxu0 %v813
      %839 = vmatprep.subr.bf16.mxu0 0
      %840 = vmatpush1.bf16.msra.mxu0 %v812
      %841 = vmatprep.subr.bf16.mxu0 0
      %842 = vmatpush1.bf16.msra.mxu0 %v811
      %843 = vmatprep.subr.bf16.mxu0 0
      %844 = vmatpush2.bf16.msra.mxu0 0
      %845 = vmatprep.subr.bf16.mxu0 0
      %846 = vmatpush2.bf16.msra.mxu0 0
      %847 = vmatprep.subr.bf16.mxu0 0
      %848 = vmatpush2.bf16.msra.mxu0 0
      %849 = vmatprep.subr.bf16.mxu0 0
      %850 = vmatpush2.bf16.msra.mxu0 0
      %851 = vmatprep.subr.bf16.mxu0 0
      %852 = vmatpush2.bf16.msra.mxu0 0
      %853 = vmatprep.subr.bf16.mxu0 0
      %854 = vmatpush2.bf16.msra.mxu0 0
      %855 = vmatprep.subr.bf16.mxu0 0
      %856 = vmatpush2.bf16.msra.mxu0 0
      %857 = vmatprep.subr.bf16.mxu0 0
      %858 = vmatpush2.bf16.msra.mxu0 0
      %859 = vmatprep.mubr.bf16.mxu0 0
      %860 = vmatmul.mubr.bf16.gmra.mxu0 %v771
      %v861 = vpop.f32.mrf.mxu0
      %v862 = vadd.f32 %v725, %v861
      %v863 = vpop.f32.mrf.mxu0
      %v864 = vpop.f32.mrf.mxu0
      %v865 = vadd.f32 %v728, %v864
      %v866 = vpop.f32.mrf.mxu0
      %867 = vmatprep.mubr.bf16.mxu0 0
      %868 = vmatmul.mubr.bf16.gmra.mxu0 %v772
      %v869 = vpop.f32.mrf.mxu0
      %v870 = vadd.f32 %v733, %v869
      %v871 = vpop.f32.mrf.mxu0
      %v872 = vpop.f32.mrf.mxu0
      %v873 = vadd.f32 %v736, %v872
      %v874 = vpop.f32.mrf.mxu0
      %875 = vmatprep.mubr.bf16.mxu0 0
      %876 = vmatmul.mubr.bf16.gmra.mxu0 %v773
      %v877 = vpop.f32.mrf.mxu0
      %v878 = vadd.f32 %v741, %v877
      %v879 = vpop.f32.mrf.mxu0
      %v880 = vpop.f32.mrf.mxu0
      %v881 = vadd.f32 %v744, %v880
      %v882 = vpop.f32.mrf.mxu0
      %883 = vmatprep.mubr.bf16.mxu0 0
      %884 = vmatmul.mubr.bf16.gmra.mxu0 %v774
      %v885 = vpop.f32.mrf.mxu0
      %v886 = vadd.f32 %v749, %v885
      %v887 = vpop.f32.mrf.mxu0
      %v888 = vpop.f32.mrf.mxu0
      %v889 = vadd.f32 %v752, %v888
      %v890 = vpop.f32.mrf.mxu0
      %891 = vdwg.mxu0
      %v892 = vld [vmem:[#allocation2] sm:$0xe]
      %v893 = vld [vmem:[#allocation2 + $0x8] sm:$0xe]
      %v894 = vld [vmem:[#allocation2 + $0x10] sm:$0xe]
      %v895 = vld [vmem:[#allocation2 + $0x18] sm:$0xe]
      %v896 = vld [vmem:[#allocation2 + $0x20] sm:$0xe]
      %v897 = vld [vmem:[#allocation2 + $0x28] sm:$0xe]
      %v898 = vld [vmem:[#allocation2 + $0x30] sm:$0xe]
      %v899 = vld [vmem:[#allocation2 + $0x38] sm:$0xe]
      %vm916 = vcmask 1042432
      %vm917 = vcmask 1046532
      %vm918 = vmor %vm916, %vm917
      %v919 = vrot.slane %v892, 5
      %v920 = vrot.slane %v919, 4
      %v921 = vrot.slane %v486, 5
      %v922 = vsel %vm918, %v920, %v921
      %v923 = vrot.slane %v893, 5
      %v924 = vrot.slane %v923, 4
      %v925 = vrot.slane %v487, 5
      %v926 = vsel %vm918, %v924, %v925
      %v927 = vrot.slane %v894, 5
      %v928 = vrot.slane %v927, 4
      %v929 = vrot.slane %v488, 5
      %v930 = vsel %vm918, %v928, %v929
      %v931 = vrot.slane %v895, 5
      %v932 = vrot.slane %v931, 4
      %v933 = vrot.slane %v489, 5
      %v934 = vsel %vm918, %v932, %v933
      %v935 = vrot.slane %v896, 5
      %v936 = vrot.slane %v935, 4
      %v937 = vrot.slane %v490, 5
      %v938 = vsel %vm918, %v936, %v937
      %v939 = vrot.slane %v897, 5
      %v940 = vrot.slane %v939, 4
      %v941 = vrot.slane %v491, 5
      %v942 = vsel %vm918, %v940, %v941
      %v943 = vrot.slane %v898, 5
      %v944 = vrot.slane %v943, 4
      %v945 = vrot.slane %v492, 5
      %v946 = vsel %vm918, %v944, %v945
      %v947 = vrot.slane %v899, 5
      %v948 = vrot.slane %v947, 4
      %v949 = vrot.slane %v493, 5
      %v950 = vsel %vm918, %v948, %v949
      %s951 = scalar_lea.vmem %s390, 128
      %v952 = vld [vmem:[%s951] sm:$0xf]
      %v953 = vld [vmem:[%s951 + $0x4] sm:$0xf]
      %v954 = vld [vmem:[%s951 + $0x8] sm:$0xf]
      %v955 = vld [vmem:[%s951 + $0xc] sm:$0xf]
      %v956 = vld [vmem:[%s951 + $0x10] sm:$0xf]
      %v957 = vld [vmem:[%s951 + $0x14] sm:$0xf]
      %v958 = vld [vmem:[%s951 + $0x18] sm:$0xf]
      %v959 = vld [vmem:[%s951 + $0x1c] sm:$0xf]
      %v960 = vld [vmem:[%s951 + $0x20] sm:$0xf]
      %v961 = vld [vmem:[%s951 + $0x24] sm:$0xf]
      %v962 = vld [vmem:[%s951 + $0x28] sm:$0xf]
      %v963 = vld [vmem:[%s951 + $0x2c] sm:$0xf]
      %v964 = vld [vmem:[%s951 + $0x30] sm:$0xf]
      %v965 = vld [vmem:[%s951 + $0x34] sm:$0xf]
      %v966 = vld [vmem:[%s951 + $0x38] sm:$0xf]
      %v967 = vld [vmem:[%s951 + $0x3c] sm:$0xf]
      %v968 = vunpack.c.l.b16 %v922
      %v969 = vunpack.c.l.b16 %v926
      %v970 = vunpack.c.l.b16 %v930
      %v971 = vunpack.c.l.b16 %v934
      %v972 = vunpack.c.l.b16 %v938
      %v973 = vunpack.c.l.b16 %v942
      %v974 = vunpack.c.l.b16 %v946
      %v975 = vunpack.c.l.b16 %v950
      %v976 = vpack.c.b16 %v969, %v968
      %v977 = vpack.c.b16 %v971, %v970
      %v978 = vpack.c.b16 %v973, %v972
      %v979 = vpack.c.b16 %v975, %v974
      %v1000 = vunpack.c.l.b16 %v952
      %v1001 = vunpack.c.l.b16 %v953
      %v1002 = vunpack.c.l.b16 %v954
      %v1003 = vunpack.c.l.b16 %v955
      %v1004 = vunpack.c.l.b16 %v956
      %v1005 = vunpack.c.l.b16 %v957
      %v1006 = vunpack.c.l.b16 %v958
      %v1007 = vunpack.c.l.b16 %v959
      %v1008 = vunpack.c.l.b16 %v960
      %v1009 = vunpack.c.l.b16 %v961
      %v1010 = vunpack.c.l.b16 %v962
      %v1011 = vunpack.c.l.b16 %v963
      %v1012 = vunpack.c.l.b16 %v964
      %v1013 = vunpack.c.l.b16 %v965
      %v1014 = vunpack.c.l.b16 %v966
      %v1015 = vunpack.c.l.b16 %v967
      %v1016 = vpack.c.b16 %v1001, %v1000
      %v1017 = vpack.c.b16 %v1003, %v1002
      %v1018 = vpack.c.b16 %v1005, %v1004
      %v1019 = vpack.c.b16 %v1007, %v1006
      %v1020 = vpack.c.b16 %v1009, %v1008
      %v1021 = vpack.c.b16 %v1011, %v1010
      %v1022 = vpack.c.b16 %v1013, %v1012
      %v1023 = vpack.c.b16 %v1015, %v1014
      %1032 = vmatprep.subr.bf16.mxu0 0
      %1033 = vmatpush1.bf16.msra.mxu0 %v1023
      %1034 = vmatprep.subr.bf16.mxu0 0
      %1035 = vmatpush1.bf16.msra.mxu0 %v1022
      %1036 = vmatprep.subr.bf16.mxu0 0
      %1037 = vmatpush1.bf16.msra.mxu0 %v1021
      %1038 = vmatprep.subr.bf16.mxu0 0
      %1039 = vmatpush1.bf16.msra.mxu0 %v1020
      %1040 = vmatprep.subr.bf16.mxu0 0
      %1041 = vmatpush1.bf16.msra.mxu0 %v1019
      %1042 = vmatprep.subr.bf16.mxu0 0
      %1043 = vmatpush1.bf16.msra.mxu0 %v1018
      %1044 = vmatprep.subr.bf16.mxu0 0
      %1045 = vmatpush1.bf16.msra.mxu0 %v1017
      %1046 = vmatprep.subr.bf16.mxu0 0
      %1047 = vmatpush1.bf16.msra.mxu0 %v1016
      %1048 = vmatprep.subr.bf16.mxu0 0
      %1049 = vmatpush2.bf16.msra.mxu0 0
      %1050 = vmatprep.subr.bf16.mxu0 0
      %1051 = vmatpush2.bf16.msra.mxu0 0
      %1052 = vmatprep.subr.bf16.mxu0 0
      %1053 = vmatpush2.bf16.msra.mxu0 0
      %1054 = vmatprep.subr.bf16.mxu0 0
      %1055 = vmatpush2.bf16.msra.mxu0 0
      %1056 = vmatprep.subr.bf16.mxu0 0
      %1057 = vmatpush2.bf16.msra.mxu0 0
      %1058 = vmatprep.subr.bf16.mxu0 0
      %1059 = vmatpush2.bf16.msra.mxu0 0
      %1060 = vmatprep.subr.bf16.mxu0 0
      %1061 = vmatpush2.bf16.msra.mxu0 0
      %1062 = vmatprep.subr.bf16.mxu0 0
      %1063 = vmatpush2.bf16.msra.mxu0 0
      %1064 = vmatprep.mubr.bf16.mxu0 0
      %1065 = vmatmul.mubr.bf16.gmra.mxu0 %v976
      %v1066 = vpop.f32.mrf.mxu0
      %v1067 = vadd.f32 0.0, %v1066
      %v1068 = vpop.f32.mrf.mxu0
      %v1069 = vpop.f32.mrf.mxu0
      %v1070 = vadd.f32 0.0, %v1069
      %v1071 = vpop.f32.mrf.mxu0
      %1072 = vmatprep.mubr.bf16.mxu0 0
      %1073 = vmatmul.mubr.bf16.gmra.mxu0 %v977
      %v1074 = vpop.f32.mrf.mxu0
      %v1075 = vadd.f32 0.0, %v1074
      %v1076 = vpop.f32.mrf.mxu0
      %v1077 = vpop.f32.mrf.mxu0
      %v1078 = vadd.f32 0.0, %v1077
      %v1079 = vpop.f32.mrf.mxu0
      %1080 = vmatprep.mubr.bf16.mxu0 0
      %1081 = vmatmul.mubr.bf16.gmra.mxu0 %v978
      %v1082 = vpop.f32.mrf.mxu0
      %v1083 = vadd.f32 0.0, %v1082
      %v1084 = vpop.f32.mrf.mxu0
      %v1085 = vpop.f32.mrf.mxu0
      %v1086 = vadd.f32 0.0, %v1085
      %v1087 = vpop.f32.mrf.mxu0
      %1088 = vmatprep.mubr.bf16.mxu0 0
      %1089 = vmatmul.mubr.bf16.gmra.mxu0 %v979
      %v1090 = vpop.f32.mrf.mxu0
      %v1091 = vadd.f32 0.0, %v1090
      %v1092 = vpop.f32.mrf.mxu0
      %v1093 = vpop.f32.mrf.mxu0
      %v1094 = vadd.f32 0.0, %v1093
      %v1095 = vpop.f32.mrf.mxu0
      %1096 = vdwg.mxu0
      %v1097 = vadd.f32 %v862, %v1067
      %v1098 = vadd.f32 %v865, %v1070
      %v1099 = vadd.f32 %v870, %v1075
      %v1100 = vadd.f32 %v873, %v1078
      %v1101 = vadd.f32 %v878, %v1083
      %v1102 = vadd.f32 %v881, %v1086
      %v1103 = vadd.f32 %v886, %v1091
      %v1104 = vadd.f32 %v889, %v1094
      %s1105 = scalar_lea.vmem [#allocation2], 8
      %v1106 = vld [vmem:[%s1105] sm:$0xf]
      %v1107 = vld [vmem:[%s1105 + $0x8] sm:$0xf]
      %v1108 = vld [vmem:[%s1105 + $0x10] sm:$0xf]
      %v1109 = vld [vmem:[%s1105 + $0x18] sm:$0xf]
      %v1110 = vld [vmem:[%s1105 + $0x20] sm:$0xf]
      %v1111 = vld [vmem:[%s1105 + $0x28] sm:$0xf]
      %v1112 = vld [vmem:[%s1105 + $0x30] sm:$0xf]
      %v1113 = vld [vmem:[%s1105 + $0x38] sm:$0xf]
      %s1114 = scalar_lea.vmem %s390, 192
      %v1115 = vld [vmem:[%s1114] sm:$0xf]
      %v1116 = vld [vmem:[%s1114 + $0x4] sm:$0xf]
      %v1117 = vld [vmem:[%s1114 + $0x8] sm:$0xf]
      %v1118 = vld [vmem:[%s1114 + $0xc] sm:$0xf]
      %v1119 = vld [vmem:[%s1114 + $0x10] sm:$0xf]
      %v1120 = vld [vmem:[%s1114 + $0x14] sm:$0xf]
      %v1121 = vld [vmem:[%s1114 + $0x18] sm:$0xf]
      %v1122 = vld [vmem:[%s1114 + $0x1c] sm:$0xf]
      %v1123 = vld [vmem:[%s1114 + $0x20] sm:$0xf]
      %v1124 = vld [vmem:[%s1114 + $0x24] sm:$0xf]
      %v1125 = vld [vmem:[%s1114 + $0x28] sm:$0xf]
      %v1126 = vld [vmem:[%s1114 + $0x2c] sm:$0xf]
      %v1127 = vld [vmem:[%s1114 + $0x30] sm:$0xf]
      %v1128 = vld [vmem:[%s1114 + $0x34] sm:$0xf]
      %v1129 = vld [vmem:[%s1114 + $0x38] sm:$0xf]
      %v1130 = vld [vmem:[%s1114 + $0x3c] sm:$0xf]
      %v1139 = vunpack.c.l.b16 %v1106
      %v1140 = vunpack.c.l.b16 %v1107
      %v1141 = vunpack.c.l.b16 %v1108
      %v1142 = vunpack.c.l.b16 %v1109
      %v1143 = vunpack.c.l.b16 %v1110
      %v1144 = vunpack.c.l.b16 %v1111
      %v1145 = vunpack.c.l.b16 %v1112
      %v1146 = vunpack.c.l.b16 %v1113
      %v1147 = vpack.c.b16 %v1140, %v1139
      %v1148 = vpack.c.b16 %v1142, %v1141
      %v1149 = vpack.c.b16 %v1144, %v1143
      %v1150 = vpack.c.b16 %v1146, %v1145
      %v1171 = vunpack.c.l.b16 %v1115
      %v1172 = vunpack.c.l.b16 %v1116
      %v1173 = vunpack.c.l.b16 %v1117
      %v1174 = vunpack.c.l.b16 %v1118
      %v1175 = vunpack.c.l.b16 %v1119
      %v1176 = vunpack.c.l.b16 %v1120
      %v1177 = vunpack.c.l.b16 %v1121
      %v1178 = vunpack.c.l.b16 %v1122
      %v1179 = vunpack.c.l.b16 %v1123
      %v1180 = vunpack.c.l.b16 %v1124
      %v1181 = vunpack.c.l.b16 %v1125
      %v1182 = vunpack.c.l.b16 %v1126
      %v1183 = vunpack.c.l.b16 %v1127
      %v1184 = vunpack.c.l.b16 %v1128
      %v1185 = vunpack.c.l.b16 %v1129
      %v1186 = vunpack.c.l.b16 %v1130
      %v1187 = vpack.c.b16 %v1172, %v1171
      %v1188 = vpack.c.b16 %v1174, %v1173
      %v1189 = vpack.c.b16 %v1176, %v1175
      %v1190 = vpack.c.b16 %v1178, %v1177
      %v1191 = vpack.c.b16 %v1180, %v1179
      %v1192 = vpack.c.b16 %v1182, %v1181
      %v1193 = vpack.c.b16 %v1184, %v1183
      %v1194 = vpack.c.b16 %v1186, %v1185
      %1203 = vmatprep.subr.bf16.mxu0 0
      %1204 = vmatpush1.bf16.msra.mxu0 %v1194
      %1205 = vmatprep.subr.bf16.mxu0 0
      %1206 = vmatpush1.bf16.msra.mxu0 %v1193
      %1207 = vmatprep.subr.bf16.mxu0 0
      %1208 = vmatpush1.bf16.msra.mxu0 %v1192
      %1209 = vmatprep.subr.bf16.mxu0 0
      %1210 = vmatpush1.bf16.msra.mxu0 %v1191
      %1211 = vmatprep.subr.bf16.mxu0 0
      %1212 = vmatpush1.bf16.msra.mxu0 %v1190
      %1213 = vmatprep.subr.bf16.mxu0 0
      %1214 = vmatpush1.bf16.msra.mxu0 %v1189
      %1215 = vmatprep.subr.bf16.mxu0 0
      %1216 = vmatpush1.bf16.msra.mxu0 %v1188
      %1217 = vmatprep.subr.bf16.mxu0 0
      %1218 = vmatpush1.bf16.msra.mxu0 %v1187
      %1219 = vmatprep.subr.bf16.mxu0 0
      %1220 = vmatpush2.bf16.msra.mxu0 0
      %1221 = vmatprep.subr.bf16.mxu0 0
      %1222 = vmatpush2.bf16.msra.mxu0 0
      %1223 = vmatprep.subr.bf16.mxu0 0
      %1224 = vmatpush2.bf16.msra.mxu0 0
      %1225 = vmatprep.subr.bf16.mxu0 0
      %1226 = vmatpush2.bf16.msra.mxu0 0
      %1227 = vmatprep.subr.bf16.mxu0 0
      %1228 = vmatpush2.bf16.msra.mxu0 0
      %1229 = vmatprep.subr.bf16.mxu0 0
      %1230 = vmatpush2.bf16.msra.mxu0 0
      %1231 = vmatprep.subr.bf16.mxu0 0
      %1232 = vmatpush2.bf16.msra.mxu0 0
      %1233 = vmatprep.subr.bf16.mxu0 0
      %1234 = vmatpush2.bf16.msra.mxu0 0
      %1235 = vmatprep.mubr.bf16.mxu0 0
      %1236 = vmatmul.mubr.bf16.gmra.mxu0 %v1147
      %v1237 = vpop.f32.mrf.mxu0
      %v1238 = vadd.f32 0.0, %v1237
      %v1239 = vpop.f32.mrf.mxu0
      %v1240 = vpop.f32.mrf.mxu0
      %v1241 = vadd.f32 0.0, %v1240
      %v1242 = vpop.f32.mrf.mxu0
      %1243 = vmatprep.mubr.bf16.mxu0 0
      %1244 = vmatmul.mubr.bf16.gmra.mxu0 %v1148
      %v1245 = vpop.f32.mrf.mxu0
      %v1246 = vadd.f32 0.0, %v1245
      %v1247 = vpop.f32.mrf.mxu0
      %v1248 = vpop.f32.mrf.mxu0
      %v1249 = vadd.f32 0.0, %v1248
      %v1250 = vpop.f32.mrf.mxu0
      %1251 = vmatprep.mubr.bf16.mxu0 0
      %1252 = vmatmul.mubr.bf16.gmra.mxu0 %v1149
      %v1253 = vpop.f32.mrf.mxu0
      %v1254 = vadd.f32 0.0, %v1253
      %v1255 = vpop.f32.mrf.mxu0
      %v1256 = vpop.f32.mrf.mxu0
      %v1257 = vadd.f32 0.0, %v1256
      %v1258 = vpop.f32.mrf.mxu0
      %1259 = vmatprep.mubr.bf16.mxu0 0
      %1260 = vmatmul.mubr.bf16.gmra.mxu0 %v1150
      %v1261 = vpop.f32.mrf.mxu0
      %v1262 = vadd.f32 0.0, %v1261
      %v1263 = vpop.f32.mrf.mxu0
      %v1264 = vpop.f32.mrf.mxu0
      %v1265 = vadd.f32 0.0, %v1264
      %v1266 = vpop.f32.mrf.mxu0
      %1267 = vdwg.mxu0
      %v1268 = vadd.f32 %v1097, %v1238
      %v1269 = vadd.f32 %v1098, %v1241
      %v1270 = vadd.f32 %v1099, %v1246
      %v1271 = vadd.f32 %v1100, %v1249
      %v1272 = vadd.f32 %v1101, %v1254
      %v1273 = vadd.f32 %v1102, %v1257
      %v1274 = vadd.f32 %v1103, %v1262
      %v1275 = vadd.f32 %v1104, %v1265
      %v1276 = vld [vmem:[%s1105] sm:$0xf]
      %v1277 = vld [vmem:[%s1105 + $0x4] sm:$0x1]
      %v1278 = vld [vmem:[%s1105 + $0x8] sm:$0xf]
      %v1279 = vld [vmem:[%s1105 + $0xc] sm:$0x1]
      %v1280 = vld [vmem:[%s1105 + $0x10] sm:$0xf]
      %v1281 = vld [vmem:[%s1105 + $0x14] sm:$0x1]
      %v1282 = vld [vmem:[%s1105 + $0x18] sm:$0xf]
      %v1283 = vld [vmem:[%s1105 + $0x1c] sm:$0x1]
      %v1284 = vld [vmem:[%s1105 + $0x20] sm:$0xf]
      %v1285 = vld [vmem:[%s1105 + $0x24] sm:$0x1]
      %v1286 = vld [vmem:[%s1105 + $0x28] sm:$0xf]
      %v1287 = vld [vmem:[%s1105 + $0x2c] sm:$0x1]
      %v1288 = vld [vmem:[%s1105 + $0x30] sm:$0xf]
      %v1289 = vld [vmem:[%s1105 + $0x34] sm:$0x1]
      %v1290 = vld [vmem:[%s1105 + $0x38] sm:$0xf]
      %v1291 = vld [vmem:[%s1105 + $0x3c] sm:$0x1]
      %v1293 = vshrl.u32 %v1276, 16
      %v1295 = vrot.slane %v1293, 4
      %v1296 = vshll.u32 %v1276, 16
      %v1298 = vrot.slane %v1296, 5
      %v1299 = vor.u32 %v1295, %v1298
      %v1300 = vrot.slane %v1299, 4
      %v1302 = vshll.u32 %v1277, 16
      %v1304 = vrot.slane %v1302, 5
      %v1305 = vsel %vm496, %v1300, %v1304
      %v1307 = vshrl.u32 %v1278, 16
      %v1309 = vrot.slane %v1307, 4
      %v1310 = vshll.u32 %v1278, 16
      %v1312 = vrot.slane %v1310, 5
      %v1313 = vor.u32 %v1309, %v1312
      %v1314 = vrot.slane %v1313, 4
      %v1316 = vshll.u32 %v1279, 16
      %v1318 = vrot.slane %v1316, 5
      %v1319 = vsel %vm496, %v1314, %v1318
      %v1321 = vshrl.u32 %v1280, 16
      %v1323 = vrot.slane %v1321, 4
      %v1324 = vshll.u32 %v1280, 16
      %v1326 = vrot.slane %v1324, 5
      %v1327 = vor.u32 %v1323, %v1326
      %v1328 = vrot.slane %v1327, 4
      %v1330 = vshll.u32 %v1281, 16
      %v1332 = vrot.slane %v1330, 5
      %v1333 = vsel %vm496, %v1328, %v1332
      %v1335 = vshrl.u32 %v1282, 16
      %v1337 = vrot.slane %v1335, 4
      %v1338 = vshll.u32 %v1282, 16
      %v1340 = vrot.slane %v1338, 5
      %v1341 = vor.u32 %v1337, %v1340
      %v1342 = vrot.slane %v1341, 4
      %v1344 = vshll.u32 %v1283, 16
      %v1346 = vrot.slane %v1344, 5
      %v1347 = vsel %vm496, %v1342, %v1346
      %v1349 = vshrl.u32 %v1284, 16
      %v1351 = vrot.slane %v1349, 4
      %v1352 = vshll.u32 %v1284, 16
      %v1354 = vrot.slane %v1352, 5
      %v1355 = vor.u32 %v1351, %v1354
      %v1356 = vrot.slane %v1355, 4
      %v1358 = vshll.u32 %v1285, 16
      %v1360 = vrot.slane %v1358, 5
      %v1361 = vsel %vm496, %v1356, %v1360
      %v1363 = vshrl.u32 %v1286, 16
      %v1365 = vrot.slane %v1363, 4
      %v1366 = vshll.u32 %v1286, 16
      %v1368 = vrot.slane %v1366, 5
      %v1369 = vor.u32 %v1365, %v1368
      %v1370 = vrot.slane %v1369, 4
      %v1372 = vshll.u32 %v1287, 16
      %v1374 = vrot.slane %v1372, 5
      %v1375 = vsel %vm496, %v1370, %v1374
      %v1377 = vshrl.u32 %v1288, 16
      %v1379 = vrot.slane %v1377, 4
      %v1380 = vshll.u32 %v1288, 16
      %v1382 = vrot.slane %v1380, 5
      %v1383 = vor.u32 %v1379, %v1382
      %v1384 = vrot.slane %v1383, 4
      %v1386 = vshll.u32 %v1289, 16
      %v1388 = vrot.slane %v1386, 5
      %v1389 = vsel %vm496, %v1384, %v1388
      %v1391 = vshrl.u32 %v1290, 16
      %v1393 = vrot.slane %v1391, 4
      %v1394 = vshll.u32 %v1290, 16
      %v1396 = vrot.slane %v1394, 5
      %v1397 = vor.u32 %v1393, %v1396
      %v1398 = vrot.slane %v1397, 4
      %v1400 = vshll.u32 %v1291, 16
      %v1402 = vrot.slane %v1400, 5
      %v1403 = vsel %vm496, %v1398, %v1402
      %s1404 = scalar_lea.vmem %s390, 256
      %v1405 = vld [vmem:[%s1404] sm:$0xf]
      %v1406 = vld [vmem:[%s1404 + $0x4] sm:$0xf]
      %v1407 = vld [vmem:[%s1404 + $0x8] sm:$0xf]
      %v1408 = vld [vmem:[%s1404 + $0xc] sm:$0xf]
      %v1409 = vld [vmem:[%s1404 + $0x10] sm:$0xf]
      %v1410 = vld [vmem:[%s1404 + $0x14] sm:$0xf]
      %v1411 = vld [vmem:[%s1404 + $0x18] sm:$0xf]
      %v1412 = vld [vmem:[%s1404 + $0x1c] sm:$0xf]
      %v1413 = vld [vmem:[%s1404 + $0x20] sm:$0xf]
      %v1414 = vld [vmem:[%s1404 + $0x24] sm:$0xf]
      %v1415 = vld [vmem:[%s1404 + $0x28] sm:$0xf]
      %v1416 = vld [vmem:[%s1404 + $0x2c] sm:$0xf]
      %v1417 = vld [vmem:[%s1404 + $0x30] sm:$0xf]
      %v1418 = vld [vmem:[%s1404 + $0x34] sm:$0xf]
      %v1419 = vld [vmem:[%s1404 + $0x38] sm:$0xf]
      %v1420 = vld [vmem:[%s1404 + $0x3c] sm:$0xf]
      %v1421 = vunpack.c.l.b16 %v1305
      %v1422 = vunpack.c.l.b16 %v1319
      %v1423 = vunpack.c.l.b16 %v1333
      %v1424 = vunpack.c.l.b16 %v1347
      %v1425 = vunpack.c.l.b16 %v1361
      %v1426 = vunpack.c.l.b16 %v1375
      %v1427 = vunpack.c.l.b16 %v1389
      %v1428 = vunpack.c.l.b16 %v1403
      %v1429 = vpack.c.b16 %v1422, %v1421
      %v1430 = vpack.c.b16 %v1424, %v1423
      %v1431 = vpack.c.b16 %v1426, %v1425
      %v1432 = vpack.c.b16 %v1428, %v1427
      %v1453 = vunpack.c.l.b16 %v1405
      %v1454 = vunpack.c.l.b16 %v1406
      %v1455 = vunpack.c.l.b16 %v1407
      %v1456 = vunpack.c.l.b16 %v1408
      %v1457 = vunpack.c.l.b16 %v1409
      %v1458 = vunpack.c.l.b16 %v1410
      %v1459 = vunpack.c.l.b16 %v1411
      %v1460 = vunpack.c.l.b16 %v1412
      %v1461 = vunpack.c.l.b16 %v1413
      %v1462 = vunpack.c.l.b16 %v1414
      %v1463 = vunpack.c.l.b16 %v1415
      %v1464 = vunpack.c.l.b16 %v1416
      %v1465 = vunpack.c.l.b16 %v1417
      %v1466 = vunpack.c.l.b16 %v1418
      %v1467 = vunpack.c.l.b16 %v1419
      %v1468 = vunpack.c.l.b16 %v1420
      %v1469 = vpack.c.b16 %v1454, %v1453
      %v1470 = vpack.c.b16 %v1456, %v1455
      %v1471 = vpack.c.b16 %v1458, %v1457
      %v1472 = vpack.c.b16 %v1460, %v1459
      %v1473 = vpack.c.b16 %v1462, %v1461
      %v1474 = vpack.c.b16 %v1464, %v1463
      %v1475 = vpack.c.b16 %v1466, %v1465
      %v1476 = vpack.c.b16 %v1468, %v1467
      %1485 = vmatprep.subr.bf16.mxu0 0
      %1486 = vmatpush1.bf16.msra.mxu0 %v1476
      %1487 = vmatprep.subr.bf16.mxu0 0
      %1488 = vmatpush1.bf16.msra.mxu0 %v1475
      %1489 = vmatprep.subr.bf16.mxu0 0
      %1490 = vmatpush1.bf16.msra.mxu0 %v1474
      %1491 = vmatprep.subr.bf16.mxu0 0
      %1492 = vmatpush1.bf16.msra.mxu0 %v1473
      %1493 = vmatprep.subr.bf16.mxu0 0
      %1494 = vmatpush1.bf16.msra.mxu0 %v1472
      %1495 = vmatprep.subr.bf16.mxu0 0
      %1496 = vmatpush1.bf16.msra.mxu0 %v1471
      %1497 = vmatprep.subr.bf16.mxu0 0
      %1498 = vmatpush1.bf16.msra.mxu0 %v1470
      %1499 = vmatprep.subr.bf16.mxu0 0
      %1500 = vmatpush1.bf16.msra.mxu0 %v1469
      %1501 = vmatprep.subr.bf16.mxu0 0
      %1502 = vmatpush2.bf16.msra.mxu0 0
      %1503 = vmatprep.subr.bf16.mxu0 0
      %1504 = vmatpush2.bf16.msra.mxu0 0
      %1505 = vmatprep.subr.bf16.mxu0 0
      %1506 = vmatpush2.bf16.msra.mxu0 0
      %1507 = vmatprep.subr.bf16.mxu0 0
      %1508 = vmatpush2.bf16.msra.mxu0 0
      %1509 = vmatprep.subr.bf16.mxu0 0
      %1510 = vmatpush2.bf16.msra.mxu0 0
      %1511 = vmatprep.subr.bf16.mxu0 0
      %1512 = vmatpush2.bf16.msra.mxu0 0
      %1513 = vmatprep.subr.bf16.mxu0 0
      %1514 = vmatpush2.bf16.msra.mxu0 0
      %1515 = vmatprep.subr.bf16.mxu0 0
      %1516 = vmatpush2.bf16.msra.mxu0 0
      %1517 = vmatprep.mubr.bf16.mxu0 0
      %1518 = vmatmul.mubr.bf16.gmra.mxu0 %v1429
      %v1519 = vpop.f32.mrf.mxu0
      %v1520 = vadd.f32 0.0, %v1519
      %v1521 = vpop.f32.mrf.mxu0
      %v1522 = vpop.f32.mrf.mxu0
      %v1523 = vadd.f32 0.0, %v1522
      %v1524 = vpop.f32.mrf.mxu0
      %1525 = vmatprep.mubr.bf16.mxu0 0
      %1526 = vmatmul.mubr.bf16.gmra.mxu0 %v1430
      %v1527 = vpop.f32.mrf.mxu0
      %v1528 = vadd.f32 0.0, %v1527
      %v1529 = vpop.f32.mrf.mxu0
      %v1530 = vpop.f32.mrf.mxu0
      %v1531 = vadd.f32 0.0, %v1530
      %v1532 = vpop.f32.mrf.mxu0
      %1533 = vmatprep.mubr.bf16.mxu0 0
      %1534 = vmatmul.mubr.bf16.gmra.mxu0 %v1431
      %v1535 = vpop.f32.mrf.mxu0
      %v1536 = vadd.f32 0.0, %v1535
      %v1537 = vpop.f32.mrf.mxu0
      %v1538 = vpop.f32.mrf.mxu0
      %v1539 = vadd.f32 0.0, %v1538
      %v1540 = vpop.f32.mrf.mxu0
      %1541 = vmatprep.mubr.bf16.mxu0 0
      %1542 = vmatmul.mubr.bf16.gmra.mxu0 %v1432
      %v1543 = vpop.f32.mrf.mxu0
      %v1544 = vadd.f32 0.0, %v1543
      %v1545 = vpop.f32.mrf.mxu0
      %v1546 = vpop.f32.mrf.mxu0
      %v1547 = vadd.f32 0.0, %v1546
      %v1548 = vpop.f32.mrf.mxu0
      %1549 = vdwg.mxu0
      %v1550 = vadd.f32 %v1268, %v1520
      %v1551 = vadd.f32 %v1269, %v1523
      %v1552 = vadd.f32 %v1270, %v1528
      %v1553 = vadd.f32 %v1271, %v1531
      %v1554 = vadd.f32 %v1272, %v1536
      %v1555 = vadd.f32 %v1273, %v1539
      %v1556 = vadd.f32 %v1274, %v1544
      %v1557 = vadd.f32 %v1275, %v1547
      %v1558 = vld [vmem:[%s1105] sm:$0xe]
      %v1559 = vld [vmem:[%s1105 + $0x8] sm:$0xe]
      %v1560 = vld [vmem:[%s1105 + $0x10] sm:$0xe]
      %v1561 = vld [vmem:[%s1105 + $0x18] sm:$0xe]
      %v1562 = vld [vmem:[%s1105 + $0x20] sm:$0xe]
      %v1563 = vld [vmem:[%s1105 + $0x28] sm:$0xe]
      %v1564 = vld [vmem:[%s1105 + $0x30] sm:$0xe]
      %v1565 = vld [vmem:[%s1105 + $0x38] sm:$0xe]
      %v1582 = vrot.slane %v1558, 5
      %v1583 = vrot.slane %v1582, 4
      %v1584 = vrot.slane %v1277, 5
      %v1585 = vsel %vm918, %v1583, %v1584
      %v1586 = vrot.slane %v1559, 5
      %v1587 = vrot.slane %v1586, 4
      %v1588 = vrot.slane %v1279, 5
      %v1589 = vsel %vm918, %v1587, %v1588
      %v1590 = vrot.slane %v1560, 5
      %v1591 = vrot.slane %v1590, 4
      %v1592 = vrot.slane %v1281, 5
      %v1593 = vsel %vm918, %v1591, %v1592
      %v1594 = vrot.slane %v1561, 5
      %v1595 = vrot.slane %v1594, 4
      %v1596 = vrot.slane %v1283, 5
      %v1597 = vsel %vm918, %v1595, %v1596
      %v1598 = vrot.slane %v1562, 5
      %v1599 = vrot.slane %v1598, 4
      %v1600 = vrot.slane %v1285, 5
      %v1601 = vsel %vm918, %v1599, %v1600
      %v1602 = vrot.slane %v1563, 5
      %v1603 = vrot.slane %v1602, 4
      %v1604 = vrot.slane %v1287, 5
      %v1605 = vsel %vm918, %v1603, %v1604
      %v1606 = vrot.slane %v1564, 5
      %v1607 = vrot.slane %v1606, 4
      %v1608 = vrot.slane %v1289, 5
      %v1609 = vsel %vm918, %v1607, %v1608
      %v1610 = vrot.slane %v1565, 5
      %v1611 = vrot.slane %v1610, 4
      %v1612 = vrot.slane %v1291, 5
      %v1613 = vsel %vm918, %v1611, %v1612
      %s1614 = scalar_lea.vmem %s390, 320
      %v1615 = vld [vmem:[%s1614] sm:$0xf]
      %v1616 = vld [vmem:[%s1614 + $0x4] sm:$0xf]
      %v1617 = vld [vmem:[%s1614 + $0x8] sm:$0xf]
      %v1618 = vld [vmem:[%s1614 + $0xc] sm:$0xf]
      %v1619 = vld [vmem:[%s1614 + $0x10] sm:$0xf]
      %v1620 = vld [vmem:[%s1614 + $0x14] sm:$0xf]
      %v1621 = vld [vmem:[%s1614 + $0x18] sm:$0xf]
      %v1622 = vld [vmem:[%s1614 + $0x1c] sm:$0xf]
      %v1623 = vld [vmem:[%s1614 + $0x20] sm:$0xf]
      %v1624 = vld [vmem:[%s1614 + $0x24] sm:$0xf]
      %v1625 = vld [vmem:[%s1614 + $0x28] sm:$0xf]
      %v1626 = vld [vmem:[%s1614 + $0x2c] sm:$0xf]
      %v1627 = vld [vmem:[%s1614 + $0x30] sm:$0xf]
      %v1628 = vld [vmem:[%s1614 + $0x34] sm:$0xf]
      %v1629 = vld [vmem:[%s1614 + $0x38] sm:$0xf]
      %v1630 = vld [vmem:[%s1614 + $0x3c] sm:$0xf]
      %v1631 = vunpack.c.l.b16 %v1585
      %v1632 = vunpack.c.l.b16 %v1589
      %v1633 = vunpack.c.l.b16 %v1593
      %v1634 = vunpack.c.l.b16 %v1597
      %v1635 = vunpack.c.l.b16 %v1601
      %v1636 = vunpack.c.l.b16 %v1605
      %v1637 = vunpack.c.l.b16 %v1609
      %v1638 = vunpack.c.l.b16 %v1613
      %v1639 = vpack.c.b16 %v1632, %v1631
      %v1640 = vpack.c.b16 %v1634, %v1633
      %v1641 = vpack.c.b16 %v1636, %v1635
      %v1642 = vpack.c.b16 %v1638, %v1637
      %v1663 = vunpack.c.l.b16 %v1615
      %v1664 = vunpack.c.l.b16 %v1616
      %v1665 = vunpack.c.l.b16 %v1617
      %v1666 = vunpack.c.l.b16 %v1618
      %v1667 = vunpack.c.l.b16 %v1619
      %v1668 = vunpack.c.l.b16 %v1620
      %v1669 = vunpack.c.l.b16 %v1621
      %v1670 = vunpack.c.l.b16 %v1622
      %v1671 = vunpack.c.l.b16 %v1623
      %v1672 = vunpack.c.l.b16 %v1624
      %v1673 = vunpack.c.l.b16 %v1625
      %v1674 = vunpack.c.l.b16 %v1626
      %v1675 = vunpack.c.l.b16 %v1627
      %v1676 = vunpack.c.l.b16 %v1628
      %v1677 = vunpack.c.l.b16 %v1629
      %v1678 = vunpack.c.l.b16 %v1630
      %v1679 = vpack.c.b16 %v1664, %v1663
      %v1680 = vpack.c.b16 %v1666, %v1665
      %v1681 = vpack.c.b16 %v1668, %v1667
      %v1682 = vpack.c.b16 %v1670, %v1669
      %v1683 = vpack.c.b16 %v1672, %v1671
      %v1684 = vpack.c.b16 %v1674, %v1673
      %v1685 = vpack.c.b16 %v1676, %v1675
      %v1686 = vpack.c.b16 %v1678, %v1677
      %1695 = vmatprep.subr.bf16.mxu0 0
      %1696 = vmatpush1.bf16.msra.mxu0 %v1686
      %1697 = vmatprep.subr.bf16.mxu0 0
      %1698 = vmatpush1.bf16.msra.mxu0 %v1685
      %1699 = vmatprep.subr.bf16.mxu0 0
      %1700 = vmatpush1.bf16.msra.mxu0 %v1684
      %1701 = vmatprep.subr.bf16.mxu0 0
      %1702 = vmatpush1.bf16.msra.mxu0 %v1683
      %1703 = vmatprep.subr.bf16.mxu0 0
      %1704 = vmatpush1.bf16.msra.mxu0 %v1682
      %1705 = vmatprep.subr.bf16.mxu0 0
      %1706 = vmatpush1.bf16.msra.mxu0 %v1681
      %1707 = vmatprep.subr.bf16.mxu0 0
      %1708 = vmatpush1.bf16.msra.mxu0 %v1680
      %1709 = vmatprep.subr.bf16.mxu0 0
      %1710 = vmatpush1.bf16.msra.mxu0 %v1679
      %1711 = vmatprep.subr.bf16.mxu0 0
      %1712 = vmatpush2.bf16.msra.mxu0 0
      %1713 = vmatprep.subr.bf16.mxu0 0
      %1714 = vmatpush2.bf16.msra.mxu0 0
      %1715 = vmatprep.subr.bf16.mxu0 0
      %1716 = vmatpush2.bf16.msra.mxu0 0
      %1717 = vmatprep.subr.bf16.mxu0 0
      %1718 = vmatpush2.bf16.msra.mxu0 0
      %1719 = vmatprep.subr.bf16.mxu0 0
      %1720 = vmatpush2.bf16.msra.mxu0 0
      %1721 = vmatprep.subr.bf16.mxu0 0
      %1722 = vmatpush2.bf16.msra.mxu0 0
      %1723 = vmatprep.subr.bf16.mxu0 0
      %1724 = vmatpush2.bf16.msra.mxu0 0
      %1725 = vmatprep.subr.bf16.mxu0 0
      %1726 = vmatpush2.bf16.msra.mxu0 0
      %1727 = vmatprep.mubr.bf16.mxu0 0
      %1728 = vmatmul.mubr.bf16.gmra.mxu0 %v1639
      %v1729 = vpop.f32.mrf.mxu0
      %v1730 = vadd.f32 0.0, %v1729
      %v1731 = vpop.f32.mrf.mxu0
      %v1732 = vpop.f32.mrf.mxu0
      %v1733 = vadd.f32 0.0, %v1732
      %v1734 = vpop.f32.mrf.mxu0
      %1735 = vmatprep.mubr.bf16.mxu0 0
      %1736 = vmatmul.mubr.bf16.gmra.mxu0 %v1640
      %v1737 = vpop.f32.mrf.mxu0
      %v1738 = vadd.f32 0.0, %v1737
      %v1739 = vpop.f32.mrf.mxu0
      %v1740 = vpop.f32.mrf.mxu0
      %v1741 = vadd.f32 0.0, %v1740
      %v1742 = vpop.f32.mrf.mxu0
      %1743 = vmatprep.mubr.bf16.mxu0 0
      %1744 = vmatmul.mubr.bf16.gmra.mxu0 %v1641
      %v1745 = vpop.f32.mrf.mxu0
      %v1746 = vadd.f32 0.0, %v1745
      %v1747 = vpop.f32.mrf.mxu0
      %v1748 = vpop.f32.mrf.mxu0
      %v1749 = vadd.f32 0.0, %v1748
      %v1750 = vpop.f32.mrf.mxu0
      %1751 = vmatprep.mubr.bf16.mxu0 0
      %1752 = vmatmul.mubr.bf16.gmra.mxu0 %v1642
      %v1753 = vpop.f32.mrf.mxu0
      %v1754 = vadd.f32 0.0, %v1753
      %v1755 = vpop.f32.mrf.mxu0
      %v1756 = vpop.f32.mrf.mxu0
      %v1757 = vadd.f32 0.0, %v1756
      %v1758 = vpop.f32.mrf.mxu0
      %1759 = vdwg.mxu0
      %v1760 = vadd.f32 %v1550, %v1730
      %v1761 = vadd.f32 %v1551, %v1733
      %v1762 = vadd.f32 %v1552, %v1738
      %v1763 = vadd.f32 %v1553, %v1741
      %v1764 = vadd.f32 %v1554, %v1746
      %v1765 = vadd.f32 %v1555, %v1749
      %v1766 = vadd.f32 %v1556, %v1754
      %v1767 = vadd.f32 %v1557, %v1757
      %s1768 = scalar_lea.vmem [#allocation2], 16
      %v1769 = vld [vmem:[%s1768] sm:$0xf]
      %v1770 = vld [vmem:[%s1768 + $0x8] sm:$0xf]
      %v1771 = vld [vmem:[%s1768 + $0x10] sm:$0xf]
      %v1772 = vld [vmem:[%s1768 + $0x18] sm:$0xf]
      %v1773 = vld [vmem:[%s1768 + $0x20] sm:$0xf]
      %v1774 = vld [vmem:[%s1768 + $0x28] sm:$0xf]
      %v1775 = vld [vmem:[%s1768 + $0x30] sm:$0xf]
      %v1776 = vld [vmem:[%s1768 + $0x38] sm:$0xf]
      %s1777 = scalar_lea.vmem %s390, 384
      %v1778 = vld [vmem:[%s1777] sm:$0xf]
      %v1779 = vld [vmem:[%s1777 + $0x4] sm:$0xf]
      %v1780 = vld [vmem:[%s1777 + $0x8] sm:$0xf]
      %v1781 = vld [vmem:[%s1777 + $0xc] sm:$0xf]
      %v1782 = vld [vmem:[%s1777 + $0x10] sm:$0xf]
      %v1783 = vld [vmem:[%s1777 + $0x14] sm:$0xf]
      %v1784 = vld [vmem:[%s1777 + $0x18] sm:$0xf]
      %v1785 = vld [vmem:[%s1777 + $0x1c] sm:$0xf]
      %v1786 = vld [vmem:[%s1777 + $0x20] sm:$0xf]
      %v1787 = vld [vmem:[%s1777 + $0x24] sm:$0xf]
      %v1788 = vld [vmem:[%s1777 + $0x28] sm:$0xf]
      %v1789 = vld [vmem:[%s1777 + $0x2c] sm:$0xf]
      %v1790 = vld [vmem:[%s1777 + $0x30] sm:$0xf]
      %v1791 = vld [vmem:[%s1777 + $0x34] sm:$0xf]
      %v1792 = vld [vmem:[%s1777 + $0x38] sm:$0xf]
      %v1793 = vld [vmem:[%s1777 + $0x3c] sm:$0xf]
      %v1802 = vunpack.c.l.b16 %v1769
      %v1803 = vunpack.c.l.b16 %v1770
      %v1804 = vunpack.c.l.b16 %v1771
      %v1805 = vunpack.c.l.b16 %v1772
      %v1806 = vunpack.c.l.b16 %v1773
      %v1807 = vunpack.c.l.b16 %v1774
      %v1808 = vunpack.c.l.b16 %v1775
      %v1809 = vunpack.c.l.b16 %v1776
      %v1810 = vpack.c.b16 %v1803, %v1802
      %v1811 = vpack.c.b16 %v1805, %v1804
      %v1812 = vpack.c.b16 %v1807, %v1806
      %v1813 = vpack.c.b16 %v1809, %v1808
      %v1834 = vunpack.c.l.b16 %v1778
      %v1835 = vunpack.c.l.b16 %v1779
      %v1836 = vunpack.c.l.b16 %v1780
      %v1837 = vunpack.c.l.b16 %v1781
      %v1838 = vunpack.c.l.b16 %v1782
      %v1839 = vunpack.c.l.b16 %v1783
      %v1840 = vunpack.c.l.b16 %v1784
      %v1841 = vunpack.c.l.b16 %v1785
      %v1842 = vunpack.c.l.b16 %v1786
      %v1843 = vunpack.c.l.b16 %v1787
      %v1844 = vunpack.c.l.b16 %v1788
      %v1845 = vunpack.c.l.b16 %v1789
      %v1846 = vunpack.c.l.b16 %v1790
      %v1847 = vunpack.c.l.b16 %v1791
      %v1848 = vunpack.c.l.b16 %v1792
      %v1849 = vunpack.c.l.b16 %v1793
      %v1850 = vpack.c.b16 %v1835, %v1834
      %v1851 = vpack.c.b16 %v1837, %v1836
      %v1852 = vpack.c.b16 %v1839, %v1838
      %v1853 = vpack.c.b16 %v1841, %v1840
      %v1854 = vpack.c.b16 %v1843, %v1842
      %v1855 = vpack.c.b16 %v1845, %v1844
      %v1856 = vpack.c.b16 %v1847, %v1846
      %v1857 = vpack.c.b16 %v1849, %v1848
      %1866 = vmatprep.subr.bf16.mxu0 0
      %1867 = vmatpush1.bf16.msra.mxu0 %v1857
      %1868 = vmatprep.subr.bf16.mxu0 0
      %1869 = vmatpush1.bf16.msra.mxu0 %v1856
      %1870 = vmatprep.subr.bf16.mxu0 0
      %1871 = vmatpush1.bf16.msra.mxu0 %v1855
      %1872 = vmatprep.subr.bf16.mxu0 0
      %1873 = vmatpush1.bf16.msra.mxu0 %v1854
      %1874 = vmatprep.subr.bf16.mxu0 0
      %1875 = vmatpush1.bf16.msra.mxu0 %v1853
      %1876 = vmatprep.subr.bf16.mxu0 0
      %1877 = vmatpush1.bf16.msra.mxu0 %v1852
      %1878 = vmatprep.subr.bf16.mxu0 0
      %1879 = vmatpush1.bf16.msra.mxu0 %v1851
      %1880 = vmatprep.subr.bf16.mxu0 0
      %1881 = vmatpush1.bf16.msra.mxu0 %v1850
      %1882 = vmatprep.subr.bf16.mxu0 0
      %1883 = vmatpush2.bf16.msra.mxu0 0
      %1884 = vmatprep.subr.bf16.mxu0 0
      %1885 = vmatpush2.bf16.msra.mxu0 0
      %1886 = vmatprep.subr.bf16.mxu0 0
      %1887 = vmatpush2.bf16.msra.mxu0 0
      %1888 = vmatprep.subr.bf16.mxu0 0
      %1889 = vmatpush2.bf16.msra.mxu0 0
      %1890 = vmatprep.subr.bf16.mxu0 0
      %1891 = vmatpush2.bf16.msra.mxu0 0
      %1892 = vmatprep.subr.bf16.mxu0 0
      %1893 = vmatpush2.bf16.msra.mxu0 0
      %1894 = vmatprep.subr.bf16.mxu0 0
      %1895 = vmatpush2.bf16.msra.mxu0 0
      %1896 = vmatprep.subr.bf16.mxu0 0
      %1897 = vmatpush2.bf16.msra.mxu0 0
      %1898 = vmatprep.mubr.bf16.mxu0 0
      %1899 = vmatmul.mubr.bf16.gmra.mxu0 %v1810
      %v1900 = vpop.f32.mrf.mxu0
      %v1901 = vadd.f32 0.0, %v1900
      %v1902 = vpop.f32.mrf.mxu0
      %v1903 = vpop.f32.mrf.mxu0
      %v1904 = vadd.f32 0.0, %v1903
      %v1905 = vpop.f32.mrf.mxu0
      %1906 = vmatprep.mubr.bf16.mxu0 0
      %1907 = vmatmul.mubr.bf16.gmra.mxu0 %v1811
      %v1908 = vpop.f32.mrf.mxu0
      %v1909 = vadd.f32 0.0, %v1908
      %v1910 = vpop.f32.mrf.mxu0
      %v1911 = vpop.f32.mrf.mxu0
      %v1912 = vadd.f32 0.0, %v1911
      %v1913 = vpop.f32.mrf.mxu0
      %1914 = vmatprep.mubr.bf16.mxu0 0
      %1915 = vmatmul.mubr.bf16.gmra.mxu0 %v1812
      %v1916 = vpop.f32.mrf.mxu0
      %v1917 = vadd.f32 0.0, %v1916
      %v1918 = vpop.f32.mrf.mxu0
      %v1919 = vpop.f32.mrf.mxu0
      %v1920 = vadd.f32 0.0, %v1919
      %v1921 = vpop.f32.mrf.mxu0
      %1922 = vmatprep.mubr.bf16.mxu0 0
      %1923 = vmatmul.mubr.bf16.gmra.mxu0 %v1813
      %v1924 = vpop.f32.mrf.mxu0
      %v1925 = vadd.f32 0.0, %v1924
      %v1926 = vpop.f32.mrf.mxu0
      %v1927 = vpop.f32.mrf.mxu0
      %v1928 = vadd.f32 0.0, %v1927
      %v1929 = vpop.f32.mrf.mxu0
      %1930 = vdwg.mxu0
      %v1931 = vadd.f32 %v1760, %v1901
      %v1932 = vadd.f32 %v1761, %v1904
      %v1933 = vadd.f32 %v1762, %v1909
      %v1934 = vadd.f32 %v1763, %v1912
      %v1935 = vadd.f32 %v1764, %v1917
      %v1936 = vadd.f32 %v1765, %v1920
      %v1937 = vadd.f32 %v1766, %v1925
      %v1938 = vadd.f32 %v1767, %v1928
      %v1939 = vld [vmem:[%s1768] sm:$0xf]
      %v1940 = vld [vmem:[%s1768 + $0x4] sm:$0x1]
      %v1941 = vld [vmem:[%s1768 + $0x8] sm:$0xf]
      %v1942 = vld [vmem:[%s1768 + $0xc] sm:$0x1]
      %v1943 = vld [vmem:[%s1768 + $0x10] sm:$0xf]
      %v1944 = vld [vmem:[%s1768 + $0x14] sm:$0x1]
      %v1945 = vld [vmem:[%s1768 + $0x18] sm:$0xf]
      %v1946 = vld [vmem:[%s1768 + $0x1c] sm:$0x1]
      %v1947 = vld [vmem:[%s1768 + $0x20] sm:$0xf]
      %v1948 = vld [vmem:[%s1768 + $0x24] sm:$0x1]
      %v1949 = vld [vmem:[%s1768 + $0x28] sm:$0xf]
      %v1950 = vld [vmem:[%s1768 + $0x2c] sm:$0x1]
      %v1951 = vld [vmem:[%s1768 + $0x30] sm:$0xf]
      %v1952 = vld [vmem:[%s1768 + $0x34] sm:$0x1]
      %v1953 = vld [vmem:[%s1768 + $0x38] sm:$0xf]
      %v1954 = vld [vmem:[%s1768 + $0x3c] sm:$0x1]
      %v1956 = vshrl.u32 %v1939, 16
      %v1958 = vrot.slane %v1956, 4
      %v1959 = vshll.u32 %v1939, 16
      %v1961 = vrot.slane %v1959, 5
      %v1962 = vor.u32 %v1958, %v1961
      %v1963 = vrot.slane %v1962, 4
      %v1965 = vshll.u32 %v1940, 16
      %v1967 = vrot.slane %v1965, 5
      %v1968 = vsel %vm496, %v1963, %v1967
      %v1970 = vshrl.u32 %v1941, 16
      %v1972 = vrot.slane %v1970, 4
      %v1973 = vshll.u32 %v1941, 16
      %v1975 = vrot.slane %v1973, 5
      %v1976 = vor.u32 %v1972, %v1975
      %v1977 = vrot.slane %v1976, 4
      %v1979 = vshll.u32 %v1942, 16
      %v1981 = vrot.slane %v1979, 5
      %v1982 = vsel %vm496, %v1977, %v1981
      %v1984 = vshrl.u32 %v1943, 16
      %v1986 = vrot.slane %v1984, 4
      %v1987 = vshll.u32 %v1943, 16
      %v1989 = vrot.slane %v1987, 5
      %v1990 = vor.u32 %v1986, %v1989
      %v1991 = vrot.slane %v1990, 4
      %v1993 = vshll.u32 %v1944, 16
      %v1995 = vrot.slane %v1993, 5
      %v1996 = vsel %vm496, %v1991, %v1995
      %v1998 = vshrl.u32 %v1945, 16
      %v2000 = vrot.slane %v1998, 4
      %v2001 = vshll.u32 %v1945, 16
      %v2003 = vrot.slane %v2001, 5
      %v2004 = vor.u32 %v2000, %v2003
      %v2005 = vrot.slane %v2004, 4
      %v2007 = vshll.u32 %v1946, 16
      %v2009 = vrot.slane %v2007, 5
      %v2010 = vsel %vm496, %v2005, %v2009
      %v2012 = vshrl.u32 %v1947, 16
      %v2014 = vrot.slane %v2012, 4
      %v2015 = vshll.u32 %v1947, 16
      %v2017 = vrot.slane %v2015, 5
      %v2018 = vor.u32 %v2014, %v2017
      %v2019 = vrot.slane %v2018, 4
      %v2021 = vshll.u32 %v1948, 16
      %v2023 = vrot.slane %v2021, 5
      %v2024 = vsel %vm496, %v2019, %v2023
      %v2026 = vshrl.u32 %v1949, 16
      %v2028 = vrot.slane %v2026, 4
      %v2029 = vshll.u32 %v1949, 16
      %v2031 = vrot.slane %v2029, 5
      %v2032 = vor.u32 %v2028, %v2031
      %v2033 = vrot.slane %v2032, 4
      %v2035 = vshll.u32 %v1950, 16
      %v2037 = vrot.slane %v2035, 5
      %v2038 = vsel %vm496, %v2033, %v2037
      %v2040 = vshrl.u32 %v1951, 16
      %v2042 = vrot.slane %v2040, 4
      %v2043 = vshll.u32 %v1951, 16
      %v2045 = vrot.slane %v2043, 5
      %v2046 = vor.u32 %v2042, %v2045
      %v2047 = vrot.slane %v2046, 4
      %v2049 = vshll.u32 %v1952, 16
      %v2051 = vrot.slane %v2049, 5
      %v2052 = vsel %vm496, %v2047, %v2051
      %v2054 = vshrl.u32 %v1953, 16
      %v2056 = vrot.slane %v2054, 4
      %v2057 = vshll.u32 %v1953, 16
      %v2059 = vrot.slane %v2057, 5
      %v2060 = vor.u32 %v2056, %v2059
      %v2061 = vrot.slane %v2060, 4
      %v2063 = vshll.u32 %v1954, 16
      %v2065 = vrot.slane %v2063, 5
      %v2066 = vsel %vm496, %v2061, %v2065
      %s2067 = scalar_lea.vmem %s390, 448
      %v2068 = vld [vmem:[%s2067] sm:$0xf]
      %v2069 = vld [vmem:[%s2067 + $0x4] sm:$0xf]
      %v2070 = vld [vmem:[%s2067 + $0x8] sm:$0xf]
      %v2071 = vld [vmem:[%s2067 + $0xc] sm:$0xf]
      %v2072 = vld [vmem:[%s2067 + $0x10] sm:$0xf]
      %v2073 = vld [vmem:[%s2067 + $0x14] sm:$0xf]
      %v2074 = vld [vmem:[%s2067 + $0x18] sm:$0xf]
      %v2075 = vld [vmem:[%s2067 + $0x1c] sm:$0xf]
      %v2076 = vld [vmem:[%s2067 + $0x20] sm:$0xf]
      %v2077 = vld [vmem:[%s2067 + $0x24] sm:$0xf]
      %v2078 = vld [vmem:[%s2067 + $0x28] sm:$0xf]
      %v2079 = vld [vmem:[%s2067 + $0x2c] sm:$0xf]
      %v2080 = vld [vmem:[%s2067 + $0x30] sm:$0xf]
      %v2081 = vld [vmem:[%s2067 + $0x34] sm:$0xf]
      %v2082 = vld [vmem:[%s2067 + $0x38] sm:$0xf]
      %v2083 = vld [vmem:[%s2067 + $0x3c] sm:$0xf]
      %v2084 = vunpack.c.l.b16 %v1968
      %v2085 = vunpack.c.l.b16 %v1982
      %v2086 = vunpack.c.l.b16 %v1996
      %v2087 = vunpack.c.l.b16 %v2010
      %v2088 = vunpack.c.l.b16 %v2024
      %v2089 = vunpack.c.l.b16 %v2038
      %v2090 = vunpack.c.l.b16 %v2052
      %v2091 = vunpack.c.l.b16 %v2066
      %v2092 = vpack.c.b16 %v2085, %v2084
      %v2093 = vpack.c.b16 %v2087, %v2086
      %v2094 = vpack.c.b16 %v2089, %v2088
      %v2095 = vpack.c.b16 %v2091, %v2090
      %v2116 = vunpack.c.l.b16 %v2068
      %v2117 = vunpack.c.l.b16 %v2069
      %v2118 = vunpack.c.l.b16 %v2070
      %v2119 = vunpack.c.l.b16 %v2071
      %v2120 = vunpack.c.l.b16 %v2072
      %v2121 = vunpack.c.l.b16 %v2073
      %v2122 = vunpack.c.l.b16 %v2074
      %v2123 = vunpack.c.l.b16 %v2075
      %v2124 = vunpack.c.l.b16 %v2076
      %v2125 = vunpack.c.l.b16 %v2077
      %v2126 = vunpack.c.l.b16 %v2078
      %v2127 = vunpack.c.l.b16 %v2079
      %v2128 = vunpack.c.l.b16 %v2080
      %v2129 = vunpack.c.l.b16 %v2081
      %v2130 = vunpack.c.l.b16 %v2082
      %v2131 = vunpack.c.l.b16 %v2083
      %v2132 = vpack.c.b16 %v2117, %v2116
      %v2133 = vpack.c.b16 %v2119, %v2118
      %v2134 = vpack.c.b16 %v2121, %v2120
      %v2135 = vpack.c.b16 %v2123, %v2122
      %v2136 = vpack.c.b16 %v2125, %v2124
      %v2137 = vpack.c.b16 %v2127, %v2126
      %v2138 = vpack.c.b16 %v2129, %v2128
      %v2139 = vpack.c.b16 %v2131, %v2130
      %2148 = vmatprep.subr.bf16.mxu0 0
      %2149 = vmatpush1.bf16.msra.mxu0 %v2139
      %2150 = vmatprep.subr.bf16.mxu0 0
      %2151 = vmatpush1.bf16.msra.mxu0 %v2138
      %2152 = vmatprep.subr.bf16.mxu0 0
      %2153 = vmatpush1.bf16.msra.mxu0 %v2137
      %2154 = vmatprep.subr.bf16.mxu0 0
      %2155 = vmatpush1.bf16.msra.mxu0 %v2136
      %2156 = vmatprep.subr.bf16.mxu0 0
      %2157 = vmatpush1.bf16.msra.mxu0 %v2135
      %2158 = vmatprep.subr.bf16.mxu0 0
      %2159 = vmatpush1.bf16.msra.mxu0 %v2134
      %2160 = vmatprep.subr.bf16.mxu0 0
      %2161 = vmatpush1.bf16.msra.mxu0 %v2133
      %2162 = vmatprep.subr.bf16.mxu0 0
      %2163 = vmatpush1.bf16.msra.mxu0 %v2132
      %2164 = vmatprep.subr.bf16.mxu0 0
      %2165 = vmatpush2.bf16.msra.mxu0 0
      %2166 = vmatprep.subr.bf16.mxu0 0
      %2167 = vmatpush2.bf16.msra.mxu0 0
      %2168 = vmatprep.subr.bf16.mxu0 0
      %2169 = vmatpush2.bf16.msra.mxu0 0
      %2170 = vmatprep.subr.bf16.mxu0 0
      %2171 = vmatpush2.bf16.msra.mxu0 0
      %2172 = vmatprep.subr.bf16.mxu0 0
      %2173 = vmatpush2.bf16.msra.mxu0 0
      %2174 = vmatprep.subr.bf16.mxu0 0
      %2175 = vmatpush2.bf16.msra.mxu0 0
      %2176 = vmatprep.subr.bf16.mxu0 0
      %2177 = vmatpush2.bf16.msra.mxu0 0
      %2178 = vmatprep.subr.bf16.mxu0 0
      %2179 = vmatpush2.bf16.msra.mxu0 0
      %2180 = vmatprep.mubr.bf16.mxu0 0
      %2181 = vmatmul.mubr.bf16.gmra.mxu0 %v2092
      %v2182 = vpop.f32.mrf.mxu0
      %v2183 = vadd.f32 0.0, %v2182
      %v2184 = vpop.f32.mrf.mxu0
      %v2185 = vpop.f32.mrf.mxu0
      %v2186 = vadd.f32 0.0, %v2185
      %v2187 = vpop.f32.mrf.mxu0
      %2188 = vmatprep.mubr.bf16.mxu0 0
      %2189 = vmatmul.mubr.bf16.gmra.mxu0 %v2093
      %v2190 = vpop.f32.mrf.mxu0
      %v2191 = vadd.f32 0.0, %v2190
      %v2192 = vpop.f32.mrf.mxu0
      %v2193 = vpop.f32.mrf.mxu0
      %v2194 = vadd.f32 0.0, %v2193
      %v2195 = vpop.f32.mrf.mxu0
      %2196 = vmatprep.mubr.bf16.mxu0 0
      %2197 = vmatmul.mubr.bf16.gmra.mxu0 %v2094
      %v2198 = vpop.f32.mrf.mxu0
      %v2199 = vadd.f32 0.0, %v2198
      %v2200 = vpop.f32.mrf.mxu0
      %v2201 = vpop.f32.mrf.mxu0
      %v2202 = vadd.f32 0.0, %v2201
      %v2203 = vpop.f32.mrf.mxu0
      %2204 = vmatprep.mubr.bf16.mxu0 0
      %2205 = vmatmul.mubr.bf16.gmra.mxu0 %v2095
      %v2206 = vpop.f32.mrf.mxu0
      %v2207 = vadd.f32 0.0, %v2206
      %v2208 = vpop.f32.mrf.mxu0
      %v2209 = vpop.f32.mrf.mxu0
      %v2210 = vadd.f32 0.0, %v2209
      %v2211 = vpop.f32.mrf.mxu0
      %2212 = vdwg.mxu0
      %v2213 = vadd.f32 %v1931, %v2183
      %v2214 = vadd.f32 %v1932, %v2186
      %v2215 = vadd.f32 %v1933, %v2191
      %v2216 = vadd.f32 %v1934, %v2194
      %v2217 = vadd.f32 %v1935, %v2199
      %v2218 = vadd.f32 %v1936, %v2202
      %v2219 = vadd.f32 %v1937, %v2207
      %v2220 = vadd.f32 %v1938, %v2210
      %v2221 = vld [vmem:[%s1768] sm:$0xe]
      %v2222 = vld [vmem:[%s1768 + $0x8] sm:$0xe]
      %v2223 = vld [vmem:[%s1768 + $0x10] sm:$0xe]
      %v2224 = vld [vmem:[%s1768 + $0x18] sm:$0xe]
      %v2225 = vld [vmem:[%s1768 + $0x20] sm:$0xe]
      %v2226 = vld [vmem:[%s1768 + $0x28] sm:$0xe]
      %v2227 = vld [vmem:[%s1768 + $0x30] sm:$0xe]
      %v2228 = vld [vmem:[%s1768 + $0x38] sm:$0xe]
      %v2245 = vrot.slane %v2221, 5
      %v2246 = vrot.slane %v2245, 4
      %v2247 = vrot.slane %v1940, 5
      %v2248 = vsel %vm918, %v2246, %v2247
      %v2249 = vrot.slane %v2222, 5
      %v2250 = vrot.slane %v2249, 4
      %v2251 = vrot.slane %v1942, 5
      %v2252 = vsel %vm918, %v2250, %v2251
      %v2253 = vrot.slane %v2223, 5
      %v2254 = vrot.slane %v2253, 4
      %v2255 = vrot.slane %v1944, 5
      %v2256 = vsel %vm918, %v2254, %v2255
      %v2257 = vrot.slane %v2224, 5
      %v2258 = vrot.slane %v2257, 4
      %v2259 = vrot.slane %v1946, 5
      %v2260 = vsel %vm918, %v2258, %v2259
      %v2261 = vrot.slane %v2225, 5
      %v2262 = vrot.slane %v2261, 4
      %v2263 = vrot.slane %v1948, 5
      %v2264 = vsel %vm918, %v2262, %v2263
      %v2265 = vrot.slane %v2226, 5
      %v2266 = vrot.slane %v2265, 4
      %v2267 = vrot.slane %v1950, 5
      %v2268 = vsel %vm918, %v2266, %v2267
      %v2269 = vrot.slane %v2227, 5
      %v2270 = vrot.slane %v2269, 4
      %v2271 = vrot.slane %v1952, 5
      %v2272 = vsel %vm918, %v2270, %v2271
      %v2273 = vrot.slane %v2228, 5
      %v2274 = vrot.slane %v2273, 4
      %v2275 = vrot.slane %v1954, 5
      %v2276 = vsel %vm918, %v2274, %v2275
      %s2277 = scalar_lea.vmem %s390, 512
      %v2278 = vld [vmem:[%s2277] sm:$0xf]
      %v2279 = vld [vmem:[%s2277 + $0x4] sm:$0xf]
      %v2280 = vld [vmem:[%s2277 + $0x8] sm:$0xf]
      %v2281 = vld [vmem:[%s2277 + $0xc] sm:$0xf]
      %v2282 = vld [vmem:[%s2277 + $0x10] sm:$0xf]
      %v2283 = vld [vmem:[%s2277 + $0x14] sm:$0xf]
      %v2284 = vld [vmem:[%s2277 + $0x18] sm:$0xf]
      %v2285 = vld [vmem:[%s2277 + $0x1c] sm:$0xf]
      %v2286 = vld [vmem:[%s2277 + $0x20] sm:$0xf]
      %v2287 = vld [vmem:[%s2277 + $0x24] sm:$0xf]
      %v2288 = vld [vmem:[%s2277 + $0x28] sm:$0xf]
      %v2289 = vld [vmem:[%s2277 + $0x2c] sm:$0xf]
      %v2290 = vld [vmem:[%s2277 + $0x30] sm:$0xf]
      %v2291 = vld [vmem:[%s2277 + $0x34] sm:$0xf]
      %v2292 = vld [vmem:[%s2277 + $0x38] sm:$0xf]
      %v2293 = vld [vmem:[%s2277 + $0x3c] sm:$0xf]
      %v2294 = vunpack.c.l.b16 %v2248
      %v2295 = vunpack.c.l.b16 %v2252
      %v2296 = vunpack.c.l.b16 %v2256
      %v2297 = vunpack.c.l.b16 %v2260
      %v2298 = vunpack.c.l.b16 %v2264
      %v2299 = vunpack.c.l.b16 %v2268
      %v2300 = vunpack.c.l.b16 %v2272
      %v2301 = vunpack.c.l.b16 %v2276
      %v2302 = vpack.c.b16 %v2295, %v2294
      %v2303 = vpack.c.b16 %v2297, %v2296
      %v2304 = vpack.c.b16 %v2299, %v2298
      %v2305 = vpack.c.b16 %v2301, %v2300
      %v2326 = vunpack.c.l.b16 %v2278
      %v2327 = vunpack.c.l.b16 %v2279
      %v2328 = vunpack.c.l.b16 %v2280
      %v2329 = vunpack.c.l.b16 %v2281
      %v2330 = vunpack.c.l.b16 %v2282
      %v2331 = vunpack.c.l.b16 %v2283
      %v2332 = vunpack.c.l.b16 %v2284
      %v2333 = vunpack.c.l.b16 %v2285
      %v2334 = vunpack.c.l.b16 %v2286
      %v2335 = vunpack.c.l.b16 %v2287
      %v2336 = vunpack.c.l.b16 %v2288
      %v2337 = vunpack.c.l.b16 %v2289
      %v2338 = vunpack.c.l.b16 %v2290
      %v2339 = vunpack.c.l.b16 %v2291
      %v2340 = vunpack.c.l.b16 %v2292
      %v2341 = vunpack.c.l.b16 %v2293
      %v2342 = vpack.c.b16 %v2327, %v2326
      %v2343 = vpack.c.b16 %v2329, %v2328
      %v2344 = vpack.c.b16 %v2331, %v2330
      %v2345 = vpack.c.b16 %v2333, %v2332
      %v2346 = vpack.c.b16 %v2335, %v2334
      %v2347 = vpack.c.b16 %v2337, %v2336
      %v2348 = vpack.c.b16 %v2339, %v2338
      %v2349 = vpack.c.b16 %v2341, %v2340
      %2358 = vmatprep.subr.bf16.mxu0 0
      %2359 = vmatpush1.bf16.msra.mxu0 %v2349
      %2360 = vmatprep.subr.bf16.mxu0 0
      %2361 = vmatpush1.bf16.msra.mxu0 %v2348
      %2362 = vmatprep.subr.bf16.mxu0 0
      %2363 = vmatpush1.bf16.msra.mxu0 %v2347
      %2364 = vmatprep.subr.bf16.mxu0 0
      %2365 = vmatpush1.bf16.msra.mxu0 %v2346
      %2366 = vmatprep.subr.bf16.mxu0 0
      %2367 = vmatpush1.bf16.msra.mxu0 %v2345
      %2368 = vmatprep.subr.bf16.mxu0 0
      %2369 = vmatpush1.bf16.msra.mxu0 %v2344
      %2370 = vmatprep.subr.bf16.mxu0 0
      %2371 = vmatpush1.bf16.msra.mxu0 %v2343
      %2372 = vmatprep.subr.bf16.mxu0 0
      %2373 = vmatpush1.bf16.msra.mxu0 %v2342
      %2374 = vmatprep.subr.bf16.mxu0 0
      %2375 = vmatpush2.bf16.msra.mxu0 0
      %2376 = vmatprep.subr.bf16.mxu0 0
      %2377 = vmatpush2.bf16.msra.mxu0 0
      %2378 = vmatprep.subr.bf16.mxu0 0
      %2379 = vmatpush2.bf16.msra.mxu0 0
      %2380 = vmatprep.subr.bf16.mxu0 0
      %2381 = vmatpush2.bf16.msra.mxu0 0
      %2382 = vmatprep.subr.bf16.mxu0 0
      %2383 = vmatpush2.bf16.msra.mxu0 0
      %2384 = vmatprep.subr.bf16.mxu0 0
      %2385 = vmatpush2.bf16.msra.mxu0 0
      %2386 = vmatprep.subr.bf16.mxu0 0
      %2387 = vmatpush2.bf16.msra.mxu0 0
      %2388 = vmatprep.subr.bf16.mxu0 0
      %2389 = vmatpush2.bf16.msra.mxu0 0
      %2390 = vmatprep.mubr.bf16.mxu0 0
      %2391 = vmatmul.mubr.bf16.gmra.mxu0 %v2302
      %v2392 = vpop.f32.mrf.mxu0
      %v2393 = vadd.f32 0.0, %v2392
      %v2394 = vpop.f32.mrf.mxu0
      %v2395 = vpop.f32.mrf.mxu0
      %v2396 = vadd.f32 0.0, %v2395
      %v2397 = vpop.f32.mrf.mxu0
      %2398 = vmatprep.mubr.bf16.mxu0 0
      %2399 = vmatmul.mubr.bf16.gmra.mxu0 %v2303
      %v2400 = vpop.f32.mrf.mxu0
      %v2401 = vadd.f32 0.0, %v2400
      %v2402 = vpop.f32.mrf.mxu0
      %v2403 = vpop.f32.mrf.mxu0
      %v2404 = vadd.f32 0.0, %v2403
      %v2405 = vpop.f32.mrf.mxu0
      %2406 = vmatprep.mubr.bf16.mxu0 0
      %2407 = vmatmul.mubr.bf16.gmra.mxu0 %v2304
      %v2408 = vpop.f32.mrf.mxu0
      %v2409 = vadd.f32 0.0, %v2408
      %v2410 = vpop.f32.mrf.mxu0
      %v2411 = vpop.f32.mrf.mxu0
      %v2412 = vadd.f32 0.0, %v2411
      %v2413 = vpop.f32.mrf.mxu0
      %2414 = vmatprep.mubr.bf16.mxu0 0
      %2415 = vmatmul.mubr.bf16.gmra.mxu0 %v2305
      %v2416 = vpop.f32.mrf.mxu0
      %v2417 = vadd.f32 0.0, %v2416
      %v2418 = vpop.f32.mrf.mxu0
      %v2419 = vpop.f32.mrf.mxu0
      %v2420 = vadd.f32 0.0, %v2419
      %v2421 = vpop.f32.mrf.mxu0
      %2422 = vdwg.mxu0
      %v2423 = vadd.f32 %v2213, %v2393
      %v2424 = vadd.f32 %v2214, %v2396
      %v2425 = vadd.f32 %v2215, %v2401
      %v2426 = vadd.f32 %v2216, %v2404
      %v2427 = vadd.f32 %v2217, %v2409
      %v2428 = vadd.f32 %v2218, %v2412
      %v2429 = vadd.f32 %v2219, %v2417
      %v2430 = vadd.f32 %v2220, %v2420
      %2431 = vst [vmem:[%s402] sm:$0xff] %v2423
      %2432 = vst [vmem:[%s402 + $0x8] sm:$0xff] %v2424
      %2433 = vst [vmem:[%s402 + $0x10] sm:$0xff] %v2425
      %2434 = vst [vmem:[%s402 + $0x18] sm:$0xff] %v2426
      %2435 = vst [vmem:[%s402 + $0x20] sm:$0xff] %v2427
      %2436 = vst [vmem:[%s402 + $0x28] sm:$0xff] %v2428
      %2437 = vst [vmem:[%s402 + $0x30] sm:$0xff] %v2429
      %2438 = vst [vmem:[%s402 + $0x38] sm:$0xff] %v2430
      %v2439 = vadd.f32 %v2423, %v2424
      %v2440 = vadd.f32 %v2439, %v2425
      %v2441 = vadd.f32 %v2440, %v2426
      %v2442 = vadd.f32 %v2441, %v2427
      %v2443 = vadd.f32 %v2442, %v2428
      %v2444 = vadd.f32 %v2443, %v2429
      %v2445 = vadd.f32 %v2444, %v2430
      %v2446 = vrot.slane %v2445, 4
      %v2447 = vadd.f32 %v2445, %v2446
      %v2448 = vrot.slane %v2447, 2
      %v2449 = vadd.f32 %v2447, %v2448
      %v2450 = vrot.slane %v2449, 1
      %v2451 = vadd.f32 %v2449, %v2450
      %2452 = vst [vmem:[%s410] sm:$0x1] %v2451
      %v2453 = vmul.f32 %v2423, %v2423
      %v2454 = vmul.f32 %v2424, %v2424
      %v2455 = vmul.f32 %v2425, %v2425
      %v2456 = vmul.f32 %v2426, %v2426
      %v2457 = vmul.f32 %v2427, %v2427
      %v2458 = vmul.f32 %v2428, %v2428
      %v2459 = vmul.f32 %v2429, %v2429
      %v2460 = vmul.f32 %v2430, %v2430
      %v2461 = vadd.f32 %v2453, %v2454
      %v2462 = vadd.f32 %v2461, %v2455
      %v2463 = vadd.f32 %v2462, %v2456
      %v2464 = vadd.f32 %v2463, %v2457
      %v2465 = vadd.f32 %v2464, %v2458
      %v2466 = vadd.f32 %v2465, %v2459
      %v2467 = vadd.f32 %v2466, %v2460
      %v2468 = vrot.slane %v2467, 4
      %v2469 = vadd.f32 %v2467, %v2468
      %v2470 = vrot.slane %v2469, 2
      %v2471 = vadd.f32 %v2469, %v2470
      %v2472 = vrot.slane %v2471, 1
      %v2473 = vadd.f32 %v2471, %v2472
      %2474 = vst [vmem:[%s418] sm:$0x1] %v2473
      %s2475 = smul.u32 8, %s23
      %p2476 = scmp.lt.s32.totalorder %s22, 1
      %s2477 = scalar_select %p2476, %s22, 1
      %p2478 = scmp.lt.s32.totalorder %s2475, 7
      %s2479 = scalar_select %p2478, %s2475, 7
      %p2480 = scmp.lt.s32.totalorder %s24, 0
      %s2481 = scalar_select %p2480, %s24, 0
      %s2482 = sadd.s32 %s2481, %s2479
      %s2483 = smul.addr %s2477, 8
      %s2484 = sadd.s32 %s2482, %s2483
      %s2485 = smul.addr %s2484, 8
      %s2486 = scalar_lea.vmem %s3, %s2485
      %s2487 = sadd.s32 %s22, %s23
      %p2488 = scmp.lt.s32.totalorder %s2487, 1
      %s2489 = scalar_select %p2488, %s2487, 1
      %p2490 = scmp.lt.s32.totalorder %s24, 0
      %s2491 = scalar_select %p2490, %s24, 0
      %s2492 = sadd.s32 %s2491, %s2489
      %s2493 = scalar_lea.vmem %s4, %s2492
      %s2494 = sadd.s32 %s22, %s23
      %p2495 = scmp.lt.s32.totalorder %s2494, 1
      %s2496 = scalar_select %p2495, %s2494, 1
      %p2497 = scmp.lt.s32.totalorder %s24, 0
      %s2498 = scalar_select %p2497, %s24, 0
      %s2499 = sadd.s32 %s2498, %s2496
      %s2500 = scalar_lea.vmem %s5, %s2499
      // Predicated region
      $region33: #{block_group_forward.15} parent=31 // pred_check
        %p2501 = pneg %p144
      $region34: #{block_group_forward.15} parent=31 // pred_check_branch
        %2503 = sbr.rel (%p2501) target = $region36
      $region35: #{block_group_forward.15} parent=31 // pred_region
        %s2504 = smul.u32 8, %s23
      $region36: #{block_group_forward.15} parent=31 // pred_fallthru
        _
      // Predicated region
      $region37: #{block_group_forward.15} parent=31 // pred_check
        %p2505 = pneg %p174
      $region38: #{block_group_forward.15} parent=31 // pred_check_branch
        %2507 = sbr.rel (%p2505) target = $region40
      $region39: #{block_group_forward.15} parent=31 // pred_region
        %s2508 = sadd.s32 %s22, %s23
      $region40: #{block_group_forward.15} parent=31 // pred_fallthru
        _
      // Predicated region
      $region41: #{block_group_forward.15} parent=31 // pred_check
        %p2509 = pneg %p204
      $region42: #{block_group_forward.15} parent=31 // pred_check_branch
        %2511 = sbr.rel (%p2509) target = $region44
      $region43: #{block_group_forward.15} parent=31 // pred_region
        %s2512 = sadd.s32 %s22, %s23
      $region44: #{block_group_forward.15} parent=31 // pred_fallthru
        _
    $region32: #{block_group_forward.15} parent=5 // pred_fallthru
      _
    %p2513 = scmp.le.s32.totalorder 2, %s12
    // Predicated region
    $region45: #{block_group_forward.15} parent=5 // pred_check
      %p2514 = pneg %p2513
    $region46: #{block_group_forward.15} parent=5 // pred_check_branch
      %2516 = sbr.rel (%p2514) target = $region48
    $region47: #{block_group_forward.15} parent=5 // pred_region
      %s2517 = ssub.s32 %s12, 2
      // Predicated region
      $region49: #{block_group_forward.15} parent=47 // pred_check
        %p2518 = pneg %p150
      $region50: #{block_group_forward.15} parent=47 // pred_check_branch
        %2520 = sbr.rel (%p2518) target = $region52
      $region51: #{block_group_forward.15} parent=47 // pred_region
        %s2521 = smul.u32 8, %s26
        %p2522 = scmp.lt.s32.totalorder %s25, 1
        %s2523 = scalar_select %p2522, %s25, 1
        %p2524 = scmp.lt.s32.totalorder %s2521, 7
        %s2525 = scalar_select %p2524, %s2521, 7
        %p2526 = scmp.lt.s32.totalorder %s27, 0
        %s2527 = scalar_select %p2526, %s27, 0
        %s2528 = sadd.s32 %s2527, %s2525
        %s2529 = smul.addr %s2523, 8
        %s2530 = sadd.s32 %s2528, %s2529
        %s2531 = smul.addr %s2530, 8
        %s2532 = scalar_lea.vmem %s3, %s2531
      $region52: #{block_group_forward.15} parent=47 // pred_fallthru
        _
      // Predicated region
      $region53: #{block_group_forward.15} parent=47 // pred_check
        %p2533 = pneg %p180
      $region54: #{block_group_forward.15} parent=47 // pred_check_branch
        %2535 = sbr.rel (%p2533) target = $region56
      $region55: #{block_group_forward.15} parent=47 // pred_region
        %s2536 = sadd.s32 %s25, %s26
        %p2537 = scmp.lt.s32.totalorder %s2536, 1
        %s2538 = scalar_select %p2537, %s2536, 1
        %p2539 = scmp.lt.s32.totalorder %s27, 0
        %s2540 = scalar_select %p2539, %s27, 0
        %s2541 = sadd.s32 %s2540, %s2538
        %s2542 = scalar_lea.vmem %s4, %s2541
      $region56: #{block_group_forward.15} parent=47 // pred_fallthru
        _
      // Predicated region
      $region57: #{block_group_forward.15} parent=47 // pred_check
        %p2543 = pneg %p210
      $region58: #{block_group_forward.15} parent=47 // pred_check_branch
        %2545 = sbr.rel (%p2543) target = $region60
      $region59: #{block_group_forward.15} parent=47 // pred_region
        %s2546 = sadd.s32 %s25, %s26
        %p2547 = scmp.lt.s32.totalorder %s2546, 1
        %s2548 = scalar_select %p2547, %s2546, 1
        %p2549 = scmp.lt.s32.totalorder %s27, 0
        %s2550 = scalar_select %p2549, %s27, 0
        %s2551 = sadd.s32 %s2550, %s2548
        %s2552 = scalar_lea.vmem %s5, %s2551
      $region60: #{block_group_forward.15} parent=47 // pred_fallthru
        _
    $region48: #{block_group_forward.15} parent=5 // pred_fallthru
      _
  $region6: #{block_group_forward.15} parent=0 // loop_footer
    %s16 = sadd.s32 1, %s12
  $region7: #{block_group_forward.15} parent=0 // loop_footer_branch
    %11 = sbr.rel target = $region3
  $region8: #{block_group_forward.15} parent=0 // loop_exit
    _

</llo_original>
